<compile_context>
chip_gen: v7x
topology: tpu7x:2x2x1
jax: 0.10.0
libtpu: 0.0.40
codegen_flags: <defaults>
</compile_context>

<pallas_src>
import functools

import jax
import jax.numpy as jnp
import numpy as np
from jax import lax
from jax.experimental import pallas as pl
from jax.experimental.pallas import tpu as pltpu  # noqa: F401

D_MODEL = 32
N_HEADS = 4
D_K = D_MODEL // N_HEADS
D_FF = 64
LN_EPS = 1e-6

# ---------------- packed weight slab layout (rows 8/32-aligned) -------------
R_SQKV = 0                      # (D, 3D) self-attn Q|K|V (Q pre-scaled)
R_SWO = R_SQKV + D_MODEL        # (D, D)
R_AWQ = R_SWO + D_MODEL         # (D, D)  audio Q (pre-scaled)
R_AWKV = R_AWQ + D_MODEL        # (D, 2D) audio K|V
R_AWO = R_AWKV + D_MODEL        # (D, D)
R_TWQ = R_AWO + D_MODEL         # (D, D)  text Q (pre-scaled)
R_TWKV = R_TWQ + D_MODEL        # (D, 2D) text K|V
R_TWO = R_TWKV + D_MODEL        # (D, D)
R_FW1 = R_TWO + D_MODEL         # (D, D_FF)
R_FW2 = R_FW1 + D_MODEL         # (D_FF, D)
W_ROWS = R_FW2 + D_FF
W_COLS = 3 * D_MODEL

# ---------------- packed bias / LayerNorm slab layout -----------------------
# rows 0..7: LN gamma/beta for sublayers 0..3 (gamma at 2i, beta at 2i+1)
P_SBQKV, P_SBO = 8, 9
P_ABQ, P_ABKV, P_ABO = 10, 11, 12
P_TBQ, P_TBKV, P_TBO = 13, 14, 15
P_FB1, P_FB2 = 16, 17
P_ROWS = 18
P_COLS = 3 * D_MODEL


# ----------------------------- fused Pallas kernel --------------------------


def _mix3_kernel(x_ref, ma_ref, mt_ref, sb_ref, ab_ref, tb_ref, w_ref, p_ref,
                 out_ref, *, bsz, tq, ta_pad, tt_pad):
    d, nh, dk, dff = D_MODEL, N_HEADS, D_K, D_FF

    def prow(row, width):
        # (1, width) bias / LN row out of the packed parameter slab.
        return p_ref[row:row + 1, :width]

    def layernorm(v, idx):
        # One stacked lane-reduction gives mean and E[x^2]; var = E[x^2]-mu^2.
        n = v.shape[0]
        st = jnp.concatenate([v, v * v], axis=0)            # (2n, d)
        s = jnp.sum(st, axis=-1, keepdims=True) * (1.0 / d)  # (2n, 1)
        mu, ex2 = s[:n], s[n:]
        inv = lax.rsqrt(ex2 - mu * mu + LN_EPS)
        return (v - mu) * inv * prow(2 * idx, d) + prow(2 * idx + 1, d)

    def mha(q_all, kv_all, kcol, vcol, tk, mask_ref, wo_row, bo_row):
        # q_all: (bsz*tq, >=d) with Q in columns [0, d)  (already scaled)
        # kv_all: (bsz*tk, ...) with K at kcol, V at vcol
        outs = []
        for b in range(bsz):                         # static unroll, bsz small
            qb = q_all[b * tq:(b + 1) * tq]
            kvb = kv_all[b * tk:(b + 1) * tk]
            mb = mask_ref[b]                          # (Mq, tk) additive bias
            s_heads = []
            for h in range(nh):                       # static unroll
                qh = qb[:, h * dk:(h + 1) * dk]
                kh = kvb[:, kcol + h * dk:kcol + (h + 1) * dk]
                s = lax.dot_general(qh, kh, (((1,), (1,)), ((), ())),
                                    preferred_element_type=jnp.float32)
                s_heads.append(s + mb)
            # heads stacked along sublanes -> one max/exp/sum/recip per layer
            s_all = jnp.concatenate(s_heads, axis=0)          # (nh*tq, tk)
            e = jnp.exp(s_all - jnp.max(s_all, axis=-1, keepdims=True))
            pr = e * pl.reciprocal(jnp.sum(e, axis=-1, keepdims=True))
            ob = jnp.zeros((tq, d), jnp.float32)
            for h in range(nh):
                ph = pr[h * tq:(h + 1) * tq]                  # aligned view
                vh = kvb[:, vcol + h * dk:vcol + (h + 1) * dk]
                head = jnp.dot(ph, vh, preferred_element_type=jnp.float32)
                ob = ob + jnp.dot(
                    head, w_ref[wo_row + h * dk:wo_row + (h + 1) * dk, :d],
                    preferred_element_type=jnp.float32)
            outs.append(ob)
        return jnp.concatenate(outs, axis=0) + prow(bo_row, d)

    x = x_ref[...]          # (bsz*tq, d)
    ma = ma_ref[...]        # (bsz*ta_pad, d)
    mt = mt_ref[...]        # (bsz*tt_pad, d)

    # ---- sublayer 0: self attention (q = k = v = LayerNorm(x)) ----
    xn = layernorm(x, 0)
    qkv = jnp.dot(xn, w_ref[R_SQKV:R_SQKV + d, :3 * d],
                  preferred_element_type=jnp.float32) + prow(P_SBQKV, 3 * d)
    x = x + mha(qkv, qkv, d, 2 * d, tq, sb_ref, R_SWO, P_SBO)

    # ---- sublayer 1: audio cross attention ----
    xn = layernorm(x, 1)
    q = jnp.dot(xn, w_ref[R_AWQ:R_AWQ + d, :d],
                preferred_element_type=jnp.float32) + prow(P_ABQ, d)
    kv = jnp.dot(ma, w_ref[R_AWKV:R_AWKV + d, :2 * d],
                 preferred_element_type=jnp.float32) + prow(P_ABKV, 2 * d)
    x = x + mha(q, kv, 0, d, ta_pad, ab_ref, R_AWO, P_ABO)

    # ---- sublayer 2: text cross attention ----
    xn = layernorm(x, 2)
    q = jnp.dot(xn, w_ref[R_TWQ:R_TWQ + d, :d],
                preferred_element_type=jnp.float32) + prow(P_TBQ, d)
    kv = jnp.dot(mt, w_ref[R_TWKV:R_TWKV + d, :2 * d],
                 preferred_element_type=jnp.float32) + prow(P_TBKV, 2 * d)
    x = x + mha(q, kv, 0, d, tt_pad, tb_ref, R_TWO, P_TBO)

    # ---- sublayer 3: position-wise feed forward ----
    xn = layernorm(x, 3)
    hmid = jnp.maximum(
        jnp.dot(xn, w_ref[R_FW1:R_FW1 + d, :dff],
                preferred_element_type=jnp.float32) + prow(P_FB1, dff), 0.0)
    x = x + jnp.dot(hmid, w_ref[R_FW2:R_FW2 + dff, :d],
                    preferred_element_type=jnp.float32) + prow(P_FB2, d)

    out_ref[...] = x


# ----------------------------- parameter packing ----------------------------


def pack_mix3_params(params):
    """Pack all weights/biases into two slabs.  Call once, reuse per forward."""
    scale = 1.0 / float(np.sqrt(D_K))
    sg, sb_, swq, sbq, swk, sbk, swv, sbv, swo, sbo = params["self_attn"]
    ag, ab_, awq, abq, awk, abk, awv, abv, awo, abo = params["src_attn_audio"]
    tg, tb_, twq, tbq, twk, tbk, twv, tbv, two, tbo = params["src_attn_text"]
    fg, fb_, fw1, fb1, fw2, fb2 = params["feed_forward"]

    def put(slab, row, mat):
        m = np.asarray(mat, np.float32)
        slab[row:row + m.shape[0], :m.shape[1]] = m

    w = np.zeros((W_ROWS, W_COLS), np.float32)
    put(w, R_SQKV, np.concatenate(
        [np.asarray(swq) * scale, np.asarray(swk), np.asarray(swv)], axis=1))
    put(w, R_SWO, swo)
    put(w, R_AWQ, np.asarray(awq) * scale)
    put(w, R_AWKV, np.concatenate([np.asarray(awk), np.asarray(awv)], axis=1))
    put(w, R_AWO, awo)
    put(w, R_TWQ, np.asarray(twq) * scale)
    put(w, R_TWKV, np.concatenate([np.asarray(twk), np.asarray(twv)], axis=1))
    put(w, R_TWO, two)
    put(w, R_FW1, fw1)
    put(w, R_FW2, fw2)

    p = np.zeros((P_ROWS, P_COLS), np.float32)
    for i, (g, b) in enumerate([(sg, sb_), (ag, ab_), (tg, tb_), (fg, fb_)]):
        put(p, 2 * i, g)
        put(p, 2 * i + 1, b)
    put(p, P_SBQKV, np.concatenate(
        [np.asarray(sbq) * scale, np.asarray(sbk), np.asarray(sbv)], axis=1))
    put(p, P_SBO, sbo)
    put(p, P_ABQ, np.asarray(abq) * scale)
    put(p, P_ABKV, np.concatenate([np.asarray(abk), np.asarray(abv)], axis=1))
    put(p, P_ABO, abo)
    put(p, P_TBQ, np.asarray(tbq) * scale)
    put(p, P_TBKV, np.concatenate([np.asarray(tbk), np.asarray(tbv)], axis=1))
    put(p, P_TBO, tbo)
    put(p, P_FB1, fb1)
    put(p, P_FB2, fb2)

    return jnp.asarray(w), jnp.asarray(p)


# ----------------------------- wrapper ---------------------------------------


def _round_up(n, m):
    return -(-n // m) * m


def mix3_att_layer(x, memory_audio, memory_text,
                   src_mask_audio, src_mask_text, self_mask, packed):
    """Forward pass of Mix3AttLayer (dropout = identity), one fused kernel."""
    w_slab, p_slab = packed
    B, Tq, D = x.shape
    Ta, Tt = memory_audio.shape[1], memory_text.shape[1]
    Ta_p, Tt_p = _round_up(Ta, 8), _round_up(Tt, 8)

    x2 = x.reshape(B * Tq, D).astype(jnp.float32)
    ma2 = jnp.pad(memory_audio.astype(jnp.float32),
                  ((0, 0), (0, Ta_p - Ta), (0, 0))).reshape(B * Ta_p, D)
    mt2 = jnp.pad(memory_text.astype(jnp.float32),
                  ((0, 0), (0, Tt_p - Tt), (0, 0))).reshape(B * Tt_p, D)

    # Additive biases at their NATURAL shapes (no query-axis broadcast in HBM).
    sbias = jnp.where(self_mask == 0, -1e9, 0.0).astype(jnp.float32)
    abias = jnp.where(src_mask_audio == 0, -1e9, 0.0).astype(jnp.float32)
    tbias = jnp.where(src_mask_text == 0, -1e9, 0.0).astype(jnp.float32)
    # Padded keys get -1e30 -> exactly zero probability after exp underflow.
    abias = jnp.pad(abias, ((0, 0), (0, 0), (0, Ta_p - Ta)),
                    constant_values=-1e30)
    tbias = jnp.pad(tbias, ((0, 0), (0, 0), (0, Tt_p - Tt)),
                    constant_values=-1e30)

    kernel = functools.partial(_mix3_kernel, bsz=B, tq=Tq,
                               ta_pad=Ta_p, tt_pad=Tt_p)
    out = pl.pallas_call(
        kernel,
        out_shape=jax.ShapeDtypeStruct((B * Tq, D), jnp.float32),
    )(x2, ma2, mt2, sbias, abias, tbias, w_slab, p_slab)
    return out.reshape(B, Tq, D)


# ----------------------------- parameters ------------------------------------


def _linear(key, d_in, d_out):
    k1, k2 = jax.random.split(key)
    w = jax.random.normal(k1, (d_in, d_out), jnp.float32) / jnp.sqrt(float(d_in))
    b = 0.01 * jax.random.normal(k2, (1, d_out), jnp.float32)
    return w, b


def _attn_params(key):
    ks = jax.random.split(key, 4)
    gamma = jnp.ones((1, D_MODEL), jnp.float32)
    beta = jnp.zeros((1, D_MODEL), jnp.float32)
    wq, bq = _linear(ks[0], D_MODEL, D_MODEL)
    wk, bk = _linear(ks[1], D_MODEL, D_MODEL)
    wv, bv = _linear(ks[2], D_MODEL, D_MODEL)
    wo, bo = _linear(ks[3], D_MODEL, D_MODEL)
    return (gamma, beta, wq, bq, wk, bk, wv, bv, wo, bo)


def _ffn_params(key):
    k1, k2 = jax.random.split(key)
    gamma = jnp.ones((1, D_MODEL), jnp.float32)
    beta = jnp.zeros((1, D_MODEL), jnp.float32)
    w1, b1 = _linear(k1, D_MODEL, D_FF)
    w2, b2 = _linear(k2, D_FF, D_MODEL)
    return (gamma, beta, w1, b1, w2, b2)


def init_params(key):
    k0, k1, k2, k3 = jax.random.split(key, 4)
    return {
        "self_attn": _attn_params(k0),
        "src_attn_audio": _attn_params(k1),
        "src_attn_text": _attn_params(k2),
        "feed_forward": _ffn_params(k3),
    }


# ----------------------------- pure-JAX reference ----------------------------
# Faithful to the PyTorch module: SublayerConnection = x + sublayer(LN(x));
# self-attn passes the *normed* x as q, k and v.


def _ref_layernorm(x, gamma, beta):
    mu = jnp.mean(x, axis=-1, keepdims=True)
    var = jnp.mean((x - mu) ** 2, axis=-1, keepdims=True)
    return (x - mu) * lax.rsqrt(var + LN_EPS) * gamma + beta


def _ref_attn_sublayer(x, key_src, mask, p, self_attention):
    gamma, beta, wq, bq, wk, bk, wv, bv, wo, bo = p
    B, Tq, D = x.shape
    xn = _ref_layernorm(x, gamma, beta)
    kv_in = xn if self_attention else key_src
    Tk = kv_in.shape[1]
    q = xn @ wq + bq
    k = kv_in @ wk + bk
    v = kv_in @ wv + bv
    qh = q.reshape(B, Tq, N_HEADS, D_K).transpose(0, 2, 1, 3)
    kh = k.reshape(B, Tk, N_HEADS, D_K).transpose(0, 2, 1, 3)
    vh = v.reshape(B, Tk, N_HEADS, D_K).transpose(0, 2, 1, 3)
    s = jnp.einsum("bhqd,bhkd->bhqk", qh, kh) / jnp.sqrt(float(D_K))
    s = jnp.where(mask[:, None, :, :] == 0.0, -1e9, s)
    pmat = jax.nn.softmax(s, axis=-1)
    o = jnp.einsum("bhqk,bhkd->bhqd", pmat, vh)
    o = o.transpose(0, 2, 1, 3).reshape(B, Tq, D)
    return x + o @ wo + bo


def _ref_ffn_sublayer(x, p):
    gamma, beta, w1, b1, w2, b2 = p
    xn = _ref_layernorm(x, gamma, beta)
    return x + jnp.maximum(xn @ w1 + b1, 0.0) @ w2 + b2


def mix3_att_layer_ref(x, ma, mt, mask_a, mask_t, self_mask, params):
    x = _ref_attn_sublayer(x, x, self_mask, params["self_attn"], True)
    x = _ref_attn_sublayer(x, ma, mask_a, params["src_attn_audio"], False)
    x = _ref_attn_sublayer(x, mt, mask_t, params["src_attn_text"], False)
    return _ref_ffn_sublayer(x, params["feed_forward"])


# ----------------------------- main -------------------------------------------


if __name__ == "__main__":
    B, Tq, Ta, Tt = 2, 8, 12, 10

    key = jax.random.PRNGKey(0)
    kx, ka, kt, kma, kmt, kp = jax.random.split(key, 6)

    x = jax.random.normal(kx, (B, Tq, D_MODEL), jnp.float32)
    memory_audio = jax.random.normal(ka, (B, Ta, D_MODEL), jnp.float32)
    memory_text = jax.random.normal(kt, (B, Tt, D_MODEL), jnp.float32)

    # causal self mask (per batch), key-level keep/drop src masks (1=attend).
    self_mask = jnp.broadcast_to(
        jnp.tril(jnp.ones((Tq, Tq), jnp.float32)), (B, Tq, Tq))
    src_mask_audio = (jax.random.uniform(kma, (B, 1, Ta)) > 0.2).astype(jnp.float32)
    src_mask_text = (jax.random.uniform(kmt, (B, 1, Tt)) > 0.2).astype(jnp.float32)
    # keep at least one key so no row is fully masked (degenerate case).
    src_mask_audio = src_mask_audio.at[..., 0].set(1.0)
    src_mask_text = src_mask_text.at[..., 0].set(1.0)

    params = init_params(kp)
    packed = pack_mix3_params(params)   # packed ONCE, reused every forward

    out = mix3_att_layer(x, memory_audio, memory_text,
                         src_mask_audio, src_mask_text, self_mask, packed)
    out = jax.block_until_ready(out)

    ref = mix3_att_layer_ref(x, memory_audio, memory_text,
                             src_mask_audio, src_mask_text, self_mask, params)
    # Tolerance covers MXU f32 matmul pass differences vs. XLA default precision.
    np.testing.assert_allclose(np.asarray(out), np.asarray(ref),
                               rtol=5e-3, atol=5e-3)

    print("KERNEL_OK")
</pallas_src>

<mosaic_0001>
module attributes {stable_mosaic.version = 11 : i64} {
  func.func @_mix3_kernel(%arg0: memref<16x32xf32, #tpu.memory_space<vmem>>, %arg1: memref<32x32xf32, #tpu.memory_space<vmem>>, %arg2: memref<32x32xf32, #tpu.memory_space<vmem>>, %arg3: memref<2x8x8xf32, #tpu.memory_space<vmem>>, %arg4: memref<2x1x16xf32, #tpu.memory_space<vmem>>, %arg5: memref<2x1x16xf32, #tpu.memory_space<vmem>>, %arg6: memref<352x96xf32, #tpu.memory_space<vmem>>, %arg7: memref<18x96xf32, #tpu.memory_space<vmem>>, %arg8: memref<16x32xf32, #tpu.memory_space<vmem>>) attributes {dimension_semantics = [], scalar_prefetch = 0 : i64, scratch_operands = 0 : i64, tpu.core_type = #tpu.core_type<tc>} {
    %c0 = arith.constant 0 : index
    %c0_0 = arith.constant 0 : index
    %0 = vector.load %arg0[%c0, %c0_0] : memref<16x32xf32, #tpu.memory_space<vmem>>, vector<16x32xf32>
    %c0_1 = arith.constant 0 : index
    %c0_2 = arith.constant 0 : index
    %1 = vector.load %arg1[%c0_1, %c0_2] : memref<32x32xf32, #tpu.memory_space<vmem>>, vector<32x32xf32>
    %c0_3 = arith.constant 0 : index
    %c0_4 = arith.constant 0 : index
    %2 = vector.load %arg2[%c0_3, %c0_4] : memref<32x32xf32, #tpu.memory_space<vmem>>, vector<32x32xf32>
    %3 = arith.mulf %0, %0 : vector<16x32xf32>
    %4 = tpu.concatenate %0, %3 in 0 : vector<16x32xf32>, vector<16x32xf32> -> vector<32x32xf32>
    %cst = arith.constant dense<0.000000e+00> : vector<32xf32>
    %5 = vector.multi_reduction <add>, %4, %cst [1] : vector<32x32xf32> to vector<32xf32>
    %6 = vector.shape_cast %5 : vector<32xf32> to vector<32x1xf32>
    %cst_5 = arith.constant 3.125000e-02 : f32
    %7 = vector.broadcast %cst_5 : f32 to vector<32x1xf32>
    %8 = arith.mulf %6, %7 : vector<32x1xf32>
    %9 = vector.extract_strided_slice %8 {offsets = [0, 0], sizes = [16, 1], strides = [1, 1]} : vector<32x1xf32> to vector<16x1xf32>
    %10 = vector.extract_strided_slice %8 {offsets = [16, 0], sizes = [16, 1], strides = [1, 1]} : vector<32x1xf32> to vector<16x1xf32>
    %11 = arith.mulf %9, %9 : vector<16x1xf32>
    %12 = arith.subf %10, %11 : vector<16x1xf32>
    %cst_6 = arith.constant 9.99999997E-7 : f32
    %13 = vector.broadcast %cst_6 : f32 to vector<16x1xf32>
    %14 = arith.addf %12, %13 : vector<16x1xf32>
    %15 = math.rsqrt %14 : vector<16x1xf32>
    %16 = vector.broadcast %9 : vector<16x1xf32> to vector<16x32xf32>
    %17 = arith.subf %0, %16 : vector<16x32xf32>
    %18 = vector.broadcast %15 : vector<16x1xf32> to vector<16x32xf32>
    %19 = arith.mulf %17, %18 : vector<16x32xf32>
    %c0_7 = arith.constant 0 : index
    %c0_8 = arith.constant 0 : index
    %20 = vector.load %arg7[%c0_7, %c0_8] : memref<18x96xf32, #tpu.memory_space<vmem>>, vector<1x32xf32>
    %21 = vector.broadcast %20 : vector<1x32xf32> to vector<16x32xf32>
    %22 = arith.mulf %19, %21 : vector<16x32xf32>
    %c1 = arith.constant 1 : index
    %c0_9 = arith.constant 0 : index
    %23 = vector.load %arg7[%c1, %c0_9] : memref<18x96xf32, #tpu.memory_space<vmem>>, vector<1x32xf32>
    %24 = vector.broadcast %23 : vector<1x32xf32> to vector<16x32xf32>
    %25 = arith.addf %22, %24 : vector<16x32xf32>
    %c0_10 = arith.constant 0 : index
    %c0_11 = arith.constant 0 : index
    %26 = vector.load %arg6[%c0_10, %c0_11] : memref<352x96xf32, #tpu.memory_space<vmem>>, vector<32x96xf32>
    %cst_12 = arith.constant dense<0.000000e+00> : vector<16x96xf32>
    %27 = tpu.matmul %25, %26, %cst_12 {dimension_numbers = #tpu.dot_dimension_numbers<[1], [0], [0], [1], [0, 0, 1, 1], [], []>} : vector<16x32xf32>, vector<32x96xf32>, vector<16x96xf32> -> vector<16x96xf32>
    %c8 = arith.constant 8 : index
    %c0_13 = arith.constant 0 : index
    %28 = vector.load %arg7[%c8, %c0_13] : memref<18x96xf32, #tpu.memory_space<vmem>>, vector<1x96xf32>
    %29 = vector.broadcast %28 : vector<1x96xf32> to vector<16x96xf32>
    %30 = arith.addf %27, %29 : vector<16x96xf32>
    %31 = vector.extract_strided_slice %30 {offsets = [0, 0], sizes = [8, 96], strides = [1, 1]} : vector<16x96xf32> to vector<8x96xf32>
    %32 = vector.extract_strided_slice %30 {offsets = [0, 0], sizes = [8, 96], strides = [1, 1]} : vector<16x96xf32> to vector<8x96xf32>
    %c0_14 = arith.constant 0 : index
    %c0_15 = arith.constant 0 : index
    %c0_16 = arith.constant 0 : index
    %33 = vector.load %arg3[%c0_14, %c0_15, %c0_16] : memref<2x8x8xf32, #tpu.memory_space<vmem>>, vector<1x8x8xf32>
    %34 = vector.shape_cast %33 : vector<1x8x8xf32> to vector<8x8xf32>
    %35 = vector.extract_strided_slice %31 {offsets = [0, 0], sizes = [8, 8], strides = [1, 1]} : vector<8x96xf32> to vector<8x8xf32>
    %36 = vector.extract_strided_slice %32 {offsets = [0, 32], sizes = [8, 8], strides = [1, 1]} : vector<8x96xf32> to vector<8x8xf32>
    %cst_17 = arith.constant dense<0.000000e+00> : vector<8x8xf32>
    %37 = tpu.matmul %35, %36, %cst_17 {dimension_numbers = #tpu.dot_dimension_numbers<[1], [1], [0], [0], [0, 0, 1, 0], [], []>} : vector<8x8xf32>, vector<8x8xf32>, vector<8x8xf32> -> vector<8x8xf32>
    %38 = arith.addf %37, %34 : vector<8x8xf32>
    %39 = vector.extract_strided_slice %31 {offsets = [0, 8], sizes = [8, 8], strides = [1, 1]} : vector<8x96xf32> to vector<8x8xf32>
    %40 = vector.extract_strided_slice %32 {offsets = [0, 40], sizes = [8, 8], strides = [1, 1]} : vector<8x96xf32> to vector<8x8xf32>
    %cst_18 = arith.constant dense<0.000000e+00> : vector<8x8xf32>
    %41 = tpu.matmul %39, %40, %cst_18 {dimension_numbers = #tpu.dot_dimension_numbers<[1], [1], [0], [0], [0, 0, 1, 0], [], []>} : vector<8x8xf32>, vector<8x8xf32>, vector<8x8xf32> -> vector<8x8xf32>
    %42 = arith.addf %41, %34 : vector<8x8xf32>
    %43 = vector.extract_strided_slice %31 {offsets = [0, 16], sizes = [8, 8], strides = [1, 1]} : vector<8x96xf32> to vector<8x8xf32>
    %44 = vector.extract_strided_slice %32 {offsets = [0, 48], sizes = [8, 8], strides = [1, 1]} : vector<8x96xf32> to vector<8x8xf32>
    %cst_19 = arith.constant dense<0.000000e+00> : vector<8x8xf32>
    %45 = tpu.matmul %43, %44, %cst_19 {dimension_numbers = #tpu.dot_dimension_numbers<[1], [1], [0], [0], [0, 0, 1, 0], [], []>} : vector<8x8xf32>, vector<8x8xf32>, vector<8x8xf32> -> vector<8x8xf32>
    %46 = arith.addf %45, %34 : vector<8x8xf32>
    %47 = vector.extract_strided_slice %31 {offsets = [0, 24], sizes = [8, 8], strides = [1, 1]} : vector<8x96xf32> to vector<8x8xf32>
    %48 = vector.extract_strided_slice %32 {offsets = [0, 56], sizes = [8, 8], strides = [1, 1]} : vector<8x96xf32> to vector<8x8xf32>
    %cst_20 = arith.constant dense<0.000000e+00> : vector<8x8xf32>
    %49 = tpu.matmul %47, %48, %cst_20 {dimension_numbers = #tpu.dot_dimension_numbers<[1], [1], [0], [0], [0, 0, 1, 0], [], []>} : vector<8x8xf32>, vector<8x8xf32>, vector<8x8xf32> -> vector<8x8xf32>
    %50 = arith.addf %49, %34 : vector<8x8xf32>
    %51 = tpu.concatenate %38, %42, %46, %50 in 0 : vector<8x8xf32>, vector<8x8xf32>, vector<8x8xf32>, vector<8x8xf32> -> vector<32x8xf32>
    %cst_21 = arith.constant dense<0xFF800000> : vector<32xf32>
    %52 = vector.multi_reduction <maximumf>, %51, %cst_21 [1] : vector<32x8xf32> to vector<32xf32>
    %53 = vector.shape_cast %52 : vector<32xf32> to vector<32x1xf32>
    %54 = vector.broadcast %53 : vector<32x1xf32> to vector<32x8xf32>
    %55 = arith.subf %51, %54 : vector<32x8xf32>
    %56 = math.exp %55 : vector<32x8xf32>
    %cst_22 = arith.constant dense<0.000000e+00> : vector<32xf32>
    %57 = vector.multi_reduction <add>, %56, %cst_22 [1] : vector<32x8xf32> to vector<32xf32>
    %58 = vector.shape_cast %57 : vector<32xf32> to vector<32x1xf32>
    %59 = tpu.reciprocal %58 : vector<32x1xf32> -> vector<32x1xf32>
    %60 = vector.broadcast %59 : vector<32x1xf32> to vector<32x8xf32>
    %61 = arith.mulf %56, %60 : vector<32x8xf32>
    %cst_23 = arith.constant 0.000000e+00 : f32
    %62 = vector.broadcast %cst_23 : f32 to vector<8x32xf32>
    %63 = vector.extract_strided_slice %61 {offsets = [0, 0], sizes = [8, 8], strides = [1, 1]} : vector<32x8xf32> to vector<8x8xf32>
    %64 = vector.extract_strided_slice %32 {offsets = [0, 64], sizes = [8, 8], strides = [1, 1]} : vector<8x96xf32> to vector<8x8xf32>
    %cst_24 = arith.constant dense<0.000000e+00> : vector<8x8xf32>
    %65 = tpu.matmul %63, %64, %cst_24 {dimension_numbers = #tpu.dot_dimension_numbers<[1], [0], [0], [1], [0, 0, 1, 1], [], []>} : vector<8x8xf32>, vector<8x8xf32>, vector<8x8xf32> -> vector<8x8xf32>
    %c32 = arith.constant 32 : index
    %c0_25 = arith.constant 0 : index
    %66 = vector.load %arg6[%c32, %c0_25] : memref<352x96xf32, #tpu.memory_space<vmem>>, vector<8x32xf32>
    %cst_26 = arith.constant dense<0.000000e+00> : vector<8x32xf32>
    %67 = tpu.matmul %65, %66, %cst_26 {dimension_numbers = #tpu.dot_dimension_numbers<[1], [0], [0], [1], [0, 0, 1, 1], [], []>} : vector<8x8xf32>, vector<8x32xf32>, vector<8x32xf32> -> vector<8x32xf32>
    %68 = arith.addf %62, %67 : vector<8x32xf32>
    %69 = vector.extract_strided_slice %61 {offsets = [8, 0], sizes = [8, 8], strides = [1, 1]} : vector<32x8xf32> to vector<8x8xf32>
    %70 = vector.extract_strided_slice %32 {offsets = [0, 72], sizes = [8, 8], strides = [1, 1]} : vector<8x96xf32> to vector<8x8xf32>
    %cst_27 = arith.constant dense<0.000000e+00> : vector<8x8xf32>
    %71 = tpu.matmul %69, %70, %cst_27 {dimension_numbers = #tpu.dot_dimension_numbers<[1], [0], [0], [1], [0, 0, 1, 1], [], []>} : vector<8x8xf32>, vector<8x8xf32>, vector<8x8xf32> -> vector<8x8xf32>
    %c40 = arith.constant 40 : index
    %c0_28 = arith.constant 0 : index
    %72 = vector.load %arg6[%c40, %c0_28] : memref<352x96xf32, #tpu.memory_space<vmem>>, vector<8x32xf32>
    %cst_29 = arith.constant dense<0.000000e+00> : vector<8x32xf32>
    %73 = tpu.matmul %71, %72, %cst_29 {dimension_numbers = #tpu.dot_dimension_numbers<[1], [0], [0], [1], [0, 0, 1, 1], [], []>} : vector<8x8xf32>, vector<8x32xf32>, vector<8x32xf32> -> vector<8x32xf32>
    %74 = arith.addf %68, %73 : vector<8x32xf32>
    %75 = vector.extract_strided_slice %61 {offsets = [16, 0], sizes = [8, 8], strides = [1, 1]} : vector<32x8xf32> to vector<8x8xf32>
    %76 = vector.extract_strided_slice %32 {offsets = [0, 80], sizes = [8, 8], strides = [1, 1]} : vector<8x96xf32> to vector<8x8xf32>
    %cst_30 = arith.constant dense<0.000000e+00> : vector<8x8xf32>
    %77 = tpu.matmul %75, %76, %cst_30 {dimension_numbers = #tpu.dot_dimension_numbers<[1], [0], [0], [1], [0, 0, 1, 1], [], []>} : vector<8x8xf32>, vector<8x8xf32>, vector<8x8xf32> -> vector<8x8xf32>
    %c48 = arith.constant 48 : index
    %c0_31 = arith.constant 0 : index
    %78 = vector.load %arg6[%c48, %c0_31] : memref<352x96xf32, #tpu.memory_space<vmem>>, vector<8x32xf32>
    %cst_32 = arith.constant dense<0.000000e+00> : vector<8x32xf32>
    %79 = tpu.matmul %77, %78, %cst_32 {dimension_numbers = #tpu.dot_dimension_numbers<[1], [0], [0], [1], [0, 0, 1, 1], [], []>} : vector<8x8xf32>, vector<8x32xf32>, vector<8x32xf32> -> vector<8x32xf32>
    %80 = arith.addf %74, %79 : vector<8x32xf32>
    %81 = vector.extract_strided_slice %61 {offsets = [24, 0], sizes = [8, 8], strides = [1, 1]} : vector<32x8xf32> to vector<8x8xf32>
    %82 = vector.extract_strided_slice %32 {offsets = [0, 88], sizes = [8, 8], strides = [1, 1]} : vector<8x96xf32> to vector<8x8xf32>
    %cst_33 = arith.constant dense<0.000000e+00> : vector<8x8xf32>
    %83 = tpu.matmul %81, %82, %cst_33 {dimension_numbers = #tpu.dot_dimension_numbers<[1], [0], [0], [1], [0, 0, 1, 1], [], []>} : vector<8x8xf32>, vector<8x8xf32>, vector<8x8xf32> -> vector<8x8xf32>
    %c56 = arith.constant 56 : index
    %c0_34 = arith.constant 0 : index
    %84 = vector.load %arg6[%c56, %c0_34] : memref<352x96xf32, #tpu.memory_space<vmem>>, vector<8x32xf32>
    %cst_35 = arith.constant dense<0.000000e+00> : vector<8x32xf32>
    %85 = tpu.matmul %83, %84, %cst_35 {dimension_numbers = #tpu.dot_dimension_numbers<[1], [0], [0], [1], [0, 0, 1, 1], [], []>} : vector<8x8xf32>, vector<8x32xf32>, vector<8x32xf32> -> vector<8x32xf32>
    %86 = arith.addf %80, %85 : vector<8x32xf32>
    %87 = vector.extract_strided_slice %30 {offsets = [8, 0], sizes = [8, 96], strides = [1, 1]} : vector<16x96xf32> to vector<8x96xf32>
    %88 = vector.extract_strided_slice %30 {offsets = [8, 0], sizes = [8, 96], strides = [1, 1]} : vector<16x96xf32> to vector<8x96xf32>
    %c1_36 = arith.constant 1 : index
    %c0_37 = arith.constant 0 : index
    %c0_38 = arith.constant 0 : index
    %89 = vector.load %arg3[%c1_36, %c0_37, %c0_38] : memref<2x8x8xf32, #tpu.memory_space<vmem>>, vector<1x8x8xf32>
    %90 = vector.shape_cast %89 : vector<1x8x8xf32> to vector<8x8xf32>
    %91 = vector.extract_strided_slice %87 {offsets = [0, 0], sizes = [8, 8], strides = [1, 1]} : vector<8x96xf32> to vector<8x8xf32>
    %92 = vector.extract_strided_slice %88 {offsets = [0, 32], sizes = [8, 8], strides = [1, 1]} : vector<8x96xf32> to vector<8x8xf32>
    %cst_39 = arith.constant dense<0.000000e+00> : vector<8x8xf32>
    %93 = tpu.matmul %91, %92, %cst_39 {dimension_numbers = #tpu.dot_dimension_numbers<[1], [1], [0], [0], [0, 0, 1, 0], [], []>} : vector<8x8xf32>, vector<8x8xf32>, vector<8x8xf32> -> vector<8x8xf32>
    %94 = arith.addf %93, %90 : vector<8x8xf32>
    %95 = vector.extract_strided_slice %87 {offsets = [0, 8], sizes = [8, 8], strides = [1, 1]} : vector<8x96xf32> to vector<8x8xf32>
    %96 = vector.extract_strided_slice %88 {offsets = [0, 40], sizes = [8, 8], strides = [1, 1]} : vector<8x96xf32> to vector<8x8xf32>
    %cst_40 = arith.constant dense<0.000000e+00> : vector<8x8xf32>
    %97 = tpu.matmul %95, %96, %cst_40 {dimension_numbers = #tpu.dot_dimension_numbers<[1], [1], [0], [0], [0, 0, 1, 0], [], []>} : vector<8x8xf32>, vector<8x8xf32>, vector<8x8xf32> -> vector<8x8xf32>
    %98 = arith.addf %97, %90 : vector<8x8xf32>
    %99 = vector.extract_strided_slice %87 {offsets = [0, 16], sizes = [8, 8], strides = [1, 1]} : vector<8x96xf32> to vector<8x8xf32>
    %100 = vector.extract_strided_slice %88 {offsets = [0, 48], sizes = [8, 8], strides = [1, 1]} : vector<8x96xf32> to vector<8x8xf32>
    %cst_41 = arith.constant dense<0.000000e+00> : vector<8x8xf32>
    %101 = tpu.matmul %99, %100, %cst_41 {dimension_numbers = #tpu.dot_dimension_numbers<[1], [1], [0], [0], [0, 0, 1, 0], [], []>} : vector<8x8xf32>, vector<8x8xf32>, vector<8x8xf32> -> vector<8x8xf32>
    %102 = arith.addf %101, %90 : vector<8x8xf32>
    %103 = vector.extract_strided_slice %87 {offsets = [0, 24], sizes = [8, 8], strides = [1, 1]} : vector<8x96xf32> to vector<8x8xf32>
    %104 = vector.extract_strided_slice %88 {offsets = [0, 56], sizes = [8, 8], strides = [1, 1]} : vector<8x96xf32> to vector<8x8xf32>
    %cst_42 = arith.constant dense<0.000000e+00> : vector<8x8xf32>
    %105 = tpu.matmul %103, %104, %cst_42 {dimension_numbers = #tpu.dot_dimension_numbers<[1], [1], [0], [0], [0, 0, 1, 0], [], []>} : vector<8x8xf32>, vector<8x8xf32>, vector<8x8xf32> -> vector<8x8xf32>
    %106 = arith.addf %105, %90 : vector<8x8xf32>
    %107 = tpu.concatenate %94, %98, %102, %106 in 0 : vector<8x8xf32>, vector<8x8xf32>, vector<8x8xf32>, vector<8x8xf32> -> vector<32x8xf32>
    %cst_43 = arith.constant dense<0xFF800000> : vector<32xf32>
    %108 = vector.multi_reduction <maximumf>, %107, %cst_43 [1] : vector<32x8xf32> to vector<32xf32>
    %109 = vector.shape_cast %108 : vector<32xf32> to vector<32x1xf32>
    %110 = vector.broadcast %109 : vector<32x1xf32> to vector<32x8xf32>
    %111 = arith.subf %107, %110 : vector<32x8xf32>
    %112 = math.exp %111 : vector<32x8xf32>
    %cst_44 = arith.constant dense<0.000000e+00> : vector<32xf32>
    %113 = vector.multi_reduction <add>, %112, %cst_44 [1] : vector<32x8xf32> to vector<32xf32>
    %114 = vector.shape_cast %113 : vector<32xf32> to vector<32x1xf32>
    %115 = tpu.reciprocal %114 : vector<32x1xf32> -> vector<32x1xf32>
    %116 = vector.broadcast %115 : vector<32x1xf32> to vector<32x8xf32>
    %117 = arith.mulf %112, %116 : vector<32x8xf32>
    %cst_45 = arith.constant 0.000000e+00 : f32
    %118 = vector.broadcast %cst_45 : f32 to vector<8x32xf32>
    %119 = vector.extract_strided_slice %117 {offsets = [0, 0], sizes = [8, 8], strides = [1, 1]} : vector<32x8xf32> to vector<8x8xf32>
    %120 = vector.extract_strided_slice %88 {offsets = [0, 64], sizes = [8, 8], strides = [1, 1]} : vector<8x96xf32> to vector<8x8xf32>
    %cst_46 = arith.constant dense<0.000000e+00> : vector<8x8xf32>
    %121 = tpu.matmul %119, %120, %cst_46 {dimension_numbers = #tpu.dot_dimension_numbers<[1], [0], [0], [1], [0, 0, 1, 1], [], []>} : vector<8x8xf32>, vector<8x8xf32>, vector<8x8xf32> -> vector<8x8xf32>
    %c32_47 = arith.constant 32 : index
    %c0_48 = arith.constant 0 : index
    %122 = vector.load %arg6[%c32_47, %c0_48] : memref<352x96xf32, #tpu.memory_space<vmem>>, vector<8x32xf32>
    %cst_49 = arith.constant dense<0.000000e+00> : vector<8x32xf32>
    %123 = tpu.matmul %121, %122, %cst_49 {dimension_numbers = #tpu.dot_dimension_numbers<[1], [0], [0], [1], [0, 0, 1, 1], [], []>} : vector<8x8xf32>, vector<8x32xf32>, vector<8x32xf32> -> vector<8x32xf32>
    %124 = arith.addf %118, %123 : vector<8x32xf32>
    %125 = vector.extract_strided_slice %117 {offsets = [8, 0], sizes = [8, 8], strides = [1, 1]} : vector<32x8xf32> to vector<8x8xf32>
    %126 = vector.extract_strided_slice %88 {offsets = [0, 72], sizes = [8, 8], strides = [1, 1]} : vector<8x96xf32> to vector<8x8xf32>
    %cst_50 = arith.constant dense<0.000000e+00> : vector<8x8xf32>
    %127 = tpu.matmul %125, %126, %cst_50 {dimension_numbers = #tpu.dot_dimension_numbers<[1], [0], [0], [1], [0, 0, 1, 1], [], []>} : vector<8x8xf32>, vector<8x8xf32>, vector<8x8xf32> -> vector<8x8xf32>
    %c40_51 = arith.constant 40 : index
    %c0_52 = arith.constant 0 : index
    %128 = vector.load %arg6[%c40_51, %c0_52] : memref<352x96xf32, #tpu.memory_space<vmem>>, vector<8x32xf32>
    %cst_53 = arith.constant dense<0.000000e+00> : vector<8x32xf32>
    %129 = tpu.matmul %127, %128, %cst_53 {dimension_numbers = #tpu.dot_dimension_numbers<[1], [0], [0], [1], [0, 0, 1, 1], [], []>} : vector<8x8xf32>, vector<8x32xf32>, vector<8x32xf32> -> vector<8x32xf32>
    %130 = arith.addf %124, %129 : vector<8x32xf32>
    %131 = vector.extract_strided_slice %117 {offsets = [16, 0], sizes = [8, 8], strides = [1, 1]} : vector<32x8xf32> to vector<8x8xf32>
    %132 = vector.extract_strided_slice %88 {offsets = [0, 80], sizes = [8, 8], strides = [1, 1]} : vector<8x96xf32> to vector<8x8xf32>
    %cst_54 = arith.constant dense<0.000000e+00> : vector<8x8xf32>
    %133 = tpu.matmul %131, %132, %cst_54 {dimension_numbers = #tpu.dot_dimension_numbers<[1], [0], [0], [1], [0, 0, 1, 1], [], []>} : vector<8x8xf32>, vector<8x8xf32>, vector<8x8xf32> -> vector<8x8xf32>
    %c48_55 = arith.constant 48 : index
    %c0_56 = arith.constant 0 : index
    %134 = vector.load %arg6[%c48_55, %c0_56] : memref<352x96xf32, #tpu.memory_space<vmem>>, vector<8x32xf32>
    %cst_57 = arith.constant dense<0.000000e+00> : vector<8x32xf32>
    %135 = tpu.matmul %133, %134, %cst_57 {dimension_numbers = #tpu.dot_dimension_numbers<[1], [0], [0], [1], [0, 0, 1, 1], [], []>} : vector<8x8xf32>, vector<8x32xf32>, vector<8x32xf32> -> vector<8x32xf32>
    %136 = arith.addf %130, %135 : vector<8x32xf32>
    %137 = vector.extract_strided_slice %117 {offsets = [24, 0], sizes = [8, 8], strides = [1, 1]} : vector<32x8xf32> to vector<8x8xf32>
    %138 = vector.extract_strided_slice %88 {offsets = [0, 88], sizes = [8, 8], strides = [1, 1]} : vector<8x96xf32> to vector<8x8xf32>
    %cst_58 = arith.constant dense<0.000000e+00> : vector<8x8xf32>
    %139 = tpu.matmul %137, %138, %cst_58 {dimension_numbers = #tpu.dot_dimension_numbers<[1], [0], [0], [1], [0, 0, 1, 1], [], []>} : vector<8x8xf32>, vector<8x8xf32>, vector<8x8xf32> -> vector<8x8xf32>
    %c56_59 = arith.constant 56 : index
    %c0_60 = arith.constant 0 : index
    %140 = vector.load %arg6[%c56_59, %c0_60] : memref<352x96xf32, #tpu.memory_space<vmem>>, vector<8x32xf32>
    %cst_61 = arith.constant dense<0.000000e+00> : vector<8x32xf32>
    %141 = tpu.matmul %139, %140, %cst_61 {dimension_numbers = #tpu.dot_dimension_numbers<[1], [0], [0], [1], [0, 0, 1, 1], [], []>} : vector<8x8xf32>, vector<8x32xf32>, vector<8x32xf32> -> vector<8x32xf32>
    %142 = arith.addf %136, %141 : vector<8x32xf32>
    %143 = tpu.concatenate %86, %142 in 0 : vector<8x32xf32>, vector<8x32xf32> -> vector<16x32xf32>
    %c9 = arith.constant 9 : index
    %c0_62 = arith.constant 0 : index
    %144 = vector.load %arg7[%c9, %c0_62] : memref<18x96xf32, #tpu.memory_space<vmem>>, vector<1x32xf32>
    %145 = vector.broadcast %144 : vector<1x32xf32> to vector<16x32xf32>
    %146 = arith.addf %143, %145 : vector<16x32xf32>
    %147 = arith.addf %0, %146 : vector<16x32xf32>
    %148 = arith.mulf %147, %147 : vector<16x32xf32>
    %149 = tpu.concatenate %147, %148 in 0 : vector<16x32xf32>, vector<16x32xf32> -> vector<32x32xf32>
    %cst_63 = arith.constant dense<0.000000e+00> : vector<32xf32>
    %150 = vector.multi_reduction <add>, %149, %cst_63 [1] : vector<32x32xf32> to vector<32xf32>
    %151 = vector.shape_cast %150 : vector<32xf32> to vector<32x1xf32>
    %cst_64 = arith.constant 3.125000e-02 : f32
    %152 = vector.broadcast %cst_64 : f32 to vector<32x1xf32>
    %153 = arith.mulf %151, %152 : vector<32x1xf32>
    %154 = vector.extract_strided_slice %153 {offsets = [0, 0], sizes = [16, 1], strides = [1, 1]} : vector<32x1xf32> to vector<16x1xf32>
    %155 = vector.extract_strided_slice %153 {offsets = [16, 0], sizes = [16, 1], strides = [1, 1]} : vector<32x1xf32> to vector<16x1xf32>
    %156 = arith.mulf %154, %154 : vector<16x1xf32>
    %157 = arith.subf %155, %156 : vector<16x1xf32>
    %cst_65 = arith.constant 9.99999997E-7 : f32
    %158 = vector.broadcast %cst_65 : f32 to vector<16x1xf32>
    %159 = arith.addf %157, %158 : vector<16x1xf32>
    %160 = math.rsqrt %159 : vector<16x1xf32>
    %161 = vector.broadcast %154 : vector<16x1xf32> to vector<16x32xf32>
    %162 = arith.subf %147, %161 : vector<16x32xf32>
    %163 = vector.broadcast %160 : vector<16x1xf32> to vector<16x32xf32>
    %164 = arith.mulf %162, %163 : vector<16x32xf32>
    %c2 = arith.constant 2 : index
    %c0_66 = arith.constant 0 : index
    %165 = vector.load %arg7[%c2, %c0_66] : memref<18x96xf32, #tpu.memory_space<vmem>>, vector<1x32xf32>
    %166 = vector.broadcast %165 : vector<1x32xf32> to vector<16x32xf32>
    %167 = arith.mulf %164, %166 : vector<16x32xf32>
    %c3 = arith.constant 3 : index
    %c0_67 = arith.constant 0 : index
    %168 = vector.load %arg7[%c3, %c0_67] : memref<18x96xf32, #tpu.memory_space<vmem>>, vector<1x32xf32>
    %169 = vector.broadcast %168 : vector<1x32xf32> to vector<16x32xf32>
    %170 = arith.addf %167, %169 : vector<16x32xf32>
    %c64 = arith.constant 64 : index
    %c0_68 = arith.constant 0 : index
    %171 = vector.load %arg6[%c64, %c0_68] : memref<352x96xf32, #tpu.memory_space<vmem>>, vector<32x32xf32>
    %cst_69 = arith.constant dense<0.000000e+00> : vector<16x32xf32>
    %172 = tpu.matmul %170, %171, %cst_69 {dimension_numbers = #tpu.dot_dimension_numbers<[1], [0], [0], [1], [0, 0, 1, 1], [], []>} : vector<16x32xf32>, vector<32x32xf32>, vector<16x32xf32> -> vector<16x32xf32>
    %c10 = arith.constant 10 : index
    %c0_70 = arith.constant 0 : index
    %173 = vector.load %arg7[%c10, %c0_70] : memref<18x96xf32, #tpu.memory_space<vmem>>, vector<1x32xf32>
    %174 = vector.broadcast %173 : vector<1x32xf32> to vector<16x32xf32>
    %175 = arith.addf %172, %174 : vector<16x32xf32>
    %c96 = arith.constant 96 : index
    %c0_71 = arith.constant 0 : index
    %176 = vector.load %arg6[%c96, %c0_71] : memref<352x96xf32, #tpu.memory_space<vmem>>, vector<32x64xf32>
    %cst_72 = arith.constant dense<0.000000e+00> : vector<32x64xf32>
    %177 = tpu.matmul %1, %176, %cst_72 {dimension_numbers = #tpu.dot_dimension_numbers<[1], [0], [0], [1], [0, 0, 1, 1], [], []>} : vector<32x32xf32>, vector<32x64xf32>, vector<32x64xf32> -> vector<32x64xf32>
    %c11 = arith.constant 11 : index
    %c0_73 = arith.constant 0 : index
    %178 = vector.load %arg7[%c11, %c0_73] : memref<18x96xf32, #tpu.memory_space<vmem>>, vector<1x64xf32>
    %179 = vector.broadcast %178 : vector<1x64xf32> to vector<32x64xf32>
    %180 = arith.addf %177, %179 : vector<32x64xf32>
    %181 = vector.extract_strided_slice %175 {offsets = [0, 0], sizes = [8, 32], strides = [1, 1]} : vector<16x32xf32> to vector<8x32xf32>
    %182 = vector.extract_strided_slice %180 {offsets = [0, 0], sizes = [16, 64], strides = [1, 1]} : vector<32x64xf32> to vector<16x64xf32>
    %c0_74 = arith.constant 0 : index
    %c0_75 = arith.constant 0 : index
    %c0_76 = arith.constant 0 : index
    %183 = vector.load %arg4[%c0_74, %c0_75, %c0_76] : memref<2x1x16xf32, #tpu.memory_space<vmem>>, vector<1x1x16xf32>
    %184 = vector.shape_cast %183 : vector<1x1x16xf32> to vector<1x16xf32>
    %185 = vector.extract_strided_slice %181 {offsets = [0, 0], sizes = [8, 8], strides = [1, 1]} : vector<8x32xf32> to vector<8x8xf32>
    %186 = vector.extract_strided_slice %182 {offsets = [0, 0], sizes = [16, 8], strides = [1, 1]} : vector<16x64xf32> to vector<16x8xf32>
    %cst_77 = arith.constant dense<0.000000e+00> : vector<8x16xf32>
    %187 = tpu.matmul %185, %186, %cst_77 {dimension_numbers = #tpu.dot_dimension_numbers<[1], [1], [0], [0], [0, 0, 1, 0], [], []>} : vector<8x8xf32>, vector<16x8xf32>, vector<8x16xf32> -> vector<8x16xf32>
    %188 = vector.broadcast %184 : vector<1x16xf32> to vector<8x16xf32>
    %189 = arith.addf %187, %188 : vector<8x16xf32>
    %190 = vector.extract_strided_slice %181 {offsets = [0, 8], sizes = [8, 8], strides = [1, 1]} : vector<8x32xf32> to vector<8x8xf32>
    %191 = vector.extract_strided_slice %182 {offsets = [0, 8], sizes = [16, 8], strides = [1, 1]} : vector<16x64xf32> to vector<16x8xf32>
    %cst_78 = arith.constant dense<0.000000e+00> : vector<8x16xf32>
    %192 = tpu.matmul %190, %191, %cst_78 {dimension_numbers = #tpu.dot_dimension_numbers<[1], [1], [0], [0], [0, 0, 1, 0], [], []>} : vector<8x8xf32>, vector<16x8xf32>, vector<8x16xf32> -> vector<8x16xf32>
    %193 = vector.broadcast %184 : vector<1x16xf32> to vector<8x16xf32>
    %194 = arith.addf %192, %193 : vector<8x16xf32>
    %195 = vector.extract_strided_slice %181 {offsets = [0, 16], sizes = [8, 8], strides = [1, 1]} : vector<8x32xf32> to vector<8x8xf32>
    %196 = vector.extract_strided_slice %182 {offsets = [0, 16], sizes = [16, 8], strides = [1, 1]} : vector<16x64xf32> to vector<16x8xf32>
    %cst_79 = arith.constant dense<0.000000e+00> : vector<8x16xf32>
    %197 = tpu.matmul %195, %196, %cst_79 {dimension_numbers = #tpu.dot_dimension_numbers<[1], [1], [0], [0], [0, 0, 1, 0], [], []>} : vector<8x8xf32>, vector<16x8xf32>, vector<8x16xf32> -> vector<8x16xf32>
    %198 = vector.broadcast %184 : vector<1x16xf32> to vector<8x16xf32>
    %199 = arith.addf %197, %198 : vector<8x16xf32>
    %200 = vector.extract_strided_slice %181 {offsets = [0, 24], sizes = [8, 8], strides = [1, 1]} : vector<8x32xf32> to vector<8x8xf32>
    %201 = vector.extract_strided_slice %182 {offsets = [0, 24], sizes = [16, 8], strides = [1, 1]} : vector<16x64xf32> to vector<16x8xf32>
    %cst_80 = arith.constant dense<0.000000e+00> : vector<8x16xf32>
    %202 = tpu.matmul %200, %201, %cst_80 {dimension_numbers = #tpu.dot_dimension_numbers<[1], [1], [0], [0], [0, 0, 1, 0], [], []>} : vector<8x8xf32>, vector<16x8xf32>, vector<8x16xf32> -> vector<8x16xf32>
    %203 = vector.broadcast %184 : vector<1x16xf32> to vector<8x16xf32>
    %204 = arith.addf %202, %203 : vector<8x16xf32>
    %205 = tpu.concatenate %189, %194, %199, %204 in 0 : vector<8x16xf32>, vector<8x16xf32>, vector<8x16xf32>, vector<8x16xf32> -> vector<32x16xf32>
    %cst_81 = arith.constant dense<0xFF800000> : vector<32xf32>
    %206 = vector.multi_reduction <maximumf>, %205, %cst_81 [1] : vector<32x16xf32> to vector<32xf32>
    %207 = vector.shape_cast %206 : vector<32xf32> to vector<32x1xf32>
    %208 = vector.broadcast %207 : vector<32x1xf32> to vector<32x16xf32>
    %209 = arith.subf %205, %208 : vector<32x16xf32>
    %210 = math.exp %209 : vector<32x16xf32>
    %cst_82 = arith.constant dense<0.000000e+00> : vector<32xf32>
    %211 = vector.multi_reduction <add>, %210, %cst_82 [1] : vector<32x16xf32> to vector<32xf32>
    %212 = vector.shape_cast %211 : vector<32xf32> to vector<32x1xf32>
    %213 = tpu.reciprocal %212 : vector<32x1xf32> -> vector<32x1xf32>
    %214 = vector.broadcast %213 : vector<32x1xf32> to vector<32x16xf32>
    %215 = arith.mulf %210, %214 : vector<32x16xf32>
    %cst_83 = arith.constant 0.000000e+00 : f32
    %216 = vector.broadcast %cst_83 : f32 to vector<8x32xf32>
    %217 = vector.extract_strided_slice %215 {offsets = [0, 0], sizes = [8, 16], strides = [1, 1]} : vector<32x16xf32> to vector<8x16xf32>
    %218 = vector.extract_strided_slice %182 {offsets = [0, 32], sizes = [16, 8], strides = [1, 1]} : vector<16x64xf32> to vector<16x8xf32>
    %cst_84 = arith.constant dense<0.000000e+00> : vector<8x8xf32>
    %219 = tpu.matmul %217, %218, %cst_84 {dimension_numbers = #tpu.dot_dimension_numbers<[1], [0], [0], [1], [0, 0, 1, 1], [], []>} : vector<8x16xf32>, vector<16x8xf32>, vector<8x8xf32> -> vector<8x8xf32>
    %c128 = arith.constant 128 : index
    %c0_85 = arith.constant 0 : index
    %220 = vector.load %arg6[%c128, %c0_85] : memref<352x96xf32, #tpu.memory_space<vmem>>, vector<8x32xf32>
    %cst_86 = arith.constant dense<0.000000e+00> : vector<8x32xf32>
    %221 = tpu.matmul %219, %220, %cst_86 {dimension_numbers = #tpu.dot_dimension_numbers<[1], [0], [0], [1], [0, 0, 1, 1], [], []>} : vector<8x8xf32>, vector<8x32xf32>, vector<8x32xf32> -> vector<8x32xf32>
    %222 = arith.addf %216, %221 : vector<8x32xf32>
    %223 = vector.extract_strided_slice %215 {offsets = [8, 0], sizes = [8, 16], strides = [1, 1]} : vector<32x16xf32> to vector<8x16xf32>
    %224 = vector.extract_strided_slice %182 {offsets = [0, 40], sizes = [16, 8], strides = [1, 1]} : vector<16x64xf32> to vector<16x8xf32>
    %cst_87 = arith.constant dense<0.000000e+00> : vector<8x8xf32>
    %225 = tpu.matmul %223, %224, %cst_87 {dimension_numbers = #tpu.dot_dimension_numbers<[1], [0], [0], [1], [0, 0, 1, 1], [], []>} : vector<8x16xf32>, vector<16x8xf32>, vector<8x8xf32> -> vector<8x8xf32>
    %c136 = arith.constant 136 : index
    %c0_88 = arith.constant 0 : index
    %226 = vector.load %arg6[%c136, %c0_88] : memref<352x96xf32, #tpu.memory_space<vmem>>, vector<8x32xf32>
    %cst_89 = arith.constant dense<0.000000e+00> : vector<8x32xf32>
    %227 = tpu.matmul %225, %226, %cst_89 {dimension_numbers = #tpu.dot_dimension_numbers<[1], [0], [0], [1], [0, 0, 1, 1], [], []>} : vector<8x8xf32>, vector<8x32xf32>, vector<8x32xf32> -> vector<8x32xf32>
    %228 = arith.addf %222, %227 : vector<8x32xf32>
    %229 = vector.extract_strided_slice %215 {offsets = [16, 0], sizes = [8, 16], strides = [1, 1]} : vector<32x16xf32> to vector<8x16xf32>
    %230 = vector.extract_strided_slice %182 {offsets = [0, 48], sizes = [16, 8], strides = [1, 1]} : vector<16x64xf32> to vector<16x8xf32>
    %cst_90 = arith.constant dense<0.000000e+00> : vector<8x8xf32>
    %231 = tpu.matmul %229, %230, %cst_90 {dimension_numbers = #tpu.dot_dimension_numbers<[1], [0], [0], [1], [0, 0, 1, 1], [], []>} : vector<8x16xf32>, vector<16x8xf32>, vector<8x8xf32> -> vector<8x8xf32>
    %c144 = arith.constant 144 : index
    %c0_91 = arith.constant 0 : index
    %232 = vector.load %arg6[%c144, %c0_91] : memref<352x96xf32, #tpu.memory_space<vmem>>, vector<8x32xf32>
    %cst_92 = arith.constant dense<0.000000e+00> : vector<8x32xf32>
    %233 = tpu.matmul %231, %232, %cst_92 {dimension_numbers = #tpu.dot_dimension_numbers<[1], [0], [0], [1], [0, 0, 1, 1], [], []>} : vector<8x8xf32>, vector<8x32xf32>, vector<8x32xf32> -> vector<8x32xf32>
    %234 = arith.addf %228, %233 : vector<8x32xf32>
    %235 = vector.extract_strided_slice %215 {offsets = [24, 0], sizes = [8, 16], strides = [1, 1]} : vector<32x16xf32> to vector<8x16xf32>
    %236 = vector.extract_strided_slice %182 {offsets = [0, 56], sizes = [16, 8], strides = [1, 1]} : vector<16x64xf32> to vector<16x8xf32>
    %cst_93 = arith.constant dense<0.000000e+00> : vector<8x8xf32>
    %237 = tpu.matmul %235, %236, %cst_93 {dimension_numbers = #tpu.dot_dimension_numbers<[1], [0], [0], [1], [0, 0, 1, 1], [], []>} : vector<8x16xf32>, vector<16x8xf32>, vector<8x8xf32> -> vector<8x8xf32>
    %c152 = arith.constant 152 : index
    %c0_94 = arith.constant 0 : index
    %238 = vector.load %arg6[%c152, %c0_94] : memref<352x96xf32, #tpu.memory_space<vmem>>, vector<8x32xf32>
    %cst_95 = arith.constant dense<0.000000e+00> : vector<8x32xf32>
    %239 = tpu.matmul %237, %238, %cst_95 {dimension_numbers = #tpu.dot_dimension_numbers<[1], [0], [0], [1], [0, 0, 1, 1], [], []>} : vector<8x8xf32>, vector<8x32xf32>, vector<8x32xf32> -> vector<8x32xf32>
    %240 = arith.addf %234, %239 : vector<8x32xf32>
    %241 = vector.extract_strided_slice %175 {offsets = [8, 0], sizes = [8, 32], strides = [1, 1]} : vector<16x32xf32> to vector<8x32xf32>
    %242 = vector.extract_strided_slice %180 {offsets = [16, 0], sizes = [16, 64], strides = [1, 1]} : vector<32x64xf32> to vector<16x64xf32>
    %c1_96 = arith.constant 1 : index
    %c0_97 = arith.constant 0 : index
    %c0_98 = arith.constant 0 : index
    %243 = vector.load %arg4[%c1_96, %c0_97, %c0_98] : memref<2x1x16xf32, #tpu.memory_space<vmem>>, vector<1x1x16xf32>
    %244 = vector.shape_cast %243 : vector<1x1x16xf32> to vector<1x16xf32>
    %245 = vector.extract_strided_slice %241 {offsets = [0, 0], sizes = [8, 8], strides = [1, 1]} : vector<8x32xf32> to vector<8x8xf32>
    %246 = vector.extract_strided_slice %242 {offsets = [0, 0], sizes = [16, 8], strides = [1, 1]} : vector<16x64xf32> to vector<16x8xf32>
    %cst_99 = arith.constant dense<0.000000e+00> : vector<8x16xf32>
    %247 = tpu.matmul %245, %246, %cst_99 {dimension_numbers = #tpu.dot_dimension_numbers<[1], [1], [0], [0], [0, 0, 1, 0], [], []>} : vector<8x8xf32>, vector<16x8xf32>, vector<8x16xf32> -> vector<8x16xf32>
    %248 = vector.broadcast %244 : vector<1x16xf32> to vector<8x16xf32>
    %249 = arith.addf %247, %248 : vector<8x16xf32>
    %250 = vector.extract_strided_slice %241 {offsets = [0, 8], sizes = [8, 8], strides = [1, 1]} : vector<8x32xf32> to vector<8x8xf32>
    %251 = vector.extract_strided_slice %242 {offsets = [0, 8], sizes = [16, 8], strides = [1, 1]} : vector<16x64xf32> to vector<16x8xf32>
    %cst_100 = arith.constant dense<0.000000e+00> : vector<8x16xf32>
    %252 = tpu.matmul %250, %251, %cst_100 {dimension_numbers = #tpu.dot_dimension_numbers<[1], [1], [0], [0], [0, 0, 1, 0], [], []>} : vector<8x8xf32>, vector<16x8xf32>, vector<8x16xf32> -> vector<8x16xf32>
    %253 = vector.broadcast %244 : vector<1x16xf32> to vector<8x16xf32>
    %254 = arith.addf %252, %253 : vector<8x16xf32>
    %255 = vector.extract_strided_slice %241 {offsets = [0, 16], sizes = [8, 8], strides = [1, 1]} : vector<8x32xf32> to vector<8x8xf32>
    %256 = vector.extract_strided_slice %242 {offsets = [0, 16], sizes = [16, 8], strides = [1, 1]} : vector<16x64xf32> to vector<16x8xf32>
    %cst_101 = arith.constant dense<0.000000e+00> : vector<8x16xf32>
    %257 = tpu.matmul %255, %256, %cst_101 {dimension_numbers = #tpu.dot_dimension_numbers<[1], [1], [0], [0], [0, 0, 1, 0], [], []>} : vector<8x8xf32>, vector<16x8xf32>, vector<8x16xf32> -> vector<8x16xf32>
    %258 = vector.broadcast %244 : vector<1x16xf32> to vector<8x16xf32>
    %259 = arith.addf %257, %258 : vector<8x16xf32>
    %260 = vector.extract_strided_slice %241 {offsets = [0, 24], sizes = [8, 8], strides = [1, 1]} : vector<8x32xf32> to vector<8x8xf32>
    %261 = vector.extract_strided_slice %242 {offsets = [0, 24], sizes = [16, 8], strides = [1, 1]} : vector<16x64xf32> to vector<16x8xf32>
    %cst_102 = arith.constant dense<0.000000e+00> : vector<8x16xf32>
    %262 = tpu.matmul %260, %261, %cst_102 {dimension_numbers = #tpu.dot_dimension_numbers<[1], [1], [0], [0], [0, 0, 1, 0], [], []>} : vector<8x8xf32>, vector<16x8xf32>, vector<8x16xf32> -> vector<8x16xf32>
    %263 = vector.broadcast %244 : vector<1x16xf32> to vector<8x16xf32>
    %264 = arith.addf %262, %263 : vector<8x16xf32>
    %265 = tpu.concatenate %249, %254, %259, %264 in 0 : vector<8x16xf32>, vector<8x16xf32>, vector<8x16xf32>, vector<8x16xf32> -> vector<32x16xf32>
    %cst_103 = arith.constant dense<0xFF800000> : vector<32xf32>
    %266 = vector.multi_reduction <maximumf>, %265, %cst_103 [1] : vector<32x16xf32> to vector<32xf32>
    %267 = vector.shape_cast %266 : vector<32xf32> to vector<32x1xf32>
    %268 = vector.broadcast %267 : vector<32x1xf32> to vector<32x16xf32>
    %269 = arith.subf %265, %268 : vector<32x16xf32>
    %270 = math.exp %269 : vector<32x16xf32>
    %cst_104 = arith.constant dense<0.000000e+00> : vector<32xf32>
    %271 = vector.multi_reduction <add>, %270, %cst_104 [1] : vector<32x16xf32> to vector<32xf32>
    %272 = vector.shape_cast %271 : vector<32xf32> to vector<32x1xf32>
    %273 = tpu.reciprocal %272 : vector<32x1xf32> -> vector<32x1xf32>
    %274 = vector.broadcast %273 : vector<32x1xf32> to vector<32x16xf32>
    %275 = arith.mulf %270, %274 : vector<32x16xf32>
    %cst_105 = arith.constant 0.000000e+00 : f32
    %276 = vector.broadcast %cst_105 : f32 to vector<8x32xf32>
    %277 = vector.extract_strided_slice %275 {offsets = [0, 0], sizes = [8, 16], strides = [1, 1]} : vector<32x16xf32> to vector<8x16xf32>
    %278 = vector.extract_strided_slice %242 {offsets = [0, 32], sizes = [16, 8], strides = [1, 1]} : vector<16x64xf32> to vector<16x8xf32>
    %cst_106 = arith.constant dense<0.000000e+00> : vector<8x8xf32>
    %279 = tpu.matmul %277, %278, %cst_106 {dimension_numbers = #tpu.dot_dimension_numbers<[1], [0], [0], [1], [0, 0, 1, 1], [], []>} : vector<8x16xf32>, vector<16x8xf32>, vector<8x8xf32> -> vector<8x8xf32>
    %c128_107 = arith.constant 128 : index
    %c0_108 = arith.constant 0 : index
    %280 = vector.load %arg6[%c128_107, %c0_108] : memref<352x96xf32, #tpu.memory_space<vmem>>, vector<8x32xf32>
    %cst_109 = arith.constant dense<0.000000e+00> : vector<8x32xf32>
    %281 = tpu.matmul %279, %280, %cst_109 {dimension_numbers = #tpu.dot_dimension_numbers<[1], [0], [0], [1], [0, 0, 1, 1], [], []>} : vector<8x8xf32>, vector<8x32xf32>, vector<8x32xf32> -> vector<8x32xf32>
    %282 = arith.addf %276, %281 : vector<8x32xf32>
    %283 = vector.extract_strided_slice %275 {offsets = [8, 0], sizes = [8, 16], strides = [1, 1]} : vector<32x16xf32> to vector<8x16xf32>
    %284 = vector.extract_strided_slice %242 {offsets = [0, 40], sizes = [16, 8], strides = [1, 1]} : vector<16x64xf32> to vector<16x8xf32>
    %cst_110 = arith.constant dense<0.000000e+00> : vector<8x8xf32>
    %285 = tpu.matmul %283, %284, %cst_110 {dimension_numbers = #tpu.dot_dimension_numbers<[1], [0], [0], [1], [0, 0, 1, 1], [], []>} : vector<8x16xf32>, vector<16x8xf32>, vector<8x8xf32> -> vector<8x8xf32>
    %c136_111 = arith.constant 136 : index
    %c0_112 = arith.constant 0 : index
    %286 = vector.load %arg6[%c136_111, %c0_112] : memref<352x96xf32, #tpu.memory_space<vmem>>, vector<8x32xf32>
    %cst_113 = arith.constant dense<0.000000e+00> : vector<8x32xf32>
    %287 = tpu.matmul %285, %286, %cst_113 {dimension_numbers = #tpu.dot_dimension_numbers<[1], [0], [0], [1], [0, 0, 1, 1], [], []>} : vector<8x8xf32>, vector<8x32xf32>, vector<8x32xf32> -> vector<8x32xf32>
    %288 = arith.addf %282, %287 : vector<8x32xf32>
    %289 = vector.extract_strided_slice %275 {offsets = [16, 0], sizes = [8, 16], strides = [1, 1]} : vector<32x16xf32> to vector<8x16xf32>
    %290 = vector.extract_strided_slice %242 {offsets = [0, 48], sizes = [16, 8], strides = [1, 1]} : vector<16x64xf32> to vector<16x8xf32>
    %cst_114 = arith.constant dense<0.000000e+00> : vector<8x8xf32>
    %291 = tpu.matmul %289, %290, %cst_114 {dimension_numbers = #tpu.dot_dimension_numbers<[1], [0], [0], [1], [0, 0, 1, 1], [], []>} : vector<8x16xf32>, vector<16x8xf32>, vector<8x8xf32> -> vector<8x8xf32>
    %c144_115 = arith.constant 144 : index
    %c0_116 = arith.constant 0 : index
    %292 = vector.load %arg6[%c144_115, %c0_116] : memref<352x96xf32, #tpu.memory_space<vmem>>, vector<8x32xf32>
    %cst_117 = arith.constant dense<0.000000e+00> : vector<8x32xf32>
    %293 = tpu.matmul %291, %292, %cst_117 {dimension_numbers = #tpu.dot_dimension_numbers<[1], [0], [0], [1], [0, 0, 1, 1], [], []>} : vector<8x8xf32>, vector<8x32xf32>, vector<8x32xf32> -> vector<8x32xf32>
    %294 = arith.addf %288, %293 : vector<8x32xf32>
    %295 = vector.extract_strided_slice %275 {offsets = [24, 0], sizes = [8, 16], strides = [1, 1]} : vector<32x16xf32> to vector<8x16xf32>
    %296 = vector.extract_strided_slice %242 {offsets = [0, 56], sizes = [16, 8], strides = [1, 1]} : vector<16x64xf32> to vector<16x8xf32>
    %cst_118 = arith.constant dense<0.000000e+00> : vector<8x8xf32>
    %297 = tpu.matmul %295, %296, %cst_118 {dimension_numbers = #tpu.dot_dimension_numbers<[1], [0], [0], [1], [0, 0, 1, 1], [], []>} : vector<8x16xf32>, vector<16x8xf32>, vector<8x8xf32> -> vector<8x8xf32>
    %c152_119 = arith.constant 152 : index
    %c0_120 = arith.constant 0 : index
    %298 = vector.load %arg6[%c152_119, %c0_120] : memref<352x96xf32, #tpu.memory_space<vmem>>, vector<8x32xf32>
    %cst_121 = arith.constant dense<0.000000e+00> : vector<8x32xf32>
    %299 = tpu.matmul %297, %298, %cst_121 {dimension_numbers = #tpu.dot_dimension_numbers<[1], [0], [0], [1], [0, 0, 1, 1], [], []>} : vector<8x8xf32>, vector<8x32xf32>, vector<8x32xf32> -> vector<8x32xf32>
    %300 = arith.addf %294, %299 : vector<8x32xf32>
    %301 = tpu.concatenate %240, %300 in 0 : vector<8x32xf32>, vector<8x32xf32> -> vector<16x32xf32>
    %c12 = arith.constant 12 : index
    %c0_122 = arith.constant 0 : index
    %302 = vector.load %arg7[%c12, %c0_122] : memref<18x96xf32, #tpu.memory_space<vmem>>, vector<1x32xf32>
    %303 = vector.broadcast %302 : vector<1x32xf32> to vector<16x32xf32>
    %304 = arith.addf %301, %303 : vector<16x32xf32>
    %305 = arith.addf %147, %304 : vector<16x32xf32>
    %306 = arith.mulf %305, %305 : vector<16x32xf32>
    %307 = tpu.concatenate %305, %306 in 0 : vector<16x32xf32>, vector<16x32xf32> -> vector<32x32xf32>
    %cst_123 = arith.constant dense<0.000000e+00> : vector<32xf32>
    %308 = vector.multi_reduction <add>, %307, %cst_123 [1] : vector<32x32xf32> to vector<32xf32>
    %309 = vector.shape_cast %308 : vector<32xf32> to vector<32x1xf32>
    %cst_124 = arith.constant 3.125000e-02 : f32
    %310 = vector.broadcast %cst_124 : f32 to vector<32x1xf32>
    %311 = arith.mulf %309, %310 : vector<32x1xf32>
    %312 = vector.extract_strided_slice %311 {offsets = [0, 0], sizes = [16, 1], strides = [1, 1]} : vector<32x1xf32> to vector<16x1xf32>
    %313 = vector.extract_strided_slice %311 {offsets = [16, 0], sizes = [16, 1], strides = [1, 1]} : vector<32x1xf32> to vector<16x1xf32>
    %314 = arith.mulf %312, %312 : vector<16x1xf32>
    %315 = arith.subf %313, %314 : vector<16x1xf32>
    %cst_125 = arith.constant 9.99999997E-7 : f32
    %316 = vector.broadcast %cst_125 : f32 to vector<16x1xf32>
    %317 = arith.addf %315, %316 : vector<16x1xf32>
    %318 = math.rsqrt %317 : vector<16x1xf32>
    %319 = vector.broadcast %312 : vector<16x1xf32> to vector<16x32xf32>
    %320 = arith.subf %305, %319 : vector<16x32xf32>
    %321 = vector.broadcast %318 : vector<16x1xf32> to vector<16x32xf32>
    %322 = arith.mulf %320, %321 : vector<16x32xf32>
    %c4 = arith.constant 4 : index
    %c0_126 = arith.constant 0 : index
    %323 = vector.load %arg7[%c4, %c0_126] : memref<18x96xf32, #tpu.memory_space<vmem>>, vector<1x32xf32>
    %324 = vector.broadcast %323 : vector<1x32xf32> to vector<16x32xf32>
    %325 = arith.mulf %322, %324 : vector<16x32xf32>
    %c5 = arith.constant 5 : index
    %c0_127 = arith.constant 0 : index
    %326 = vector.load %arg7[%c5, %c0_127] : memref<18x96xf32, #tpu.memory_space<vmem>>, vector<1x32xf32>
    %327 = vector.broadcast %326 : vector<1x32xf32> to vector<16x32xf32>
    %328 = arith.addf %325, %327 : vector<16x32xf32>
    %c160 = arith.constant 160 : index
    %c0_128 = arith.constant 0 : index
    %329 = vector.load %arg6[%c160, %c0_128] : memref<352x96xf32, #tpu.memory_space<vmem>>, vector<32x32xf32>
    %cst_129 = arith.constant dense<0.000000e+00> : vector<16x32xf32>
    %330 = tpu.matmul %328, %329, %cst_129 {dimension_numbers = #tpu.dot_dimension_numbers<[1], [0], [0], [1], [0, 0, 1, 1], [], []>} : vector<16x32xf32>, vector<32x32xf32>, vector<16x32xf32> -> vector<16x32xf32>
    %c13 = arith.constant 13 : index
    %c0_130 = arith.constant 0 : index
    %331 = vector.load %arg7[%c13, %c0_130] : memref<18x96xf32, #tpu.memory_space<vmem>>, vector<1x32xf32>
    %332 = vector.broadcast %331 : vector<1x32xf32> to vector<16x32xf32>
    %333 = arith.addf %330, %332 : vector<16x32xf32>
    %c192 = arith.constant 192 : index
    %c0_131 = arith.constant 0 : index
    %334 = vector.load %arg6[%c192, %c0_131] : memref<352x96xf32, #tpu.memory_space<vmem>>, vector<32x64xf32>
    %cst_132 = arith.constant dense<0.000000e+00> : vector<32x64xf32>
    %335 = tpu.matmul %2, %334, %cst_132 {dimension_numbers = #tpu.dot_dimension_numbers<[1], [0], [0], [1], [0, 0, 1, 1], [], []>} : vector<32x32xf32>, vector<32x64xf32>, vector<32x64xf32> -> vector<32x64xf32>
    %c14 = arith.constant 14 : index
    %c0_133 = arith.constant 0 : index
    %336 = vector.load %arg7[%c14, %c0_133] : memref<18x96xf32, #tpu.memory_space<vmem>>, vector<1x64xf32>
    %337 = vector.broadcast %336 : vector<1x64xf32> to vector<32x64xf32>
    %338 = arith.addf %335, %337 : vector<32x64xf32>
    %339 = vector.extract_strided_slice %333 {offsets = [0, 0], sizes = [8, 32], strides = [1, 1]} : vector<16x32xf32> to vector<8x32xf32>
    %340 = vector.extract_strided_slice %338 {offsets = [0, 0], sizes = [16, 64], strides = [1, 1]} : vector<32x64xf32> to vector<16x64xf32>
    %c0_134 = arith.constant 0 : index
    %c0_135 = arith.constant 0 : index
    %c0_136 = arith.constant 0 : index
    %341 = vector.load %arg5[%c0_134, %c0_135, %c0_136] : memref<2x1x16xf32, #tpu.memory_space<vmem>>, vector<1x1x16xf32>
    %342 = vector.shape_cast %341 : vector<1x1x16xf32> to vector<1x16xf32>
    %343 = vector.extract_strided_slice %339 {offsets = [0, 0], sizes = [8, 8], strides = [1, 1]} : vector<8x32xf32> to vector<8x8xf32>
    %344 = vector.extract_strided_slice %340 {offsets = [0, 0], sizes = [16, 8], strides = [1, 1]} : vector<16x64xf32> to vector<16x8xf32>
    %cst_137 = arith.constant dense<0.000000e+00> : vector<8x16xf32>
    %345 = tpu.matmul %343, %344, %cst_137 {dimension_numbers = #tpu.dot_dimension_numbers<[1], [1], [0], [0], [0, 0, 1, 0], [], []>} : vector<8x8xf32>, vector<16x8xf32>, vector<8x16xf32> -> vector<8x16xf32>
    %346 = vector.broadcast %342 : vector<1x16xf32> to vector<8x16xf32>
    %347 = arith.addf %345, %346 : vector<8x16xf32>
    %348 = vector.extract_strided_slice %339 {offsets = [0, 8], sizes = [8, 8], strides = [1, 1]} : vector<8x32xf32> to vector<8x8xf32>
    %349 = vector.extract_strided_slice %340 {offsets = [0, 8], sizes = [16, 8], strides = [1, 1]} : vector<16x64xf32> to vector<16x8xf32>
    %cst_138 = arith.constant dense<0.000000e+00> : vector<8x16xf32>
    %350 = tpu.matmul %348, %349, %cst_138 {dimension_numbers = #tpu.dot_dimension_numbers<[1], [1], [0], [0], [0, 0, 1, 0], [], []>} : vector<8x8xf32>, vector<16x8xf32>, vector<8x16xf32> -> vector<8x16xf32>
    %351 = vector.broadcast %342 : vector<1x16xf32> to vector<8x16xf32>
    %352 = arith.addf %350, %351 : vector<8x16xf32>
    %353 = vector.extract_strided_slice %339 {offsets = [0, 16], sizes = [8, 8], strides = [1, 1]} : vector<8x32xf32> to vector<8x8xf32>
    %354 = vector.extract_strided_slice %340 {offsets = [0, 16], sizes = [16, 8], strides = [1, 1]} : vector<16x64xf32> to vector<16x8xf32>
    %cst_139 = arith.constant dense<0.000000e+00> : vector<8x16xf32>
    %355 = tpu.matmul %353, %354, %cst_139 {dimension_numbers = #tpu.dot_dimension_numbers<[1], [1], [0], [0], [0, 0, 1, 0], [], []>} : vector<8x8xf32>, vector<16x8xf32>, vector<8x16xf32> -> vector<8x16xf32>
    %356 = vector.broadcast %342 : vector<1x16xf32> to vector<8x16xf32>
    %357 = arith.addf %355, %356 : vector<8x16xf32>
    %358 = vector.extract_strided_slice %339 {offsets = [0, 24], sizes = [8, 8], strides = [1, 1]} : vector<8x32xf32> to vector<8x8xf32>
    %359 = vector.extract_strided_slice %340 {offsets = [0, 24], sizes = [16, 8], strides = [1, 1]} : vector<16x64xf32> to vector<16x8xf32>
    %cst_140 = arith.constant dense<0.000000e+00> : vector<8x16xf32>
    %360 = tpu.matmul %358, %359, %cst_140 {dimension_numbers = #tpu.dot_dimension_numbers<[1], [1], [0], [0], [0, 0, 1, 0], [], []>} : vector<8x8xf32>, vector<16x8xf32>, vector<8x16xf32> -> vector<8x16xf32>
    %361 = vector.broadcast %342 : vector<1x16xf32> to vector<8x16xf32>
    %362 = arith.addf %360, %361 : vector<8x16xf32>
    %363 = tpu.concatenate %347, %352, %357, %362 in 0 : vector<8x16xf32>, vector<8x16xf32>, vector<8x16xf32>, vector<8x16xf32> -> vector<32x16xf32>
    %cst_141 = arith.constant dense<0xFF800000> : vector<32xf32>
    %364 = vector.multi_reduction <maximumf>, %363, %cst_141 [1] : vector<32x16xf32> to vector<32xf32>
    %365 = vector.shape_cast %364 : vector<32xf32> to vector<32x1xf32>
    %366 = vector.broadcast %365 : vector<32x1xf32> to vector<32x16xf32>
    %367 = arith.subf %363, %366 : vector<32x16xf32>
    %368 = math.exp %367 : vector<32x16xf32>
    %cst_142 = arith.constant dense<0.000000e+00> : vector<32xf32>
    %369 = vector.multi_reduction <add>, %368, %cst_142 [1] : vector<32x16xf32> to vector<32xf32>
    %370 = vector.shape_cast %369 : vector<32xf32> to vector<32x1xf32>
    %371 = tpu.reciprocal %370 : vector<32x1xf32> -> vector<32x1xf32>
    %372 = vector.broadcast %371 : vector<32x1xf32> to vector<32x16xf32>
    %373 = arith.mulf %368, %372 : vector<32x16xf32>
    %cst_143 = arith.constant 0.000000e+00 : f32
    %374 = vector.broadcast %cst_143 : f32 to vector<8x32xf32>
    %375 = vector.extract_strided_slice %373 {offsets = [0, 0], sizes = [8, 16], strides = [1, 1]} : vector<32x16xf32> to vector<8x16xf32>
    %376 = vector.extract_strided_slice %340 {offsets = [0, 32], sizes = [16, 8], strides = [1, 1]} : vector<16x64xf32> to vector<16x8xf32>
    %cst_144 = arith.constant dense<0.000000e+00> : vector<8x8xf32>
    %377 = tpu.matmul %375, %376, %cst_144 {dimension_numbers = #tpu.dot_dimension_numbers<[1], [0], [0], [1], [0, 0, 1, 1], [], []>} : vector<8x16xf32>, vector<16x8xf32>, vector<8x8xf32> -> vector<8x8xf32>
    %c224 = arith.constant 224 : index
    %c0_145 = arith.constant 0 : index
    %378 = vector.load %arg6[%c224, %c0_145] : memref<352x96xf32, #tpu.memory_space<vmem>>, vector<8x32xf32>
    %cst_146 = arith.constant dense<0.000000e+00> : vector<8x32xf32>
    %379 = tpu.matmul %377, %378, %cst_146 {dimension_numbers = #tpu.dot_dimension_numbers<[1], [0], [0], [1], [0, 0, 1, 1], [], []>} : vector<8x8xf32>, vector<8x32xf32>, vector<8x32xf32> -> vector<8x32xf32>
    %380 = arith.addf %374, %379 : vector<8x32xf32>
    %381 = vector.extract_strided_slice %373 {offsets = [8, 0], sizes = [8, 16], strides = [1, 1]} : vector<32x16xf32> to vector<8x16xf32>
    %382 = vector.extract_strided_slice %340 {offsets = [0, 40], sizes = [16, 8], strides = [1, 1]} : vector<16x64xf32> to vector<16x8xf32>
    %cst_147 = arith.constant dense<0.000000e+00> : vector<8x8xf32>
    %383 = tpu.matmul %381, %382, %cst_147 {dimension_numbers = #tpu.dot_dimension_numbers<[1], [0], [0], [1], [0, 0, 1, 1], [], []>} : vector<8x16xf32>, vector<16x8xf32>, vector<8x8xf32> -> vector<8x8xf32>
    %c232 = arith.constant 232 : index
    %c0_148 = arith.constant 0 : index
    %384 = vector.load %arg6[%c232, %c0_148] : memref<352x96xf32, #tpu.memory_space<vmem>>, vector<8x32xf32>
    %cst_149 = arith.constant dense<0.000000e+00> : vector<8x32xf32>
    %385 = tpu.matmul %383, %384, %cst_149 {dimension_numbers = #tpu.dot_dimension_numbers<[1], [0], [0], [1], [0, 0, 1, 1], [], []>} : vector<8x8xf32>, vector<8x32xf32>, vector<8x32xf32> -> vector<8x32xf32>
    %386 = arith.addf %380, %385 : vector<8x32xf32>
    %387 = vector.extract_strided_slice %373 {offsets = [16, 0], sizes = [8, 16], strides = [1, 1]} : vector<32x16xf32> to vector<8x16xf32>
    %388 = vector.extract_strided_slice %340 {offsets = [0, 48], sizes = [16, 8], strides = [1, 1]} : vector<16x64xf32> to vector<16x8xf32>
    %cst_150 = arith.constant dense<0.000000e+00> : vector<8x8xf32>
    %389 = tpu.matmul %387, %388, %cst_150 {dimension_numbers = #tpu.dot_dimension_numbers<[1], [0], [0], [1], [0, 0, 1, 1], [], []>} : vector<8x16xf32>, vector<16x8xf32>, vector<8x8xf32> -> vector<8x8xf32>
    %c240 = arith.constant 240 : index
    %c0_151 = arith.constant 0 : index
    %390 = vector.load %arg6[%c240, %c0_151] : memref<352x96xf32, #tpu.memory_space<vmem>>, vector<8x32xf32>
    %cst_152 = arith.constant dense<0.000000e+00> : vector<8x32xf32>
    %391 = tpu.matmul %389, %390, %cst_152 {dimension_numbers = #tpu.dot_dimension_numbers<[1], [0], [0], [1], [0, 0, 1, 1], [], []>} : vector<8x8xf32>, vector<8x32xf32>, vector<8x32xf32> -> vector<8x32xf32>
    %392 = arith.addf %386, %391 : vector<8x32xf32>
    %393 = vector.extract_strided_slice %373 {offsets = [24, 0], sizes = [8, 16], strides = [1, 1]} : vector<32x16xf32> to vector<8x16xf32>
    %394 = vector.extract_strided_slice %340 {offsets = [0, 56], sizes = [16, 8], strides = [1, 1]} : vector<16x64xf32> to vector<16x8xf32>
    %cst_153 = arith.constant dense<0.000000e+00> : vector<8x8xf32>
    %395 = tpu.matmul %393, %394, %cst_153 {dimension_numbers = #tpu.dot_dimension_numbers<[1], [0], [0], [1], [0, 0, 1, 1], [], []>} : vector<8x16xf32>, vector<16x8xf32>, vector<8x8xf32> -> vector<8x8xf32>
    %c248 = arith.constant 248 : index
    %c0_154 = arith.constant 0 : index
    %396 = vector.load %arg6[%c248, %c0_154] : memref<352x96xf32, #tpu.memory_space<vmem>>, vector<8x32xf32>
    %cst_155 = arith.constant dense<0.000000e+00> : vector<8x32xf32>
    %397 = tpu.matmul %395, %396, %cst_155 {dimension_numbers = #tpu.dot_dimension_numbers<[1], [0], [0], [1], [0, 0, 1, 1], [], []>} : vector<8x8xf32>, vector<8x32xf32>, vector<8x32xf32> -> vector<8x32xf32>
    %398 = arith.addf %392, %397 : vector<8x32xf32>
    %399 = vector.extract_strided_slice %333 {offsets = [8, 0], sizes = [8, 32], strides = [1, 1]} : vector<16x32xf32> to vector<8x32xf32>
    %400 = vector.extract_strided_slice %338 {offsets = [16, 0], sizes = [16, 64], strides = [1, 1]} : vector<32x64xf32> to vector<16x64xf32>
    %c1_156 = arith.constant 1 : index
    %c0_157 = arith.constant 0 : index
    %c0_158 = arith.constant 0 : index
    %401 = vector.load %arg5[%c1_156, %c0_157, %c0_158] : memref<2x1x16xf32, #tpu.memory_space<vmem>>, vector<1x1x16xf32>
    %402 = vector.shape_cast %401 : vector<1x1x16xf32> to vector<1x16xf32>
    %403 = vector.extract_strided_slice %399 {offsets = [0, 0], sizes = [8, 8], strides = [1, 1]} : vector<8x32xf32> to vector<8x8xf32>
    %404 = vector.extract_strided_slice %400 {offsets = [0, 0], sizes = [16, 8], strides = [1, 1]} : vector<16x64xf32> to vector<16x8xf32>
    %cst_159 = arith.constant dense<0.000000e+00> : vector<8x16xf32>
    %405 = tpu.matmul %403, %404, %cst_159 {dimension_numbers = #tpu.dot_dimension_numbers<[1], [1], [0], [0], [0, 0, 1, 0], [], []>} : vector<8x8xf32>, vector<16x8xf32>, vector<8x16xf32> -> vector<8x16xf32>
    %406 = vector.broadcast %402 : vector<1x16xf32> to vector<8x16xf32>
    %407 = arith.addf %405, %406 : vector<8x16xf32>
    %408 = vector.extract_strided_slice %399 {offsets = [0, 8], sizes = [8, 8], strides = [1, 1]} : vector<8x32xf32> to vector<8x8xf32>
    %409 = vector.extract_strided_slice %400 {offsets = [0, 8], sizes = [16, 8], strides = [1, 1]} : vector<16x64xf32> to vector<16x8xf32>
    %cst_160 = arith.constant dense<0.000000e+00> : vector<8x16xf32>
    %410 = tpu.matmul %408, %409, %cst_160 {dimension_numbers = #tpu.dot_dimension_numbers<[1], [1], [0], [0], [0, 0, 1, 0], [], []>} : vector<8x8xf32>, vector<16x8xf32>, vector<8x16xf32> -> vector<8x16xf32>
    %411 = vector.broadcast %402 : vector<1x16xf32> to vector<8x16xf32>
    %412 = arith.addf %410, %411 : vector<8x16xf32>
    %413 = vector.extract_strided_slice %399 {offsets = [0, 16], sizes = [8, 8], strides = [1, 1]} : vector<8x32xf32> to vector<8x8xf32>
    %414 = vector.extract_strided_slice %400 {offsets = [0, 16], sizes = [16, 8], strides = [1, 1]} : vector<16x64xf32> to vector<16x8xf32>
    %cst_161 = arith.constant dense<0.000000e+00> : vector<8x16xf32>
    %415 = tpu.matmul %413, %414, %cst_161 {dimension_numbers = #tpu.dot_dimension_numbers<[1], [1], [0], [0], [0, 0, 1, 0], [], []>} : vector<8x8xf32>, vector<16x8xf32>, vector<8x16xf32> -> vector<8x16xf32>
    %416 = vector.broadcast %402 : vector<1x16xf32> to vector<8x16xf32>
    %417 = arith.addf %415, %416 : vector<8x16xf32>
    %418 = vector.extract_strided_slice %399 {offsets = [0, 24], sizes = [8, 8], strides = [1, 1]} : vector<8x32xf32> to vector<8x8xf32>
    %419 = vector.extract_strided_slice %400 {offsets = [0, 24], sizes = [16, 8], strides = [1, 1]} : vector<16x64xf32> to vector<16x8xf32>
    %cst_162 = arith.constant dense<0.000000e+00> : vector<8x16xf32>
    %420 = tpu.matmul %418, %419, %cst_162 {dimension_numbers = #tpu.dot_dimension_numbers<[1], [1], [0], [0], [0, 0, 1, 0], [], []>} : vector<8x8xf32>, vector<16x8xf32>, vector<8x16xf32> -> vector<8x16xf32>
    %421 = vector.broadcast %402 : vector<1x16xf32> to vector<8x16xf32>
    %422 = arith.addf %420, %421 : vector<8x16xf32>
    %423 = tpu.concatenate %407, %412, %417, %422 in 0 : vector<8x16xf32>, vector<8x16xf32>, vector<8x16xf32>, vector<8x16xf32> -> vector<32x16xf32>
    %cst_163 = arith.constant dense<0xFF800000> : vector<32xf32>
    %424 = vector.multi_reduction <maximumf>, %423, %cst_163 [1] : vector<32x16xf32> to vector<32xf32>
    %425 = vector.shape_cast %424 : vector<32xf32> to vector<32x1xf32>
    %426 = vector.broadcast %425 : vector<32x1xf32> to vector<32x16xf32>
    %427 = arith.subf %423, %426 : vector<32x16xf32>
    %428 = math.exp %427 : vector<32x16xf32>
    %cst_164 = arith.constant dense<0.000000e+00> : vector<32xf32>
    %429 = vector.multi_reduction <add>, %428, %cst_164 [1] : vector<32x16xf32> to vector<32xf32>
    %430 = vector.shape_cast %429 : vector<32xf32> to vector<32x1xf32>
    %431 = tpu.reciprocal %430 : vector<32x1xf32> -> vector<32x1xf32>
    %432 = vector.broadcast %431 : vector<32x1xf32> to vector<32x16xf32>
    %433 = arith.mulf %428, %432 : vector<32x16xf32>
    %cst_165 = arith.constant 0.000000e+00 : f32
    %434 = vector.broadcast %cst_165 : f32 to vector<8x32xf32>
    %435 = vector.extract_strided_slice %433 {offsets = [0, 0], sizes = [8, 16], strides = [1, 1]} : vector<32x16xf32> to vector<8x16xf32>
    %436 = vector.extract_strided_slice %400 {offsets = [0, 32], sizes = [16, 8], strides = [1, 1]} : vector<16x64xf32> to vector<16x8xf32>
    %cst_166 = arith.constant dense<0.000000e+00> : vector<8x8xf32>
    %437 = tpu.matmul %435, %436, %cst_166 {dimension_numbers = #tpu.dot_dimension_numbers<[1], [0], [0], [1], [0, 0, 1, 1], [], []>} : vector<8x16xf32>, vector<16x8xf32>, vector<8x8xf32> -> vector<8x8xf32>
    %c224_167 = arith.constant 224 : index
    %c0_168 = arith.constant 0 : index
    %438 = vector.load %arg6[%c224_167, %c0_168] : memref<352x96xf32, #tpu.memory_space<vmem>>, vector<8x32xf32>
    %cst_169 = arith.constant dense<0.000000e+00> : vector<8x32xf32>
    %439 = tpu.matmul %437, %438, %cst_169 {dimension_numbers = #tpu.dot_dimension_numbers<[1], [0], [0], [1], [0, 0, 1, 1], [], []>} : vector<8x8xf32>, vector<8x32xf32>, vector<8x32xf32> -> vector<8x32xf32>
    %440 = arith.addf %434, %439 : vector<8x32xf32>
    %441 = vector.extract_strided_slice %433 {offsets = [8, 0], sizes = [8, 16], strides = [1, 1]} : vector<32x16xf32> to vector<8x16xf32>
    %442 = vector.extract_strided_slice %400 {offsets = [0, 40], sizes = [16, 8], strides = [1, 1]} : vector<16x64xf32> to vector<16x8xf32>
    %cst_170 = arith.constant dense<0.000000e+00> : vector<8x8xf32>
    %443 = tpu.matmul %441, %442, %cst_170 {dimension_numbers = #tpu.dot_dimension_numbers<[1], [0], [0], [1], [0, 0, 1, 1], [], []>} : vector<8x16xf32>, vector<16x8xf32>, vector<8x8xf32> -> vector<8x8xf32>
    %c232_171 = arith.constant 232 : index
    %c0_172 = arith.constant 0 : index
    %444 = vector.load %arg6[%c232_171, %c0_172] : memref<352x96xf32, #tpu.memory_space<vmem>>, vector<8x32xf32>
    %cst_173 = arith.constant dense<0.000000e+00> : vector<8x32xf32>
    %445 = tpu.matmul %443, %444, %cst_173 {dimension_numbers = #tpu.dot_dimension_numbers<[1], [0], [0], [1], [0, 0, 1, 1], [], []>} : vector<8x8xf32>, vector<8x32xf32>, vector<8x32xf32> -> vector<8x32xf32>
    %446 = arith.addf %440, %445 : vector<8x32xf32>
    %447 = vector.extract_strided_slice %433 {offsets = [16, 0], sizes = [8, 16], strides = [1, 1]} : vector<32x16xf32> to vector<8x16xf32>
    %448 = vector.extract_strided_slice %400 {offsets = [0, 48], sizes = [16, 8], strides = [1, 1]} : vector<16x64xf32> to vector<16x8xf32>
    %cst_174 = arith.constant dense<0.000000e+00> : vector<8x8xf32>
    %449 = tpu.matmul %447, %448, %cst_174 {dimension_numbers = #tpu.dot_dimension_numbers<[1], [0], [0], [1], [0, 0, 1, 1], [], []>} : vector<8x16xf32>, vector<16x8xf32>, vector<8x8xf32> -> vector<8x8xf32>
    %c240_175 = arith.constant 240 : index
    %c0_176 = arith.constant 0 : index
    %450 = vector.load %arg6[%c240_175, %c0_176] : memref<352x96xf32, #tpu.memory_space<vmem>>, vector<8x32xf32>
    %cst_177 = arith.constant dense<0.000000e+00> : vector<8x32xf32>
    %451 = tpu.matmul %449, %450, %cst_177 {dimension_numbers = #tpu.dot_dimension_numbers<[1], [0], [0], [1], [0, 0, 1, 1], [], []>} : vector<8x8xf32>, vector<8x32xf32>, vector<8x32xf32> -> vector<8x32xf32>
    %452 = arith.addf %446, %451 : vector<8x32xf32>
    %453 = vector.extract_strided_slice %433 {offsets = [24, 0], sizes = [8, 16], strides = [1, 1]} : vector<32x16xf32> to vector<8x16xf32>
    %454 = vector.extract_strided_slice %400 {offsets = [0, 56], sizes = [16, 8], strides = [1, 1]} : vector<16x64xf32> to vector<16x8xf32>
    %cst_178 = arith.constant dense<0.000000e+00> : vector<8x8xf32>
    %455 = tpu.matmul %453, %454, %cst_178 {dimension_numbers = #tpu.dot_dimension_numbers<[1], [0], [0], [1], [0, 0, 1, 1], [], []>} : vector<8x16xf32>, vector<16x8xf32>, vector<8x8xf32> -> vector<8x8xf32>
    %c248_179 = arith.constant 248 : index
    %c0_180 = arith.constant 0 : index
    %456 = vector.load %arg6[%c248_179, %c0_180] : memref<352x96xf32, #tpu.memory_space<vmem>>, vector<8x32xf32>
    %cst_181 = arith.constant dense<0.000000e+00> : vector<8x32xf32>
    %457 = tpu.matmul %455, %456, %cst_181 {dimension_numbers = #tpu.dot_dimension_numbers<[1], [0], [0], [1], [0, 0, 1, 1], [], []>} : vector<8x8xf32>, vector<8x32xf32>, vector<8x32xf32> -> vector<8x32xf32>
    %458 = arith.addf %452, %457 : vector<8x32xf32>
    %459 = tpu.concatenate %398, %458 in 0 : vector<8x32xf32>, vector<8x32xf32> -> vector<16x32xf32>
    %c15 = arith.constant 15 : index
    %c0_182 = arith.constant 0 : index
    %460 = vector.load %arg7[%c15, %c0_182] : memref<18x96xf32, #tpu.memory_space<vmem>>, vector<1x32xf32>
    %461 = vector.broadcast %460 : vector<1x32xf32> to vector<16x32xf32>
    %462 = arith.addf %459, %461 : vector<16x32xf32>
    %463 = arith.addf %305, %462 : vector<16x32xf32>
    %464 = arith.mulf %463, %463 : vector<16x32xf32>
    %465 = tpu.concatenate %463, %464 in 0 : vector<16x32xf32>, vector<16x32xf32> -> vector<32x32xf32>
    %cst_183 = arith.constant dense<0.000000e+00> : vector<32xf32>
    %466 = vector.multi_reduction <add>, %465, %cst_183 [1] : vector<32x32xf32> to vector<32xf32>
    %467 = vector.shape_cast %466 : vector<32xf32> to vector<32x1xf32>
    %cst_184 = arith.constant 3.125000e-02 : f32
    %468 = vector.broadcast %cst_184 : f32 to vector<32x1xf32>
    %469 = arith.mulf %467, %468 : vector<32x1xf32>
    %470 = vector.extract_strided_slice %469 {offsets = [0, 0], sizes = [16, 1], strides = [1, 1]} : vector<32x1xf32> to vector<16x1xf32>
    %471 = vector.extract_strided_slice %469 {offsets = [16, 0], sizes = [16, 1], strides = [1, 1]} : vector<32x1xf32> to vector<16x1xf32>
    %472 = arith.mulf %470, %470 : vector<16x1xf32>
    %473 = arith.subf %471, %472 : vector<16x1xf32>
    %cst_185 = arith.constant 9.99999997E-7 : f32
    %474 = vector.broadcast %cst_185 : f32 to vector<16x1xf32>
    %475 = arith.addf %473, %474 : vector<16x1xf32>
    %476 = math.rsqrt %475 : vector<16x1xf32>
    %477 = vector.broadcast %470 : vector<16x1xf32> to vector<16x32xf32>
    %478 = arith.subf %463, %477 : vector<16x32xf32>
    %479 = vector.broadcast %476 : vector<16x1xf32> to vector<16x32xf32>
    %480 = arith.mulf %478, %479 : vector<16x32xf32>
    %c6 = arith.constant 6 : index
    %c0_186 = arith.constant 0 : index
    %481 = vector.load %arg7[%c6, %c0_186] : memref<18x96xf32, #tpu.memory_space<vmem>>, vector<1x32xf32>
    %482 = vector.broadcast %481 : vector<1x32xf32> to vector<16x32xf32>
    %483 = arith.mulf %480, %482 : vector<16x32xf32>
    %c7 = arith.constant 7 : index
    %c0_187 = arith.constant 0 : index
    %484 = vector.load %arg7[%c7, %c0_187] : memref<18x96xf32, #tpu.memory_space<vmem>>, vector<1x32xf32>
    %485 = vector.broadcast %484 : vector<1x32xf32> to vector<16x32xf32>
    %486 = arith.addf %483, %485 : vector<16x32xf32>
    %c256 = arith.constant 256 : index
    %c0_188 = arith.constant 0 : index
    %487 = vector.load %arg6[%c256, %c0_188] : memref<352x96xf32, #tpu.memory_space<vmem>>, vector<32x64xf32>
    %cst_189 = arith.constant dense<0.000000e+00> : vector<16x64xf32>
    %488 = tpu.matmul %486, %487, %cst_189 {dimension_numbers = #tpu.dot_dimension_numbers<[1], [0], [0], [1], [0, 0, 1, 1], [], []>} : vector<16x32xf32>, vector<32x64xf32>, vector<16x64xf32> -> vector<16x64xf32>
    %c16 = arith.constant 16 : index
    %c0_190 = arith.constant 0 : index
    %489 = vector.load %arg7[%c16, %c0_190] : memref<18x96xf32, #tpu.memory_space<vmem>>, vector<1x64xf32>
    %490 = vector.broadcast %489 : vector<1x64xf32> to vector<16x64xf32>
    %491 = arith.addf %488, %490 : vector<16x64xf32>
    %cst_191 = arith.constant 0.000000e+00 : f32
    %492 = vector.broadcast %cst_191 : f32 to vector<16x64xf32>
    %493 = arith.maximumf %491, %492 : vector<16x64xf32>
    %c288 = arith.constant 288 : index
    %c0_192 = arith.constant 0 : index
    %494 = vector.load %arg6[%c288, %c0_192] : memref<352x96xf32, #tpu.memory_space<vmem>>, vector<64x32xf32>
    %cst_193 = arith.constant dense<0.000000e+00> : vector<16x32xf32>
    %495 = tpu.matmul %493, %494, %cst_193 {dimension_numbers = #tpu.dot_dimension_numbers<[1], [0], [0], [1], [0, 0, 1, 1], [], []>} : vector<16x64xf32>, vector<64x32xf32>, vector<16x32xf32> -> vector<16x32xf32>
    %496 = arith.addf %463, %495 : vector<16x32xf32>
    %c17 = arith.constant 17 : index
    %c0_194 = arith.constant 0 : index
    %497 = vector.load %arg7[%c17, %c0_194] : memref<18x96xf32, #tpu.memory_space<vmem>>, vector<1x32xf32>
    %498 = vector.broadcast %497 : vector<1x32xf32> to vector<16x32xf32>
    %499 = arith.addf %496, %498 : vector<16x32xf32>
    %c0_195 = arith.constant 0 : index
    %c0_196 = arith.constant 0 : index
    %500 = vector.load %arg8[%c0_195, %c0_196] : memref<16x32xf32, #tpu.memory_space<vmem>>, vector<16x32xf32>
    tpu.vector_store %arg8[%c0_195, %c0_196], %499 {strides = array<i32>} : memref<16x32xf32, #tpu.memory_space<vmem>>, vector<16x32xf32>,
    return
  }
}

</mosaic_0001>

<llo_original>
// kernel: tpu_custom_call.1
$region0: #{tpu_custom_call.1}
  #allocation0 [shape = 'u32[]', space=smem, size = 0x4, offset = 0x4, fixed_abs, tag = 'smem constant byte address 0x4 - core index']
  #allocation1 [shape = 'u32[144,128]{1,0:T(1,128)}', space=vmem, size = 0x12000, scoped, tag = 'internal scratch']
  %s0 = inlined_call_operand.vmem [shape: f32[16,32], index: 0, kind: input, shape index: {}]
  %s1 = inlined_call_operand.vmem [shape: f32[32,32], index: 1, kind: input, shape index: {}]
  %s2 = inlined_call_operand.vmem [shape: f32[32,32], index: 2, kind: input, shape index: {}]
  %s3 = inlined_call_operand.vmem [shape: f32[2,8,8], index: 3, kind: input, shape index: {}]
  %s4 = inlined_call_operand.vmem [shape: f32[2,1,16], index: 4, kind: input, shape index: {}]
  %s5 = inlined_call_operand.vmem [shape: f32[2,1,16], index: 5, kind: input, shape index: {}]
  %s6 = inlined_call_operand.vmem [shape: f32[352,96], index: 6, kind: input, shape index: {}]
  %s7 = inlined_call_operand.vmem [shape: f32[18,96], index: 7, kind: input, shape index: {}]
  %s8 = inlined_call_operand.hbm [shape: f32[16,32], index: 8, kind: output, shape index: {}]
  %s9 = sld [smem:[#allocation0]]
  $region42: #{tpu_custom_call.1} parent=0
    _
  %s11 = ssub.s32 1, %s9
  %s12 = scalar_select 0, %s11, %s9
  $region1: #{tpu_custom_call.1} parent=0
    #allocation2 [shape = 'u8[8192]{0}', space=vmem, size = 0x2000, scoped, tag = 'output window, operand 0, single buffered']
    #allocation3 [shape = 's32[1]{0}', space=sflag, size = 0x4, scoped, tag = 'scoped memory for tpu_custom_call.1']
    %13 = vsyncpa [#allocation3], 0
    // Predicated region
    $region2: #{tpu_custom_call.1} parent=1 // pred_check
      _
    $region3: #{tpu_custom_call.1} parent=1 // pred_check_branch
      %15 = sbr.rel (0) target = $region5
    $region4: #{tpu_custom_call.1} parent=1 // pred_region
      _
    $region5: #{tpu_custom_call.1} parent=1 // pred_fallthru
      _
    // Predicated region
    $region6: #{tpu_custom_call.1} parent=1 // pred_check
      _
    $region7: #{tpu_custom_call.1} parent=1 // pred_check_branch
      %17 = sbr.rel (0) target = $region9
    $region8: #{tpu_custom_call.1} parent=1 // pred_region
      _
    $region9: #{tpu_custom_call.1} parent=1 // pred_fallthru
      _
    // Predicated region
    $region10: #{tpu_custom_call.1} parent=1 // pred_check
      _
    $region11: #{tpu_custom_call.1} parent=1 // pred_check_branch
      %19 = sbr.rel (0) target = $region13
    $region12: #{tpu_custom_call.1} parent=1 // pred_region
      _
    $region13: #{tpu_custom_call.1} parent=1 // pred_fallthru
      _
    // Predicated region
    $region14: #{tpu_custom_call.1} parent=1 // pred_check
      _
    $region15: #{tpu_custom_call.1} parent=1 // pred_check_branch
      %21 = sbr.rel (0) target = $region17
    $region16: #{tpu_custom_call.1} parent=1 // pred_region
      _
    $region17: #{tpu_custom_call.1} parent=1 // pred_fallthru
      _
    // Predicated region
    $region18: #{tpu_custom_call.1} parent=1 // pred_check
      _
    $region19: #{tpu_custom_call.1} parent=1 // pred_check_branch
      %23 = sbr.rel (0) target = $region21
    $region20: #{tpu_custom_call.1} parent=1 // pred_region
      _
    $region21: #{tpu_custom_call.1} parent=1 // pred_fallthru
      _
    // Predicated region
    $region22: #{tpu_custom_call.1} parent=1 // pred_check
      _
    $region23: #{tpu_custom_call.1} parent=1 // pred_check_branch
      %25 = sbr.rel (0) target = $region25
    $region24: #{tpu_custom_call.1} parent=1 // pred_region
      _
    $region25: #{tpu_custom_call.1} parent=1 // pred_fallthru
      _
    // Predicated region
    $region26: #{tpu_custom_call.1} parent=1 // pred_check
      _
    $region27: #{tpu_custom_call.1} parent=1 // pred_check_branch
      %27 = sbr.rel (0) target = $region29
    $region28: #{tpu_custom_call.1} parent=1 // pred_region
      _
    $region29: #{tpu_custom_call.1} parent=1 // pred_fallthru
      _
    // Predicated region
    $region30: #{tpu_custom_call.1} parent=1 // pred_check
      _
    $region31: #{tpu_custom_call.1} parent=1 // pred_check_branch
      %29 = sbr.rel (0) target = $region33
    $region32: #{tpu_custom_call.1} parent=1 // pred_region
      _
    $region33: #{tpu_custom_call.1} parent=1 // pred_fallthru
      _
    %v30 = vld [vmem:[%s0] sm:$0xff]
    %v31 = vld [vmem:[%s0 + $0x8] sm:$0xff]
    %v32 = vld [vmem:[%s1] sm:$0xff]
    %v33 = vld [vmem:[%s1 + $0x8] sm:$0xff]
    %v34 = vld [vmem:[%s1 + $0x10] sm:$0xff]
    %v35 = vld [vmem:[%s1 + $0x18] sm:$0xff]
    %v36 = vld [vmem:[%s2] sm:$0xff]
    %v37 = vld [vmem:[%s2 + $0x8] sm:$0xff]
    %v38 = vld [vmem:[%s2 + $0x10] sm:$0xff]
    %v39 = vld [vmem:[%s2 + $0x18] sm:$0xff]
    %v40 = vmul.f32 %v30, %v30
    %v41 = vmul.f32 %v31, %v31
    %vm42 = vcmask 261120
    %v43 = vsel %vm42, %v30, 0.0
    %44 = vadd.xlane.f32.xlu0 %v43
    %v45 = vpop.xlane.xlu0 %44
    %v46 = vsel %vm42, %v31, 0.0
    %47 = vadd.xlane.f32.xlu0 %v46
    %v48 = vpop.xlane.xlu0 %47
    %v49 = vsel %vm42, %v40, 0.0
    %50 = vadd.xlane.f32.xlu0 %v49
    %v51 = vpop.xlane.xlu0 %50
    %v52 = vsel %vm42, %v41, 0.0
    %53 = vadd.xlane.f32.xlu0 %v52
    %v54 = vpop.xlane.xlu0 %53
    %v55 = vmul.f32 %v45, 0.03125
    %v56 = vmul.f32 %v48, 0.03125
    %v57 = vmul.f32 %v51, 0.03125
    %v58 = vmul.f32 %v54, 0.03125
    %v59 = vmul.f32 %v55, %v55
    %v60 = vmul.f32 %v56, %v56
    %v61 = vsub.f32 %v57, %v59
    %v62 = vsub.f32 %v58, %v60
    %v63 = vadd.f32 %v61, 1e-06
    %v64 = vadd.f32 %v62, 1e-06
    %v65 = vrsqrt.pop %v63
    %v66 = vrsqrt.pop %v64
    %v67 = vsub.f32 %v30, %v55
    %v68 = vsub.f32 %v31, %v56
    %v69 = vmul.f32 %v67, %v65
    %v70 = vmul.f32 %v68, %v66
    %v71 = vld [vmem:[%s7] sm:$0x1]
    %v72 = vlaneseq
    %v73 = vshrl.u32 %v72, 7
    %v74 = vsub.s32 0, %v73
    %v75 = vrot.slane %v71, %v74
    %v76 = vmul.f32 %v69, %v75
    %v77 = vmul.f32 %v70, %v75
    %v78 = vld [vmem:[%s7 + $0x1] sm:$0x1]
    %v79 = vlaneseq
    %v80 = vshrl.u32 %v79, 7
    %v81 = vsub.s32 0, %v80
    %v82 = vrot.slane %v78, %v81
    %v83 = vadd.f32 %v76, %v82
    %v84 = vadd.f32 %v77, %v82
    %v85 = vld [vmem:[%s6] sm:$0xff]
    %v86 = vld [vmem:[%s6 + $0x8] sm:$0xff]
    %v87 = vld [vmem:[%s6 + $0x10] sm:$0xff]
    %v88 = vld [vmem:[%s6 + $0x18] sm:$0xff]
    %v89 = vld [vmem:[%s7 + $0x8] sm:$0x1]
    %v90 = vlaneseq
    %v91 = vshrl.u32 %v90, 7
    %v92 = vsub.s32 0, %v91
    %v93 = vrot.slane %v89, %v92
    %v95 = vsel %vm42, %v83, 0
    %v98 = vsel %vm42, %v84, 0
    %100 = vmatprep.subr.mxu0 0.0
    %101 = vmatpush1.msra.mxu0 %v85
    %102 = vmatprep.subr.mxu0 0.0
    %103 = vmatpush1.msra.mxu0 %v86
    %104 = vmatprep.subr.mxu0 0.0
    %105 = vmatpush1.msra.mxu0 %v87
    %106 = vmatprep.subr.mxu0 0.0
    %107 = vmatpush1.msra.mxu0 %v88
    %108 = vmatprep.subr.mxu0 0.0
    %109 = vmatpush1.msra.mxu0 0.0
    %110 = vmatprep.subr.mxu0 0.0
    %111 = vmatpush1.msra.mxu0 0.0
    %112 = vmatprep.subr.mxu0 0.0
    %113 = vmatpush1.msra.mxu0 0.0
    %114 = vmatprep.subr.mxu0 0.0
    %115 = vmatpush1.msra.mxu0 0.0
    %116 = vmatprep.subr.mxu0 0.0
    %117 = vmatpush1.msra.mxu0 0.0
    %118 = vmatprep.subr.mxu0 0.0
    %119 = vmatpush1.msra.mxu0 0.0
    %120 = vmatprep.subr.mxu0 0.0
    %121 = vmatpush1.msra.mxu0 0.0
    %122 = vmatprep.subr.mxu0 0.0
    %123 = vmatpush1.msra.mxu0 0.0
    %124 = vmatprep.subr.mxu0 0.0
    %125 = vmatpush1.msra.mxu0 0.0
    %126 = vmatprep.subr.mxu0 0.0
    %127 = vmatpush1.msra.mxu0 0.0
    %128 = vmatprep.subr.mxu0 0.0
    %129 = vmatpush1.msra.mxu0 0.0
    %130 = vmatprep.subr.mxu0 0.0
    %131 = vmatpush1.msra.mxu0 0.0
    %132 = vmatprep.subr.mxu0 0.0
    %133 = vmatpush1.msra.mxu0 0.0
    %134 = vmatprep.subr.mxu0 0.0
    %135 = vmatpush1.msra.mxu0 0.0
    %136 = vmatprep.subr.mxu0 0.0
    %137 = vmatpush1.msra.mxu0 0.0
    %138 = vmatprep.subr.mxu0 0.0
    %139 = vmatpush1.msra.mxu0 0.0
    %140 = vmatprep.subr.mxu0 0.0
    %141 = vmatpush1.msra.mxu0 0.0
    %142 = vmatprep.subr.mxu0 0.0
    %143 = vmatpush1.msra.mxu0 0.0
    %144 = vmatprep.subr.mxu0 0.0
    %145 = vmatpush1.msra.mxu0 0.0
    %146 = vmatprep.subr.mxu0 0.0
    %147 = vmatpush1.msra.mxu0 0.0
    %148 = vmatprep.subr.mxu0 0.0
    %149 = vmatpush1.msra.mxu0 0.0
    %150 = vmatprep.subr.mxu0 0.0
    %151 = vmatpush1.msra.mxu0 0.0
    %152 = vmatprep.subr.mxu0 0.0
    %153 = vmatpush1.msra.mxu0 0.0
    %154 = vmatprep.subr.mxu0 0.0
    %155 = vmatpush1.msra.mxu0 0.0
    %156 = vmatprep.subr.mxu0 0.0
    %157 = vmatpush1.msra.mxu0 0.0
    %158 = vmatprep.subr.mxu0 0.0
    %159 = vmatpush1.msra.mxu0 0.0
    %160 = vmatprep.subr.mxu0 0.0
    %161 = vmatpush1.msra.mxu0 0.0
    %162 = vmatprep.subr.mxu0 0.0
    %163 = vmatpush1.msra.mxu0 0.0
    %164 = vmatprep.mubr.f32.mxu0 0.0
    %165 = vmatmul.mubr.f32.gmra.mrb[0].mxu0 %v95
    %v166 = vpop.f32.mrb[0].mxu0
    %v167 = vadd.f32 %v93, %v166
    %v168 = vpop.f32.mrb[0].mxu0
    %169 = vmatprep.mubr.f32.mxu0 0.0
    %170 = vmatmul.mubr.f32.gmra.mrb[0].mxu0 %v98
    %v171 = vpop.f32.mrb[0].mxu0
    %v172 = vadd.f32 %v93, %v171
    %v173 = vpop.f32.mrb[0].mxu0
    %174 = vdwg.mxu0
    %v175 = vld [vmem:[%s3] sm:$0xff]
    %177 = vrot.lane.b32.xlu0 %v167, 96
    %v178 = vpop.permute.xlu0 %177
    %vm179 = vcmask 64512
    %v180 = vsel %vm179, %v167, 0
    %v182 = vsel %vm179, %v178, 0
    %184 = vmatprep.subr.mxu0 0.0
    %185 = vmatpush1.xpose.msra.mxu0 %v182
    %186 = vmatprep.subr.mxu0 0.0
    %187 = vmatpush1.xpose.msra.mxu0 0.0
    %188 = vmatprep.subr.mxu0 0.0
    %189 = vmatpush1.xpose.msra.mxu0 0.0
    %190 = vmatprep.subr.mxu0 0.0
    %191 = vmatpush1.xpose.msra.mxu0 0.0
    %192 = vmatprep.subr.mxu0 0.0
    %193 = vmatpush1.xpose.msra.mxu0 0.0
    %194 = vmatprep.subr.mxu0 0.0
    %195 = vmatpush1.xpose.msra.mxu0 0.0
    %196 = vmatprep.subr.mxu0 0.0
    %197 = vmatpush1.xpose.msra.mxu0 0.0
    %198 = vmatprep.subr.mxu0 0.0
    %199 = vmatpush1.xpose.msra.mxu0 0.0
    %200 = vmatprep.subr.mxu0 0.0
    %201 = vmatpush1.xpose.msra.mxu0 0.0
    %202 = vmatprep.subr.mxu0 0.0
    %203 = vmatpush1.xpose.msra.mxu0 0.0
    %204 = vmatprep.subr.mxu0 0.0
    %205 = vmatpush1.xpose.msra.mxu0 0.0
    %206 = vmatprep.subr.mxu0 0.0
    %207 = vmatpush1.xpose.msra.mxu0 0.0
    %208 = vmatprep.subr.mxu0 0.0
    %209 = vmatpush1.xpose.msra.mxu0 0.0
    %210 = vmatprep.subr.mxu0 0.0
    %211 = vmatpush1.xpose.msra.mxu0 0.0
    %212 = vmatprep.subr.mxu0 0.0
    %213 = vmatpush1.xpose.msra.mxu0 0.0
    %214 = vmatprep.subr.mxu0 0.0
    %215 = vmatpush1.xpose.msra.mxu0 0.0
    %216 = vmatprep.subr.mxu0 0.0
    %217 = vmatpush1.xpose.msra.mxu0 0.0
    %218 = vmatprep.subr.mxu0 0.0
    %219 = vmatpush1.xpose.msra.mxu0 0.0
    %220 = vmatprep.subr.mxu0 0.0
    %221 = vmatpush1.xpose.msra.mxu0 0.0
    %222 = vmatprep.subr.mxu0 0.0
    %223 = vmatpush1.xpose.msra.mxu0 0.0
    %224 = vmatprep.subr.mxu0 0.0
    %225 = vmatpush1.xpose.msra.mxu0 0.0
    %226 = vmatprep.subr.mxu0 0.0
    %227 = vmatpush1.xpose.msra.mxu0 0.0
    %228 = vmatprep.subr.mxu0 0.0
    %229 = vmatpush1.xpose.msra.mxu0 0.0
    %230 = vmatprep.subr.mxu0 0.0
    %231 = vmatpush1.xpose.msra.mxu0 0.0
    %232 = vmatprep.subr.mxu0 0.0
    %233 = vmatpush1.xpose.msra.mxu0 0.0
    %234 = vmatprep.subr.mxu0 0.0
    %235 = vmatpush1.xpose.msra.mxu0 0.0
    %236 = vmatprep.subr.mxu0 0.0
    %237 = vmatpush1.xpose.msra.mxu0 0.0
    %238 = vmatprep.subr.mxu0 0.0
    %239 = vmatpush1.xpose.msra.mxu0 0.0
    %240 = vmatprep.subr.mxu0 0.0
    %241 = vmatpush1.xpose.msra.mxu0 0.0
    %242 = vmatprep.subr.mxu0 0.0
    %243 = vmatpush1.xpose.msra.mxu0 0.0
    %244 = vmatprep.subr.mxu0 0.0
    %245 = vmatpush1.xpose.msra.mxu0 0.0
    %246 = vmatprep.subr.mxu0 0.0
    %247 = vmatpush1.xpose.msra.mxu0 0.0
    %248 = vmatprep.mubr.f32.mxu0 0.0
    %249 = vmatmul.mubr.f32.gmra.mrb[0].mxu0 %v180
    %v250 = vpop.f32.mrb[0].mxu0
    %v251 = vadd.f32 %v175, %v250
    %v252 = vpop.f32.mrb[0].mxu0
    %253 = vdwg.mxu0
    %254 = vrot.lane.b32.xlu0 %v167, 120
    %v255 = vpop.permute.xlu0 %254
    %256 = vrot.lane.b32.xlu0 %v167, 88
    %v257 = vpop.permute.xlu0 %256
    %v258 = vsel %vm179, %v255, 0
    %v260 = vsel %vm179, %v257, 0
    %262 = vmatprep.subr.mxu0 0.0
    %263 = vmatpush1.xpose.msra.mxu0 %v260
    %264 = vmatprep.subr.mxu0 0.0
    %265 = vmatpush1.xpose.msra.mxu0 0.0
    %266 = vmatprep.subr.mxu0 0.0
    %267 = vmatpush1.xpose.msra.mxu0 0.0
    %268 = vmatprep.subr.mxu0 0.0
    %269 = vmatpush1.xpose.msra.mxu0 0.0
    %270 = vmatprep.subr.mxu0 0.0
    %271 = vmatpush1.xpose.msra.mxu0 0.0
    %272 = vmatprep.subr.mxu0 0.0
    %273 = vmatpush1.xpose.msra.mxu0 0.0
    %274 = vmatprep.subr.mxu0 0.0
    %275 = vmatpush1.xpose.msra.mxu0 0.0
    %276 = vmatprep.subr.mxu0 0.0
    %277 = vmatpush1.xpose.msra.mxu0 0.0
    %278 = vmatprep.subr.mxu0 0.0
    %279 = vmatpush1.xpose.msra.mxu0 0.0
    %280 = vmatprep.subr.mxu0 0.0
    %281 = vmatpush1.xpose.msra.mxu0 0.0
    %282 = vmatprep.subr.mxu0 0.0
    %283 = vmatpush1.xpose.msra.mxu0 0.0
    %284 = vmatprep.subr.mxu0 0.0
    %285 = vmatpush1.xpose.msra.mxu0 0.0
    %286 = vmatprep.subr.mxu0 0.0
    %287 = vmatpush1.xpose.msra.mxu0 0.0
    %288 = vmatprep.subr.mxu0 0.0
    %289 = vmatpush1.xpose.msra.mxu0 0.0
    %290 = vmatprep.subr.mxu0 0.0
    %291 = vmatpush1.xpose.msra.mxu0 0.0
    %292 = vmatprep.subr.mxu0 0.0
    %293 = vmatpush1.xpose.msra.mxu0 0.0
    %294 = vmatprep.subr.mxu0 0.0
    %295 = vmatpush1.xpose.msra.mxu0 0.0
    %296 = vmatprep.subr.mxu0 0.0
    %297 = vmatpush1.xpose.msra.mxu0 0.0
    %298 = vmatprep.subr.mxu0 0.0
    %299 = vmatpush1.xpose.msra.mxu0 0.0
    %300 = vmatprep.subr.mxu0 0.0
    %301 = vmatpush1.xpose.msra.mxu0 0.0
    %302 = vmatprep.subr.mxu0 0.0
    %303 = vmatpush1.xpose.msra.mxu0 0.0
    %304 = vmatprep.subr.mxu0 0.0
    %305 = vmatpush1.xpose.msra.mxu0 0.0
    %306 = vmatprep.subr.mxu0 0.0
    %307 = vmatpush1.xpose.msra.mxu0 0.0
    %308 = vmatprep.subr.mxu0 0.0
    %309 = vmatpush1.xpose.msra.mxu0 0.0
    %310 = vmatprep.subr.mxu0 0.0
    %311 = vmatpush1.xpose.msra.mxu0 0.0
    %312 = vmatprep.subr.mxu0 0.0
    %313 = vmatpush1.xpose.msra.mxu0 0.0
    %314 = vmatprep.subr.mxu0 0.0
    %315 = vmatpush1.xpose.msra.mxu0 0.0
    %316 = vmatprep.subr.mxu0 0.0
    %317 = vmatpush1.xpose.msra.mxu0 0.0
    %318 = vmatprep.subr.mxu0 0.0
    %319 = vmatpush1.xpose.msra.mxu0 0.0
    %320 = vmatprep.subr.mxu0 0.0
    %321 = vmatpush1.xpose.msra.mxu0 0.0
    %322 = vmatprep.subr.mxu0 0.0
    %323 = vmatpush1.xpose.msra.mxu0 0.0
    %324 = vmatprep.subr.mxu0 0.0
    %325 = vmatpush1.xpose.msra.mxu0 0.0
    %326 = vmatprep.mubr.f32.mxu0 0.0
    %327 = vmatmul.mubr.f32.gmra.mrb[0].mxu0 %v258
    %v328 = vpop.f32.mrb[0].mxu0
    %v329 = vadd.f32 %v175, %v328
    %v330 = vpop.f32.mrb[0].mxu0
    %331 = vdwg.mxu0
    %332 = vrot.lane.b32.xlu0 %v167, 112
    %v333 = vpop.permute.xlu0 %332
    %334 = vrot.lane.b32.xlu0 %v167, 80
    %v335 = vpop.permute.xlu0 %334
    %v336 = vsel %vm179, %v333, 0
    %v338 = vsel %vm179, %v335, 0
    %340 = vmatprep.subr.mxu0 0.0
    %341 = vmatpush1.xpose.msra.mxu0 %v338
    %342 = vmatprep.subr.mxu0 0.0
    %343 = vmatpush1.xpose.msra.mxu0 0.0
    %344 = vmatprep.subr.mxu0 0.0
    %345 = vmatpush1.xpose.msra.mxu0 0.0
    %346 = vmatprep.subr.mxu0 0.0
    %347 = vmatpush1.xpose.msra.mxu0 0.0
    %348 = vmatprep.subr.mxu0 0.0
    %349 = vmatpush1.xpose.msra.mxu0 0.0
    %350 = vmatprep.subr.mxu0 0.0
    %351 = vmatpush1.xpose.msra.mxu0 0.0
    %352 = vmatprep.subr.mxu0 0.0
    %353 = vmatpush1.xpose.msra.mxu0 0.0
    %354 = vmatprep.subr.mxu0 0.0
    %355 = vmatpush1.xpose.msra.mxu0 0.0
    %356 = vmatprep.subr.mxu0 0.0
    %357 = vmatpush1.xpose.msra.mxu0 0.0
    %358 = vmatprep.subr.mxu0 0.0
    %359 = vmatpush1.xpose.msra.mxu0 0.0
    %360 = vmatprep.subr.mxu0 0.0
    %361 = vmatpush1.xpose.msra.mxu0 0.0
    %362 = vmatprep.subr.mxu0 0.0
    %363 = vmatpush1.xpose.msra.mxu0 0.0
    %364 = vmatprep.subr.mxu0 0.0
    %365 = vmatpush1.xpose.msra.mxu0 0.0
    %366 = vmatprep.subr.mxu0 0.0
    %367 = vmatpush1.xpose.msra.mxu0 0.0
    %368 = vmatprep.subr.mxu0 0.0
    %369 = vmatpush1.xpose.msra.mxu0 0.0
    %370 = vmatprep.subr.mxu0 0.0
    %371 = vmatpush1.xpose.msra.mxu0 0.0
    %372 = vmatprep.subr.mxu0 0.0
    %373 = vmatpush1.xpose.msra.mxu0 0.0
    %374 = vmatprep.subr.mxu0 0.0
    %375 = vmatpush1.xpose.msra.mxu0 0.0
    %376 = vmatprep.subr.mxu0 0.0
    %377 = vmatpush1.xpose.msra.mxu0 0.0
    %378 = vmatprep.subr.mxu0 0.0
    %379 = vmatpush1.xpose.msra.mxu0 0.0
    %380 = vmatprep.subr.mxu0 0.0
    %381 = vmatpush1.xpose.msra.mxu0 0.0
    %382 = vmatprep.subr.mxu0 0.0
    %383 = vmatpush1.xpose.msra.mxu0 0.0
    %384 = vmatprep.subr.mxu0 0.0
    %385 = vmatpush1.xpose.msra.mxu0 0.0
    %386 = vmatprep.subr.mxu0 0.0
    %387 = vmatpush1.xpose.msra.mxu0 0.0
    %388 = vmatprep.subr.mxu0 0.0
    %389 = vmatpush1.xpose.msra.mxu0 0.0
    %390 = vmatprep.subr.mxu0 0.0
    %391 = vmatpush1.xpose.msra.mxu0 0.0
    %392 = vmatprep.subr.mxu0 0.0
    %393 = vmatpush1.xpose.msra.mxu0 0.0
    %394 = vmatprep.subr.mxu0 0.0
    %395 = vmatpush1.xpose.msra.mxu0 0.0
    %396 = vmatprep.subr.mxu0 0.0
    %397 = vmatpush1.xpose.msra.mxu0 0.0
    %398 = vmatprep.subr.mxu0 0.0
    %399 = vmatpush1.xpose.msra.mxu0 0.0
    %400 = vmatprep.subr.mxu0 0.0
    %401 = vmatpush1.xpose.msra.mxu0 0.0
    %402 = vmatprep.subr.mxu0 0.0
    %403 = vmatpush1.xpose.msra.mxu0 0.0
    %404 = vmatprep.mubr.f32.mxu0 0.0
    %405 = vmatmul.mubr.f32.gmra.mrb[0].mxu0 %v336
    %v406 = vpop.f32.mrb[0].mxu0
    %v407 = vadd.f32 %v175, %v406
    %v408 = vpop.f32.mrb[0].mxu0
    %409 = vdwg.mxu0
    %410 = vrot.lane.b32.xlu0 %v167, 104
    %v411 = vpop.permute.xlu0 %410
    %412 = vrot.lane.b32.xlu0 %v167, 72
    %v413 = vpop.permute.xlu0 %412
    %v414 = vsel %vm179, %v411, 0
    %v416 = vsel %vm179, %v413, 0
    %418 = vmatprep.subr.mxu0 0.0
    %419 = vmatpush1.xpose.msra.mxu0 %v416
    %420 = vmatprep.subr.mxu0 0.0
    %421 = vmatpush1.xpose.msra.mxu0 0.0
    %422 = vmatprep.subr.mxu0 0.0
    %423 = vmatpush1.xpose.msra.mxu0 0.0
    %424 = vmatprep.subr.mxu0 0.0
    %425 = vmatpush1.xpose.msra.mxu0 0.0
    %426 = vmatprep.subr.mxu0 0.0
    %427 = vmatpush1.xpose.msra.mxu0 0.0
    %428 = vmatprep.subr.mxu0 0.0
    %429 = vmatpush1.xpose.msra.mxu0 0.0
    %430 = vmatprep.subr.mxu0 0.0
    %431 = vmatpush1.xpose.msra.mxu0 0.0
    %432 = vmatprep.subr.mxu0 0.0
    %433 = vmatpush1.xpose.msra.mxu0 0.0
    %434 = vmatprep.subr.mxu0 0.0
    %435 = vmatpush1.xpose.msra.mxu0 0.0
    %436 = vmatprep.subr.mxu0 0.0
    %437 = vmatpush1.xpose.msra.mxu0 0.0
    %438 = vmatprep.subr.mxu0 0.0
    %439 = vmatpush1.xpose.msra.mxu0 0.0
    %440 = vmatprep.subr.mxu0 0.0
    %441 = vmatpush1.xpose.msra.mxu0 0.0
    %442 = vmatprep.subr.mxu0 0.0
    %443 = vmatpush1.xpose.msra.mxu0 0.0
    %444 = vmatprep.subr.mxu0 0.0
    %445 = vmatpush1.xpose.msra.mxu0 0.0
    %446 = vmatprep.subr.mxu0 0.0
    %447 = vmatpush1.xpose.msra.mxu0 0.0
    %448 = vmatprep.subr.mxu0 0.0
    %449 = vmatpush1.xpose.msra.mxu0 0.0
    %450 = vmatprep.subr.mxu0 0.0
    %451 = vmatpush1.xpose.msra.mxu0 0.0
    %452 = vmatprep.subr.mxu0 0.0
    %453 = vmatpush1.xpose.msra.mxu0 0.0
    %454 = vmatprep.subr.mxu0 0.0
    %455 = vmatpush1.xpose.msra.mxu0 0.0
    %456 = vmatprep.subr.mxu0 0.0
    %457 = vmatpush1.xpose.msra.mxu0 0.0
    %458 = vmatprep.subr.mxu0 0.0
    %459 = vmatpush1.xpose.msra.mxu0 0.0
    %460 = vmatprep.subr.mxu0 0.0
    %461 = vmatpush1.xpose.msra.mxu0 0.0
    %462 = vmatprep.subr.mxu0 0.0
    %463 = vmatpush1.xpose.msra.mxu0 0.0
    %464 = vmatprep.subr.mxu0 0.0
    %465 = vmatpush1.xpose.msra.mxu0 0.0
    %466 = vmatprep.subr.mxu0 0.0
    %467 = vmatpush1.xpose.msra.mxu0 0.0
    %468 = vmatprep.subr.mxu0 0.0
    %469 = vmatpush1.xpose.msra.mxu0 0.0
    %470 = vmatprep.subr.mxu0 0.0
    %471 = vmatpush1.xpose.msra.mxu0 0.0
    %472 = vmatprep.subr.mxu0 0.0
    %473 = vmatpush1.xpose.msra.mxu0 0.0
    %474 = vmatprep.subr.mxu0 0.0
    %475 = vmatpush1.xpose.msra.mxu0 0.0
    %476 = vmatprep.subr.mxu0 0.0
    %477 = vmatpush1.xpose.msra.mxu0 0.0
    %478 = vmatprep.subr.mxu0 0.0
    %479 = vmatpush1.xpose.msra.mxu0 0.0
    %480 = vmatprep.subr.mxu0 0.0
    %481 = vmatpush1.xpose.msra.mxu0 0.0
    %482 = vmatprep.mubr.f32.mxu0 0.0
    %483 = vmatmul.mubr.f32.gmra.mrb[0].mxu0 %v414
    %v484 = vpop.f32.mrb[0].mxu0
    %v485 = vadd.f32 %v175, %v484
    %v486 = vpop.f32.mrb[0].mxu0
    %487 = vdwg.mxu0
    %v488 = vsel %vm179, %v251, -inf
    %489 = vmax.xlane.f32.xlu0 %v488
    %v490 = vpop.xlane.xlu0 %489
    %v491 = vsel %vm179, %v329, -inf
    %492 = vmax.xlane.f32.xlu0 %v491
    %v493 = vpop.xlane.xlu0 %492
    %v494 = vsel %vm179, %v407, -inf
    %495 = vmax.xlane.f32.xlu0 %v494
    %v496 = vpop.xlane.xlu0 %495
    %v497 = vsel %vm179, %v485, -inf
    %498 = vmax.xlane.f32.xlu0 %v497
    %v499 = vpop.xlane.xlu0 %498
    %v500 = vsub.f32 %v251, %v490
    %v501 = vsub.f32 %v329, %v493
    %v502 = vsub.f32 %v407, %v496
    %v503 = vsub.f32 %v485, %v499
    %v504 = vmul.f32 %v500, 1.442695
    %v505 = vpow.pop %v504
    %v506 = vmul.f32 %v501, 1.442695
    %v507 = vpow.pop %v506
    %v508 = vmul.f32 %v502, 1.442695
    %v509 = vpow.pop %v508
    %v510 = vmul.f32 %v503, 1.442695
    %v511 = vpow.pop %v510
    %v512 = vsel %vm179, %v505, 0.0
    %513 = vadd.xlane.f32.xlu0 %v512
    %v514 = vpop.xlane.xlu0 %513
    %v515 = vsel %vm179, %v507, 0.0
    %516 = vadd.xlane.f32.xlu0 %v515
    %v517 = vpop.xlane.xlu0 %516
    %v518 = vsel %vm179, %v509, 0.0
    %519 = vadd.xlane.f32.xlu0 %v518
    %v520 = vpop.xlane.xlu0 %519
    %v521 = vsel %vm179, %v511, 0.0
    %522 = vadd.xlane.f32.xlu0 %v521
    %v523 = vpop.xlane.xlu0 %522
    %v524 = vrcp.pop %v514
    %v525 = vrcp.pop %v517
    %v526 = vrcp.pop %v520
    %v527 = vrcp.pop %v523
    %v528 = vmul.f32 %v505, %v524
    %v529 = vmul.f32 %v507, %v525
    %v530 = vmul.f32 %v509, %v526
    %v531 = vmul.f32 %v511, %v527
    %532 = vrot.lane.b32.xlu0 %v167, 64
    %v533 = vpop.permute.xlu0 %532
    %v536 = vsel %vm179, %v528, 0
    %538 = vmatprep.subr.mxu0 0.0
    %539 = vmatpush1.msra.mxu0 %v533
    %540 = vmatprep.subr.mxu0 0.0
    %541 = vmatpush1.msra.mxu0 0.0
    %542 = vmatprep.subr.mxu0 0.0
    %543 = vmatpush1.msra.mxu0 0.0
    %544 = vmatprep.subr.mxu0 0.0
    %545 = vmatpush1.msra.mxu0 0.0
    %546 = vmatprep.subr.mxu0 0.0
    %547 = vmatpush1.msra.mxu0 0.0
    %548 = vmatprep.subr.mxu0 0.0
    %549 = vmatpush1.msra.mxu0 0.0
    %550 = vmatprep.subr.mxu0 0.0
    %551 = vmatpush1.msra.mxu0 0.0
    %552 = vmatprep.subr.mxu0 0.0
    %553 = vmatpush1.msra.mxu0 0.0
    %554 = vmatprep.subr.mxu0 0.0
    %555 = vmatpush1.msra.mxu0 0.0
    %556 = vmatprep.subr.mxu0 0.0
    %557 = vmatpush1.msra.mxu0 0.0
    %558 = vmatprep.subr.mxu0 0.0
    %559 = vmatpush1.msra.mxu0 0.0
    %560 = vmatprep.subr.mxu0 0.0
    %561 = vmatpush1.msra.mxu0 0.0
    %562 = vmatprep.subr.mxu0 0.0
    %563 = vmatpush1.msra.mxu0 0.0
    %564 = vmatprep.subr.mxu0 0.0
    %565 = vmatpush1.msra.mxu0 0.0
    %566 = vmatprep.subr.mxu0 0.0
    %567 = vmatpush1.msra.mxu0 0.0
    %568 = vmatprep.subr.mxu0 0.0
    %569 = vmatpush1.msra.mxu0 0.0
    %570 = vmatprep.subr.mxu0 0.0
    %571 = vmatpush1.msra.mxu0 0.0
    %572 = vmatprep.subr.mxu0 0.0
    %573 = vmatpush1.msra.mxu0 0.0
    %574 = vmatprep.subr.mxu0 0.0
    %575 = vmatpush1.msra.mxu0 0.0
    %576 = vmatprep.subr.mxu0 0.0
    %577 = vmatpush1.msra.mxu0 0.0
    %578 = vmatprep.subr.mxu0 0.0
    %579 = vmatpush1.msra.mxu0 0.0
    %580 = vmatprep.subr.mxu0 0.0
    %581 = vmatpush1.msra.mxu0 0.0
    %582 = vmatprep.subr.mxu0 0.0
    %583 = vmatpush1.msra.mxu0 0.0
    %584 = vmatprep.subr.mxu0 0.0
    %585 = vmatpush1.msra.mxu0 0.0
    %586 = vmatprep.subr.mxu0 0.0
    %587 = vmatpush1.msra.mxu0 0.0
    %588 = vmatprep.subr.mxu0 0.0
    %589 = vmatpush1.msra.mxu0 0.0
    %590 = vmatprep.subr.mxu0 0.0
    %591 = vmatpush1.msra.mxu0 0.0
    %592 = vmatprep.subr.mxu0 0.0
    %593 = vmatpush1.msra.mxu0 0.0
    %594 = vmatprep.subr.mxu0 0.0
    %595 = vmatpush1.msra.mxu0 0.0
    %596 = vmatprep.subr.mxu0 0.0
    %597 = vmatpush1.msra.mxu0 0.0
    %598 = vmatprep.subr.mxu0 0.0
    %599 = vmatpush1.msra.mxu0 0.0
    %600 = vmatprep.subr.mxu0 0.0
    %601 = vmatpush1.msra.mxu0 0.0
    %602 = vmatprep.mubr.f32.mxu0 0.0
    %603 = vmatmul.mubr.f32.gmra.mrb[0].mxu0 %v536
    %v604 = vpop.f32.mrb[0].mxu0
    %v605 = vadd.f32 0.0, %v604
    %v606 = vpop.f32.mrb[0].mxu0
    %607 = vdwg.mxu0
    %v608 = vld [vmem:[%s6 + $0x20] sm:$0xff]
    %609 = vrot.lane.b32.xlu0 %v167, 56
    %v610 = vpop.permute.xlu0 %609
    %v613 = vsel %vm179, %v529, 0
    %615 = vmatprep.subr.mxu0 0.0
    %616 = vmatpush1.msra.mxu0 %v610
    %617 = vmatprep.subr.mxu0 0.0
    %618 = vmatpush1.msra.mxu0 0.0
    %619 = vmatprep.subr.mxu0 0.0
    %620 = vmatpush1.msra.mxu0 0.0
    %621 = vmatprep.subr.mxu0 0.0
    %622 = vmatpush1.msra.mxu0 0.0
    %623 = vmatprep.subr.mxu0 0.0
    %624 = vmatpush1.msra.mxu0 0.0
    %625 = vmatprep.subr.mxu0 0.0
    %626 = vmatpush1.msra.mxu0 0.0
    %627 = vmatprep.subr.mxu0 0.0
    %628 = vmatpush1.msra.mxu0 0.0
    %629 = vmatprep.subr.mxu0 0.0
    %630 = vmatpush1.msra.mxu0 0.0
    %631 = vmatprep.subr.mxu0 0.0
    %632 = vmatpush1.msra.mxu0 0.0
    %633 = vmatprep.subr.mxu0 0.0
    %634 = vmatpush1.msra.mxu0 0.0
    %635 = vmatprep.subr.mxu0 0.0
    %636 = vmatpush1.msra.mxu0 0.0
    %637 = vmatprep.subr.mxu0 0.0
    %638 = vmatpush1.msra.mxu0 0.0
    %639 = vmatprep.subr.mxu0 0.0
    %640 = vmatpush1.msra.mxu0 0.0
    %641 = vmatprep.subr.mxu0 0.0
    %642 = vmatpush1.msra.mxu0 0.0
    %643 = vmatprep.subr.mxu0 0.0
    %644 = vmatpush1.msra.mxu0 0.0
    %645 = vmatprep.subr.mxu0 0.0
    %646 = vmatpush1.msra.mxu0 0.0
    %647 = vmatprep.subr.mxu0 0.0
    %648 = vmatpush1.msra.mxu0 0.0
    %649 = vmatprep.subr.mxu0 0.0
    %650 = vmatpush1.msra.mxu0 0.0
    %651 = vmatprep.subr.mxu0 0.0
    %652 = vmatpush1.msra.mxu0 0.0
    %653 = vmatprep.subr.mxu0 0.0
    %654 = vmatpush1.msra.mxu0 0.0
    %655 = vmatprep.subr.mxu0 0.0
    %656 = vmatpush1.msra.mxu0 0.0
    %657 = vmatprep.subr.mxu0 0.0
    %658 = vmatpush1.msra.mxu0 0.0
    %659 = vmatprep.subr.mxu0 0.0
    %660 = vmatpush1.msra.mxu0 0.0
    %661 = vmatprep.subr.mxu0 0.0
    %662 = vmatpush1.msra.mxu0 0.0
    %663 = vmatprep.subr.mxu0 0.0
    %664 = vmatpush1.msra.mxu0 0.0
    %665 = vmatprep.subr.mxu0 0.0
    %666 = vmatpush1.msra.mxu0 0.0
    %667 = vmatprep.subr.mxu0 0.0
    %668 = vmatpush1.msra.mxu0 0.0
    %669 = vmatprep.subr.mxu0 0.0
    %670 = vmatpush1.msra.mxu0 0.0
    %671 = vmatprep.subr.mxu0 0.0
    %672 = vmatpush1.msra.mxu0 0.0
    %673 = vmatprep.subr.mxu0 0.0
    %674 = vmatpush1.msra.mxu0 0.0
    %675 = vmatprep.subr.mxu0 0.0
    %676 = vmatpush1.msra.mxu0 0.0
    %677 = vmatprep.subr.mxu0 0.0
    %678 = vmatpush1.msra.mxu0 0.0
    %679 = vmatprep.mubr.f32.mxu0 0.0
    %680 = vmatmul.mubr.f32.gmra.mrb[0].mxu0 %v613
    %v681 = vpop.f32.mrb[0].mxu0
    %v682 = vadd.f32 0.0, %v681
    %v683 = vpop.f32.mrb[0].mxu0
    %684 = vdwg.mxu0
    %v685 = vld [vmem:[%s6 + $0x28] sm:$0xff]
    %v687 = vsel %vm179, %v682, 0
    %689 = vmatprep.subr.mxu0 0.0
    %690 = vmatpush1.msra.mxu0 %v685
    %691 = vmatprep.subr.mxu0 0.0
    %692 = vmatpush1.msra.mxu0 0.0
    %693 = vmatprep.subr.mxu0 0.0
    %694 = vmatpush1.msra.mxu0 0.0
    %695 = vmatprep.subr.mxu0 0.0
    %696 = vmatpush1.msra.mxu0 0.0
    %697 = vmatprep.subr.mxu0 0.0
    %698 = vmatpush1.msra.mxu0 0.0
    %699 = vmatprep.subr.mxu0 0.0
    %700 = vmatpush1.msra.mxu0 0.0
    %701 = vmatprep.subr.mxu0 0.0
    %702 = vmatpush1.msra.mxu0 0.0
    %703 = vmatprep.subr.mxu0 0.0
    %704 = vmatpush1.msra.mxu0 0.0
    %705 = vmatprep.subr.mxu0 0.0
    %706 = vmatpush1.msra.mxu0 0.0
    %707 = vmatprep.subr.mxu0 0.0
    %708 = vmatpush1.msra.mxu0 0.0
    %709 = vmatprep.subr.mxu0 0.0
    %710 = vmatpush1.msra.mxu0 0.0
    %711 = vmatprep.subr.mxu0 0.0
    %712 = vmatpush1.msra.mxu0 0.0
    %713 = vmatprep.subr.mxu0 0.0
    %714 = vmatpush1.msra.mxu0 0.0
    %715 = vmatprep.subr.mxu0 0.0
    %716 = vmatpush1.msra.mxu0 0.0
    %717 = vmatprep.subr.mxu0 0.0
    %718 = vmatpush1.msra.mxu0 0.0
    %719 = vmatprep.subr.mxu0 0.0
    %720 = vmatpush1.msra.mxu0 0.0
    %721 = vmatprep.subr.mxu0 0.0
    %722 = vmatpush1.msra.mxu0 0.0
    %723 = vmatprep.subr.mxu0 0.0
    %724 = vmatpush1.msra.mxu0 0.0
    %725 = vmatprep.subr.mxu0 0.0
    %726 = vmatpush1.msra.mxu0 0.0
    %727 = vmatprep.subr.mxu0 0.0
    %728 = vmatpush1.msra.mxu0 0.0
    %729 = vmatprep.subr.mxu0 0.0
    %730 = vmatpush1.msra.mxu0 0.0
    %731 = vmatprep.subr.mxu0 0.0
    %732 = vmatpush1.msra.mxu0 0.0
    %733 = vmatprep.subr.mxu0 0.0
    %734 = vmatpush1.msra.mxu0 0.0
    %735 = vmatprep.subr.mxu0 0.0
    %736 = vmatpush1.msra.mxu0 0.0
    %737 = vmatprep.subr.mxu0 0.0
    %738 = vmatpush1.msra.mxu0 0.0
    %739 = vmatprep.subr.mxu0 0.0
    %740 = vmatpush1.msra.mxu0 0.0
    %741 = vmatprep.subr.mxu0 0.0
    %742 = vmatpush1.msra.mxu0 0.0
    %743 = vmatprep.subr.mxu0 0.0
    %744 = vmatpush1.msra.mxu0 0.0
    %745 = vmatprep.subr.mxu0 0.0
    %746 = vmatpush1.msra.mxu0 0.0
    %747 = vmatprep.subr.mxu0 0.0
    %748 = vmatpush1.msra.mxu0 0.0
    %749 = vmatprep.subr.mxu0 0.0
    %750 = vmatpush1.msra.mxu0 0.0
    %751 = vmatprep.subr.mxu0 0.0
    %752 = vmatpush1.msra.mxu0 0.0
    %753 = vmatprep.mubr.f32.mxu0 0.0
    %754 = vmatmul.mubr.f32.gmra.mrb[0].mxu0 %v687
    %v755 = vpop.f32.mrb[0].mxu0
    %v756 = vadd.f32 0.0, %v755
    %v757 = vpop.f32.mrb[0].mxu0
    %758 = vdwg.mxu0
    %v760 = vsel %vm179, %v605, 0
    %762 = vmatprep.subr.mxu0 0.0
    %763 = vmatpush1.msra.mxu0 %v608
    %764 = vmatprep.subr.mxu0 0.0
    %765 = vmatpush1.msra.mxu0 0.0
    %766 = vmatprep.subr.mxu0 0.0
    %767 = vmatpush1.msra.mxu0 0.0
    %768 = vmatprep.subr.mxu0 0.0
    %769 = vmatpush1.msra.mxu0 0.0
    %770 = vmatprep.subr.mxu0 0.0
    %771 = vmatpush1.msra.mxu0 0.0
    %772 = vmatprep.subr.mxu0 0.0
    %773 = vmatpush1.msra.mxu0 0.0
    %774 = vmatprep.subr.mxu0 0.0
    %775 = vmatpush1.msra.mxu0 0.0
    %776 = vmatprep.subr.mxu0 0.0
    %777 = vmatpush1.msra.mxu0 0.0
    %778 = vmatprep.subr.mxu0 0.0
    %779 = vmatpush1.msra.mxu0 0.0
    %780 = vmatprep.subr.mxu0 0.0
    %781 = vmatpush1.msra.mxu0 0.0
    %782 = vmatprep.subr.mxu0 0.0
    %783 = vmatpush1.msra.mxu0 0.0
    %784 = vmatprep.subr.mxu0 0.0
    %785 = vmatpush1.msra.mxu0 0.0
    %786 = vmatprep.subr.mxu0 0.0
    %787 = vmatpush1.msra.mxu0 0.0
    %788 = vmatprep.subr.mxu0 0.0
    %789 = vmatpush1.msra.mxu0 0.0
    %790 = vmatprep.subr.mxu0 0.0
    %791 = vmatpush1.msra.mxu0 0.0
    %792 = vmatprep.subr.mxu0 0.0
    %793 = vmatpush1.msra.mxu0 0.0
    %794 = vmatprep.subr.mxu0 0.0
    %795 = vmatpush1.msra.mxu0 0.0
    %796 = vmatprep.subr.mxu0 0.0
    %797 = vmatpush1.msra.mxu0 0.0
    %798 = vmatprep.subr.mxu0 0.0
    %799 = vmatpush1.msra.mxu0 0.0
    %800 = vmatprep.subr.mxu0 0.0
    %801 = vmatpush1.msra.mxu0 0.0
    %802 = vmatprep.subr.mxu0 0.0
    %803 = vmatpush1.msra.mxu0 0.0
    %804 = vmatprep.subr.mxu0 0.0
    %805 = vmatpush1.msra.mxu0 0.0
    %806 = vmatprep.subr.mxu0 0.0
    %807 = vmatpush1.msra.mxu0 0.0
    %808 = vmatprep.subr.mxu0 0.0
    %809 = vmatpush1.msra.mxu0 0.0
    %810 = vmatprep.subr.mxu0 0.0
    %811 = vmatpush1.msra.mxu0 0.0
    %812 = vmatprep.subr.mxu0 0.0
    %813 = vmatpush1.msra.mxu0 0.0
    %814 = vmatprep.subr.mxu0 0.0
    %815 = vmatpush1.msra.mxu0 0.0
    %816 = vmatprep.subr.mxu0 0.0
    %817 = vmatpush1.msra.mxu0 0.0
    %818 = vmatprep.subr.mxu0 0.0
    %819 = vmatpush1.msra.mxu0 0.0
    %820 = vmatprep.subr.mxu0 0.0
    %821 = vmatpush1.msra.mxu0 0.0
    %822 = vmatprep.subr.mxu0 0.0
    %823 = vmatpush1.msra.mxu0 0.0
    %824 = vmatprep.subr.mxu0 0.0
    %825 = vmatpush1.msra.mxu0 0.0
    %826 = vmatprep.mubr.f32.mxu0 0.0
    %827 = vmatmul.mubr.f32.gmra.mrb[0].mxu0 %v760
    %v828 = vpop.f32.mrb[0].mxu0
    %v829 = vadd.f32 %v756, %v828
    %v830 = vpop.f32.mrb[0].mxu0
    %831 = vdwg.mxu0
    %832 = vrot.lane.b32.xlu0 %v167, 48
    %v833 = vpop.permute.xlu0 %832
    %v836 = vsel %vm179, %v530, 0
    %838 = vmatprep.subr.mxu0 0.0
    %839 = vmatpush1.msra.mxu0 %v833
    %840 = vmatprep.subr.mxu0 0.0
    %841 = vmatpush1.msra.mxu0 0.0
    %842 = vmatprep.subr.mxu0 0.0
    %843 = vmatpush1.msra.mxu0 0.0
    %844 = vmatprep.subr.mxu0 0.0
    %845 = vmatpush1.msra.mxu0 0.0
    %846 = vmatprep.subr.mxu0 0.0
    %847 = vmatpush1.msra.mxu0 0.0
    %848 = vmatprep.subr.mxu0 0.0
    %849 = vmatpush1.msra.mxu0 0.0
    %850 = vmatprep.subr.mxu0 0.0
    %851 = vmatpush1.msra.mxu0 0.0
    %852 = vmatprep.subr.mxu0 0.0
    %853 = vmatpush1.msra.mxu0 0.0
    %854 = vmatprep.subr.mxu0 0.0
    %855 = vmatpush1.msra.mxu0 0.0
    %856 = vmatprep.subr.mxu0 0.0
    %857 = vmatpush1.msra.mxu0 0.0
    %858 = vmatprep.subr.mxu0 0.0
    %859 = vmatpush1.msra.mxu0 0.0
    %860 = vmatprep.subr.mxu0 0.0
    %861 = vmatpush1.msra.mxu0 0.0
    %862 = vmatprep.subr.mxu0 0.0
    %863 = vmatpush1.msra.mxu0 0.0
    %864 = vmatprep.subr.mxu0 0.0
    %865 = vmatpush1.msra.mxu0 0.0
    %866 = vmatprep.subr.mxu0 0.0
    %867 = vmatpush1.msra.mxu0 0.0
    %868 = vmatprep.subr.mxu0 0.0
    %869 = vmatpush1.msra.mxu0 0.0
    %870 = vmatprep.subr.mxu0 0.0
    %871 = vmatpush1.msra.mxu0 0.0
    %872 = vmatprep.subr.mxu0 0.0
    %873 = vmatpush1.msra.mxu0 0.0
    %874 = vmatprep.subr.mxu0 0.0
    %875 = vmatpush1.msra.mxu0 0.0
    %876 = vmatprep.subr.mxu0 0.0
    %877 = vmatpush1.msra.mxu0 0.0
    %878 = vmatprep.subr.mxu0 0.0
    %879 = vmatpush1.msra.mxu0 0.0
    %880 = vmatprep.subr.mxu0 0.0
    %881 = vmatpush1.msra.mxu0 0.0
    %882 = vmatprep.subr.mxu0 0.0
    %883 = vmatpush1.msra.mxu0 0.0
    %884 = vmatprep.subr.mxu0 0.0
    %885 = vmatpush1.msra.mxu0 0.0
    %886 = vmatprep.subr.mxu0 0.0
    %887 = vmatpush1.msra.mxu0 0.0
    %888 = vmatprep.subr.mxu0 0.0
    %889 = vmatpush1.msra.mxu0 0.0
    %890 = vmatprep.subr.mxu0 0.0
    %891 = vmatpush1.msra.mxu0 0.0
    %892 = vmatprep.subr.mxu0 0.0
    %893 = vmatpush1.msra.mxu0 0.0
    %894 = vmatprep.subr.mxu0 0.0
    %895 = vmatpush1.msra.mxu0 0.0
    %896 = vmatprep.subr.mxu0 0.0
    %897 = vmatpush1.msra.mxu0 0.0
    %898 = vmatprep.subr.mxu0 0.0
    %899 = vmatpush1.msra.mxu0 0.0
    %900 = vmatprep.subr.mxu0 0.0
    %901 = vmatpush1.msra.mxu0 0.0
    %902 = vmatprep.mubr.f32.mxu0 0.0
    %903 = vmatmul.mubr.f32.gmra.mrb[0].mxu0 %v836
    %v904 = vpop.f32.mrb[0].mxu0
    %v905 = vadd.f32 0.0, %v904
    %v906 = vpop.f32.mrb[0].mxu0
    %907 = vdwg.mxu0
    %v908 = vld [vmem:[%s6 + $0x30] sm:$0xff]
    %v910 = vsel %vm179, %v905, 0
    %912 = vmatprep.subr.mxu0 0.0
    %913 = vmatpush1.msra.mxu0 %v908
    %914 = vmatprep.subr.mxu0 0.0
    %915 = vmatpush1.msra.mxu0 0.0
    %916 = vmatprep.subr.mxu0 0.0
    %917 = vmatpush1.msra.mxu0 0.0
    %918 = vmatprep.subr.mxu0 0.0
    %919 = vmatpush1.msra.mxu0 0.0
    %920 = vmatprep.subr.mxu0 0.0
    %921 = vmatpush1.msra.mxu0 0.0
    %922 = vmatprep.subr.mxu0 0.0
    %923 = vmatpush1.msra.mxu0 0.0
    %924 = vmatprep.subr.mxu0 0.0
    %925 = vmatpush1.msra.mxu0 0.0
    %926 = vmatprep.subr.mxu0 0.0
    %927 = vmatpush1.msra.mxu0 0.0
    %928 = vmatprep.subr.mxu0 0.0
    %929 = vmatpush1.msra.mxu0 0.0
    %930 = vmatprep.subr.mxu0 0.0
    %931 = vmatpush1.msra.mxu0 0.0
    %932 = vmatprep.subr.mxu0 0.0
    %933 = vmatpush1.msra.mxu0 0.0
    %934 = vmatprep.subr.mxu0 0.0
    %935 = vmatpush1.msra.mxu0 0.0
    %936 = vmatprep.subr.mxu0 0.0
    %937 = vmatpush1.msra.mxu0 0.0
    %938 = vmatprep.subr.mxu0 0.0
    %939 = vmatpush1.msra.mxu0 0.0
    %940 = vmatprep.subr.mxu0 0.0
    %941 = vmatpush1.msra.mxu0 0.0
    %942 = vmatprep.subr.mxu0 0.0
    %943 = vmatpush1.msra.mxu0 0.0
    %944 = vmatprep.subr.mxu0 0.0
    %945 = vmatpush1.msra.mxu0 0.0
    %946 = vmatprep.subr.mxu0 0.0
    %947 = vmatpush1.msra.mxu0 0.0
    %948 = vmatprep.subr.mxu0 0.0
    %949 = vmatpush1.msra.mxu0 0.0
    %950 = vmatprep.subr.mxu0 0.0
    %951 = vmatpush1.msra.mxu0 0.0
    %952 = vmatprep.subr.mxu0 0.0
    %953 = vmatpush1.msra.mxu0 0.0
    %954 = vmatprep.subr.mxu0 0.0
    %955 = vmatpush1.msra.mxu0 0.0
    %956 = vmatprep.subr.mxu0 0.0
    %957 = vmatpush1.msra.mxu0 0.0
    %958 = vmatprep.subr.mxu0 0.0
    %959 = vmatpush1.msra.mxu0 0.0
    %960 = vmatprep.subr.mxu0 0.0
    %961 = vmatpush1.msra.mxu0 0.0
    %962 = vmatprep.subr.mxu0 0.0
    %963 = vmatpush1.msra.mxu0 0.0
    %964 = vmatprep.subr.mxu0 0.0
    %965 = vmatpush1.msra.mxu0 0.0
    %966 = vmatprep.subr.mxu0 0.0
    %967 = vmatpush1.msra.mxu0 0.0
    %968 = vmatprep.subr.mxu0 0.0
    %969 = vmatpush1.msra.mxu0 0.0
    %970 = vmatprep.subr.mxu0 0.0
    %971 = vmatpush1.msra.mxu0 0.0
    %972 = vmatprep.subr.mxu0 0.0
    %973 = vmatpush1.msra.mxu0 0.0
    %974 = vmatprep.subr.mxu0 0.0
    %975 = vmatpush1.msra.mxu0 0.0
    %976 = vmatprep.mubr.f32.mxu0 0.0
    %977 = vmatmul.mubr.f32.gmra.mrb[0].mxu0 %v910
    %v978 = vpop.f32.mrb[0].mxu0
    %v979 = vadd.f32 0.0, %v978
    %v980 = vpop.f32.mrb[0].mxu0
    %981 = vdwg.mxu0
    %v982 = vadd.f32 %v829, %v979
    %983 = vrot.lane.b32.xlu0 %v167, 40
    %v984 = vpop.permute.xlu0 %983
    %v987 = vsel %vm179, %v531, 0
    %989 = vmatprep.subr.mxu0 0.0
    %990 = vmatpush1.msra.mxu0 %v984
    %991 = vmatprep.subr.mxu0 0.0
    %992 = vmatpush1.msra.mxu0 0.0
    %993 = vmatprep.subr.mxu0 0.0
    %994 = vmatpush1.msra.mxu0 0.0
    %995 = vmatprep.subr.mxu0 0.0
    %996 = vmatpush1.msra.mxu0 0.0
    %997 = vmatprep.subr.mxu0 0.0
    %998 = vmatpush1.msra.mxu0 0.0
    %999 = vmatprep.subr.mxu0 0.0
    %1000 = vmatpush1.msra.mxu0 0.0
    %1001 = vmatprep.subr.mxu0 0.0
    %1002 = vmatpush1.msra.mxu0 0.0
    %1003 = vmatprep.subr.mxu0 0.0
    %1004 = vmatpush1.msra.mxu0 0.0
    %1005 = vmatprep.subr.mxu0 0.0
    %1006 = vmatpush1.msra.mxu0 0.0
    %1007 = vmatprep.subr.mxu0 0.0
    %1008 = vmatpush1.msra.mxu0 0.0
    %1009 = vmatprep.subr.mxu0 0.0
    %1010 = vmatpush1.msra.mxu0 0.0
    %1011 = vmatprep.subr.mxu0 0.0
    %1012 = vmatpush1.msra.mxu0 0.0
    %1013 = vmatprep.subr.mxu0 0.0
    %1014 = vmatpush1.msra.mxu0 0.0
    %1015 = vmatprep.subr.mxu0 0.0
    %1016 = vmatpush1.msra.mxu0 0.0
    %1017 = vmatprep.subr.mxu0 0.0
    %1018 = vmatpush1.msra.mxu0 0.0
    %1019 = vmatprep.subr.mxu0 0.0
    %1020 = vmatpush1.msra.mxu0 0.0
    %1021 = vmatprep.subr.mxu0 0.0
    %1022 = vmatpush1.msra.mxu0 0.0
    %1023 = vmatprep.subr.mxu0 0.0
    %1024 = vmatpush1.msra.mxu0 0.0
    %1025 = vmatprep.subr.mxu0 0.0
    %1026 = vmatpush1.msra.mxu0 0.0
    %1027 = vmatprep.subr.mxu0 0.0
    %1028 = vmatpush1.msra.mxu0 0.0
    %1029 = vmatprep.subr.mxu0 0.0
    %1030 = vmatpush1.msra.mxu0 0.0
    %1031 = vmatprep.subr.mxu0 0.0
    %1032 = vmatpush1.msra.mxu0 0.0
    %1033 = vmatprep.subr.mxu0 0.0
    %1034 = vmatpush1.msra.mxu0 0.0
    %1035 = vmatprep.subr.mxu0 0.0
    %1036 = vmatpush1.msra.mxu0 0.0
    %1037 = vmatprep.subr.mxu0 0.0
    %1038 = vmatpush1.msra.mxu0 0.0
    %1039 = vmatprep.subr.mxu0 0.0
    %1040 = vmatpush1.msra.mxu0 0.0
    %1041 = vmatprep.subr.mxu0 0.0
    %1042 = vmatpush1.msra.mxu0 0.0
    %1043 = vmatprep.subr.mxu0 0.0
    %1044 = vmatpush1.msra.mxu0 0.0
    %1045 = vmatprep.subr.mxu0 0.0
    %1046 = vmatpush1.msra.mxu0 0.0
    %1047 = vmatprep.subr.mxu0 0.0
    %1048 = vmatpush1.msra.mxu0 0.0
    %1049 = vmatprep.subr.mxu0 0.0
    %1050 = vmatpush1.msra.mxu0 0.0
    %1051 = vmatprep.subr.mxu0 0.0
    %1052 = vmatpush1.msra.mxu0 0.0
    %1053 = vmatprep.mubr.f32.mxu0 0.0
    %1054 = vmatmul.mubr.f32.gmra.mrb[0].mxu0 %v987
    %v1055 = vpop.f32.mrb[0].mxu0
    %v1056 = vadd.f32 0.0, %v1055
    %v1057 = vpop.f32.mrb[0].mxu0
    %1058 = vdwg.mxu0
    %v1059 = vld [vmem:[%s6 + $0x38] sm:$0xff]
    %v1061 = vsel %vm179, %v1056, 0
    %1063 = vmatprep.subr.mxu0 0.0
    %1064 = vmatpush1.msra.mxu0 %v1059
    %1065 = vmatprep.subr.mxu0 0.0
    %1066 = vmatpush1.msra.mxu0 0.0
    %1067 = vmatprep.subr.mxu0 0.0
    %1068 = vmatpush1.msra.mxu0 0.0
    %1069 = vmatprep.subr.mxu0 0.0
    %1070 = vmatpush1.msra.mxu0 0.0
    %1071 = vmatprep.subr.mxu0 0.0
    %1072 = vmatpush1.msra.mxu0 0.0
    %1073 = vmatprep.subr.mxu0 0.0
    %1074 = vmatpush1.msra.mxu0 0.0
    %1075 = vmatprep.subr.mxu0 0.0
    %1076 = vmatpush1.msra.mxu0 0.0
    %1077 = vmatprep.subr.mxu0 0.0
    %1078 = vmatpush1.msra.mxu0 0.0
    %1079 = vmatprep.subr.mxu0 0.0
    %1080 = vmatpush1.msra.mxu0 0.0
    %1081 = vmatprep.subr.mxu0 0.0
    %1082 = vmatpush1.msra.mxu0 0.0
    %1083 = vmatprep.subr.mxu0 0.0
    %1084 = vmatpush1.msra.mxu0 0.0
    %1085 = vmatprep.subr.mxu0 0.0
    %1086 = vmatpush1.msra.mxu0 0.0
    %1087 = vmatprep.subr.mxu0 0.0
    %1088 = vmatpush1.msra.mxu0 0.0
    %1089 = vmatprep.subr.mxu0 0.0
    %1090 = vmatpush1.msra.mxu0 0.0
    %1091 = vmatprep.subr.mxu0 0.0
    %1092 = vmatpush1.msra.mxu0 0.0
    %1093 = vmatprep.subr.mxu0 0.0
    %1094 = vmatpush1.msra.mxu0 0.0
    %1095 = vmatprep.subr.mxu0 0.0
    %1096 = vmatpush1.msra.mxu0 0.0
    %1097 = vmatprep.subr.mxu0 0.0
    %1098 = vmatpush1.msra.mxu0 0.0
    %1099 = vmatprep.subr.mxu0 0.0
    %1100 = vmatpush1.msra.mxu0 0.0
    %1101 = vmatprep.subr.mxu0 0.0
    %1102 = vmatpush1.msra.mxu0 0.0
    %1103 = vmatprep.subr.mxu0 0.0
    %1104 = vmatpush1.msra.mxu0 0.0
    %1105 = vmatprep.subr.mxu0 0.0
    %1106 = vmatpush1.msra.mxu0 0.0
    %1107 = vmatprep.subr.mxu0 0.0
    %1108 = vmatpush1.msra.mxu0 0.0
    %1109 = vmatprep.subr.mxu0 0.0
    %1110 = vmatpush1.msra.mxu0 0.0
    %1111 = vmatprep.subr.mxu0 0.0
    %1112 = vmatpush1.msra.mxu0 0.0
    %1113 = vmatprep.subr.mxu0 0.0
    %1114 = vmatpush1.msra.mxu0 0.0
    %1115 = vmatprep.subr.mxu0 0.0
    %1116 = vmatpush1.msra.mxu0 0.0
    %1117 = vmatprep.subr.mxu0 0.0
    %1118 = vmatpush1.msra.mxu0 0.0
    %1119 = vmatprep.subr.mxu0 0.0
    %1120 = vmatpush1.msra.mxu0 0.0
    %1121 = vmatprep.subr.mxu0 0.0
    %1122 = vmatpush1.msra.mxu0 0.0
    %1123 = vmatprep.subr.mxu0 0.0
    %1124 = vmatpush1.msra.mxu0 0.0
    %1125 = vmatprep.subr.mxu0 0.0
    %1126 = vmatpush1.msra.mxu0 0.0
    %1127 = vmatprep.mubr.f32.mxu0 0.0
    %1128 = vmatmul.mubr.f32.gmra.mrb[0].mxu0 %v1061
    %v1129 = vpop.f32.mrb[0].mxu0
    %v1130 = vadd.f32 0.0, %v1129
    %v1131 = vpop.f32.mrb[0].mxu0
    %1132 = vdwg.mxu0
    %v1133 = vadd.f32 %v982, %v1130
    %s1134 = scalar_lea.vmem %s3, 8
    %v1135 = vld [vmem:[%s1134] sm:$0xff]
    %1137 = vrot.lane.b32.xlu0 %v172, 96
    %v1138 = vpop.permute.xlu0 %1137
    %v1139 = vsel %vm179, %v172, 0
    %v1141 = vsel %vm179, %v1138, 0
    %1143 = vmatprep.subr.mxu0 0.0
    %1144 = vmatpush1.xpose.msra.mxu0 %v1141
    %1145 = vmatprep.subr.mxu0 0.0
    %1146 = vmatpush1.xpose.msra.mxu0 0.0
    %1147 = vmatprep.subr.mxu0 0.0
    %1148 = vmatpush1.xpose.msra.mxu0 0.0
    %1149 = vmatprep.subr.mxu0 0.0
    %1150 = vmatpush1.xpose.msra.mxu0 0.0
    %1151 = vmatprep.subr.mxu0 0.0
    %1152 = vmatpush1.xpose.msra.mxu0 0.0
    %1153 = vmatprep.subr.mxu0 0.0
    %1154 = vmatpush1.xpose.msra.mxu0 0.0
    %1155 = vmatprep.subr.mxu0 0.0
    %1156 = vmatpush1.xpose.msra.mxu0 0.0
    %1157 = vmatprep.subr.mxu0 0.0
    %1158 = vmatpush1.xpose.msra.mxu0 0.0
    %1159 = vmatprep.subr.mxu0 0.0
    %1160 = vmatpush1.xpose.msra.mxu0 0.0
    %1161 = vmatprep.subr.mxu0 0.0
    %1162 = vmatpush1.xpose.msra.mxu0 0.0
    %1163 = vmatprep.subr.mxu0 0.0
    %1164 = vmatpush1.xpose.msra.mxu0 0.0
    %1165 = vmatprep.subr.mxu0 0.0
    %1166 = vmatpush1.xpose.msra.mxu0 0.0
    %1167 = vmatprep.subr.mxu0 0.0
    %1168 = vmatpush1.xpose.msra.mxu0 0.0
    %1169 = vmatprep.subr.mxu0 0.0
    %1170 = vmatpush1.xpose.msra.mxu0 0.0
    %1171 = vmatprep.subr.mxu0 0.0
    %1172 = vmatpush1.xpose.msra.mxu0 0.0
    %1173 = vmatprep.subr.mxu0 0.0
    %1174 = vmatpush1.xpose.msra.mxu0 0.0
    %1175 = vmatprep.subr.mxu0 0.0
    %1176 = vmatpush1.xpose.msra.mxu0 0.0
    %1177 = vmatprep.subr.mxu0 0.0
    %1178 = vmatpush1.xpose.msra.mxu0 0.0
    %1179 = vmatprep.subr.mxu0 0.0
    %1180 = vmatpush1.xpose.msra.mxu0 0.0
    %1181 = vmatprep.subr.mxu0 0.0
    %1182 = vmatpush1.xpose.msra.mxu0 0.0
    %1183 = vmatprep.subr.mxu0 0.0
    %1184 = vmatpush1.xpose.msra.mxu0 0.0
    %1185 = vmatprep.subr.mxu0 0.0
    %1186 = vmatpush1.xpose.msra.mxu0 0.0
    %1187 = vmatprep.subr.mxu0 0.0
    %1188 = vmatpush1.xpose.msra.mxu0 0.0
    %1189 = vmatprep.subr.mxu0 0.0
    %1190 = vmatpush1.xpose.msra.mxu0 0.0
    %1191 = vmatprep.subr.mxu0 0.0
    %1192 = vmatpush1.xpose.msra.mxu0 0.0
    %1193 = vmatprep.subr.mxu0 0.0
    %1194 = vmatpush1.xpose.msra.mxu0 0.0
    %1195 = vmatprep.subr.mxu0 0.0
    %1196 = vmatpush1.xpose.msra.mxu0 0.0
    %1197 = vmatprep.subr.mxu0 0.0
    %1198 = vmatpush1.xpose.msra.mxu0 0.0
    %1199 = vmatprep.subr.mxu0 0.0
    %1200 = vmatpush1.xpose.msra.mxu0 0.0
    %1201 = vmatprep.subr.mxu0 0.0
    %1202 = vmatpush1.xpose.msra.mxu0 0.0
    %1203 = vmatprep.subr.mxu0 0.0
    %1204 = vmatpush1.xpose.msra.mxu0 0.0
    %1205 = vmatprep.subr.mxu0 0.0
    %1206 = vmatpush1.xpose.msra.mxu0 0.0
    %1207 = vmatprep.mubr.f32.mxu0 0.0
    %1208 = vmatmul.mubr.f32.gmra.mrb[0].mxu0 %v1139
    %v1209 = vpop.f32.mrb[0].mxu0
    %v1210 = vadd.f32 %v1135, %v1209
    %v1211 = vpop.f32.mrb[0].mxu0
    %1212 = vdwg.mxu0
    %1213 = vrot.lane.b32.xlu0 %v172, 120
    %v1214 = vpop.permute.xlu0 %1213
    %1215 = vrot.lane.b32.xlu0 %v172, 88
    %v1216 = vpop.permute.xlu0 %1215
    %v1217 = vsel %vm179, %v1214, 0
    %v1219 = vsel %vm179, %v1216, 0
    %1221 = vmatprep.subr.mxu0 0.0
    %1222 = vmatpush1.xpose.msra.mxu0 %v1219
    %1223 = vmatprep.subr.mxu0 0.0
    %1224 = vmatpush1.xpose.msra.mxu0 0.0
    %1225 = vmatprep.subr.mxu0 0.0
    %1226 = vmatpush1.xpose.msra.mxu0 0.0
    %1227 = vmatprep.subr.mxu0 0.0
    %1228 = vmatpush1.xpose.msra.mxu0 0.0
    %1229 = vmatprep.subr.mxu0 0.0
    %1230 = vmatpush1.xpose.msra.mxu0 0.0
    %1231 = vmatprep.subr.mxu0 0.0
    %1232 = vmatpush1.xpose.msra.mxu0 0.0
    %1233 = vmatprep.subr.mxu0 0.0
    %1234 = vmatpush1.xpose.msra.mxu0 0.0
    %1235 = vmatprep.subr.mxu0 0.0
    %1236 = vmatpush1.xpose.msra.mxu0 0.0
    %1237 = vmatprep.subr.mxu0 0.0
    %1238 = vmatpush1.xpose.msra.mxu0 0.0
    %1239 = vmatprep.subr.mxu0 0.0
    %1240 = vmatpush1.xpose.msra.mxu0 0.0
    %1241 = vmatprep.subr.mxu0 0.0
    %1242 = vmatpush1.xpose.msra.mxu0 0.0
    %1243 = vmatprep.subr.mxu0 0.0
    %1244 = vmatpush1.xpose.msra.mxu0 0.0
    %1245 = vmatprep.subr.mxu0 0.0
    %1246 = vmatpush1.xpose.msra.mxu0 0.0
    %1247 = vmatprep.subr.mxu0 0.0
    %1248 = vmatpush1.xpose.msra.mxu0 0.0
    %1249 = vmatprep.subr.mxu0 0.0
    %1250 = vmatpush1.xpose.msra.mxu0 0.0
    %1251 = vmatprep.subr.mxu0 0.0
    %1252 = vmatpush1.xpose.msra.mxu0 0.0
    %1253 = vmatprep.subr.mxu0 0.0
    %1254 = vmatpush1.xpose.msra.mxu0 0.0
    %1255 = vmatprep.subr.mxu0 0.0
    %1256 = vmatpush1.xpose.msra.mxu0 0.0
    %1257 = vmatprep.subr.mxu0 0.0
    %1258 = vmatpush1.xpose.msra.mxu0 0.0
    %1259 = vmatprep.subr.mxu0 0.0
    %1260 = vmatpush1.xpose.msra.mxu0 0.0
    %1261 = vmatprep.subr.mxu0 0.0
    %1262 = vmatpush1.xpose.msra.mxu0 0.0
    %1263 = vmatprep.subr.mxu0 0.0
    %1264 = vmatpush1.xpose.msra.mxu0 0.0
    %1265 = vmatprep.subr.mxu0 0.0
    %1266 = vmatpush1.xpose.msra.mxu0 0.0
    %1267 = vmatprep.subr.mxu0 0.0
    %1268 = vmatpush1.xpose.msra.mxu0 0.0
    %1269 = vmatprep.subr.mxu0 0.0
    %1270 = vmatpush1.xpose.msra.mxu0 0.0
    %1271 = vmatprep.subr.mxu0 0.0
    %1272 = vmatpush1.xpose.msra.mxu0 0.0
    %1273 = vmatprep.subr.mxu0 0.0
    %1274 = vmatpush1.xpose.msra.mxu0 0.0
    %1275 = vmatprep.subr.mxu0 0.0
    %1276 = vmatpush1.xpose.msra.mxu0 0.0
    %1277 = vmatprep.subr.mxu0 0.0
    %1278 = vmatpush1.xpose.msra.mxu0 0.0
    %1279 = vmatprep.subr.mxu0 0.0
    %1280 = vmatpush1.xpose.msra.mxu0 0.0
    %1281 = vmatprep.subr.mxu0 0.0
    %1282 = vmatpush1.xpose.msra.mxu0 0.0
    %1283 = vmatprep.subr.mxu0 0.0
    %1284 = vmatpush1.xpose.msra.mxu0 0.0
    %1285 = vmatprep.mubr.f32.mxu0 0.0
    %1286 = vmatmul.mubr.f32.gmra.mrb[0].mxu0 %v1217
    %v1287 = vpop.f32.mrb[0].mxu0
    %v1288 = vadd.f32 %v1135, %v1287
    %v1289 = vpop.f32.mrb[0].mxu0
    %1290 = vdwg.mxu0
    %1291 = vrot.lane.b32.xlu0 %v172, 112
    %v1292 = vpop.permute.xlu0 %1291
    %1293 = vrot.lane.b32.xlu0 %v172, 80
    %v1294 = vpop.permute.xlu0 %1293
    %v1295 = vsel %vm179, %v1292, 0
    %v1297 = vsel %vm179, %v1294, 0
    %1299 = vmatprep.subr.mxu0 0.0
    %1300 = vmatpush1.xpose.msra.mxu0 %v1297
    %1301 = vmatprep.subr.mxu0 0.0
    %1302 = vmatpush1.xpose.msra.mxu0 0.0
    %1303 = vmatprep.subr.mxu0 0.0
    %1304 = vmatpush1.xpose.msra.mxu0 0.0
    %1305 = vmatprep.subr.mxu0 0.0
    %1306 = vmatpush1.xpose.msra.mxu0 0.0
    %1307 = vmatprep.subr.mxu0 0.0
    %1308 = vmatpush1.xpose.msra.mxu0 0.0
    %1309 = vmatprep.subr.mxu0 0.0
    %1310 = vmatpush1.xpose.msra.mxu0 0.0
    %1311 = vmatprep.subr.mxu0 0.0
    %1312 = vmatpush1.xpose.msra.mxu0 0.0
    %1313 = vmatprep.subr.mxu0 0.0
    %1314 = vmatpush1.xpose.msra.mxu0 0.0
    %1315 = vmatprep.subr.mxu0 0.0
    %1316 = vmatpush1.xpose.msra.mxu0 0.0
    %1317 = vmatprep.subr.mxu0 0.0
    %1318 = vmatpush1.xpose.msra.mxu0 0.0
    %1319 = vmatprep.subr.mxu0 0.0
    %1320 = vmatpush1.xpose.msra.mxu0 0.0
    %1321 = vmatprep.subr.mxu0 0.0
    %1322 = vmatpush1.xpose.msra.mxu0 0.0
    %1323 = vmatprep.subr.mxu0 0.0
    %1324 = vmatpush1.xpose.msra.mxu0 0.0
    %1325 = vmatprep.subr.mxu0 0.0
    %1326 = vmatpush1.xpose.msra.mxu0 0.0
    %1327 = vmatprep.subr.mxu0 0.0
    %1328 = vmatpush1.xpose.msra.mxu0 0.0
    %1329 = vmatprep.subr.mxu0 0.0
    %1330 = vmatpush1.xpose.msra.mxu0 0.0
    %1331 = vmatprep.subr.mxu0 0.0
    %1332 = vmatpush1.xpose.msra.mxu0 0.0
    %1333 = vmatprep.subr.mxu0 0.0
    %1334 = vmatpush1.xpose.msra.mxu0 0.0
    %1335 = vmatprep.subr.mxu0 0.0
    %1336 = vmatpush1.xpose.msra.mxu0 0.0
    %1337 = vmatprep.subr.mxu0 0.0
    %1338 = vmatpush1.xpose.msra.mxu0 0.0
    %1339 = vmatprep.subr.mxu0 0.0
    %1340 = vmatpush1.xpose.msra.mxu0 0.0
    %1341 = vmatprep.subr.mxu0 0.0
    %1342 = vmatpush1.xpose.msra.mxu0 0.0
    %1343 = vmatprep.subr.mxu0 0.0
    %1344 = vmatpush1.xpose.msra.mxu0 0.0
    %1345 = vmatprep.subr.mxu0 0.0
    %1346 = vmatpush1.xpose.msra.mxu0 0.0
    %1347 = vmatprep.subr.mxu0 0.0
    %1348 = vmatpush1.xpose.msra.mxu0 0.0
    %1349 = vmatprep.subr.mxu0 0.0
    %1350 = vmatpush1.xpose.msra.mxu0 0.0
    %1351 = vmatprep.subr.mxu0 0.0
    %1352 = vmatpush1.xpose.msra.mxu0 0.0
    %1353 = vmatprep.subr.mxu0 0.0
    %1354 = vmatpush1.xpose.msra.mxu0 0.0
    %1355 = vmatprep.subr.mxu0 0.0
    %1356 = vmatpush1.xpose.msra.mxu0 0.0
    %1357 = vmatprep.subr.mxu0 0.0
    %1358 = vmatpush1.xpose.msra.mxu0 0.0
    %1359 = vmatprep.subr.mxu0 0.0
    %1360 = vmatpush1.xpose.msra.mxu0 0.0
    %1361 = vmatprep.subr.mxu0 0.0
    %1362 = vmatpush1.xpose.msra.mxu0 0.0
    %1363 = vmatprep.mubr.f32.mxu0 0.0
    %1364 = vmatmul.mubr.f32.gmra.mrb[0].mxu0 %v1295
    %v1365 = vpop.f32.mrb[0].mxu0
    %v1366 = vadd.f32 %v1135, %v1365
    %v1367 = vpop.f32.mrb[0].mxu0
    %1368 = vdwg.mxu0
    %1369 = vrot.lane.b32.xlu0 %v172, 104
    %v1370 = vpop.permute.xlu0 %1369
    %1371 = vrot.lane.b32.xlu0 %v172, 72
    %v1372 = vpop.permute.xlu0 %1371
    %v1373 = vsel %vm179, %v1370, 0
    %v1375 = vsel %vm179, %v1372, 0
    %1377 = vmatprep.subr.mxu0 0.0
    %1378 = vmatpush1.xpose.msra.mxu0 %v1375
    %1379 = vmatprep.subr.mxu0 0.0
    %1380 = vmatpush1.xpose.msra.mxu0 0.0
    %1381 = vmatprep.subr.mxu0 0.0
    %1382 = vmatpush1.xpose.msra.mxu0 0.0
    %1383 = vmatprep.subr.mxu0 0.0
    %1384 = vmatpush1.xpose.msra.mxu0 0.0
    %1385 = vmatprep.subr.mxu0 0.0
    %1386 = vmatpush1.xpose.msra.mxu0 0.0
    %1387 = vmatprep.subr.mxu0 0.0
    %1388 = vmatpush1.xpose.msra.mxu0 0.0
    %1389 = vmatprep.subr.mxu0 0.0
    %1390 = vmatpush1.xpose.msra.mxu0 0.0
    %1391 = vmatprep.subr.mxu0 0.0
    %1392 = vmatpush1.xpose.msra.mxu0 0.0
    %1393 = vmatprep.subr.mxu0 0.0
    %1394 = vmatpush1.xpose.msra.mxu0 0.0
    %1395 = vmatprep.subr.mxu0 0.0
    %1396 = vmatpush1.xpose.msra.mxu0 0.0
    %1397 = vmatprep.subr.mxu0 0.0
    %1398 = vmatpush1.xpose.msra.mxu0 0.0
    %1399 = vmatprep.subr.mxu0 0.0
    %1400 = vmatpush1.xpose.msra.mxu0 0.0
    %1401 = vmatprep.subr.mxu0 0.0
    %1402 = vmatpush1.xpose.msra.mxu0 0.0
    %1403 = vmatprep.subr.mxu0 0.0
    %1404 = vmatpush1.xpose.msra.mxu0 0.0
    %1405 = vmatprep.subr.mxu0 0.0
    %1406 = vmatpush1.xpose.msra.mxu0 0.0
    %1407 = vmatprep.subr.mxu0 0.0
    %1408 = vmatpush1.xpose.msra.mxu0 0.0
    %1409 = vmatprep.subr.mxu0 0.0
    %1410 = vmatpush1.xpose.msra.mxu0 0.0
    %1411 = vmatprep.subr.mxu0 0.0
    %1412 = vmatpush1.xpose.msra.mxu0 0.0
    %1413 = vmatprep.subr.mxu0 0.0
    %1414 = vmatpush1.xpose.msra.mxu0 0.0
    %1415 = vmatprep.subr.mxu0 0.0
    %1416 = vmatpush1.xpose.msra.mxu0 0.0
    %1417 = vmatprep.subr.mxu0 0.0
    %1418 = vmatpush1.xpose.msra.mxu0 0.0
    %1419 = vmatprep.subr.mxu0 0.0
    %1420 = vmatpush1.xpose.msra.mxu0 0.0
    %1421 = vmatprep.subr.mxu0 0.0
    %1422 = vmatpush1.xpose.msra.mxu0 0.0
    %1423 = vmatprep.subr.mxu0 0.0
    %1424 = vmatpush1.xpose.msra.mxu0 0.0
    %1425 = vmatprep.subr.mxu0 0.0
    %1426 = vmatpush1.xpose.msra.mxu0 0.0
    %1427 = vmatprep.subr.mxu0 0.0
    %1428 = vmatpush1.xpose.msra.mxu0 0.0
    %1429 = vmatprep.subr.mxu0 0.0
    %1430 = vmatpush1.xpose.msra.mxu0 0.0
    %1431 = vmatprep.subr.mxu0 0.0
    %1432 = vmatpush1.xpose.msra.mxu0 0.0
    %1433 = vmatprep.subr.mxu0 0.0
    %1434 = vmatpush1.xpose.msra.mxu0 0.0
    %1435 = vmatprep.subr.mxu0 0.0
    %1436 = vmatpush1.xpose.msra.mxu0 0.0
    %1437 = vmatprep.subr.mxu0 0.0
    %1438 = vmatpush1.xpose.msra.mxu0 0.0
    %1439 = vmatprep.subr.mxu0 0.0
    %1440 = vmatpush1.xpose.msra.mxu0 0.0
    %1441 = vmatprep.mubr.f32.mxu0 0.0
    %1442 = vmatmul.mubr.f32.gmra.mrb[0].mxu0 %v1373
    %v1443 = vpop.f32.mrb[0].mxu0
    %v1444 = vadd.f32 %v1135, %v1443
    %v1445 = vpop.f32.mrb[0].mxu0
    %1446 = vdwg.mxu0
    %v1447 = vsel %vm179, %v1210, -inf
    %1448 = vmax.xlane.f32.xlu0 %v1447
    %v1449 = vpop.xlane.xlu0 %1448
    %v1450 = vsel %vm179, %v1288, -inf
    %1451 = vmax.xlane.f32.xlu0 %v1450
    %v1452 = vpop.xlane.xlu0 %1451
    %v1453 = vsel %vm179, %v1366, -inf
    %1454 = vmax.xlane.f32.xlu0 %v1453
    %v1455 = vpop.xlane.xlu0 %1454
    %v1456 = vsel %vm179, %v1444, -inf
    %1457 = vmax.xlane.f32.xlu0 %v1456
    %v1458 = vpop.xlane.xlu0 %1457
    %v1459 = vsub.f32 %v1210, %v1449
    %v1460 = vsub.f32 %v1288, %v1452
    %v1461 = vsub.f32 %v1366, %v1455
    %v1462 = vsub.f32 %v1444, %v1458
    %v1463 = vmul.f32 %v1459, 1.442695
    %v1464 = vpow.pop %v1463
    %v1465 = vmul.f32 %v1460, 1.442695
    %v1466 = vpow.pop %v1465
    %v1467 = vmul.f32 %v1461, 1.442695
    %v1468 = vpow.pop %v1467
    %v1469 = vmul.f32 %v1462, 1.442695
    %v1470 = vpow.pop %v1469
    %v1471 = vsel %vm179, %v1464, 0.0
    %1472 = vadd.xlane.f32.xlu0 %v1471
    %v1473 = vpop.xlane.xlu0 %1472
    %v1474 = vsel %vm179, %v1466, 0.0
    %1475 = vadd.xlane.f32.xlu0 %v1474
    %v1476 = vpop.xlane.xlu0 %1475
    %v1477 = vsel %vm179, %v1468, 0.0
    %1478 = vadd.xlane.f32.xlu0 %v1477
    %v1479 = vpop.xlane.xlu0 %1478
    %v1480 = vsel %vm179, %v1470, 0.0
    %1481 = vadd.xlane.f32.xlu0 %v1480
    %v1482 = vpop.xlane.xlu0 %1481
    %v1483 = vrcp.pop %v1473
    %v1484 = vrcp.pop %v1476
    %v1485 = vrcp.pop %v1479
    %v1486 = vrcp.pop %v1482
    %v1487 = vmul.f32 %v1464, %v1483
    %v1488 = vmul.f32 %v1466, %v1484
    %v1489 = vmul.f32 %v1468, %v1485
    %v1490 = vmul.f32 %v1470, %v1486
    %1491 = vrot.lane.b32.xlu0 %v172, 64
    %v1492 = vpop.permute.xlu0 %1491
    %v1495 = vsel %vm179, %v1487, 0
    %1497 = vmatprep.subr.mxu0 0.0
    %1498 = vmatpush1.msra.mxu0 %v1492
    %1499 = vmatprep.subr.mxu0 0.0
    %1500 = vmatpush1.msra.mxu0 0.0
    %1501 = vmatprep.subr.mxu0 0.0
    %1502 = vmatpush1.msra.mxu0 0.0
    %1503 = vmatprep.subr.mxu0 0.0
    %1504 = vmatpush1.msra.mxu0 0.0
    %1505 = vmatprep.subr.mxu0 0.0
    %1506 = vmatpush1.msra.mxu0 0.0
    %1507 = vmatprep.subr.mxu0 0.0
    %1508 = vmatpush1.msra.mxu0 0.0
    %1509 = vmatprep.subr.mxu0 0.0
    %1510 = vmatpush1.msra.mxu0 0.0
    %1511 = vmatprep.subr.mxu0 0.0
    %1512 = vmatpush1.msra.mxu0 0.0
    %1513 = vmatprep.subr.mxu0 0.0
    %1514 = vmatpush1.msra.mxu0 0.0
    %1515 = vmatprep.subr.mxu0 0.0
    %1516 = vmatpush1.msra.mxu0 0.0
    %1517 = vmatprep.subr.mxu0 0.0
    %1518 = vmatpush1.msra.mxu0 0.0
    %1519 = vmatprep.subr.mxu0 0.0
    %1520 = vmatpush1.msra.mxu0 0.0
    %1521 = vmatprep.subr.mxu0 0.0
    %1522 = vmatpush1.msra.mxu0 0.0
    %1523 = vmatprep.subr.mxu0 0.0
    %1524 = vmatpush1.msra.mxu0 0.0
    %1525 = vmatprep.subr.mxu0 0.0
    %1526 = vmatpush1.msra.mxu0 0.0
    %1527 = vmatprep.subr.mxu0 0.0
    %1528 = vmatpush1.msra.mxu0 0.0
    %1529 = vmatprep.subr.mxu0 0.0
    %1530 = vmatpush1.msra.mxu0 0.0
    %1531 = vmatprep.subr.mxu0 0.0
    %1532 = vmatpush1.msra.mxu0 0.0
    %1533 = vmatprep.subr.mxu0 0.0
    %1534 = vmatpush1.msra.mxu0 0.0
    %1535 = vmatprep.subr.mxu0 0.0
    %1536 = vmatpush1.msra.mxu0 0.0
    %1537 = vmatprep.subr.mxu0 0.0
    %1538 = vmatpush1.msra.mxu0 0.0
    %1539 = vmatprep.subr.mxu0 0.0
    %1540 = vmatpush1.msra.mxu0 0.0
    %1541 = vmatprep.subr.mxu0 0.0
    %1542 = vmatpush1.msra.mxu0 0.0
    %1543 = vmatprep.subr.mxu0 0.0
    %1544 = vmatpush1.msra.mxu0 0.0
    %1545 = vmatprep.subr.mxu0 0.0
    %1546 = vmatpush1.msra.mxu0 0.0
    %1547 = vmatprep.subr.mxu0 0.0
    %1548 = vmatpush1.msra.mxu0 0.0
    %1549 = vmatprep.subr.mxu0 0.0
    %1550 = vmatpush1.msra.mxu0 0.0
    %1551 = vmatprep.subr.mxu0 0.0
    %1552 = vmatpush1.msra.mxu0 0.0
    %1553 = vmatprep.subr.mxu0 0.0
    %1554 = vmatpush1.msra.mxu0 0.0
    %1555 = vmatprep.subr.mxu0 0.0
    %1556 = vmatpush1.msra.mxu0 0.0
    %1557 = vmatprep.subr.mxu0 0.0
    %1558 = vmatpush1.msra.mxu0 0.0
    %1559 = vmatprep.subr.mxu0 0.0
    %1560 = vmatpush1.msra.mxu0 0.0
    %1561 = vmatprep.mubr.f32.mxu0 0.0
    %1562 = vmatmul.mubr.f32.gmra.mrb[0].mxu0 %v1495
    %v1563 = vpop.f32.mrb[0].mxu0
    %v1564 = vadd.f32 0.0, %v1563
    %v1565 = vpop.f32.mrb[0].mxu0
    %1566 = vdwg.mxu0
    %1567 = vrot.lane.b32.xlu0 %v172, 56
    %v1568 = vpop.permute.xlu0 %1567
    %v1571 = vsel %vm179, %v1488, 0
    %1573 = vmatprep.subr.mxu0 0.0
    %1574 = vmatpush1.msra.mxu0 %v1568
    %1575 = vmatprep.subr.mxu0 0.0
    %1576 = vmatpush1.msra.mxu0 0.0
    %1577 = vmatprep.subr.mxu0 0.0
    %1578 = vmatpush1.msra.mxu0 0.0
    %1579 = vmatprep.subr.mxu0 0.0
    %1580 = vmatpush1.msra.mxu0 0.0
    %1581 = vmatprep.subr.mxu0 0.0
    %1582 = vmatpush1.msra.mxu0 0.0
    %1583 = vmatprep.subr.mxu0 0.0
    %1584 = vmatpush1.msra.mxu0 0.0
    %1585 = vmatprep.subr.mxu0 0.0
    %1586 = vmatpush1.msra.mxu0 0.0
    %1587 = vmatprep.subr.mxu0 0.0
    %1588 = vmatpush1.msra.mxu0 0.0
    %1589 = vmatprep.subr.mxu0 0.0
    %1590 = vmatpush1.msra.mxu0 0.0
    %1591 = vmatprep.subr.mxu0 0.0
    %1592 = vmatpush1.msra.mxu0 0.0
    %1593 = vmatprep.subr.mxu0 0.0
    %1594 = vmatpush1.msra.mxu0 0.0
    %1595 = vmatprep.subr.mxu0 0.0
    %1596 = vmatpush1.msra.mxu0 0.0
    %1597 = vmatprep.subr.mxu0 0.0
    %1598 = vmatpush1.msra.mxu0 0.0
    %1599 = vmatprep.subr.mxu0 0.0
    %1600 = vmatpush1.msra.mxu0 0.0
    %1601 = vmatprep.subr.mxu0 0.0
    %1602 = vmatpush1.msra.mxu0 0.0
    %1603 = vmatprep.subr.mxu0 0.0
    %1604 = vmatpush1.msra.mxu0 0.0
    %1605 = vmatprep.subr.mxu0 0.0
    %1606 = vmatpush1.msra.mxu0 0.0
    %1607 = vmatprep.subr.mxu0 0.0
    %1608 = vmatpush1.msra.mxu0 0.0
    %1609 = vmatprep.subr.mxu0 0.0
    %1610 = vmatpush1.msra.mxu0 0.0
    %1611 = vmatprep.subr.mxu0 0.0
    %1612 = vmatpush1.msra.mxu0 0.0
    %1613 = vmatprep.subr.mxu0 0.0
    %1614 = vmatpush1.msra.mxu0 0.0
    %1615 = vmatprep.subr.mxu0 0.0
    %1616 = vmatpush1.msra.mxu0 0.0
    %1617 = vmatprep.subr.mxu0 0.0
    %1618 = vmatpush1.msra.mxu0 0.0
    %1619 = vmatprep.subr.mxu0 0.0
    %1620 = vmatpush1.msra.mxu0 0.0
    %1621 = vmatprep.subr.mxu0 0.0
    %1622 = vmatpush1.msra.mxu0 0.0
    %1623 = vmatprep.subr.mxu0 0.0
    %1624 = vmatpush1.msra.mxu0 0.0
    %1625 = vmatprep.subr.mxu0 0.0
    %1626 = vmatpush1.msra.mxu0 0.0
    %1627 = vmatprep.subr.mxu0 0.0
    %1628 = vmatpush1.msra.mxu0 0.0
    %1629 = vmatprep.subr.mxu0 0.0
    %1630 = vmatpush1.msra.mxu0 0.0
    %1631 = vmatprep.subr.mxu0 0.0
    %1632 = vmatpush1.msra.mxu0 0.0
    %1633 = vmatprep.subr.mxu0 0.0
    %1634 = vmatpush1.msra.mxu0 0.0
    %1635 = vmatprep.subr.mxu0 0.0
    %1636 = vmatpush1.msra.mxu0 0.0
    %1637 = vmatprep.mubr.f32.mxu0 0.0
    %1638 = vmatmul.mubr.f32.gmra.mrb[0].mxu0 %v1571
    %v1639 = vpop.f32.mrb[0].mxu0
    %v1640 = vadd.f32 0.0, %v1639
    %v1641 = vpop.f32.mrb[0].mxu0
    %1642 = vdwg.mxu0
    %v1644 = vsel %vm179, %v1640, 0
    %1646 = vmatprep.subr.mxu0 0.0
    %1647 = vmatpush1.msra.mxu0 %v685
    %1648 = vmatprep.subr.mxu0 0.0
    %1649 = vmatpush1.msra.mxu0 0.0
    %1650 = vmatprep.subr.mxu0 0.0
    %1651 = vmatpush1.msra.mxu0 0.0
    %1652 = vmatprep.subr.mxu0 0.0
    %1653 = vmatpush1.msra.mxu0 0.0
    %1654 = vmatprep.subr.mxu0 0.0
    %1655 = vmatpush1.msra.mxu0 0.0
    %1656 = vmatprep.subr.mxu0 0.0
    %1657 = vmatpush1.msra.mxu0 0.0
    %1658 = vmatprep.subr.mxu0 0.0
    %1659 = vmatpush1.msra.mxu0 0.0
    %1660 = vmatprep.subr.mxu0 0.0
    %1661 = vmatpush1.msra.mxu0 0.0
    %1662 = vmatprep.subr.mxu0 0.0
    %1663 = vmatpush1.msra.mxu0 0.0
    %1664 = vmatprep.subr.mxu0 0.0
    %1665 = vmatpush1.msra.mxu0 0.0
    %1666 = vmatprep.subr.mxu0 0.0
    %1667 = vmatpush1.msra.mxu0 0.0
    %1668 = vmatprep.subr.mxu0 0.0
    %1669 = vmatpush1.msra.mxu0 0.0
    %1670 = vmatprep.subr.mxu0 0.0
    %1671 = vmatpush1.msra.mxu0 0.0
    %1672 = vmatprep.subr.mxu0 0.0
    %1673 = vmatpush1.msra.mxu0 0.0
    %1674 = vmatprep.subr.mxu0 0.0
    %1675 = vmatpush1.msra.mxu0 0.0
    %1676 = vmatprep.subr.mxu0 0.0
    %1677 = vmatpush1.msra.mxu0 0.0
    %1678 = vmatprep.subr.mxu0 0.0
    %1679 = vmatpush1.msra.mxu0 0.0
    %1680 = vmatprep.subr.mxu0 0.0
    %1681 = vmatpush1.msra.mxu0 0.0
    %1682 = vmatprep.subr.mxu0 0.0
    %1683 = vmatpush1.msra.mxu0 0.0
    %1684 = vmatprep.subr.mxu0 0.0
    %1685 = vmatpush1.msra.mxu0 0.0
    %1686 = vmatprep.subr.mxu0 0.0
    %1687 = vmatpush1.msra.mxu0 0.0
    %1688 = vmatprep.subr.mxu0 0.0
    %1689 = vmatpush1.msra.mxu0 0.0
    %1690 = vmatprep.subr.mxu0 0.0
    %1691 = vmatpush1.msra.mxu0 0.0
    %1692 = vmatprep.subr.mxu0 0.0
    %1693 = vmatpush1.msra.mxu0 0.0
    %1694 = vmatprep.subr.mxu0 0.0
    %1695 = vmatpush1.msra.mxu0 0.0
    %1696 = vmatprep.subr.mxu0 0.0
    %1697 = vmatpush1.msra.mxu0 0.0
    %1698 = vmatprep.subr.mxu0 0.0
    %1699 = vmatpush1.msra.mxu0 0.0
    %1700 = vmatprep.subr.mxu0 0.0
    %1701 = vmatpush1.msra.mxu0 0.0
    %1702 = vmatprep.subr.mxu0 0.0
    %1703 = vmatpush1.msra.mxu0 0.0
    %1704 = vmatprep.subr.mxu0 0.0
    %1705 = vmatpush1.msra.mxu0 0.0
    %1706 = vmatprep.subr.mxu0 0.0
    %1707 = vmatpush1.msra.mxu0 0.0
    %1708 = vmatprep.subr.mxu0 0.0
    %1709 = vmatpush1.msra.mxu0 0.0
    %1710 = vmatprep.mubr.f32.mxu0 0.0
    %1711 = vmatmul.mubr.f32.gmra.mrb[0].mxu0 %v1644
    %v1712 = vpop.f32.mrb[0].mxu0
    %v1713 = vadd.f32 0.0, %v1712
    %v1714 = vpop.f32.mrb[0].mxu0
    %1715 = vdwg.mxu0
    %v1717 = vsel %vm179, %v1564, 0
    %1719 = vmatprep.subr.mxu0 0.0
    %1720 = vmatpush1.msra.mxu0 %v608
    %1721 = vmatprep.subr.mxu0 0.0
    %1722 = vmatpush1.msra.mxu0 0.0
    %1723 = vmatprep.subr.mxu0 0.0
    %1724 = vmatpush1.msra.mxu0 0.0
    %1725 = vmatprep.subr.mxu0 0.0
    %1726 = vmatpush1.msra.mxu0 0.0
    %1727 = vmatprep.subr.mxu0 0.0
    %1728 = vmatpush1.msra.mxu0 0.0
    %1729 = vmatprep.subr.mxu0 0.0
    %1730 = vmatpush1.msra.mxu0 0.0
    %1731 = vmatprep.subr.mxu0 0.0
    %1732 = vmatpush1.msra.mxu0 0.0
    %1733 = vmatprep.subr.mxu0 0.0
    %1734 = vmatpush1.msra.mxu0 0.0
    %1735 = vmatprep.subr.mxu0 0.0
    %1736 = vmatpush1.msra.mxu0 0.0
    %1737 = vmatprep.subr.mxu0 0.0
    %1738 = vmatpush1.msra.mxu0 0.0
    %1739 = vmatprep.subr.mxu0 0.0
    %1740 = vmatpush1.msra.mxu0 0.0
    %1741 = vmatprep.subr.mxu0 0.0
    %1742 = vmatpush1.msra.mxu0 0.0
    %1743 = vmatprep.subr.mxu0 0.0
    %1744 = vmatpush1.msra.mxu0 0.0
    %1745 = vmatprep.subr.mxu0 0.0
    %1746 = vmatpush1.msra.mxu0 0.0
    %1747 = vmatprep.subr.mxu0 0.0
    %1748 = vmatpush1.msra.mxu0 0.0
    %1749 = vmatprep.subr.mxu0 0.0
    %1750 = vmatpush1.msra.mxu0 0.0
    %1751 = vmatprep.subr.mxu0 0.0
    %1752 = vmatpush1.msra.mxu0 0.0
    %1753 = vmatprep.subr.mxu0 0.0
    %1754 = vmatpush1.msra.mxu0 0.0
    %1755 = vmatprep.subr.mxu0 0.0
    %1756 = vmatpush1.msra.mxu0 0.0
    %1757 = vmatprep.subr.mxu0 0.0
    %1758 = vmatpush1.msra.mxu0 0.0
    %1759 = vmatprep.subr.mxu0 0.0
    %1760 = vmatpush1.msra.mxu0 0.0
    %1761 = vmatprep.subr.mxu0 0.0
    %1762 = vmatpush1.msra.mxu0 0.0
    %1763 = vmatprep.subr.mxu0 0.0
    %1764 = vmatpush1.msra.mxu0 0.0
    %1765 = vmatprep.subr.mxu0 0.0
    %1766 = vmatpush1.msra.mxu0 0.0
    %1767 = vmatprep.subr.mxu0 0.0
    %1768 = vmatpush1.msra.mxu0 0.0
    %1769 = vmatprep.subr.mxu0 0.0
    %1770 = vmatpush1.msra.mxu0 0.0
    %1771 = vmatprep.subr.mxu0 0.0
    %1772 = vmatpush1.msra.mxu0 0.0
    %1773 = vmatprep.subr.mxu0 0.0
    %1774 = vmatpush1.msra.mxu0 0.0
    %1775 = vmatprep.subr.mxu0 0.0
    %1776 = vmatpush1.msra.mxu0 0.0
    %1777 = vmatprep.subr.mxu0 0.0
    %1778 = vmatpush1.msra.mxu0 0.0
    %1779 = vmatprep.subr.mxu0 0.0
    %1780 = vmatpush1.msra.mxu0 0.0
    %1781 = vmatprep.subr.mxu0 0.0
    %1782 = vmatpush1.msra.mxu0 0.0
    %1783 = vmatprep.mubr.f32.mxu0 0.0
    %1784 = vmatmul.mubr.f32.gmra.mrb[0].mxu0 %v1717
    %v1785 = vpop.f32.mrb[0].mxu0
    %v1786 = vadd.f32 %v1713, %v1785
    %v1787 = vpop.f32.mrb[0].mxu0
    %1788 = vdwg.mxu0
    %1789 = vrot.lane.b32.xlu0 %v172, 48
    %v1790 = vpop.permute.xlu0 %1789
    %v1793 = vsel %vm179, %v1489, 0
    %1795 = vmatprep.subr.mxu0 0.0
    %1796 = vmatpush1.msra.mxu0 %v1790
    %1797 = vmatprep.subr.mxu0 0.0
    %1798 = vmatpush1.msra.mxu0 0.0
    %1799 = vmatprep.subr.mxu0 0.0
    %1800 = vmatpush1.msra.mxu0 0.0
    %1801 = vmatprep.subr.mxu0 0.0
    %1802 = vmatpush1.msra.mxu0 0.0
    %1803 = vmatprep.subr.mxu0 0.0
    %1804 = vmatpush1.msra.mxu0 0.0
    %1805 = vmatprep.subr.mxu0 0.0
    %1806 = vmatpush1.msra.mxu0 0.0
    %1807 = vmatprep.subr.mxu0 0.0
    %1808 = vmatpush1.msra.mxu0 0.0
    %1809 = vmatprep.subr.mxu0 0.0
    %1810 = vmatpush1.msra.mxu0 0.0
    %1811 = vmatprep.subr.mxu0 0.0
    %1812 = vmatpush1.msra.mxu0 0.0
    %1813 = vmatprep.subr.mxu0 0.0
    %1814 = vmatpush1.msra.mxu0 0.0
    %1815 = vmatprep.subr.mxu0 0.0
    %1816 = vmatpush1.msra.mxu0 0.0
    %1817 = vmatprep.subr.mxu0 0.0
    %1818 = vmatpush1.msra.mxu0 0.0
    %1819 = vmatprep.subr.mxu0 0.0
    %1820 = vmatpush1.msra.mxu0 0.0
    %1821 = vmatprep.subr.mxu0 0.0
    %1822 = vmatpush1.msra.mxu0 0.0
    %1823 = vmatprep.subr.mxu0 0.0
    %1824 = vmatpush1.msra.mxu0 0.0
    %1825 = vmatprep.subr.mxu0 0.0
    %1826 = vmatpush1.msra.mxu0 0.0
    %1827 = vmatprep.subr.mxu0 0.0
    %1828 = vmatpush1.msra.mxu0 0.0
    %1829 = vmatprep.subr.mxu0 0.0
    %1830 = vmatpush1.msra.mxu0 0.0
    %1831 = vmatprep.subr.mxu0 0.0
    %1832 = vmatpush1.msra.mxu0 0.0
    %1833 = vmatprep.subr.mxu0 0.0
    %1834 = vmatpush1.msra.mxu0 0.0
    %1835 = vmatprep.subr.mxu0 0.0
    %1836 = vmatpush1.msra.mxu0 0.0
    %1837 = vmatprep.subr.mxu0 0.0
    %1838 = vmatpush1.msra.mxu0 0.0
    %1839 = vmatprep.subr.mxu0 0.0
    %1840 = vmatpush1.msra.mxu0 0.0
    %1841 = vmatprep.subr.mxu0 0.0
    %1842 = vmatpush1.msra.mxu0 0.0
    %1843 = vmatprep.subr.mxu0 0.0
    %1844 = vmatpush1.msra.mxu0 0.0
    %1845 = vmatprep.subr.mxu0 0.0
    %1846 = vmatpush1.msra.mxu0 0.0
    %1847 = vmatprep.subr.mxu0 0.0
    %1848 = vmatpush1.msra.mxu0 0.0
    %1849 = vmatprep.subr.mxu0 0.0
    %1850 = vmatpush1.msra.mxu0 0.0
    %1851 = vmatprep.subr.mxu0 0.0
    %1852 = vmatpush1.msra.mxu0 0.0
    %1853 = vmatprep.subr.mxu0 0.0
    %1854 = vmatpush1.msra.mxu0 0.0
    %1855 = vmatprep.subr.mxu0 0.0
    %1856 = vmatpush1.msra.mxu0 0.0
    %1857 = vmatprep.subr.mxu0 0.0
    %1858 = vmatpush1.msra.mxu0 0.0
    %1859 = vmatprep.mubr.f32.mxu0 0.0
    %1860 = vmatmul.mubr.f32.gmra.mrb[0].mxu0 %v1793
    %v1861 = vpop.f32.mrb[0].mxu0
    %v1862 = vadd.f32 0.0, %v1861
    %v1863 = vpop.f32.mrb[0].mxu0
    %1864 = vdwg.mxu0
    %v1866 = vsel %vm179, %v1862, 0
    %1868 = vmatprep.subr.mxu0 0.0
    %1869 = vmatpush1.msra.mxu0 %v908
    %1870 = vmatprep.subr.mxu0 0.0
    %1871 = vmatpush1.msra.mxu0 0.0
    %1872 = vmatprep.subr.mxu0 0.0
    %1873 = vmatpush1.msra.mxu0 0.0
    %1874 = vmatprep.subr.mxu0 0.0
    %1875 = vmatpush1.msra.mxu0 0.0
    %1876 = vmatprep.subr.mxu0 0.0
    %1877 = vmatpush1.msra.mxu0 0.0
    %1878 = vmatprep.subr.mxu0 0.0
    %1879 = vmatpush1.msra.mxu0 0.0
    %1880 = vmatprep.subr.mxu0 0.0
    %1881 = vmatpush1.msra.mxu0 0.0
    %1882 = vmatprep.subr.mxu0 0.0
    %1883 = vmatpush1.msra.mxu0 0.0
    %1884 = vmatprep.subr.mxu0 0.0
    %1885 = vmatpush1.msra.mxu0 0.0
    %1886 = vmatprep.subr.mxu0 0.0
    %1887 = vmatpush1.msra.mxu0 0.0
    %1888 = vmatprep.subr.mxu0 0.0
    %1889 = vmatpush1.msra.mxu0 0.0
    %1890 = vmatprep.subr.mxu0 0.0
    %1891 = vmatpush1.msra.mxu0 0.0
    %1892 = vmatprep.subr.mxu0 0.0
    %1893 = vmatpush1.msra.mxu0 0.0
    %1894 = vmatprep.subr.mxu0 0.0
    %1895 = vmatpush1.msra.mxu0 0.0
    %1896 = vmatprep.subr.mxu0 0.0
    %1897 = vmatpush1.msra.mxu0 0.0
    %1898 = vmatprep.subr.mxu0 0.0
    %1899 = vmatpush1.msra.mxu0 0.0
    %1900 = vmatprep.subr.mxu0 0.0
    %1901 = vmatpush1.msra.mxu0 0.0
    %1902 = vmatprep.subr.mxu0 0.0
    %1903 = vmatpush1.msra.mxu0 0.0
    %1904 = vmatprep.subr.mxu0 0.0
    %1905 = vmatpush1.msra.mxu0 0.0
    %1906 = vmatprep.subr.mxu0 0.0
    %1907 = vmatpush1.msra.mxu0 0.0
    %1908 = vmatprep.subr.mxu0 0.0
    %1909 = vmatpush1.msra.mxu0 0.0
    %1910 = vmatprep.subr.mxu0 0.0
    %1911 = vmatpush1.msra.mxu0 0.0
    %1912 = vmatprep.subr.mxu0 0.0
    %1913 = vmatpush1.msra.mxu0 0.0
    %1914 = vmatprep.subr.mxu0 0.0
    %1915 = vmatpush1.msra.mxu0 0.0
    %1916 = vmatprep.subr.mxu0 0.0
    %1917 = vmatpush1.msra.mxu0 0.0
    %1918 = vmatprep.subr.mxu0 0.0
    %1919 = vmatpush1.msra.mxu0 0.0
    %1920 = vmatprep.subr.mxu0 0.0
    %1921 = vmatpush1.msra.mxu0 0.0
    %1922 = vmatprep.subr.mxu0 0.0
    %1923 = vmatpush1.msra.mxu0 0.0
    %1924 = vmatprep.subr.mxu0 0.0
    %1925 = vmatpush1.msra.mxu0 0.0
    %1926 = vmatprep.subr.mxu0 0.0
    %1927 = vmatpush1.msra.mxu0 0.0
    %1928 = vmatprep.subr.mxu0 0.0
    %1929 = vmatpush1.msra.mxu0 0.0
    %1930 = vmatprep.subr.mxu0 0.0
    %1931 = vmatpush1.msra.mxu0 0.0
    %1932 = vmatprep.mubr.f32.mxu0 0.0
    %1933 = vmatmul.mubr.f32.gmra.mrb[0].mxu0 %v1866
    %v1934 = vpop.f32.mrb[0].mxu0
    %v1935 = vadd.f32 0.0, %v1934
    %v1936 = vpop.f32.mrb[0].mxu0
    %1937 = vdwg.mxu0
    %v1938 = vadd.f32 %v1786, %v1935
    %1939 = vrot.lane.b32.xlu0 %v172, 40
    %v1940 = vpop.permute.xlu0 %1939
    %v1943 = vsel %vm179, %v1490, 0
    %1945 = vmatprep.subr.mxu0 0.0
    %1946 = vmatpush1.msra.mxu0 %v1940
    %1947 = vmatprep.subr.mxu0 0.0
    %1948 = vmatpush1.msra.mxu0 0.0
    %1949 = vmatprep.subr.mxu0 0.0
    %1950 = vmatpush1.msra.mxu0 0.0
    %1951 = vmatprep.subr.mxu0 0.0
    %1952 = vmatpush1.msra.mxu0 0.0
    %1953 = vmatprep.subr.mxu0 0.0
    %1954 = vmatpush1.msra.mxu0 0.0
    %1955 = vmatprep.subr.mxu0 0.0
    %1956 = vmatpush1.msra.mxu0 0.0
    %1957 = vmatprep.subr.mxu0 0.0
    %1958 = vmatpush1.msra.mxu0 0.0
    %1959 = vmatprep.subr.mxu0 0.0
    %1960 = vmatpush1.msra.mxu0 0.0
    %1961 = vmatprep.subr.mxu0 0.0
    %1962 = vmatpush1.msra.mxu0 0.0
    %1963 = vmatprep.subr.mxu0 0.0
    %1964 = vmatpush1.msra.mxu0 0.0
    %1965 = vmatprep.subr.mxu0 0.0
    %1966 = vmatpush1.msra.mxu0 0.0
    %1967 = vmatprep.subr.mxu0 0.0
    %1968 = vmatpush1.msra.mxu0 0.0
    %1969 = vmatprep.subr.mxu0 0.0
    %1970 = vmatpush1.msra.mxu0 0.0
    %1971 = vmatprep.subr.mxu0 0.0
    %1972 = vmatpush1.msra.mxu0 0.0
    %1973 = vmatprep.subr.mxu0 0.0
    %1974 = vmatpush1.msra.mxu0 0.0
    %1975 = vmatprep.subr.mxu0 0.0
    %1976 = vmatpush1.msra.mxu0 0.0
    %1977 = vmatprep.subr.mxu0 0.0
    %1978 = vmatpush1.msra.mxu0 0.0
    %1979 = vmatprep.subr.mxu0 0.0
    %1980 = vmatpush1.msra.mxu0 0.0
    %1981 = vmatprep.subr.mxu0 0.0
    %1982 = vmatpush1.msra.mxu0 0.0
    %1983 = vmatprep.subr.mxu0 0.0
    %1984 = vmatpush1.msra.mxu0 0.0
    %1985 = vmatprep.subr.mxu0 0.0
    %1986 = vmatpush1.msra.mxu0 0.0
    %1987 = vmatprep.subr.mxu0 0.0
    %1988 = vmatpush1.msra.mxu0 0.0
    %1989 = vmatprep.subr.mxu0 0.0
    %1990 = vmatpush1.msra.mxu0 0.0
    %1991 = vmatprep.subr.mxu0 0.0
    %1992 = vmatpush1.msra.mxu0 0.0
    %1993 = vmatprep.subr.mxu0 0.0
    %1994 = vmatpush1.msra.mxu0 0.0
    %1995 = vmatprep.subr.mxu0 0.0
    %1996 = vmatpush1.msra.mxu0 0.0
    %1997 = vmatprep.subr.mxu0 0.0
    %1998 = vmatpush1.msra.mxu0 0.0
    %1999 = vmatprep.subr.mxu0 0.0
    %2000 = vmatpush1.msra.mxu0 0.0
    %2001 = vmatprep.subr.mxu0 0.0
    %2002 = vmatpush1.msra.mxu0 0.0
    %2003 = vmatprep.subr.mxu0 0.0
    %2004 = vmatpush1.msra.mxu0 0.0
    %2005 = vmatprep.subr.mxu0 0.0
    %2006 = vmatpush1.msra.mxu0 0.0
    %2007 = vmatprep.subr.mxu0 0.0
    %2008 = vmatpush1.msra.mxu0 0.0
    %2009 = vmatprep.mubr.f32.mxu0 0.0
    %2010 = vmatmul.mubr.f32.gmra.mrb[0].mxu0 %v1943
    %v2011 = vpop.f32.mrb[0].mxu0
    %v2012 = vadd.f32 0.0, %v2011
    %v2013 = vpop.f32.mrb[0].mxu0
    %2014 = vdwg.mxu0
    %v2016 = vsel %vm179, %v2012, 0
    %2018 = vmatprep.subr.mxu0 0.0
    %2019 = vmatpush1.msra.mxu0 %v1059
    %2020 = vmatprep.subr.mxu0 0.0
    %2021 = vmatpush1.msra.mxu0 0.0
    %2022 = vmatprep.subr.mxu0 0.0
    %2023 = vmatpush1.msra.mxu0 0.0
    %2024 = vmatprep.subr.mxu0 0.0
    %2025 = vmatpush1.msra.mxu0 0.0
    %2026 = vmatprep.subr.mxu0 0.0
    %2027 = vmatpush1.msra.mxu0 0.0
    %2028 = vmatprep.subr.mxu0 0.0
    %2029 = vmatpush1.msra.mxu0 0.0
    %2030 = vmatprep.subr.mxu0 0.0
    %2031 = vmatpush1.msra.mxu0 0.0
    %2032 = vmatprep.subr.mxu0 0.0
    %2033 = vmatpush1.msra.mxu0 0.0
    %2034 = vmatprep.subr.mxu0 0.0
    %2035 = vmatpush1.msra.mxu0 0.0
    %2036 = vmatprep.subr.mxu0 0.0
    %2037 = vmatpush1.msra.mxu0 0.0
    %2038 = vmatprep.subr.mxu0 0.0
    %2039 = vmatpush1.msra.mxu0 0.0
    %2040 = vmatprep.subr.mxu0 0.0
    %2041 = vmatpush1.msra.mxu0 0.0
    %2042 = vmatprep.subr.mxu0 0.0
    %2043 = vmatpush1.msra.mxu0 0.0
    %2044 = vmatprep.subr.mxu0 0.0
    %2045 = vmatpush1.msra.mxu0 0.0
    %2046 = vmatprep.subr.mxu0 0.0
    %2047 = vmatpush1.msra.mxu0 0.0
    %2048 = vmatprep.subr.mxu0 0.0
    %2049 = vmatpush1.msra.mxu0 0.0
    %2050 = vmatprep.subr.mxu0 0.0
    %2051 = vmatpush1.msra.mxu0 0.0
    %2052 = vmatprep.subr.mxu0 0.0
    %2053 = vmatpush1.msra.mxu0 0.0
    %2054 = vmatprep.subr.mxu0 0.0
    %2055 = vmatpush1.msra.mxu0 0.0
    %2056 = vmatprep.subr.mxu0 0.0
    %2057 = vmatpush1.msra.mxu0 0.0
    %2058 = vmatprep.subr.mxu0 0.0
    %2059 = vmatpush1.msra.mxu0 0.0
    %2060 = vmatprep.subr.mxu0 0.0
    %2061 = vmatpush1.msra.mxu0 0.0
    %2062 = vmatprep.subr.mxu0 0.0
    %2063 = vmatpush1.msra.mxu0 0.0
    %2064 = vmatprep.subr.mxu0 0.0
    %2065 = vmatpush1.msra.mxu0 0.0
    %2066 = vmatprep.subr.mxu0 0.0
    %2067 = vmatpush1.msra.mxu0 0.0
    %2068 = vmatprep.subr.mxu0 0.0
    %2069 = vmatpush1.msra.mxu0 0.0
    %2070 = vmatprep.subr.mxu0 0.0
    %2071 = vmatpush1.msra.mxu0 0.0
    %2072 = vmatprep.subr.mxu0 0.0
    %2073 = vmatpush1.msra.mxu0 0.0
    %2074 = vmatprep.subr.mxu0 0.0
    %2075 = vmatpush1.msra.mxu0 0.0
    %2076 = vmatprep.subr.mxu0 0.0
    %2077 = vmatpush1.msra.mxu0 0.0
    %2078 = vmatprep.subr.mxu0 0.0
    %2079 = vmatpush1.msra.mxu0 0.0
    %2080 = vmatprep.subr.mxu0 0.0
    %2081 = vmatpush1.msra.mxu0 0.0
    %2082 = vmatprep.mubr.f32.mxu0 0.0
    %2083 = vmatmul.mubr.f32.gmra.mrb[0].mxu0 %v2016
    %v2084 = vpop.f32.mrb[0].mxu0
    %v2085 = vadd.f32 0.0, %v2084
    %v2086 = vpop.f32.mrb[0].mxu0
    %2087 = vdwg.mxu0
    %v2088 = vadd.f32 %v1938, %v2085
    %v2089 = vld [vmem:[%s7 + $0x9] sm:$0x1]
    %v2090 = vlaneseq
    %v2091 = vshrl.u32 %v2090, 7
    %v2092 = vsub.s32 0, %v2091
    %v2093 = vrot.slane %v2089, %v2092
    %v2094 = vadd.f32 %v1133, %v2093
    %v2095 = vadd.f32 %v2088, %v2093
    %v2096 = vadd.f32 %v30, %v2094
    %v2097 = vadd.f32 %v31, %v2095
    %v2098 = vmul.f32 %v2096, %v2096
    %v2099 = vmul.f32 %v2097, %v2097
    %v2100 = vsel %vm42, %v2096, 0.0
    %2101 = vadd.xlane.f32.xlu0 %v2100
    %v2102 = vpop.xlane.xlu0 %2101
    %v2103 = vsel %vm42, %v2097, 0.0
    %2104 = vadd.xlane.f32.xlu0 %v2103
    %v2105 = vpop.xlane.xlu0 %2104
    %v2106 = vsel %vm42, %v2098, 0.0
    %2107 = vadd.xlane.f32.xlu0 %v2106
    %v2108 = vpop.xlane.xlu0 %2107
    %v2109 = vsel %vm42, %v2099, 0.0
    %2110 = vadd.xlane.f32.xlu0 %v2109
    %v2111 = vpop.xlane.xlu0 %2110
    %v2112 = vmul.f32 %v2102, 0.03125
    %v2113 = vmul.f32 %v2105, 0.03125
    %v2114 = vmul.f32 %v2108, 0.03125
    %v2115 = vmul.f32 %v2111, 0.03125
    %v2116 = vmul.f32 %v2112, %v2112
    %v2117 = vmul.f32 %v2113, %v2113
    %v2118 = vsub.f32 %v2114, %v2116
    %v2119 = vsub.f32 %v2115, %v2117
    %v2120 = vadd.f32 %v2118, 1e-06
    %v2121 = vadd.f32 %v2119, 1e-06
    %v2122 = vrsqrt.pop %v2120
    %v2123 = vrsqrt.pop %v2121
    %v2124 = vsub.f32 %v2096, %v2112
    %v2125 = vsub.f32 %v2097, %v2113
    %v2126 = vmul.f32 %v2124, %v2122
    %v2127 = vmul.f32 %v2125, %v2123
    %v2128 = vld [vmem:[%s7 + $0x2] sm:$0x1]
    %v2129 = vlaneseq
    %v2130 = vshrl.u32 %v2129, 7
    %v2131 = vsub.s32 0, %v2130
    %v2132 = vrot.slane %v2128, %v2131
    %v2133 = vmul.f32 %v2126, %v2132
    %v2134 = vmul.f32 %v2127, %v2132
    %v2135 = vld [vmem:[%s7 + $0x3] sm:$0x1]
    %v2136 = vlaneseq
    %v2137 = vshrl.u32 %v2136, 7
    %v2138 = vsub.s32 0, %v2137
    %v2139 = vrot.slane %v2135, %v2138
    %v2140 = vadd.f32 %v2133, %v2139
    %v2141 = vadd.f32 %v2134, %v2139
    %v2142 = vld [vmem:[%s6 + $0x40] sm:$0xff]
    %v2143 = vld [vmem:[%s6 + $0x48] sm:$0xff]
    %v2144 = vld [vmem:[%s6 + $0x50] sm:$0xff]
    %v2145 = vld [vmem:[%s6 + $0x58] sm:$0xff]
    %v2146 = vld [vmem:[%s7 + $0xa] sm:$0x1]
    %v2147 = vlaneseq
    %v2148 = vshrl.u32 %v2147, 7
    %v2149 = vsub.s32 0, %v2148
    %v2150 = vrot.slane %v2146, %v2149
    %v2152 = vsel %vm42, %v2140, 0
    %v2155 = vsel %vm42, %v2141, 0
    %2157 = vmatprep.subr.mxu0 0.0
    %2158 = vmatpush1.msra.mxu0 %v2142
    %2159 = vmatprep.subr.mxu0 0.0
    %2160 = vmatpush1.msra.mxu0 %v2143
    %2161 = vmatprep.subr.mxu0 0.0
    %2162 = vmatpush1.msra.mxu0 %v2144
    %2163 = vmatprep.subr.mxu0 0.0
    %2164 = vmatpush1.msra.mxu0 %v2145
    %2165 = vmatprep.subr.mxu0 0.0
    %2166 = vmatpush1.msra.mxu0 0.0
    %2167 = vmatprep.subr.mxu0 0.0
    %2168 = vmatpush1.msra.mxu0 0.0
    %2169 = vmatprep.subr.mxu0 0.0
    %2170 = vmatpush1.msra.mxu0 0.0
    %2171 = vmatprep.subr.mxu0 0.0
    %2172 = vmatpush1.msra.mxu0 0.0
    %2173 = vmatprep.subr.mxu0 0.0
    %2174 = vmatpush1.msra.mxu0 0.0
    %2175 = vmatprep.subr.mxu0 0.0
    %2176 = vmatpush1.msra.mxu0 0.0
    %2177 = vmatprep.subr.mxu0 0.0
    %2178 = vmatpush1.msra.mxu0 0.0
    %2179 = vmatprep.subr.mxu0 0.0
    %2180 = vmatpush1.msra.mxu0 0.0
    %2181 = vmatprep.subr.mxu0 0.0
    %2182 = vmatpush1.msra.mxu0 0.0
    %2183 = vmatprep.subr.mxu0 0.0
    %2184 = vmatpush1.msra.mxu0 0.0
    %2185 = vmatprep.subr.mxu0 0.0
    %2186 = vmatpush1.msra.mxu0 0.0
    %2187 = vmatprep.subr.mxu0 0.0
    %2188 = vmatpush1.msra.mxu0 0.0
    %2189 = vmatprep.subr.mxu0 0.0
    %2190 = vmatpush1.msra.mxu0 0.0
    %2191 = vmatprep.subr.mxu0 0.0
    %2192 = vmatpush1.msra.mxu0 0.0
    %2193 = vmatprep.subr.mxu0 0.0
    %2194 = vmatpush1.msra.mxu0 0.0
    %2195 = vmatprep.subr.mxu0 0.0
    %2196 = vmatpush1.msra.mxu0 0.0
    %2197 = vmatprep.subr.mxu0 0.0
    %2198 = vmatpush1.msra.mxu0 0.0
    %2199 = vmatprep.subr.mxu0 0.0
    %2200 = vmatpush1.msra.mxu0 0.0
    %2201 = vmatprep.subr.mxu0 0.0
    %2202 = vmatpush1.msra.mxu0 0.0
    %2203 = vmatprep.subr.mxu0 0.0
    %2204 = vmatpush1.msra.mxu0 0.0
    %2205 = vmatprep.subr.mxu0 0.0
    %2206 = vmatpush1.msra.mxu0 0.0
    %2207 = vmatprep.subr.mxu0 0.0
    %2208 = vmatpush1.msra.mxu0 0.0
    %2209 = vmatprep.subr.mxu0 0.0
    %2210 = vmatpush1.msra.mxu0 0.0
    %2211 = vmatprep.subr.mxu0 0.0
    %2212 = vmatpush1.msra.mxu0 0.0
    %2213 = vmatprep.subr.mxu0 0.0
    %2214 = vmatpush1.msra.mxu0 0.0
    %2215 = vmatprep.subr.mxu0 0.0
    %2216 = vmatpush1.msra.mxu0 0.0
    %2217 = vmatprep.subr.mxu0 0.0
    %2218 = vmatpush1.msra.mxu0 0.0
    %2219 = vmatprep.subr.mxu0 0.0
    %2220 = vmatpush1.msra.mxu0 0.0
    %2221 = vmatprep.mubr.f32.mxu0 0.0
    %2222 = vmatmul.mubr.f32.gmra.mrb[0].mxu0 %v2152
    %v2223 = vpop.f32.mrb[0].mxu0
    %v2224 = vadd.f32 %v2150, %v2223
    %v2225 = vpop.f32.mrb[0].mxu0
    %2226 = vmatprep.mubr.f32.mxu0 0.0
    %2227 = vmatmul.mubr.f32.gmra.mrb[0].mxu0 %v2155
    %v2228 = vpop.f32.mrb[0].mxu0
    %v2229 = vadd.f32 %v2150, %v2228
    %v2230 = vpop.f32.mrb[0].mxu0
    %2231 = vdwg.mxu0
    %v2232 = vld [vmem:[%s6 + $0x60] sm:$0xff]
    %v2233 = vld [vmem:[%s6 + $0x68] sm:$0xff]
    %v2234 = vld [vmem:[%s6 + $0x70] sm:$0xff]
    %v2235 = vld [vmem:[%s6 + $0x78] sm:$0xff]
    %v2236 = vld [vmem:[%s7 + $0xb] sm:$0x1]
    %v2237 = vlaneseq
    %v2238 = vshrl.u32 %v2237, 7
    %v2239 = vsub.s32 0, %v2238
    %v2240 = vrot.slane %v2236, %v2239
    %v2242 = vsel %vm42, %v32, 0
    %v2245 = vsel %vm42, %v33, 0
    %v2248 = vsel %vm42, %v34, 0
    %v2251 = vsel %vm42, %v35, 0
    %2253 = vmatprep.subr.mxu0 0.0
    %2254 = vmatpush1.msra.mxu0 %v2232
    %2255 = vmatprep.subr.mxu0 0.0
    %2256 = vmatpush1.msra.mxu0 %v2233
    %2257 = vmatprep.subr.mxu0 0.0
    %2258 = vmatpush1.msra.mxu0 %v2234
    %2259 = vmatprep.subr.mxu0 0.0
    %2260 = vmatpush1.msra.mxu0 %v2235
    %2261 = vmatprep.subr.mxu0 0.0
    %2262 = vmatpush1.msra.mxu0 0.0
    %2263 = vmatprep.subr.mxu0 0.0
    %2264 = vmatpush1.msra.mxu0 0.0
    %2265 = vmatprep.subr.mxu0 0.0
    %2266 = vmatpush1.msra.mxu0 0.0
    %2267 = vmatprep.subr.mxu0 0.0
    %2268 = vmatpush1.msra.mxu0 0.0
    %2269 = vmatprep.subr.mxu0 0.0
    %2270 = vmatpush1.msra.mxu0 0.0
    %2271 = vmatprep.subr.mxu0 0.0
    %2272 = vmatpush1.msra.mxu0 0.0
    %2273 = vmatprep.subr.mxu0 0.0
    %2274 = vmatpush1.msra.mxu0 0.0
    %2275 = vmatprep.subr.mxu0 0.0
    %2276 = vmatpush1.msra.mxu0 0.0
    %2277 = vmatprep.subr.mxu0 0.0
    %2278 = vmatpush1.msra.mxu0 0.0
    %2279 = vmatprep.subr.mxu0 0.0
    %2280 = vmatpush1.msra.mxu0 0.0
    %2281 = vmatprep.subr.mxu0 0.0
    %2282 = vmatpush1.msra.mxu0 0.0
    %2283 = vmatprep.subr.mxu0 0.0
    %2284 = vmatpush1.msra.mxu0 0.0
    %2285 = vmatprep.subr.mxu0 0.0
    %2286 = vmatpush1.msra.mxu0 0.0
    %2287 = vmatprep.subr.mxu0 0.0
    %2288 = vmatpush1.msra.mxu0 0.0
    %2289 = vmatprep.subr.mxu0 0.0
    %2290 = vmatpush1.msra.mxu0 0.0
    %2291 = vmatprep.subr.mxu0 0.0
    %2292 = vmatpush1.msra.mxu0 0.0
    %2293 = vmatprep.subr.mxu0 0.0
    %2294 = vmatpush1.msra.mxu0 0.0
    %2295 = vmatprep.subr.mxu0 0.0
    %2296 = vmatpush1.msra.mxu0 0.0
    %2297 = vmatprep.subr.mxu0 0.0
    %2298 = vmatpush1.msra.mxu0 0.0
    %2299 = vmatprep.subr.mxu0 0.0
    %2300 = vmatpush1.msra.mxu0 0.0
    %2301 = vmatprep.subr.mxu0 0.0
    %2302 = vmatpush1.msra.mxu0 0.0
    %2303 = vmatprep.subr.mxu0 0.0
    %2304 = vmatpush1.msra.mxu0 0.0
    %2305 = vmatprep.subr.mxu0 0.0
    %2306 = vmatpush1.msra.mxu0 0.0
    %2307 = vmatprep.subr.mxu0 0.0
    %2308 = vmatpush1.msra.mxu0 0.0
    %2309 = vmatprep.subr.mxu0 0.0
    %2310 = vmatpush1.msra.mxu0 0.0
    %2311 = vmatprep.subr.mxu0 0.0
    %2312 = vmatpush1.msra.mxu0 0.0
    %2313 = vmatprep.subr.mxu0 0.0
    %2314 = vmatpush1.msra.mxu0 0.0
    %2315 = vmatprep.subr.mxu0 0.0
    %2316 = vmatpush1.msra.mxu0 0.0
    %2317 = vmatprep.mubr.f32.mxu0 0.0
    %2318 = vmatmul.mubr.f32.gmra.mrb[0].mxu0 %v2242
    %v2319 = vpop.f32.mrb[0].mxu0
    %v2320 = vadd.f32 %v2240, %v2319
    %v2321 = vpop.f32.mrb[0].mxu0
    %2322 = vmatprep.mubr.f32.mxu0 0.0
    %2323 = vmatmul.mubr.f32.gmra.mrb[0].mxu0 %v2245
    %v2324 = vpop.f32.mrb[0].mxu0
    %v2325 = vadd.f32 %v2240, %v2324
    %v2326 = vpop.f32.mrb[0].mxu0
    %2327 = vmatprep.mubr.f32.mxu0 0.0
    %2328 = vmatmul.mubr.f32.gmra.mrb[0].mxu0 %v2248
    %v2329 = vpop.f32.mrb[0].mxu0
    %v2330 = vadd.f32 %v2240, %v2329
    %v2331 = vpop.f32.mrb[0].mxu0
    %2332 = vmatprep.mubr.f32.mxu0 0.0
    %2333 = vmatmul.mubr.f32.gmra.mrb[0].mxu0 %v2251
    %v2334 = vpop.f32.mrb[0].mxu0
    %v2335 = vadd.f32 %v2240, %v2334
    %v2336 = vpop.f32.mrb[0].mxu0
    %2337 = vdwg.mxu0
    %v2338 = vld [vmem:[%s4] sm:$0x1]
    %v2340 = vlaneseq
    %v2341 = vshrl.u32 %v2340, 7
    %v2342 = vsub.s32 0, %v2341
    %v2343 = vrot.slane %v2338, %v2342
    %v2346 = vsel %vm179, %v2224, 0
    %v2349 = vsel %vm179, %v2320, 0
    %v2352 = vsel %vm179, %v2325, 0
    %2354 = vmatprep.subr.mxu0 0.0
    %2355 = vmatpush1.xpose.msra.mxu0 %v2349
    %2356 = vmatprep.subr.mxu0 0.0
    %2357 = vmatpush1.xpose.msra.mxu0 %v2352
    %2358 = vmatprep.subr.mxu0 0.0
    %2359 = vmatpush1.xpose.msra.mxu0 0.0
    %2360 = vmatprep.subr.mxu0 0.0
    %2361 = vmatpush1.xpose.msra.mxu0 0.0
    %2362 = vmatprep.subr.mxu0 0.0
    %2363 = vmatpush1.xpose.msra.mxu0 0.0
    %2364 = vmatprep.subr.mxu0 0.0
    %2365 = vmatpush1.xpose.msra.mxu0 0.0
    %2366 = vmatprep.subr.mxu0 0.0
    %2367 = vmatpush1.xpose.msra.mxu0 0.0
    %2368 = vmatprep.subr.mxu0 0.0
    %2369 = vmatpush1.xpose.msra.mxu0 0.0
    %2370 = vmatprep.subr.mxu0 0.0
    %2371 = vmatpush1.xpose.msra.mxu0 0.0
    %2372 = vmatprep.subr.mxu0 0.0
    %2373 = vmatpush1.xpose.msra.mxu0 0.0
    %2374 = vmatprep.subr.mxu0 0.0
    %2375 = vmatpush1.xpose.msra.mxu0 0.0
    %2376 = vmatprep.subr.mxu0 0.0
    %2377 = vmatpush1.xpose.msra.mxu0 0.0
    %2378 = vmatprep.subr.mxu0 0.0
    %2379 = vmatpush1.xpose.msra.mxu0 0.0
    %2380 = vmatprep.subr.mxu0 0.0
    %2381 = vmatpush1.xpose.msra.mxu0 0.0
    %2382 = vmatprep.subr.mxu0 0.0
    %2383 = vmatpush1.xpose.msra.mxu0 0.0
    %2384 = vmatprep.subr.mxu0 0.0
    %2385 = vmatpush1.xpose.msra.mxu0 0.0
    %2386 = vmatprep.subr.mxu0 0.0
    %2387 = vmatpush1.xpose.msra.mxu0 0.0
    %2388 = vmatprep.subr.mxu0 0.0
    %2389 = vmatpush1.xpose.msra.mxu0 0.0
    %2390 = vmatprep.subr.mxu0 0.0
    %2391 = vmatpush1.xpose.msra.mxu0 0.0
    %2392 = vmatprep.subr.mxu0 0.0
    %2393 = vmatpush1.xpose.msra.mxu0 0.0
    %2394 = vmatprep.subr.mxu0 0.0
    %2395 = vmatpush1.xpose.msra.mxu0 0.0
    %2396 = vmatprep.subr.mxu0 0.0
    %2397 = vmatpush1.xpose.msra.mxu0 0.0
    %2398 = vmatprep.subr.mxu0 0.0
    %2399 = vmatpush1.xpose.msra.mxu0 0.0
    %2400 = vmatprep.subr.mxu0 0.0
    %2401 = vmatpush1.xpose.msra.mxu0 0.0
    %2402 = vmatprep.subr.mxu0 0.0
    %2403 = vmatpush1.xpose.msra.mxu0 0.0
    %2404 = vmatprep.subr.mxu0 0.0
    %2405 = vmatpush1.xpose.msra.mxu0 0.0
    %2406 = vmatprep.subr.mxu0 0.0
    %2407 = vmatpush1.xpose.msra.mxu0 0.0
    %2408 = vmatprep.subr.mxu0 0.0
    %2409 = vmatpush1.xpose.msra.mxu0 0.0
    %2410 = vmatprep.subr.mxu0 0.0
    %2411 = vmatpush1.xpose.msra.mxu0 0.0
    %2412 = vmatprep.subr.mxu0 0.0
    %2413 = vmatpush1.xpose.msra.mxu0 0.0
    %2414 = vmatprep.subr.mxu0 0.0
    %2415 = vmatpush1.xpose.msra.mxu0 0.0
    %2416 = vmatprep.subr.mxu0 0.0
    %2417 = vmatpush1.xpose.msra.mxu0 0.0
    %2418 = vmatprep.mubr.f32.mxu0 0.0
    %2419 = vmatmul.mubr.f32.gmra.mrb[0].mxu0 %v2346
    %v2420 = vpop.f32.mrb[0].mxu0
    %v2421 = vadd.f32 %v2343, %v2420
    %v2422 = vpop.f32.mrb[0].mxu0
    %2423 = vdwg.mxu0
    %2424 = vrot.lane.b32.xlu0 %v2224, 120
    %v2425 = vpop.permute.xlu0 %2424
    %2426 = vrot.lane.b32.xlu0 %v2320, 120
    %v2427 = vpop.permute.xlu0 %2426
    %2428 = vrot.lane.b32.xlu0 %v2325, 120
    %v2429 = vpop.permute.xlu0 %2428
    %v2430 = vsel %vm179, %v2425, 0
    %v2432 = vsel %vm179, %v2427, 0
    %v2434 = vsel %vm179, %v2429, 0
    %2436 = vmatprep.subr.mxu0 0.0
    %2437 = vmatpush1.xpose.msra.mxu0 %v2432
    %2438 = vmatprep.subr.mxu0 0.0
    %2439 = vmatpush1.xpose.msra.mxu0 %v2434
    %2440 = vmatprep.subr.mxu0 0.0
    %2441 = vmatpush1.xpose.msra.mxu0 0.0
    %2442 = vmatprep.subr.mxu0 0.0
    %2443 = vmatpush1.xpose.msra.mxu0 0.0
    %2444 = vmatprep.subr.mxu0 0.0
    %2445 = vmatpush1.xpose.msra.mxu0 0.0
    %2446 = vmatprep.subr.mxu0 0.0
    %2447 = vmatpush1.xpose.msra.mxu0 0.0
    %2448 = vmatprep.subr.mxu0 0.0
    %2449 = vmatpush1.xpose.msra.mxu0 0.0
    %2450 = vmatprep.subr.mxu0 0.0
    %2451 = vmatpush1.xpose.msra.mxu0 0.0
    %2452 = vmatprep.subr.mxu0 0.0
    %2453 = vmatpush1.xpose.msra.mxu0 0.0
    %2454 = vmatprep.subr.mxu0 0.0
    %2455 = vmatpush1.xpose.msra.mxu0 0.0
    %2456 = vmatprep.subr.mxu0 0.0
    %2457 = vmatpush1.xpose.msra.mxu0 0.0
    %2458 = vmatprep.subr.mxu0 0.0
    %2459 = vmatpush1.xpose.msra.mxu0 0.0
    %2460 = vmatprep.subr.mxu0 0.0
    %2461 = vmatpush1.xpose.msra.mxu0 0.0
    %2462 = vmatprep.subr.mxu0 0.0
    %2463 = vmatpush1.xpose.msra.mxu0 0.0
    %2464 = vmatprep.subr.mxu0 0.0
    %2465 = vmatpush1.xpose.msra.mxu0 0.0
    %2466 = vmatprep.subr.mxu0 0.0
    %2467 = vmatpush1.xpose.msra.mxu0 0.0
    %2468 = vmatprep.subr.mxu0 0.0
    %2469 = vmatpush1.xpose.msra.mxu0 0.0
    %2470 = vmatprep.subr.mxu0 0.0
    %2471 = vmatpush1.xpose.msra.mxu0 0.0
    %2472 = vmatprep.subr.mxu0 0.0
    %2473 = vmatpush1.xpose.msra.mxu0 0.0
    %2474 = vmatprep.subr.mxu0 0.0
    %2475 = vmatpush1.xpose.msra.mxu0 0.0
    %2476 = vmatprep.subr.mxu0 0.0
    %2477 = vmatpush1.xpose.msra.mxu0 0.0
    %2478 = vmatprep.subr.mxu0 0.0
    %2479 = vmatpush1.xpose.msra.mxu0 0.0
    %2480 = vmatprep.subr.mxu0 0.0
    %2481 = vmatpush1.xpose.msra.mxu0 0.0
    %2482 = vmatprep.subr.mxu0 0.0
    %2483 = vmatpush1.xpose.msra.mxu0 0.0
    %2484 = vmatprep.subr.mxu0 0.0
    %2485 = vmatpush1.xpose.msra.mxu0 0.0
    %2486 = vmatprep.subr.mxu0 0.0
    %2487 = vmatpush1.xpose.msra.mxu0 0.0
    %2488 = vmatprep.subr.mxu0 0.0
    %2489 = vmatpush1.xpose.msra.mxu0 0.0
    %2490 = vmatprep.subr.mxu0 0.0
    %2491 = vmatpush1.xpose.msra.mxu0 0.0
    %2492 = vmatprep.subr.mxu0 0.0
    %2493 = vmatpush1.xpose.msra.mxu0 0.0
    %2494 = vmatprep.subr.mxu0 0.0
    %2495 = vmatpush1.xpose.msra.mxu0 0.0
    %2496 = vmatprep.subr.mxu0 0.0
    %2497 = vmatpush1.xpose.msra.mxu0 0.0
    %2498 = vmatprep.subr.mxu0 0.0
    %2499 = vmatpush1.xpose.msra.mxu0 0.0
    %2500 = vmatprep.mubr.f32.mxu0 0.0
    %2501 = vmatmul.mubr.f32.gmra.mrb[0].mxu0 %v2430
    %v2502 = vpop.f32.mrb[0].mxu0
    %v2503 = vadd.f32 %v2343, %v2502
    %v2504 = vpop.f32.mrb[0].mxu0
    %2505 = vdwg.mxu0
    %2506 = vrot.lane.b32.xlu0 %v2224, 112
    %v2507 = vpop.permute.xlu0 %2506
    %2508 = vrot.lane.b32.xlu0 %v2320, 112
    %v2509 = vpop.permute.xlu0 %2508
    %2510 = vrot.lane.b32.xlu0 %v2325, 112
    %v2511 = vpop.permute.xlu0 %2510
    %v2512 = vsel %vm179, %v2507, 0
    %v2514 = vsel %vm179, %v2509, 0
    %v2516 = vsel %vm179, %v2511, 0
    %2518 = vmatprep.subr.mxu0 0.0
    %2519 = vmatpush1.xpose.msra.mxu0 %v2514
    %2520 = vmatprep.subr.mxu0 0.0
    %2521 = vmatpush1.xpose.msra.mxu0 %v2516
    %2522 = vmatprep.subr.mxu0 0.0
    %2523 = vmatpush1.xpose.msra.mxu0 0.0
    %2524 = vmatprep.subr.mxu0 0.0
    %2525 = vmatpush1.xpose.msra.mxu0 0.0
    %2526 = vmatprep.subr.mxu0 0.0
    %2527 = vmatpush1.xpose.msra.mxu0 0.0
    %2528 = vmatprep.subr.mxu0 0.0
    %2529 = vmatpush1.xpose.msra.mxu0 0.0
    %2530 = vmatprep.subr.mxu0 0.0
    %2531 = vmatpush1.xpose.msra.mxu0 0.0
    %2532 = vmatprep.subr.mxu0 0.0
    %2533 = vmatpush1.xpose.msra.mxu0 0.0
    %2534 = vmatprep.subr.mxu0 0.0
    %2535 = vmatpush1.xpose.msra.mxu0 0.0
    %2536 = vmatprep.subr.mxu0 0.0
    %2537 = vmatpush1.xpose.msra.mxu0 0.0
    %2538 = vmatprep.subr.mxu0 0.0
    %2539 = vmatpush1.xpose.msra.mxu0 0.0
    %2540 = vmatprep.subr.mxu0 0.0
    %2541 = vmatpush1.xpose.msra.mxu0 0.0
    %2542 = vmatprep.subr.mxu0 0.0
    %2543 = vmatpush1.xpose.msra.mxu0 0.0
    %2544 = vmatprep.subr.mxu0 0.0
    %2545 = vmatpush1.xpose.msra.mxu0 0.0
    %2546 = vmatprep.subr.mxu0 0.0
    %2547 = vmatpush1.xpose.msra.mxu0 0.0
    %2548 = vmatprep.subr.mxu0 0.0
    %2549 = vmatpush1.xpose.msra.mxu0 0.0
    %2550 = vmatprep.subr.mxu0 0.0
    %2551 = vmatpush1.xpose.msra.mxu0 0.0
    %2552 = vmatprep.subr.mxu0 0.0
    %2553 = vmatpush1.xpose.msra.mxu0 0.0
    %2554 = vmatprep.subr.mxu0 0.0
    %2555 = vmatpush1.xpose.msra.mxu0 0.0
    %2556 = vmatprep.subr.mxu0 0.0
    %2557 = vmatpush1.xpose.msra.mxu0 0.0
    %2558 = vmatprep.subr.mxu0 0.0
    %2559 = vmatpush1.xpose.msra.mxu0 0.0
    %2560 = vmatprep.subr.mxu0 0.0
    %2561 = vmatpush1.xpose.msra.mxu0 0.0
    %2562 = vmatprep.subr.mxu0 0.0
    %2563 = vmatpush1.xpose.msra.mxu0 0.0
    %2564 = vmatprep.subr.mxu0 0.0
    %2565 = vmatpush1.xpose.msra.mxu0 0.0
    %2566 = vmatprep.subr.mxu0 0.0
    %2567 = vmatpush1.xpose.msra.mxu0 0.0
    %2568 = vmatprep.subr.mxu0 0.0
    %2569 = vmatpush1.xpose.msra.mxu0 0.0
    %2570 = vmatprep.subr.mxu0 0.0
    %2571 = vmatpush1.xpose.msra.mxu0 0.0
    %2572 = vmatprep.subr.mxu0 0.0
    %2573 = vmatpush1.xpose.msra.mxu0 0.0
    %2574 = vmatprep.subr.mxu0 0.0
    %2575 = vmatpush1.xpose.msra.mxu0 0.0
    %2576 = vmatprep.subr.mxu0 0.0
    %2577 = vmatpush1.xpose.msra.mxu0 0.0
    %2578 = vmatprep.subr.mxu0 0.0
    %2579 = vmatpush1.xpose.msra.mxu0 0.0
    %2580 = vmatprep.subr.mxu0 0.0
    %2581 = vmatpush1.xpose.msra.mxu0 0.0
    %2582 = vmatprep.mubr.f32.mxu0 0.0
    %2583 = vmatmul.mubr.f32.gmra.mrb[0].mxu0 %v2512
    %v2584 = vpop.f32.mrb[0].mxu0
    %v2585 = vadd.f32 %v2343, %v2584
    %v2586 = vpop.f32.mrb[0].mxu0
    %2587 = vdwg.mxu0
    %2588 = vrot.lane.b32.xlu0 %v2224, 104
    %v2589 = vpop.permute.xlu0 %2588
    %2590 = vrot.lane.b32.xlu0 %v2320, 104
    %v2591 = vpop.permute.xlu0 %2590
    %2592 = vrot.lane.b32.xlu0 %v2325, 104
    %v2593 = vpop.permute.xlu0 %2592
    %v2594 = vsel %vm179, %v2589, 0
    %v2596 = vsel %vm179, %v2591, 0
    %v2598 = vsel %vm179, %v2593, 0
    %2600 = vmatprep.subr.mxu0 0.0
    %2601 = vmatpush1.xpose.msra.mxu0 %v2596
    %2602 = vmatprep.subr.mxu0 0.0
    %2603 = vmatpush1.xpose.msra.mxu0 %v2598
    %2604 = vmatprep.subr.mxu0 0.0
    %2605 = vmatpush1.xpose.msra.mxu0 0.0
    %2606 = vmatprep.subr.mxu0 0.0
    %2607 = vmatpush1.xpose.msra.mxu0 0.0
    %2608 = vmatprep.subr.mxu0 0.0
    %2609 = vmatpush1.xpose.msra.mxu0 0.0
    %2610 = vmatprep.subr.mxu0 0.0
    %2611 = vmatpush1.xpose.msra.mxu0 0.0
    %2612 = vmatprep.subr.mxu0 0.0
    %2613 = vmatpush1.xpose.msra.mxu0 0.0
    %2614 = vmatprep.subr.mxu0 0.0
    %2615 = vmatpush1.xpose.msra.mxu0 0.0
    %2616 = vmatprep.subr.mxu0 0.0
    %2617 = vmatpush1.xpose.msra.mxu0 0.0
    %2618 = vmatprep.subr.mxu0 0.0
    %2619 = vmatpush1.xpose.msra.mxu0 0.0
    %2620 = vmatprep.subr.mxu0 0.0
    %2621 = vmatpush1.xpose.msra.mxu0 0.0
    %2622 = vmatprep.subr.mxu0 0.0
    %2623 = vmatpush1.xpose.msra.mxu0 0.0
    %2624 = vmatprep.subr.mxu0 0.0
    %2625 = vmatpush1.xpose.msra.mxu0 0.0
    %2626 = vmatprep.subr.mxu0 0.0
    %2627 = vmatpush1.xpose.msra.mxu0 0.0
    %2628 = vmatprep.subr.mxu0 0.0
    %2629 = vmatpush1.xpose.msra.mxu0 0.0
    %2630 = vmatprep.subr.mxu0 0.0
    %2631 = vmatpush1.xpose.msra.mxu0 0.0
    %2632 = vmatprep.subr.mxu0 0.0
    %2633 = vmatpush1.xpose.msra.mxu0 0.0
    %2634 = vmatprep.subr.mxu0 0.0
    %2635 = vmatpush1.xpose.msra.mxu0 0.0
    %2636 = vmatprep.subr.mxu0 0.0
    %2637 = vmatpush1.xpose.msra.mxu0 0.0
    %2638 = vmatprep.subr.mxu0 0.0
    %2639 = vmatpush1.xpose.msra.mxu0 0.0
    %2640 = vmatprep.subr.mxu0 0.0
    %2641 = vmatpush1.xpose.msra.mxu0 0.0
    %2642 = vmatprep.subr.mxu0 0.0
    %2643 = vmatpush1.xpose.msra.mxu0 0.0
    %2644 = vmatprep.subr.mxu0 0.0
    %2645 = vmatpush1.xpose.msra.mxu0 0.0
    %2646 = vmatprep.subr.mxu0 0.0
    %2647 = vmatpush1.xpose.msra.mxu0 0.0
    %2648 = vmatprep.subr.mxu0 0.0
    %2649 = vmatpush1.xpose.msra.mxu0 0.0
    %2650 = vmatprep.subr.mxu0 0.0
    %2651 = vmatpush1.xpose.msra.mxu0 0.0
    %2652 = vmatprep.subr.mxu0 0.0
    %2653 = vmatpush1.xpose.msra.mxu0 0.0
    %2654 = vmatprep.subr.mxu0 0.0
    %2655 = vmatpush1.xpose.msra.mxu0 0.0
    %2656 = vmatprep.subr.mxu0 0.0
    %2657 = vmatpush1.xpose.msra.mxu0 0.0
    %2658 = vmatprep.subr.mxu0 0.0
    %2659 = vmatpush1.xpose.msra.mxu0 0.0
    %2660 = vmatprep.subr.mxu0 0.0
    %2661 = vmatpush1.xpose.msra.mxu0 0.0
    %2662 = vmatprep.subr.mxu0 0.0
    %2663 = vmatpush1.xpose.msra.mxu0 0.0
    %2664 = vmatprep.mubr.f32.mxu0 0.0
    %2665 = vmatmul.mubr.f32.gmra.mrb[0].mxu0 %v2594
    %v2666 = vpop.f32.mrb[0].mxu0
    %v2667 = vadd.f32 %v2343, %v2666
    %v2668 = vpop.f32.mrb[0].mxu0
    %2669 = vdwg.mxu0
    %vm2670 = vcmask 130048
    %v2671 = vsel %vm2670, %v2421, -inf
    %2672 = vmax.xlane.f32.xlu0 %v2671
    %v2673 = vpop.xlane.xlu0 %2672
    %v2674 = vsel %vm2670, %v2503, -inf
    %2675 = vmax.xlane.f32.xlu0 %v2674
    %v2676 = vpop.xlane.xlu0 %2675
    %v2677 = vsel %vm2670, %v2585, -inf
    %2678 = vmax.xlane.f32.xlu0 %v2677
    %v2679 = vpop.xlane.xlu0 %2678
    %v2680 = vsel %vm2670, %v2667, -inf
    %2681 = vmax.xlane.f32.xlu0 %v2680
    %v2682 = vpop.xlane.xlu0 %2681
    %v2683 = vsub.f32 %v2421, %v2673
    %v2684 = vsub.f32 %v2503, %v2676
    %v2685 = vsub.f32 %v2585, %v2679
    %v2686 = vsub.f32 %v2667, %v2682
    %v2687 = vmul.f32 %v2683, 1.442695
    %v2688 = vpow.pop %v2687
    %v2689 = vmul.f32 %v2684, 1.442695
    %v2690 = vpow.pop %v2689
    %v2691 = vmul.f32 %v2685, 1.442695
    %v2692 = vpow.pop %v2691
    %v2693 = vmul.f32 %v2686, 1.442695
    %v2694 = vpow.pop %v2693
    %v2695 = vsel %vm2670, %v2688, 0.0
    %2696 = vadd.xlane.f32.xlu0 %v2695
    %v2697 = vpop.xlane.xlu0 %2696
    %v2698 = vsel %vm2670, %v2690, 0.0
    %2699 = vadd.xlane.f32.xlu0 %v2698
    %v2700 = vpop.xlane.xlu0 %2699
    %v2701 = vsel %vm2670, %v2692, 0.0
    %2702 = vadd.xlane.f32.xlu0 %v2701
    %v2703 = vpop.xlane.xlu0 %2702
    %v2704 = vsel %vm2670, %v2694, 0.0
    %2705 = vadd.xlane.f32.xlu0 %v2704
    %v2706 = vpop.xlane.xlu0 %2705
    %v2707 = vrcp.pop %v2697
    %v2708 = vrcp.pop %v2700
    %v2709 = vrcp.pop %v2703
    %v2710 = vrcp.pop %v2706
    %v2711 = vmul.f32 %v2688, %v2707
    %v2712 = vmul.f32 %v2690, %v2708
    %v2713 = vmul.f32 %v2692, %v2709
    %v2714 = vmul.f32 %v2694, %v2710
    %2715 = vrot.lane.b32.xlu0 %v2320, 96
    %v2716 = vpop.permute.xlu0 %2715
    %2717 = vrot.lane.b32.xlu0 %v2325, 96
    %v2718 = vpop.permute.xlu0 %2717
    %v2722 = vsel %vm2670, %v2711, 0
    %2724 = vmatprep.subr.mxu0 0.0
    %2725 = vmatpush1.msra.mxu0 %v2716
    %2726 = vmatprep.subr.mxu0 0.0
    %2727 = vmatpush1.msra.mxu0 %v2718
    %2728 = vmatprep.subr.mxu0 0.0
    %2729 = vmatpush1.msra.mxu0 0.0
    %2730 = vmatprep.subr.mxu0 0.0
    %2731 = vmatpush1.msra.mxu0 0.0
    %2732 = vmatprep.subr.mxu0 0.0
    %2733 = vmatpush1.msra.mxu0 0.0
    %2734 = vmatprep.subr.mxu0 0.0
    %2735 = vmatpush1.msra.mxu0 0.0
    %2736 = vmatprep.subr.mxu0 0.0
    %2737 = vmatpush1.msra.mxu0 0.0
    %2738 = vmatprep.subr.mxu0 0.0
    %2739 = vmatpush1.msra.mxu0 0.0
    %2740 = vmatprep.subr.mxu0 0.0
    %2741 = vmatpush1.msra.mxu0 0.0
    %2742 = vmatprep.subr.mxu0 0.0
    %2743 = vmatpush1.msra.mxu0 0.0
    %2744 = vmatprep.subr.mxu0 0.0
    %2745 = vmatpush1.msra.mxu0 0.0
    %2746 = vmatprep.subr.mxu0 0.0
    %2747 = vmatpush1.msra.mxu0 0.0
    %2748 = vmatprep.subr.mxu0 0.0
    %2749 = vmatpush1.msra.mxu0 0.0
    %2750 = vmatprep.subr.mxu0 0.0
    %2751 = vmatpush1.msra.mxu0 0.0
    %2752 = vmatprep.subr.mxu0 0.0
    %2753 = vmatpush1.msra.mxu0 0.0
    %2754 = vmatprep.subr.mxu0 0.0
    %2755 = vmatpush1.msra.mxu0 0.0
    %2756 = vmatprep.subr.mxu0 0.0
    %2757 = vmatpush1.msra.mxu0 0.0
    %2758 = vmatprep.subr.mxu0 0.0
    %2759 = vmatpush1.msra.mxu0 0.0
    %2760 = vmatprep.subr.mxu0 0.0
    %2761 = vmatpush1.msra.mxu0 0.0
    %2762 = vmatprep.subr.mxu0 0.0
    %2763 = vmatpush1.msra.mxu0 0.0
    %2764 = vmatprep.subr.mxu0 0.0
    %2765 = vmatpush1.msra.mxu0 0.0
    %2766 = vmatprep.subr.mxu0 0.0
    %2767 = vmatpush1.msra.mxu0 0.0
    %2768 = vmatprep.subr.mxu0 0.0
    %2769 = vmatpush1.msra.mxu0 0.0
    %2770 = vmatprep.subr.mxu0 0.0
    %2771 = vmatpush1.msra.mxu0 0.0
    %2772 = vmatprep.subr.mxu0 0.0
    %2773 = vmatpush1.msra.mxu0 0.0
    %2774 = vmatprep.subr.mxu0 0.0
    %2775 = vmatpush1.msra.mxu0 0.0
    %2776 = vmatprep.subr.mxu0 0.0
    %2777 = vmatpush1.msra.mxu0 0.0
    %2778 = vmatprep.subr.mxu0 0.0
    %2779 = vmatpush1.msra.mxu0 0.0
    %2780 = vmatprep.subr.mxu0 0.0
    %2781 = vmatpush1.msra.mxu0 0.0
    %2782 = vmatprep.subr.mxu0 0.0
    %2783 = vmatpush1.msra.mxu0 0.0
    %2784 = vmatprep.subr.mxu0 0.0
    %2785 = vmatpush1.msra.mxu0 0.0
    %2786 = vmatprep.subr.mxu0 0.0
    %2787 = vmatpush1.msra.mxu0 0.0
    %2788 = vmatprep.mubr.f32.mxu0 0.0
    %2789 = vmatmul.mubr.f32.gmra.mrb[0].mxu0 %v2722
    %v2790 = vpop.f32.mrb[0].mxu0
    %v2791 = vadd.f32 0.0, %v2790
    %v2792 = vpop.f32.mrb[0].mxu0
    %2793 = vdwg.mxu0
    %v2794 = vld [vmem:[%s6 + $0x80] sm:$0xff]
    %2795 = vrot.lane.b32.xlu0 %v2320, 88
    %v2796 = vpop.permute.xlu0 %2795
    %2797 = vrot.lane.b32.xlu0 %v2325, 88
    %v2798 = vpop.permute.xlu0 %2797
    %v2802 = vsel %vm2670, %v2712, 0
    %2804 = vmatprep.subr.mxu0 0.0
    %2805 = vmatpush1.msra.mxu0 %v2796
    %2806 = vmatprep.subr.mxu0 0.0
    %2807 = vmatpush1.msra.mxu0 %v2798
    %2808 = vmatprep.subr.mxu0 0.0
    %2809 = vmatpush1.msra.mxu0 0.0
    %2810 = vmatprep.subr.mxu0 0.0
    %2811 = vmatpush1.msra.mxu0 0.0
    %2812 = vmatprep.subr.mxu0 0.0
    %2813 = vmatpush1.msra.mxu0 0.0
    %2814 = vmatprep.subr.mxu0 0.0
    %2815 = vmatpush1.msra.mxu0 0.0
    %2816 = vmatprep.subr.mxu0 0.0
    %2817 = vmatpush1.msra.mxu0 0.0
    %2818 = vmatprep.subr.mxu0 0.0
    %2819 = vmatpush1.msra.mxu0 0.0
    %2820 = vmatprep.subr.mxu0 0.0
    %2821 = vmatpush1.msra.mxu0 0.0
    %2822 = vmatprep.subr.mxu0 0.0
    %2823 = vmatpush1.msra.mxu0 0.0
    %2824 = vmatprep.subr.mxu0 0.0
    %2825 = vmatpush1.msra.mxu0 0.0
    %2826 = vmatprep.subr.mxu0 0.0
    %2827 = vmatpush1.msra.mxu0 0.0
    %2828 = vmatprep.subr.mxu0 0.0
    %2829 = vmatpush1.msra.mxu0 0.0
    %2830 = vmatprep.subr.mxu0 0.0
    %2831 = vmatpush1.msra.mxu0 0.0
    %2832 = vmatprep.subr.mxu0 0.0
    %2833 = vmatpush1.msra.mxu0 0.0
    %2834 = vmatprep.subr.mxu0 0.0
    %2835 = vmatpush1.msra.mxu0 0.0
    %2836 = vmatprep.subr.mxu0 0.0
    %2837 = vmatpush1.msra.mxu0 0.0
    %2838 = vmatprep.subr.mxu0 0.0
    %2839 = vmatpush1.msra.mxu0 0.0
    %2840 = vmatprep.subr.mxu0 0.0
    %2841 = vmatpush1.msra.mxu0 0.0
    %2842 = vmatprep.subr.mxu0 0.0
    %2843 = vmatpush1.msra.mxu0 0.0
    %2844 = vmatprep.subr.mxu0 0.0
    %2845 = vmatpush1.msra.mxu0 0.0
    %2846 = vmatprep.subr.mxu0 0.0
    %2847 = vmatpush1.msra.mxu0 0.0
    %2848 = vmatprep.subr.mxu0 0.0
    %2849 = vmatpush1.msra.mxu0 0.0
    %2850 = vmatprep.subr.mxu0 0.0
    %2851 = vmatpush1.msra.mxu0 0.0
    %2852 = vmatprep.subr.mxu0 0.0
    %2853 = vmatpush1.msra.mxu0 0.0
    %2854 = vmatprep.subr.mxu0 0.0
    %2855 = vmatpush1.msra.mxu0 0.0
    %2856 = vmatprep.subr.mxu0 0.0
    %2857 = vmatpush1.msra.mxu0 0.0
    %2858 = vmatprep.subr.mxu0 0.0
    %2859 = vmatpush1.msra.mxu0 0.0
    %2860 = vmatprep.subr.mxu0 0.0
    %2861 = vmatpush1.msra.mxu0 0.0
    %2862 = vmatprep.subr.mxu0 0.0
    %2863 = vmatpush1.msra.mxu0 0.0
    %2864 = vmatprep.subr.mxu0 0.0
    %2865 = vmatpush1.msra.mxu0 0.0
    %2866 = vmatprep.subr.mxu0 0.0
    %2867 = vmatpush1.msra.mxu0 0.0
    %2868 = vmatprep.mubr.f32.mxu0 0.0
    %2869 = vmatmul.mubr.f32.gmra.mrb[0].mxu0 %v2802
    %v2870 = vpop.f32.mrb[0].mxu0
    %v2871 = vadd.f32 0.0, %v2870
    %v2872 = vpop.f32.mrb[0].mxu0
    %2873 = vdwg.mxu0
    %v2874 = vld [vmem:[%s6 + $0x88] sm:$0xff]
    %v2876 = vsel %vm179, %v2871, 0
    %2878 = vmatprep.subr.mxu0 0.0
    %2879 = vmatpush1.msra.mxu0 %v2874
    %2880 = vmatprep.subr.mxu0 0.0
    %2881 = vmatpush1.msra.mxu0 0.0
    %2882 = vmatprep.subr.mxu0 0.0
    %2883 = vmatpush1.msra.mxu0 0.0
    %2884 = vmatprep.subr.mxu0 0.0
    %2885 = vmatpush1.msra.mxu0 0.0
    %2886 = vmatprep.subr.mxu0 0.0
    %2887 = vmatpush1.msra.mxu0 0.0
    %2888 = vmatprep.subr.mxu0 0.0
    %2889 = vmatpush1.msra.mxu0 0.0
    %2890 = vmatprep.subr.mxu0 0.0
    %2891 = vmatpush1.msra.mxu0 0.0
    %2892 = vmatprep.subr.mxu0 0.0
    %2893 = vmatpush1.msra.mxu0 0.0
    %2894 = vmatprep.subr.mxu0 0.0
    %2895 = vmatpush1.msra.mxu0 0.0
    %2896 = vmatprep.subr.mxu0 0.0
    %2897 = vmatpush1.msra.mxu0 0.0
    %2898 = vmatprep.subr.mxu0 0.0
    %2899 = vmatpush1.msra.mxu0 0.0
    %2900 = vmatprep.subr.mxu0 0.0
    %2901 = vmatpush1.msra.mxu0 0.0
    %2902 = vmatprep.subr.mxu0 0.0
    %2903 = vmatpush1.msra.mxu0 0.0
    %2904 = vmatprep.subr.mxu0 0.0
    %2905 = vmatpush1.msra.mxu0 0.0
    %2906 = vmatprep.subr.mxu0 0.0
    %2907 = vmatpush1.msra.mxu0 0.0
    %2908 = vmatprep.subr.mxu0 0.0
    %2909 = vmatpush1.msra.mxu0 0.0
    %2910 = vmatprep.subr.mxu0 0.0
    %2911 = vmatpush1.msra.mxu0 0.0
    %2912 = vmatprep.subr.mxu0 0.0
    %2913 = vmatpush1.msra.mxu0 0.0
    %2914 = vmatprep.subr.mxu0 0.0
    %2915 = vmatpush1.msra.mxu0 0.0
    %2916 = vmatprep.subr.mxu0 0.0
    %2917 = vmatpush1.msra.mxu0 0.0
    %2918 = vmatprep.subr.mxu0 0.0
    %2919 = vmatpush1.msra.mxu0 0.0
    %2920 = vmatprep.subr.mxu0 0.0
    %2921 = vmatpush1.msra.mxu0 0.0
    %2922 = vmatprep.subr.mxu0 0.0
    %2923 = vmatpush1.msra.mxu0 0.0
    %2924 = vmatprep.subr.mxu0 0.0
    %2925 = vmatpush1.msra.mxu0 0.0
    %2926 = vmatprep.subr.mxu0 0.0
    %2927 = vmatpush1.msra.mxu0 0.0
    %2928 = vmatprep.subr.mxu0 0.0
    %2929 = vmatpush1.msra.mxu0 0.0
    %2930 = vmatprep.subr.mxu0 0.0
    %2931 = vmatpush1.msra.mxu0 0.0
    %2932 = vmatprep.subr.mxu0 0.0
    %2933 = vmatpush1.msra.mxu0 0.0
    %2934 = vmatprep.subr.mxu0 0.0
    %2935 = vmatpush1.msra.mxu0 0.0
    %2936 = vmatprep.subr.mxu0 0.0
    %2937 = vmatpush1.msra.mxu0 0.0
    %2938 = vmatprep.subr.mxu0 0.0
    %2939 = vmatpush1.msra.mxu0 0.0
    %2940 = vmatprep.subr.mxu0 0.0
    %2941 = vmatpush1.msra.mxu0 0.0
    %2942 = vmatprep.mubr.f32.mxu0 0.0
    %2943 = vmatmul.mubr.f32.gmra.mrb[0].mxu0 %v2876
    %v2944 = vpop.f32.mrb[0].mxu0
    %v2945 = vadd.f32 0.0, %v2944
    %v2946 = vpop.f32.mrb[0].mxu0
    %2947 = vdwg.mxu0
    %v2949 = vsel %vm179, %v2791, 0
    %2951 = vmatprep.subr.mxu0 0.0
    %2952 = vmatpush1.msra.mxu0 %v2794
    %2953 = vmatprep.subr.mxu0 0.0
    %2954 = vmatpush1.msra.mxu0 0.0
    %2955 = vmatprep.subr.mxu0 0.0
    %2956 = vmatpush1.msra.mxu0 0.0
    %2957 = vmatprep.subr.mxu0 0.0
    %2958 = vmatpush1.msra.mxu0 0.0
    %2959 = vmatprep.subr.mxu0 0.0
    %2960 = vmatpush1.msra.mxu0 0.0
    %2961 = vmatprep.subr.mxu0 0.0
    %2962 = vmatpush1.msra.mxu0 0.0
    %2963 = vmatprep.subr.mxu0 0.0
    %2964 = vmatpush1.msra.mxu0 0.0
    %2965 = vmatprep.subr.mxu0 0.0
    %2966 = vmatpush1.msra.mxu0 0.0
    %2967 = vmatprep.subr.mxu0 0.0
    %2968 = vmatpush1.msra.mxu0 0.0
    %2969 = vmatprep.subr.mxu0 0.0
    %2970 = vmatpush1.msra.mxu0 0.0
    %2971 = vmatprep.subr.mxu0 0.0
    %2972 = vmatpush1.msra.mxu0 0.0
    %2973 = vmatprep.subr.mxu0 0.0
    %2974 = vmatpush1.msra.mxu0 0.0
    %2975 = vmatprep.subr.mxu0 0.0
    %2976 = vmatpush1.msra.mxu0 0.0
    %2977 = vmatprep.subr.mxu0 0.0
    %2978 = vmatpush1.msra.mxu0 0.0
    %2979 = vmatprep.subr.mxu0 0.0
    %2980 = vmatpush1.msra.mxu0 0.0
    %2981 = vmatprep.subr.mxu0 0.0
    %2982 = vmatpush1.msra.mxu0 0.0
    %2983 = vmatprep.subr.mxu0 0.0
    %2984 = vmatpush1.msra.mxu0 0.0
    %2985 = vmatprep.subr.mxu0 0.0
    %2986 = vmatpush1.msra.mxu0 0.0
    %2987 = vmatprep.subr.mxu0 0.0
    %2988 = vmatpush1.msra.mxu0 0.0
    %2989 = vmatprep.subr.mxu0 0.0
    %2990 = vmatpush1.msra.mxu0 0.0
    %2991 = vmatprep.subr.mxu0 0.0
    %2992 = vmatpush1.msra.mxu0 0.0
    %2993 = vmatprep.subr.mxu0 0.0
    %2994 = vmatpush1.msra.mxu0 0.0
    %2995 = vmatprep.subr.mxu0 0.0
    %2996 = vmatpush1.msra.mxu0 0.0
    %2997 = vmatprep.subr.mxu0 0.0
    %2998 = vmatpush1.msra.mxu0 0.0
    %2999 = vmatprep.subr.mxu0 0.0
    %3000 = vmatpush1.msra.mxu0 0.0
    %3001 = vmatprep.subr.mxu0 0.0
    %3002 = vmatpush1.msra.mxu0 0.0
    %3003 = vmatprep.subr.mxu0 0.0
    %3004 = vmatpush1.msra.mxu0 0.0
    %3005 = vmatprep.subr.mxu0 0.0
    %3006 = vmatpush1.msra.mxu0 0.0
    %3007 = vmatprep.subr.mxu0 0.0
    %3008 = vmatpush1.msra.mxu0 0.0
    %3009 = vmatprep.subr.mxu0 0.0
    %3010 = vmatpush1.msra.mxu0 0.0
    %3011 = vmatprep.subr.mxu0 0.0
    %3012 = vmatpush1.msra.mxu0 0.0
    %3013 = vmatprep.subr.mxu0 0.0
    %3014 = vmatpush1.msra.mxu0 0.0
    %3015 = vmatprep.mubr.f32.mxu0 0.0
    %3016 = vmatmul.mubr.f32.gmra.mrb[0].mxu0 %v2949
    %v3017 = vpop.f32.mrb[0].mxu0
    %v3018 = vadd.f32 %v2945, %v3017
    %v3019 = vpop.f32.mrb[0].mxu0
    %3020 = vdwg.mxu0
    %3021 = vrot.lane.b32.xlu0 %v2320, 80
    %v3022 = vpop.permute.xlu0 %3021
    %3023 = vrot.lane.b32.xlu0 %v2325, 80
    %v3024 = vpop.permute.xlu0 %3023
    %v3028 = vsel %vm2670, %v2713, 0
    %3030 = vmatprep.subr.mxu0 0.0
    %3031 = vmatpush1.msra.mxu0 %v3022
    %3032 = vmatprep.subr.mxu0 0.0
    %3033 = vmatpush1.msra.mxu0 %v3024
    %3034 = vmatprep.subr.mxu0 0.0
    %3035 = vmatpush1.msra.mxu0 0.0
    %3036 = vmatprep.subr.mxu0 0.0
    %3037 = vmatpush1.msra.mxu0 0.0
    %3038 = vmatprep.subr.mxu0 0.0
    %3039 = vmatpush1.msra.mxu0 0.0
    %3040 = vmatprep.subr.mxu0 0.0
    %3041 = vmatpush1.msra.mxu0 0.0
    %3042 = vmatprep.subr.mxu0 0.0
    %3043 = vmatpush1.msra.mxu0 0.0
    %3044 = vmatprep.subr.mxu0 0.0
    %3045 = vmatpush1.msra.mxu0 0.0
    %3046 = vmatprep.subr.mxu0 0.0
    %3047 = vmatpush1.msra.mxu0 0.0
    %3048 = vmatprep.subr.mxu0 0.0
    %3049 = vmatpush1.msra.mxu0 0.0
    %3050 = vmatprep.subr.mxu0 0.0
    %3051 = vmatpush1.msra.mxu0 0.0
    %3052 = vmatprep.subr.mxu0 0.0
    %3053 = vmatpush1.msra.mxu0 0.0
    %3054 = vmatprep.subr.mxu0 0.0
    %3055 = vmatpush1.msra.mxu0 0.0
    %3056 = vmatprep.subr.mxu0 0.0
    %3057 = vmatpush1.msra.mxu0 0.0
    %3058 = vmatprep.subr.mxu0 0.0
    %3059 = vmatpush1.msra.mxu0 0.0
    %3060 = vmatprep.subr.mxu0 0.0
    %3061 = vmatpush1.msra.mxu0 0.0
    %3062 = vmatprep.subr.mxu0 0.0
    %3063 = vmatpush1.msra.mxu0 0.0
    %3064 = vmatprep.subr.mxu0 0.0
    %3065 = vmatpush1.msra.mxu0 0.0
    %3066 = vmatprep.subr.mxu0 0.0
    %3067 = vmatpush1.msra.mxu0 0.0
    %3068 = vmatprep.subr.mxu0 0.0
    %3069 = vmatpush1.msra.mxu0 0.0
    %3070 = vmatprep.subr.mxu0 0.0
    %3071 = vmatpush1.msra.mxu0 0.0
    %3072 = vmatprep.subr.mxu0 0.0
    %3073 = vmatpush1.msra.mxu0 0.0
    %3074 = vmatprep.subr.mxu0 0.0
    %3075 = vmatpush1.msra.mxu0 0.0
    %3076 = vmatprep.subr.mxu0 0.0
    %3077 = vmatpush1.msra.mxu0 0.0
    %3078 = vmatprep.subr.mxu0 0.0
    %3079 = vmatpush1.msra.mxu0 0.0
    %3080 = vmatprep.subr.mxu0 0.0
    %3081 = vmatpush1.msra.mxu0 0.0
    %3082 = vmatprep.subr.mxu0 0.0
    %3083 = vmatpush1.msra.mxu0 0.0
    %3084 = vmatprep.subr.mxu0 0.0
    %3085 = vmatpush1.msra.mxu0 0.0
    %3086 = vmatprep.subr.mxu0 0.0
    %3087 = vmatpush1.msra.mxu0 0.0
    %3088 = vmatprep.subr.mxu0 0.0
    %3089 = vmatpush1.msra.mxu0 0.0
    %3090 = vmatprep.subr.mxu0 0.0
    %3091 = vmatpush1.msra.mxu0 0.0
    %3092 = vmatprep.subr.mxu0 0.0
    %3093 = vmatpush1.msra.mxu0 0.0
    %3094 = vmatprep.mubr.f32.mxu0 0.0
    %3095 = vmatmul.mubr.f32.gmra.mrb[0].mxu0 %v3028
    %v3096 = vpop.f32.mrb[0].mxu0
    %v3097 = vadd.f32 0.0, %v3096
    %v3098 = vpop.f32.mrb[0].mxu0
    %3099 = vdwg.mxu0
    %v3100 = vld [vmem:[%s6 + $0x90] sm:$0xff]
    %v3102 = vsel %vm179, %v3097, 0
    %3104 = vmatprep.subr.mxu0 0.0
    %3105 = vmatpush1.msra.mxu0 %v3100
    %3106 = vmatprep.subr.mxu0 0.0
    %3107 = vmatpush1.msra.mxu0 0.0
    %3108 = vmatprep.subr.mxu0 0.0
    %3109 = vmatpush1.msra.mxu0 0.0
    %3110 = vmatprep.subr.mxu0 0.0
    %3111 = vmatpush1.msra.mxu0 0.0
    %3112 = vmatprep.subr.mxu0 0.0
    %3113 = vmatpush1.msra.mxu0 0.0
    %3114 = vmatprep.subr.mxu0 0.0
    %3115 = vmatpush1.msra.mxu0 0.0
    %3116 = vmatprep.subr.mxu0 0.0
    %3117 = vmatpush1.msra.mxu0 0.0
    %3118 = vmatprep.subr.mxu0 0.0
    %3119 = vmatpush1.msra.mxu0 0.0
    %3120 = vmatprep.subr.mxu0 0.0
    %3121 = vmatpush1.msra.mxu0 0.0
    %3122 = vmatprep.subr.mxu0 0.0
    %3123 = vmatpush1.msra.mxu0 0.0
    %3124 = vmatprep.subr.mxu0 0.0
    %3125 = vmatpush1.msra.mxu0 0.0
    %3126 = vmatprep.subr.mxu0 0.0
    %3127 = vmatpush1.msra.mxu0 0.0
    %3128 = vmatprep.subr.mxu0 0.0
    %3129 = vmatpush1.msra.mxu0 0.0
    %3130 = vmatprep.subr.mxu0 0.0
    %3131 = vmatpush1.msra.mxu0 0.0
    %3132 = vmatprep.subr.mxu0 0.0
    %3133 = vmatpush1.msra.mxu0 0.0
    %3134 = vmatprep.subr.mxu0 0.0
    %3135 = vmatpush1.msra.mxu0 0.0
    %3136 = vmatprep.subr.mxu0 0.0
    %3137 = vmatpush1.msra.mxu0 0.0
    %3138 = vmatprep.subr.mxu0 0.0
    %3139 = vmatpush1.msra.mxu0 0.0
    %3140 = vmatprep.subr.mxu0 0.0
    %3141 = vmatpush1.msra.mxu0 0.0
    %3142 = vmatprep.subr.mxu0 0.0
    %3143 = vmatpush1.msra.mxu0 0.0
    %3144 = vmatprep.subr.mxu0 0.0
    %3145 = vmatpush1.msra.mxu0 0.0
    %3146 = vmatprep.subr.mxu0 0.0
    %3147 = vmatpush1.msra.mxu0 0.0
    %3148 = vmatprep.subr.mxu0 0.0
    %3149 = vmatpush1.msra.mxu0 0.0
    %3150 = vmatprep.subr.mxu0 0.0
    %3151 = vmatpush1.msra.mxu0 0.0
    %3152 = vmatprep.subr.mxu0 0.0
    %3153 = vmatpush1.msra.mxu0 0.0
    %3154 = vmatprep.subr.mxu0 0.0
    %3155 = vmatpush1.msra.mxu0 0.0
    %3156 = vmatprep.subr.mxu0 0.0
    %3157 = vmatpush1.msra.mxu0 0.0
    %3158 = vmatprep.subr.mxu0 0.0
    %3159 = vmatpush1.msra.mxu0 0.0
    %3160 = vmatprep.subr.mxu0 0.0
    %3161 = vmatpush1.msra.mxu0 0.0
    %3162 = vmatprep.subr.mxu0 0.0
    %3163 = vmatpush1.msra.mxu0 0.0
    %3164 = vmatprep.subr.mxu0 0.0
    %3165 = vmatpush1.msra.mxu0 0.0
    %3166 = vmatprep.subr.mxu0 0.0
    %3167 = vmatpush1.msra.mxu0 0.0
    %3168 = vmatprep.mubr.f32.mxu0 0.0
    %3169 = vmatmul.mubr.f32.gmra.mrb[0].mxu0 %v3102
    %v3170 = vpop.f32.mrb[0].mxu0
    %v3171 = vadd.f32 0.0, %v3170
    %v3172 = vpop.f32.mrb[0].mxu0
    %3173 = vdwg.mxu0
    %v3174 = vadd.f32 %v3018, %v3171
    %3175 = vrot.lane.b32.xlu0 %v2320, 72
    %v3176 = vpop.permute.xlu0 %3175
    %3177 = vrot.lane.b32.xlu0 %v2325, 72
    %v3178 = vpop.permute.xlu0 %3177
    %v3182 = vsel %vm2670, %v2714, 0
    %3184 = vmatprep.subr.mxu0 0.0
    %3185 = vmatpush1.msra.mxu0 %v3176
    %3186 = vmatprep.subr.mxu0 0.0
    %3187 = vmatpush1.msra.mxu0 %v3178
    %3188 = vmatprep.subr.mxu0 0.0
    %3189 = vmatpush1.msra.mxu0 0.0
    %3190 = vmatprep.subr.mxu0 0.0
    %3191 = vmatpush1.msra.mxu0 0.0
    %3192 = vmatprep.subr.mxu0 0.0
    %3193 = vmatpush1.msra.mxu0 0.0
    %3194 = vmatprep.subr.mxu0 0.0
    %3195 = vmatpush1.msra.mxu0 0.0
    %3196 = vmatprep.subr.mxu0 0.0
    %3197 = vmatpush1.msra.mxu0 0.0
    %3198 = vmatprep.subr.mxu0 0.0
    %3199 = vmatpush1.msra.mxu0 0.0
    %3200 = vmatprep.subr.mxu0 0.0
    %3201 = vmatpush1.msra.mxu0 0.0
    %3202 = vmatprep.subr.mxu0 0.0
    %3203 = vmatpush1.msra.mxu0 0.0
    %3204 = vmatprep.subr.mxu0 0.0
    %3205 = vmatpush1.msra.mxu0 0.0
    %3206 = vmatprep.subr.mxu0 0.0
    %3207 = vmatpush1.msra.mxu0 0.0
    %3208 = vmatprep.subr.mxu0 0.0
    %3209 = vmatpush1.msra.mxu0 0.0
    %3210 = vmatprep.subr.mxu0 0.0
    %3211 = vmatpush1.msra.mxu0 0.0
    %3212 = vmatprep.subr.mxu0 0.0
    %3213 = vmatpush1.msra.mxu0 0.0
    %3214 = vmatprep.subr.mxu0 0.0
    %3215 = vmatpush1.msra.mxu0 0.0
    %3216 = vmatprep.subr.mxu0 0.0
    %3217 = vmatpush1.msra.mxu0 0.0
    %3218 = vmatprep.subr.mxu0 0.0
    %3219 = vmatpush1.msra.mxu0 0.0
    %3220 = vmatprep.subr.mxu0 0.0
    %3221 = vmatpush1.msra.mxu0 0.0
    %3222 = vmatprep.subr.mxu0 0.0
    %3223 = vmatpush1.msra.mxu0 0.0
    %3224 = vmatprep.subr.mxu0 0.0
    %3225 = vmatpush1.msra.mxu0 0.0
    %3226 = vmatprep.subr.mxu0 0.0
    %3227 = vmatpush1.msra.mxu0 0.0
    %3228 = vmatprep.subr.mxu0 0.0
    %3229 = vmatpush1.msra.mxu0 0.0
    %3230 = vmatprep.subr.mxu0 0.0
    %3231 = vmatpush1.msra.mxu0 0.0
    %3232 = vmatprep.subr.mxu0 0.0
    %3233 = vmatpush1.msra.mxu0 0.0
    %3234 = vmatprep.subr.mxu0 0.0
    %3235 = vmatpush1.msra.mxu0 0.0
    %3236 = vmatprep.subr.mxu0 0.0
    %3237 = vmatpush1.msra.mxu0 0.0
    %3238 = vmatprep.subr.mxu0 0.0
    %3239 = vmatpush1.msra.mxu0 0.0
    %3240 = vmatprep.subr.mxu0 0.0
    %3241 = vmatpush1.msra.mxu0 0.0
    %3242 = vmatprep.subr.mxu0 0.0
    %3243 = vmatpush1.msra.mxu0 0.0
    %3244 = vmatprep.subr.mxu0 0.0
    %3245 = vmatpush1.msra.mxu0 0.0
    %3246 = vmatprep.subr.mxu0 0.0
    %3247 = vmatpush1.msra.mxu0 0.0
    %3248 = vmatprep.mubr.f32.mxu0 0.0
    %3249 = vmatmul.mubr.f32.gmra.mrb[0].mxu0 %v3182
    %v3250 = vpop.f32.mrb[0].mxu0
    %v3251 = vadd.f32 0.0, %v3250
    %v3252 = vpop.f32.mrb[0].mxu0
    %3253 = vdwg.mxu0
    %v3254 = vld [vmem:[%s6 + $0x98] sm:$0xff]
    %v3256 = vsel %vm179, %v3251, 0
    %3258 = vmatprep.subr.mxu0 0.0
    %3259 = vmatpush1.msra.mxu0 %v3254
    %3260 = vmatprep.subr.mxu0 0.0
    %3261 = vmatpush1.msra.mxu0 0.0
    %3262 = vmatprep.subr.mxu0 0.0
    %3263 = vmatpush1.msra.mxu0 0.0
    %3264 = vmatprep.subr.mxu0 0.0
    %3265 = vmatpush1.msra.mxu0 0.0
    %3266 = vmatprep.subr.mxu0 0.0
    %3267 = vmatpush1.msra.mxu0 0.0
    %3268 = vmatprep.subr.mxu0 0.0
    %3269 = vmatpush1.msra.mxu0 0.0
    %3270 = vmatprep.subr.mxu0 0.0
    %3271 = vmatpush1.msra.mxu0 0.0
    %3272 = vmatprep.subr.mxu0 0.0
    %3273 = vmatpush1.msra.mxu0 0.0
    %3274 = vmatprep.subr.mxu0 0.0
    %3275 = vmatpush1.msra.mxu0 0.0
    %3276 = vmatprep.subr.mxu0 0.0
    %3277 = vmatpush1.msra.mxu0 0.0
    %3278 = vmatprep.subr.mxu0 0.0
    %3279 = vmatpush1.msra.mxu0 0.0
    %3280 = vmatprep.subr.mxu0 0.0
    %3281 = vmatpush1.msra.mxu0 0.0
    %3282 = vmatprep.subr.mxu0 0.0
    %3283 = vmatpush1.msra.mxu0 0.0
    %3284 = vmatprep.subr.mxu0 0.0
    %3285 = vmatpush1.msra.mxu0 0.0
    %3286 = vmatprep.subr.mxu0 0.0
    %3287 = vmatpush1.msra.mxu0 0.0
    %3288 = vmatprep.subr.mxu0 0.0
    %3289 = vmatpush1.msra.mxu0 0.0
    %3290 = vmatprep.subr.mxu0 0.0
    %3291 = vmatpush1.msra.mxu0 0.0
    %3292 = vmatprep.subr.mxu0 0.0
    %3293 = vmatpush1.msra.mxu0 0.0
    %3294 = vmatprep.subr.mxu0 0.0
    %3295 = vmatpush1.msra.mxu0 0.0
    %3296 = vmatprep.subr.mxu0 0.0
    %3297 = vmatpush1.msra.mxu0 0.0
    %3298 = vmatprep.subr.mxu0 0.0
    %3299 = vmatpush1.msra.mxu0 0.0
    %3300 = vmatprep.subr.mxu0 0.0
    %3301 = vmatpush1.msra.mxu0 0.0
    %3302 = vmatprep.subr.mxu0 0.0
    %3303 = vmatpush1.msra.mxu0 0.0
    %3304 = vmatprep.subr.mxu0 0.0
    %3305 = vmatpush1.msra.mxu0 0.0
    %3306 = vmatprep.subr.mxu0 0.0
    %3307 = vmatpush1.msra.mxu0 0.0
    %3308 = vmatprep.subr.mxu0 0.0
    %3309 = vmatpush1.msra.mxu0 0.0
    %3310 = vmatprep.subr.mxu0 0.0
    %3311 = vmatpush1.msra.mxu0 0.0
    %3312 = vmatprep.subr.mxu0 0.0
    %3313 = vmatpush1.msra.mxu0 0.0
    %3314 = vmatprep.subr.mxu0 0.0
    %3315 = vmatpush1.msra.mxu0 0.0
    %3316 = vmatprep.subr.mxu0 0.0
    %3317 = vmatpush1.msra.mxu0 0.0
    %3318 = vmatprep.subr.mxu0 0.0
    %3319 = vmatpush1.msra.mxu0 0.0
    %3320 = vmatprep.subr.mxu0 0.0
    %3321 = vmatpush1.msra.mxu0 0.0
    %3322 = vmatprep.mubr.f32.mxu0 0.0
    %3323 = vmatmul.mubr.f32.gmra.mrb[0].mxu0 %v3256
    %v3324 = vpop.f32.mrb[0].mxu0
    %v3325 = vadd.f32 0.0, %v3324
    %v3326 = vpop.f32.mrb[0].mxu0
    %3327 = vdwg.mxu0
    %v3328 = vadd.f32 %v3174, %v3325
    %s3329 = scalar_lea.vmem %s4, 1
    %v3330 = vld [vmem:[%s3329] sm:$0x1]
    %v3332 = vlaneseq
    %v3333 = vshrl.u32 %v3332, 7
    %v3334 = vsub.s32 0, %v3333
    %v3335 = vrot.slane %v3330, %v3334
    %v3338 = vsel %vm179, %v2229, 0
    %v3341 = vsel %vm179, %v2330, 0
    %v3344 = vsel %vm179, %v2335, 0
    %3346 = vmatprep.subr.mxu0 0.0
    %3347 = vmatpush1.xpose.msra.mxu0 %v3341
    %3348 = vmatprep.subr.mxu0 0.0
    %3349 = vmatpush1.xpose.msra.mxu0 %v3344
    %3350 = vmatprep.subr.mxu0 0.0
    %3351 = vmatpush1.xpose.msra.mxu0 0.0
    %3352 = vmatprep.subr.mxu0 0.0
    %3353 = vmatpush1.xpose.msra.mxu0 0.0
    %3354 = vmatprep.subr.mxu0 0.0
    %3355 = vmatpush1.xpose.msra.mxu0 0.0
    %3356 = vmatprep.subr.mxu0 0.0
    %3357 = vmatpush1.xpose.msra.mxu0 0.0
    %3358 = vmatprep.subr.mxu0 0.0
    %3359 = vmatpush1.xpose.msra.mxu0 0.0
    %3360 = vmatprep.subr.mxu0 0.0
    %3361 = vmatpush1.xpose.msra.mxu0 0.0
    %3362 = vmatprep.subr.mxu0 0.0
    %3363 = vmatpush1.xpose.msra.mxu0 0.0
    %3364 = vmatprep.subr.mxu0 0.0
    %3365 = vmatpush1.xpose.msra.mxu0 0.0
    %3366 = vmatprep.subr.mxu0 0.0
    %3367 = vmatpush1.xpose.msra.mxu0 0.0
    %3368 = vmatprep.subr.mxu0 0.0
    %3369 = vmatpush1.xpose.msra.mxu0 0.0
    %3370 = vmatprep.subr.mxu0 0.0
    %3371 = vmatpush1.xpose.msra.mxu0 0.0
    %3372 = vmatprep.subr.mxu0 0.0
    %3373 = vmatpush1.xpose.msra.mxu0 0.0
    %3374 = vmatprep.subr.mxu0 0.0
    %3375 = vmatpush1.xpose.msra.mxu0 0.0
    %3376 = vmatprep.subr.mxu0 0.0
    %3377 = vmatpush1.xpose.msra.mxu0 0.0
    %3378 = vmatprep.subr.mxu0 0.0
    %3379 = vmatpush1.xpose.msra.mxu0 0.0
    %3380 = vmatprep.subr.mxu0 0.0
    %3381 = vmatpush1.xpose.msra.mxu0 0.0
    %3382 = vmatprep.subr.mxu0 0.0
    %3383 = vmatpush1.xpose.msra.mxu0 0.0
    %3384 = vmatprep.subr.mxu0 0.0
    %3385 = vmatpush1.xpose.msra.mxu0 0.0
    %3386 = vmatprep.subr.mxu0 0.0
    %3387 = vmatpush1.xpose.msra.mxu0 0.0
    %3388 = vmatprep.subr.mxu0 0.0
    %3389 = vmatpush1.xpose.msra.mxu0 0.0
    %3390 = vmatprep.subr.mxu0 0.0
    %3391 = vmatpush1.xpose.msra.mxu0 0.0
    %3392 = vmatprep.subr.mxu0 0.0
    %3393 = vmatpush1.xpose.msra.mxu0 0.0
    %3394 = vmatprep.subr.mxu0 0.0
    %3395 = vmatpush1.xpose.msra.mxu0 0.0
    %3396 = vmatprep.subr.mxu0 0.0
    %3397 = vmatpush1.xpose.msra.mxu0 0.0
    %3398 = vmatprep.subr.mxu0 0.0
    %3399 = vmatpush1.xpose.msra.mxu0 0.0
    %3400 = vmatprep.subr.mxu0 0.0
    %3401 = vmatpush1.xpose.msra.mxu0 0.0
    %3402 = vmatprep.subr.mxu0 0.0
    %3403 = vmatpush1.xpose.msra.mxu0 0.0
    %3404 = vmatprep.subr.mxu0 0.0
    %3405 = vmatpush1.xpose.msra.mxu0 0.0
    %3406 = vmatprep.subr.mxu0 0.0
    %3407 = vmatpush1.xpose.msra.mxu0 0.0
    %3408 = vmatprep.subr.mxu0 0.0
    %3409 = vmatpush1.xpose.msra.mxu0 0.0
    %3410 = vmatprep.mubr.f32.mxu0 0.0
    %3411 = vmatmul.mubr.f32.gmra.mrb[0].mxu0 %v3338
    %v3412 = vpop.f32.mrb[0].mxu0
    %v3413 = vadd.f32 %v3335, %v3412
    %v3414 = vpop.f32.mrb[0].mxu0
    %3415 = vdwg.mxu0
    %3416 = vrot.lane.b32.xlu0 %v2229, 120
    %v3417 = vpop.permute.xlu0 %3416
    %3418 = vrot.lane.b32.xlu0 %v2330, 120
    %v3419 = vpop.permute.xlu0 %3418
    %3420 = vrot.lane.b32.xlu0 %v2335, 120
    %v3421 = vpop.permute.xlu0 %3420
    %v3422 = vsel %vm179, %v3417, 0
    %v3424 = vsel %vm179, %v3419, 0
    %v3426 = vsel %vm179, %v3421, 0
    %3428 = vmatprep.subr.mxu0 0.0
    %3429 = vmatpush1.xpose.msra.mxu0 %v3424
    %3430 = vmatprep.subr.mxu0 0.0
    %3431 = vmatpush1.xpose.msra.mxu0 %v3426
    %3432 = vmatprep.subr.mxu0 0.0
    %3433 = vmatpush1.xpose.msra.mxu0 0.0
    %3434 = vmatprep.subr.mxu0 0.0
    %3435 = vmatpush1.xpose.msra.mxu0 0.0
    %3436 = vmatprep.subr.mxu0 0.0
    %3437 = vmatpush1.xpose.msra.mxu0 0.0
    %3438 = vmatprep.subr.mxu0 0.0
    %3439 = vmatpush1.xpose.msra.mxu0 0.0
    %3440 = vmatprep.subr.mxu0 0.0
    %3441 = vmatpush1.xpose.msra.mxu0 0.0
    %3442 = vmatprep.subr.mxu0 0.0
    %3443 = vmatpush1.xpose.msra.mxu0 0.0
    %3444 = vmatprep.subr.mxu0 0.0
    %3445 = vmatpush1.xpose.msra.mxu0 0.0
    %3446 = vmatprep.subr.mxu0 0.0
    %3447 = vmatpush1.xpose.msra.mxu0 0.0
    %3448 = vmatprep.subr.mxu0 0.0
    %3449 = vmatpush1.xpose.msra.mxu0 0.0
    %3450 = vmatprep.subr.mxu0 0.0
    %3451 = vmatpush1.xpose.msra.mxu0 0.0
    %3452 = vmatprep.subr.mxu0 0.0
    %3453 = vmatpush1.xpose.msra.mxu0 0.0
    %3454 = vmatprep.subr.mxu0 0.0
    %3455 = vmatpush1.xpose.msra.mxu0 0.0
    %3456 = vmatprep.subr.mxu0 0.0
    %3457 = vmatpush1.xpose.msra.mxu0 0.0
    %3458 = vmatprep.subr.mxu0 0.0
    %3459 = vmatpush1.xpose.msra.mxu0 0.0
    %3460 = vmatprep.subr.mxu0 0.0
    %3461 = vmatpush1.xpose.msra.mxu0 0.0
    %3462 = vmatprep.subr.mxu0 0.0
    %3463 = vmatpush1.xpose.msra.mxu0 0.0
    %3464 = vmatprep.subr.mxu0 0.0
    %3465 = vmatpush1.xpose.msra.mxu0 0.0
    %3466 = vmatprep.subr.mxu0 0.0
    %3467 = vmatpush1.xpose.msra.mxu0 0.0
    %3468 = vmatprep.subr.mxu0 0.0
    %3469 = vmatpush1.xpose.msra.mxu0 0.0
    %3470 = vmatprep.subr.mxu0 0.0
    %3471 = vmatpush1.xpose.msra.mxu0 0.0
    %3472 = vmatprep.subr.mxu0 0.0
    %3473 = vmatpush1.xpose.msra.mxu0 0.0
    %3474 = vmatprep.subr.mxu0 0.0
    %3475 = vmatpush1.xpose.msra.mxu0 0.0
    %3476 = vmatprep.subr.mxu0 0.0
    %3477 = vmatpush1.xpose.msra.mxu0 0.0
    %3478 = vmatprep.subr.mxu0 0.0
    %3479 = vmatpush1.xpose.msra.mxu0 0.0
    %3480 = vmatprep.subr.mxu0 0.0
    %3481 = vmatpush1.xpose.msra.mxu0 0.0
    %3482 = vmatprep.subr.mxu0 0.0
    %3483 = vmatpush1.xpose.msra.mxu0 0.0
    %3484 = vmatprep.subr.mxu0 0.0
    %3485 = vmatpush1.xpose.msra.mxu0 0.0
    %3486 = vmatprep.subr.mxu0 0.0
    %3487 = vmatpush1.xpose.msra.mxu0 0.0
    %3488 = vmatprep.subr.mxu0 0.0
    %3489 = vmatpush1.xpose.msra.mxu0 0.0
    %3490 = vmatprep.subr.mxu0 0.0
    %3491 = vmatpush1.xpose.msra.mxu0 0.0
    %3492 = vmatprep.mubr.f32.mxu0 0.0
    %3493 = vmatmul.mubr.f32.gmra.mrb[0].mxu0 %v3422
    %v3494 = vpop.f32.mrb[0].mxu0
    %v3495 = vadd.f32 %v3335, %v3494
    %v3496 = vpop.f32.mrb[0].mxu0
    %3497 = vdwg.mxu0
    %3498 = vrot.lane.b32.xlu0 %v2229, 112
    %v3499 = vpop.permute.xlu0 %3498
    %3500 = vrot.lane.b32.xlu0 %v2330, 112
    %v3501 = vpop.permute.xlu0 %3500
    %3502 = vrot.lane.b32.xlu0 %v2335, 112
    %v3503 = vpop.permute.xlu0 %3502
    %v3504 = vsel %vm179, %v3499, 0
    %v3506 = vsel %vm179, %v3501, 0
    %v3508 = vsel %vm179, %v3503, 0
    %3510 = vmatprep.subr.mxu0 0.0
    %3511 = vmatpush1.xpose.msra.mxu0 %v3506
    %3512 = vmatprep.subr.mxu0 0.0
    %3513 = vmatpush1.xpose.msra.mxu0 %v3508
    %3514 = vmatprep.subr.mxu0 0.0
    %3515 = vmatpush1.xpose.msra.mxu0 0.0
    %3516 = vmatprep.subr.mxu0 0.0
    %3517 = vmatpush1.xpose.msra.mxu0 0.0
    %3518 = vmatprep.subr.mxu0 0.0
    %3519 = vmatpush1.xpose.msra.mxu0 0.0
    %3520 = vmatprep.subr.mxu0 0.0
    %3521 = vmatpush1.xpose.msra.mxu0 0.0
    %3522 = vmatprep.subr.mxu0 0.0
    %3523 = vmatpush1.xpose.msra.mxu0 0.0
    %3524 = vmatprep.subr.mxu0 0.0
    %3525 = vmatpush1.xpose.msra.mxu0 0.0
    %3526 = vmatprep.subr.mxu0 0.0
    %3527 = vmatpush1.xpose.msra.mxu0 0.0
    %3528 = vmatprep.subr.mxu0 0.0
    %3529 = vmatpush1.xpose.msra.mxu0 0.0
    %3530 = vmatprep.subr.mxu0 0.0
    %3531 = vmatpush1.xpose.msra.mxu0 0.0
    %3532 = vmatprep.subr.mxu0 0.0
    %3533 = vmatpush1.xpose.msra.mxu0 0.0
    %3534 = vmatprep.subr.mxu0 0.0
    %3535 = vmatpush1.xpose.msra.mxu0 0.0
    %3536 = vmatprep.subr.mxu0 0.0
    %3537 = vmatpush1.xpose.msra.mxu0 0.0
    %3538 = vmatprep.subr.mxu0 0.0
    %3539 = vmatpush1.xpose.msra.mxu0 0.0
    %3540 = vmatprep.subr.mxu0 0.0
    %3541 = vmatpush1.xpose.msra.mxu0 0.0
    %3542 = vmatprep.subr.mxu0 0.0
    %3543 = vmatpush1.xpose.msra.mxu0 0.0
    %3544 = vmatprep.subr.mxu0 0.0
    %3545 = vmatpush1.xpose.msra.mxu0 0.0
    %3546 = vmatprep.subr.mxu0 0.0
    %3547 = vmatpush1.xpose.msra.mxu0 0.0
    %3548 = vmatprep.subr.mxu0 0.0
    %3549 = vmatpush1.xpose.msra.mxu0 0.0
    %3550 = vmatprep.subr.mxu0 0.0
    %3551 = vmatpush1.xpose.msra.mxu0 0.0
    %3552 = vmatprep.subr.mxu0 0.0
    %3553 = vmatpush1.xpose.msra.mxu0 0.0
    %3554 = vmatprep.subr.mxu0 0.0
    %3555 = vmatpush1.xpose.msra.mxu0 0.0
    %3556 = vmatprep.subr.mxu0 0.0
    %3557 = vmatpush1.xpose.msra.mxu0 0.0
    %3558 = vmatprep.subr.mxu0 0.0
    %3559 = vmatpush1.xpose.msra.mxu0 0.0
    %3560 = vmatprep.subr.mxu0 0.0
    %3561 = vmatpush1.xpose.msra.mxu0 0.0
    %3562 = vmatprep.subr.mxu0 0.0
    %3563 = vmatpush1.xpose.msra.mxu0 0.0
    %3564 = vmatprep.subr.mxu0 0.0
    %3565 = vmatpush1.xpose.msra.mxu0 0.0
    %3566 = vmatprep.subr.mxu0 0.0
    %3567 = vmatpush1.xpose.msra.mxu0 0.0
    %3568 = vmatprep.subr.mxu0 0.0
    %3569 = vmatpush1.xpose.msra.mxu0 0.0
    %3570 = vmatprep.subr.mxu0 0.0
    %3571 = vmatpush1.xpose.msra.mxu0 0.0
    %3572 = vmatprep.subr.mxu0 0.0
    %3573 = vmatpush1.xpose.msra.mxu0 0.0
    %3574 = vmatprep.mubr.f32.mxu0 0.0
    %3575 = vmatmul.mubr.f32.gmra.mrb[0].mxu0 %v3504
    %v3576 = vpop.f32.mrb[0].mxu0
    %v3577 = vadd.f32 %v3335, %v3576
    %v3578 = vpop.f32.mrb[0].mxu0
    %3579 = vdwg.mxu0
    %3580 = vrot.lane.b32.xlu0 %v2229, 104
    %v3581 = vpop.permute.xlu0 %3580
    %3582 = vrot.lane.b32.xlu0 %v2330, 104
    %v3583 = vpop.permute.xlu0 %3582
    %3584 = vrot.lane.b32.xlu0 %v2335, 104
    %v3585 = vpop.permute.xlu0 %3584
    %v3586 = vsel %vm179, %v3581, 0
    %v3588 = vsel %vm179, %v3583, 0
    %v3590 = vsel %vm179, %v3585, 0
    %3592 = vmatprep.subr.mxu0 0.0
    %3593 = vmatpush1.xpose.msra.mxu0 %v3588
    %3594 = vmatprep.subr.mxu0 0.0
    %3595 = vmatpush1.xpose.msra.mxu0 %v3590
    %3596 = vmatprep.subr.mxu0 0.0
    %3597 = vmatpush1.xpose.msra.mxu0 0.0
    %3598 = vmatprep.subr.mxu0 0.0
    %3599 = vmatpush1.xpose.msra.mxu0 0.0
    %3600 = vmatprep.subr.mxu0 0.0
    %3601 = vmatpush1.xpose.msra.mxu0 0.0
    %3602 = vmatprep.subr.mxu0 0.0
    %3603 = vmatpush1.xpose.msra.mxu0 0.0
    %3604 = vmatprep.subr.mxu0 0.0
    %3605 = vmatpush1.xpose.msra.mxu0 0.0
    %3606 = vmatprep.subr.mxu0 0.0
    %3607 = vmatpush1.xpose.msra.mxu0 0.0
    %3608 = vmatprep.subr.mxu0 0.0
    %3609 = vmatpush1.xpose.msra.mxu0 0.0
    %3610 = vmatprep.subr.mxu0 0.0
    %3611 = vmatpush1.xpose.msra.mxu0 0.0
    %3612 = vmatprep.subr.mxu0 0.0
    %3613 = vmatpush1.xpose.msra.mxu0 0.0
    %3614 = vmatprep.subr.mxu0 0.0
    %3615 = vmatpush1.xpose.msra.mxu0 0.0
    %3616 = vmatprep.subr.mxu0 0.0
    %3617 = vmatpush1.xpose.msra.mxu0 0.0
    %3618 = vmatprep.subr.mxu0 0.0
    %3619 = vmatpush1.xpose.msra.mxu0 0.0
    %3620 = vmatprep.subr.mxu0 0.0
    %3621 = vmatpush1.xpose.msra.mxu0 0.0
    %3622 = vmatprep.subr.mxu0 0.0
    %3623 = vmatpush1.xpose.msra.mxu0 0.0
    %3624 = vmatprep.subr.mxu0 0.0
    %3625 = vmatpush1.xpose.msra.mxu0 0.0
    %3626 = vmatprep.subr.mxu0 0.0
    %3627 = vmatpush1.xpose.msra.mxu0 0.0
    %3628 = vmatprep.subr.mxu0 0.0
    %3629 = vmatpush1.xpose.msra.mxu0 0.0
    %3630 = vmatprep.subr.mxu0 0.0
    %3631 = vmatpush1.xpose.msra.mxu0 0.0
    %3632 = vmatprep.subr.mxu0 0.0
    %3633 = vmatpush1.xpose.msra.mxu0 0.0
    %3634 = vmatprep.subr.mxu0 0.0
    %3635 = vmatpush1.xpose.msra.mxu0 0.0
    %3636 = vmatprep.subr.mxu0 0.0
    %3637 = vmatpush1.xpose.msra.mxu0 0.0
    %3638 = vmatprep.subr.mxu0 0.0
    %3639 = vmatpush1.xpose.msra.mxu0 0.0
    %3640 = vmatprep.subr.mxu0 0.0
    %3641 = vmatpush1.xpose.msra.mxu0 0.0
    %3642 = vmatprep.subr.mxu0 0.0
    %3643 = vmatpush1.xpose.msra.mxu0 0.0
    %3644 = vmatprep.subr.mxu0 0.0
    %3645 = vmatpush1.xpose.msra.mxu0 0.0
    %3646 = vmatprep.subr.mxu0 0.0
    %3647 = vmatpush1.xpose.msra.mxu0 0.0
    %3648 = vmatprep.subr.mxu0 0.0
    %3649 = vmatpush1.xpose.msra.mxu0 0.0
    %3650 = vmatprep.subr.mxu0 0.0
    %3651 = vmatpush1.xpose.msra.mxu0 0.0
    %3652 = vmatprep.subr.mxu0 0.0
    %3653 = vmatpush1.xpose.msra.mxu0 0.0
    %3654 = vmatprep.subr.mxu0 0.0
    %3655 = vmatpush1.xpose.msra.mxu0 0.0
    %3656 = vmatprep.mubr.f32.mxu0 0.0
    %3657 = vmatmul.mubr.f32.gmra.mrb[0].mxu0 %v3586
    %v3658 = vpop.f32.mrb[0].mxu0
    %v3659 = vadd.f32 %v3335, %v3658
    %v3660 = vpop.f32.mrb[0].mxu0
    %3661 = vdwg.mxu0
    %v3662 = vsel %vm2670, %v3413, -inf
    %3663 = vmax.xlane.f32.xlu0 %v3662
    %v3664 = vpop.xlane.xlu0 %3663
    %v3665 = vsel %vm2670, %v3495, -inf
    %3666 = vmax.xlane.f32.xlu0 %v3665
    %v3667 = vpop.xlane.xlu0 %3666
    %v3668 = vsel %vm2670, %v3577, -inf
    %3669 = vmax.xlane.f32.xlu0 %v3668
    %v3670 = vpop.xlane.xlu0 %3669
    %v3671 = vsel %vm2670, %v3659, -inf
    %3672 = vmax.xlane.f32.xlu0 %v3671
    %v3673 = vpop.xlane.xlu0 %3672
    %v3674 = vsub.f32 %v3413, %v3664
    %v3675 = vsub.f32 %v3495, %v3667
    %v3676 = vsub.f32 %v3577, %v3670
    %v3677 = vsub.f32 %v3659, %v3673
    %v3678 = vmul.f32 %v3674, 1.442695
    %v3679 = vpow.pop %v3678
    %v3680 = vmul.f32 %v3675, 1.442695
    %v3681 = vpow.pop %v3680
    %v3682 = vmul.f32 %v3676, 1.442695
    %v3683 = vpow.pop %v3682
    %v3684 = vmul.f32 %v3677, 1.442695
    %v3685 = vpow.pop %v3684
    %v3686 = vsel %vm2670, %v3679, 0.0
    %3687 = vadd.xlane.f32.xlu0 %v3686
    %v3688 = vpop.xlane.xlu0 %3687
    %v3689 = vsel %vm2670, %v3681, 0.0
    %3690 = vadd.xlane.f32.xlu0 %v3689
    %v3691 = vpop.xlane.xlu0 %3690
    %v3692 = vsel %vm2670, %v3683, 0.0
    %3693 = vadd.xlane.f32.xlu0 %v3692
    %v3694 = vpop.xlane.xlu0 %3693
    %v3695 = vsel %vm2670, %v3685, 0.0
    %3696 = vadd.xlane.f32.xlu0 %v3695
    %v3697 = vpop.xlane.xlu0 %3696
    %v3698 = vrcp.pop %v3688
    %v3699 = vrcp.pop %v3691
    %v3700 = vrcp.pop %v3694
    %v3701 = vrcp.pop %v3697
    %v3702 = vmul.f32 %v3679, %v3698
    %v3703 = vmul.f32 %v3681, %v3699
    %v3704 = vmul.f32 %v3683, %v3700
    %v3705 = vmul.f32 %v3685, %v3701
    %3706 = vrot.lane.b32.xlu0 %v2330, 96
    %v3707 = vpop.permute.xlu0 %3706
    %3708 = vrot.lane.b32.xlu0 %v2335, 96
    %v3709 = vpop.permute.xlu0 %3708
    %v3713 = vsel %vm2670, %v3702, 0
    %3715 = vmatprep.subr.mxu0 0.0
    %3716 = vmatpush1.msra.mxu0 %v3707
    %3717 = vmatprep.subr.mxu0 0.0
    %3718 = vmatpush1.msra.mxu0 %v3709
    %3719 = vmatprep.subr.mxu0 0.0
    %3720 = vmatpush1.msra.mxu0 0.0
    %3721 = vmatprep.subr.mxu0 0.0
    %3722 = vmatpush1.msra.mxu0 0.0
    %3723 = vmatprep.subr.mxu0 0.0
    %3724 = vmatpush1.msra.mxu0 0.0
    %3725 = vmatprep.subr.mxu0 0.0
    %3726 = vmatpush1.msra.mxu0 0.0
    %3727 = vmatprep.subr.mxu0 0.0
    %3728 = vmatpush1.msra.mxu0 0.0
    %3729 = vmatprep.subr.mxu0 0.0
    %3730 = vmatpush1.msra.mxu0 0.0
    %3731 = vmatprep.subr.mxu0 0.0
    %3732 = vmatpush1.msra.mxu0 0.0
    %3733 = vmatprep.subr.mxu0 0.0
    %3734 = vmatpush1.msra.mxu0 0.0
    %3735 = vmatprep.subr.mxu0 0.0
    %3736 = vmatpush1.msra.mxu0 0.0
    %3737 = vmatprep.subr.mxu0 0.0
    %3738 = vmatpush1.msra.mxu0 0.0
    %3739 = vmatprep.subr.mxu0 0.0
    %3740 = vmatpush1.msra.mxu0 0.0
    %3741 = vmatprep.subr.mxu0 0.0
    %3742 = vmatpush1.msra.mxu0 0.0
    %3743 = vmatprep.subr.mxu0 0.0
    %3744 = vmatpush1.msra.mxu0 0.0
    %3745 = vmatprep.subr.mxu0 0.0
    %3746 = vmatpush1.msra.mxu0 0.0
    %3747 = vmatprep.subr.mxu0 0.0
    %3748 = vmatpush1.msra.mxu0 0.0
    %3749 = vmatprep.subr.mxu0 0.0
    %3750 = vmatpush1.msra.mxu0 0.0
    %3751 = vmatprep.subr.mxu0 0.0
    %3752 = vmatpush1.msra.mxu0 0.0
    %3753 = vmatprep.subr.mxu0 0.0
    %3754 = vmatpush1.msra.mxu0 0.0
    %3755 = vmatprep.subr.mxu0 0.0
    %3756 = vmatpush1.msra.mxu0 0.0
    %3757 = vmatprep.subr.mxu0 0.0
    %3758 = vmatpush1.msra.mxu0 0.0
    %3759 = vmatprep.subr.mxu0 0.0
    %3760 = vmatpush1.msra.mxu0 0.0
    %3761 = vmatprep.subr.mxu0 0.0
    %3762 = vmatpush1.msra.mxu0 0.0
    %3763 = vmatprep.subr.mxu0 0.0
    %3764 = vmatpush1.msra.mxu0 0.0
    %3765 = vmatprep.subr.mxu0 0.0
    %3766 = vmatpush1.msra.mxu0 0.0
    %3767 = vmatprep.subr.mxu0 0.0
    %3768 = vmatpush1.msra.mxu0 0.0
    %3769 = vmatprep.subr.mxu0 0.0
    %3770 = vmatpush1.msra.mxu0 0.0
    %3771 = vmatprep.subr.mxu0 0.0
    %3772 = vmatpush1.msra.mxu0 0.0
    %3773 = vmatprep.subr.mxu0 0.0
    %3774 = vmatpush1.msra.mxu0 0.0
    %3775 = vmatprep.subr.mxu0 0.0
    %3776 = vmatpush1.msra.mxu0 0.0
    %3777 = vmatprep.subr.mxu0 0.0
    %3778 = vmatpush1.msra.mxu0 0.0
    %3779 = vmatprep.mubr.f32.mxu0 0.0
    %3780 = vmatmul.mubr.f32.gmra.mrb[0].mxu0 %v3713
    %v3781 = vpop.f32.mrb[0].mxu0
    %v3782 = vadd.f32 0.0, %v3781
    %v3783 = vpop.f32.mrb[0].mxu0
    %3784 = vdwg.mxu0
    %3785 = vrot.lane.b32.xlu0 %v2330, 88
    %v3786 = vpop.permute.xlu0 %3785
    %3787 = vrot.lane.b32.xlu0 %v2335, 88
    %v3788 = vpop.permute.xlu0 %3787
    %v3792 = vsel %vm2670, %v3703, 0
    %3794 = vmatprep.subr.mxu0 0.0
    %3795 = vmatpush1.msra.mxu0 %v3786
    %3796 = vmatprep.subr.mxu0 0.0
    %3797 = vmatpush1.msra.mxu0 %v3788
    %3798 = vmatprep.subr.mxu0 0.0
    %3799 = vmatpush1.msra.mxu0 0.0
    %3800 = vmatprep.subr.mxu0 0.0
    %3801 = vmatpush1.msra.mxu0 0.0
    %3802 = vmatprep.subr.mxu0 0.0
    %3803 = vmatpush1.msra.mxu0 0.0
    %3804 = vmatprep.subr.mxu0 0.0
    %3805 = vmatpush1.msra.mxu0 0.0
    %3806 = vmatprep.subr.mxu0 0.0
    %3807 = vmatpush1.msra.mxu0 0.0
    %3808 = vmatprep.subr.mxu0 0.0
    %3809 = vmatpush1.msra.mxu0 0.0
    %3810 = vmatprep.subr.mxu0 0.0
    %3811 = vmatpush1.msra.mxu0 0.0
    %3812 = vmatprep.subr.mxu0 0.0
    %3813 = vmatpush1.msra.mxu0 0.0
    %3814 = vmatprep.subr.mxu0 0.0
    %3815 = vmatpush1.msra.mxu0 0.0
    %3816 = vmatprep.subr.mxu0 0.0
    %3817 = vmatpush1.msra.mxu0 0.0
    %3818 = vmatprep.subr.mxu0 0.0
    %3819 = vmatpush1.msra.mxu0 0.0
    %3820 = vmatprep.subr.mxu0 0.0
    %3821 = vmatpush1.msra.mxu0 0.0
    %3822 = vmatprep.subr.mxu0 0.0
    %3823 = vmatpush1.msra.mxu0 0.0
    %3824 = vmatprep.subr.mxu0 0.0
    %3825 = vmatpush1.msra.mxu0 0.0
    %3826 = vmatprep.subr.mxu0 0.0
    %3827 = vmatpush1.msra.mxu0 0.0
    %3828 = vmatprep.subr.mxu0 0.0
    %3829 = vmatpush1.msra.mxu0 0.0
    %3830 = vmatprep.subr.mxu0 0.0
    %3831 = vmatpush1.msra.mxu0 0.0
    %3832 = vmatprep.subr.mxu0 0.0
    %3833 = vmatpush1.msra.mxu0 0.0
    %3834 = vmatprep.subr.mxu0 0.0
    %3835 = vmatpush1.msra.mxu0 0.0
    %3836 = vmatprep.subr.mxu0 0.0
    %3837 = vmatpush1.msra.mxu0 0.0
    %3838 = vmatprep.subr.mxu0 0.0
    %3839 = vmatpush1.msra.mxu0 0.0
    %3840 = vmatprep.subr.mxu0 0.0
    %3841 = vmatpush1.msra.mxu0 0.0
    %3842 = vmatprep.subr.mxu0 0.0
    %3843 = vmatpush1.msra.mxu0 0.0
    %3844 = vmatprep.subr.mxu0 0.0
    %3845 = vmatpush1.msra.mxu0 0.0
    %3846 = vmatprep.subr.mxu0 0.0
    %3847 = vmatpush1.msra.mxu0 0.0
    %3848 = vmatprep.subr.mxu0 0.0
    %3849 = vmatpush1.msra.mxu0 0.0
    %3850 = vmatprep.subr.mxu0 0.0
    %3851 = vmatpush1.msra.mxu0 0.0
    %3852 = vmatprep.subr.mxu0 0.0
    %3853 = vmatpush1.msra.mxu0 0.0
    %3854 = vmatprep.subr.mxu0 0.0
    %3855 = vmatpush1.msra.mxu0 0.0
    %3856 = vmatprep.subr.mxu0 0.0
    %3857 = vmatpush1.msra.mxu0 0.0
    %3858 = vmatprep.mubr.f32.mxu0 0.0
    %3859 = vmatmul.mubr.f32.gmra.mrb[0].mxu0 %v3792
    %v3860 = vpop.f32.mrb[0].mxu0
    %v3861 = vadd.f32 0.0, %v3860
    %v3862 = vpop.f32.mrb[0].mxu0
    %3863 = vdwg.mxu0
    %v3865 = vsel %vm179, %v3861, 0
    %3867 = vmatprep.subr.mxu0 0.0
    %3868 = vmatpush1.msra.mxu0 %v2874
    %3869 = vmatprep.subr.mxu0 0.0
    %3870 = vmatpush1.msra.mxu0 0.0
    %3871 = vmatprep.subr.mxu0 0.0
    %3872 = vmatpush1.msra.mxu0 0.0
    %3873 = vmatprep.subr.mxu0 0.0
    %3874 = vmatpush1.msra.mxu0 0.0
    %3875 = vmatprep.subr.mxu0 0.0
    %3876 = vmatpush1.msra.mxu0 0.0
    %3877 = vmatprep.subr.mxu0 0.0
    %3878 = vmatpush1.msra.mxu0 0.0
    %3879 = vmatprep.subr.mxu0 0.0
    %3880 = vmatpush1.msra.mxu0 0.0
    %3881 = vmatprep.subr.mxu0 0.0
    %3882 = vmatpush1.msra.mxu0 0.0
    %3883 = vmatprep.subr.mxu0 0.0
    %3884 = vmatpush1.msra.mxu0 0.0
    %3885 = vmatprep.subr.mxu0 0.0
    %3886 = vmatpush1.msra.mxu0 0.0
    %3887 = vmatprep.subr.mxu0 0.0
    %3888 = vmatpush1.msra.mxu0 0.0
    %3889 = vmatprep.subr.mxu0 0.0
    %3890 = vmatpush1.msra.mxu0 0.0
    %3891 = vmatprep.subr.mxu0 0.0
    %3892 = vmatpush1.msra.mxu0 0.0
    %3893 = vmatprep.subr.mxu0 0.0
    %3894 = vmatpush1.msra.mxu0 0.0
    %3895 = vmatprep.subr.mxu0 0.0
    %3896 = vmatpush1.msra.mxu0 0.0
    %3897 = vmatprep.subr.mxu0 0.0
    %3898 = vmatpush1.msra.mxu0 0.0
    %3899 = vmatprep.subr.mxu0 0.0
    %3900 = vmatpush1.msra.mxu0 0.0
    %3901 = vmatprep.subr.mxu0 0.0
    %3902 = vmatpush1.msra.mxu0 0.0
    %3903 = vmatprep.subr.mxu0 0.0
    %3904 = vmatpush1.msra.mxu0 0.0
    %3905 = vmatprep.subr.mxu0 0.0
    %3906 = vmatpush1.msra.mxu0 0.0
    %3907 = vmatprep.subr.mxu0 0.0
    %3908 = vmatpush1.msra.mxu0 0.0
    %3909 = vmatprep.subr.mxu0 0.0
    %3910 = vmatpush1.msra.mxu0 0.0
    %3911 = vmatprep.subr.mxu0 0.0
    %3912 = vmatpush1.msra.mxu0 0.0
    %3913 = vmatprep.subr.mxu0 0.0
    %3914 = vmatpush1.msra.mxu0 0.0
    %3915 = vmatprep.subr.mxu0 0.0
    %3916 = vmatpush1.msra.mxu0 0.0
    %3917 = vmatprep.subr.mxu0 0.0
    %3918 = vmatpush1.msra.mxu0 0.0
    %3919 = vmatprep.subr.mxu0 0.0
    %3920 = vmatpush1.msra.mxu0 0.0
    %3921 = vmatprep.subr.mxu0 0.0
    %3922 = vmatpush1.msra.mxu0 0.0
    %3923 = vmatprep.subr.mxu0 0.0
    %3924 = vmatpush1.msra.mxu0 0.0
    %3925 = vmatprep.subr.mxu0 0.0
    %3926 = vmatpush1.msra.mxu0 0.0
    %3927 = vmatprep.subr.mxu0 0.0
    %3928 = vmatpush1.msra.mxu0 0.0
    %3929 = vmatprep.subr.mxu0 0.0
    %3930 = vmatpush1.msra.mxu0 0.0
    %3931 = vmatprep.mubr.f32.mxu0 0.0
    %3932 = vmatmul.mubr.f32.gmra.mrb[0].mxu0 %v3865
    %v3933 = vpop.f32.mrb[0].mxu0
    %v3934 = vadd.f32 0.0, %v3933
    %v3935 = vpop.f32.mrb[0].mxu0
    %3936 = vdwg.mxu0
    %v3938 = vsel %vm179, %v3782, 0
    %3940 = vmatprep.subr.mxu0 0.0
    %3941 = vmatpush1.msra.mxu0 %v2794
    %3942 = vmatprep.subr.mxu0 0.0
    %3943 = vmatpush1.msra.mxu0 0.0
    %3944 = vmatprep.subr.mxu0 0.0
    %3945 = vmatpush1.msra.mxu0 0.0
    %3946 = vmatprep.subr.mxu0 0.0
    %3947 = vmatpush1.msra.mxu0 0.0
    %3948 = vmatprep.subr.mxu0 0.0
    %3949 = vmatpush1.msra.mxu0 0.0
    %3950 = vmatprep.subr.mxu0 0.0
    %3951 = vmatpush1.msra.mxu0 0.0
    %3952 = vmatprep.subr.mxu0 0.0
    %3953 = vmatpush1.msra.mxu0 0.0
    %3954 = vmatprep.subr.mxu0 0.0
    %3955 = vmatpush1.msra.mxu0 0.0
    %3956 = vmatprep.subr.mxu0 0.0
    %3957 = vmatpush1.msra.mxu0 0.0
    %3958 = vmatprep.subr.mxu0 0.0
    %3959 = vmatpush1.msra.mxu0 0.0
    %3960 = vmatprep.subr.mxu0 0.0
    %3961 = vmatpush1.msra.mxu0 0.0
    %3962 = vmatprep.subr.mxu0 0.0
    %3963 = vmatpush1.msra.mxu0 0.0
    %3964 = vmatprep.subr.mxu0 0.0
    %3965 = vmatpush1.msra.mxu0 0.0
    %3966 = vmatprep.subr.mxu0 0.0
    %3967 = vmatpush1.msra.mxu0 0.0
    %3968 = vmatprep.subr.mxu0 0.0
    %3969 = vmatpush1.msra.mxu0 0.0
    %3970 = vmatprep.subr.mxu0 0.0
    %3971 = vmatpush1.msra.mxu0 0.0
    %3972 = vmatprep.subr.mxu0 0.0
    %3973 = vmatpush1.msra.mxu0 0.0
    %3974 = vmatprep.subr.mxu0 0.0
    %3975 = vmatpush1.msra.mxu0 0.0
    %3976 = vmatprep.subr.mxu0 0.0
    %3977 = vmatpush1.msra.mxu0 0.0
    %3978 = vmatprep.subr.mxu0 0.0
    %3979 = vmatpush1.msra.mxu0 0.0
    %3980 = vmatprep.subr.mxu0 0.0
    %3981 = vmatpush1.msra.mxu0 0.0
    %3982 = vmatprep.subr.mxu0 0.0
    %3983 = vmatpush1.msra.mxu0 0.0
    %3984 = vmatprep.subr.mxu0 0.0
    %3985 = vmatpush1.msra.mxu0 0.0
    %3986 = vmatprep.subr.mxu0 0.0
    %3987 = vmatpush1.msra.mxu0 0.0
    %3988 = vmatprep.subr.mxu0 0.0
    %3989 = vmatpush1.msra.mxu0 0.0
    %3990 = vmatprep.subr.mxu0 0.0
    %3991 = vmatpush1.msra.mxu0 0.0
    %3992 = vmatprep.subr.mxu0 0.0
    %3993 = vmatpush1.msra.mxu0 0.0
    %3994 = vmatprep.subr.mxu0 0.0
    %3995 = vmatpush1.msra.mxu0 0.0
    %3996 = vmatprep.subr.mxu0 0.0
    %3997 = vmatpush1.msra.mxu0 0.0
    %3998 = vmatprep.subr.mxu0 0.0
    %3999 = vmatpush1.msra.mxu0 0.0
    %4000 = vmatprep.subr.mxu0 0.0
    %4001 = vmatpush1.msra.mxu0 0.0
    %4002 = vmatprep.subr.mxu0 0.0
    %4003 = vmatpush1.msra.mxu0 0.0
    %4004 = vmatprep.mubr.f32.mxu0 0.0
    %4005 = vmatmul.mubr.f32.gmra.mrb[0].mxu0 %v3938
    %v4006 = vpop.f32.mrb[0].mxu0
    %v4007 = vadd.f32 %v3934, %v4006
    %v4008 = vpop.f32.mrb[0].mxu0
    %4009 = vdwg.mxu0
    %4010 = vrot.lane.b32.xlu0 %v2330, 80
    %v4011 = vpop.permute.xlu0 %4010
    %4012 = vrot.lane.b32.xlu0 %v2335, 80
    %v4013 = vpop.permute.xlu0 %4012
    %v4017 = vsel %vm2670, %v3704, 0
    %4019 = vmatprep.subr.mxu0 0.0
    %4020 = vmatpush1.msra.mxu0 %v4011
    %4021 = vmatprep.subr.mxu0 0.0
    %4022 = vmatpush1.msra.mxu0 %v4013
    %4023 = vmatprep.subr.mxu0 0.0
    %4024 = vmatpush1.msra.mxu0 0.0
    %4025 = vmatprep.subr.mxu0 0.0
    %4026 = vmatpush1.msra.mxu0 0.0
    %4027 = vmatprep.subr.mxu0 0.0
    %4028 = vmatpush1.msra.mxu0 0.0
    %4029 = vmatprep.subr.mxu0 0.0
    %4030 = vmatpush1.msra.mxu0 0.0
    %4031 = vmatprep.subr.mxu0 0.0
    %4032 = vmatpush1.msra.mxu0 0.0
    %4033 = vmatprep.subr.mxu0 0.0
    %4034 = vmatpush1.msra.mxu0 0.0
    %4035 = vmatprep.subr.mxu0 0.0
    %4036 = vmatpush1.msra.mxu0 0.0
    %4037 = vmatprep.subr.mxu0 0.0
    %4038 = vmatpush1.msra.mxu0 0.0
    %4039 = vmatprep.subr.mxu0 0.0
    %4040 = vmatpush1.msra.mxu0 0.0
    %4041 = vmatprep.subr.mxu0 0.0
    %4042 = vmatpush1.msra.mxu0 0.0
    %4043 = vmatprep.subr.mxu0 0.0
    %4044 = vmatpush1.msra.mxu0 0.0
    %4045 = vmatprep.subr.mxu0 0.0
    %4046 = vmatpush1.msra.mxu0 0.0
    %4047 = vmatprep.subr.mxu0 0.0
    %4048 = vmatpush1.msra.mxu0 0.0
    %4049 = vmatprep.subr.mxu0 0.0
    %4050 = vmatpush1.msra.mxu0 0.0
    %4051 = vmatprep.subr.mxu0 0.0
    %4052 = vmatpush1.msra.mxu0 0.0
    %4053 = vmatprep.subr.mxu0 0.0
    %4054 = vmatpush1.msra.mxu0 0.0
    %4055 = vmatprep.subr.mxu0 0.0
    %4056 = vmatpush1.msra.mxu0 0.0
    %4057 = vmatprep.subr.mxu0 0.0
    %4058 = vmatpush1.msra.mxu0 0.0
    %4059 = vmatprep.subr.mxu0 0.0
    %4060 = vmatpush1.msra.mxu0 0.0
    %4061 = vmatprep.subr.mxu0 0.0
    %4062 = vmatpush1.msra.mxu0 0.0
    %4063 = vmatprep.subr.mxu0 0.0
    %4064 = vmatpush1.msra.mxu0 0.0
    %4065 = vmatprep.subr.mxu0 0.0
    %4066 = vmatpush1.msra.mxu0 0.0
    %4067 = vmatprep.subr.mxu0 0.0
    %4068 = vmatpush1.msra.mxu0 0.0
    %4069 = vmatprep.subr.mxu0 0.0
    %4070 = vmatpush1.msra.mxu0 0.0
    %4071 = vmatprep.subr.mxu0 0.0
    %4072 = vmatpush1.msra.mxu0 0.0
    %4073 = vmatprep.subr.mxu0 0.0
    %4074 = vmatpush1.msra.mxu0 0.0
    %4075 = vmatprep.subr.mxu0 0.0
    %4076 = vmatpush1.msra.mxu0 0.0
    %4077 = vmatprep.subr.mxu0 0.0
    %4078 = vmatpush1.msra.mxu0 0.0
    %4079 = vmatprep.subr.mxu0 0.0
    %4080 = vmatpush1.msra.mxu0 0.0
    %4081 = vmatprep.subr.mxu0 0.0
    %4082 = vmatpush1.msra.mxu0 0.0
    %4083 = vmatprep.mubr.f32.mxu0 0.0
    %4084 = vmatmul.mubr.f32.gmra.mrb[0].mxu0 %v4017
    %v4085 = vpop.f32.mrb[0].mxu0
    %v4086 = vadd.f32 0.0, %v4085
    %v4087 = vpop.f32.mrb[0].mxu0
    %4088 = vdwg.mxu0
    %v4090 = vsel %vm179, %v4086, 0
    %4092 = vmatprep.subr.mxu0 0.0
    %4093 = vmatpush1.msra.mxu0 %v3100
    %4094 = vmatprep.subr.mxu0 0.0
    %4095 = vmatpush1.msra.mxu0 0.0
    %4096 = vmatprep.subr.mxu0 0.0
    %4097 = vmatpush1.msra.mxu0 0.0
    %4098 = vmatprep.subr.mxu0 0.0
    %4099 = vmatpush1.msra.mxu0 0.0
    %4100 = vmatprep.subr.mxu0 0.0
    %4101 = vmatpush1.msra.mxu0 0.0
    %4102 = vmatprep.subr.mxu0 0.0
    %4103 = vmatpush1.msra.mxu0 0.0
    %4104 = vmatprep.subr.mxu0 0.0
    %4105 = vmatpush1.msra.mxu0 0.0
    %4106 = vmatprep.subr.mxu0 0.0
    %4107 = vmatpush1.msra.mxu0 0.0
    %4108 = vmatprep.subr.mxu0 0.0
    %4109 = vmatpush1.msra.mxu0 0.0
    %4110 = vmatprep.subr.mxu0 0.0
    %4111 = vmatpush1.msra.mxu0 0.0
    %4112 = vmatprep.subr.mxu0 0.0
    %4113 = vmatpush1.msra.mxu0 0.0
    %4114 = vmatprep.subr.mxu0 0.0
    %4115 = vmatpush1.msra.mxu0 0.0
    %4116 = vmatprep.subr.mxu0 0.0
    %4117 = vmatpush1.msra.mxu0 0.0
    %4118 = vmatprep.subr.mxu0 0.0
    %4119 = vmatpush1.msra.mxu0 0.0
    %4120 = vmatprep.subr.mxu0 0.0
    %4121 = vmatpush1.msra.mxu0 0.0
    %4122 = vmatprep.subr.mxu0 0.0
    %4123 = vmatpush1.msra.mxu0 0.0
    %4124 = vmatprep.subr.mxu0 0.0
    %4125 = vmatpush1.msra.mxu0 0.0
    %4126 = vmatprep.subr.mxu0 0.0
    %4127 = vmatpush1.msra.mxu0 0.0
    %4128 = vmatprep.subr.mxu0 0.0
    %4129 = vmatpush1.msra.mxu0 0.0
    %4130 = vmatprep.subr.mxu0 0.0
    %4131 = vmatpush1.msra.mxu0 0.0
    %4132 = vmatprep.subr.mxu0 0.0
    %4133 = vmatpush1.msra.mxu0 0.0
    %4134 = vmatprep.subr.mxu0 0.0
    %4135 = vmatpush1.msra.mxu0 0.0
    %4136 = vmatprep.subr.mxu0 0.0
    %4137 = vmatpush1.msra.mxu0 0.0
    %4138 = vmatprep.subr.mxu0 0.0
    %4139 = vmatpush1.msra.mxu0 0.0
    %4140 = vmatprep.subr.mxu0 0.0
    %4141 = vmatpush1.msra.mxu0 0.0
    %4142 = vmatprep.subr.mxu0 0.0
    %4143 = vmatpush1.msra.mxu0 0.0
    %4144 = vmatprep.subr.mxu0 0.0
    %4145 = vmatpush1.msra.mxu0 0.0
    %4146 = vmatprep.subr.mxu0 0.0
    %4147 = vmatpush1.msra.mxu0 0.0
    %4148 = vmatprep.subr.mxu0 0.0
    %4149 = vmatpush1.msra.mxu0 0.0
    %4150 = vmatprep.subr.mxu0 0.0
    %4151 = vmatpush1.msra.mxu0 0.0
    %4152 = vmatprep.subr.mxu0 0.0
    %4153 = vmatpush1.msra.mxu0 0.0
    %4154 = vmatprep.subr.mxu0 0.0
    %4155 = vmatpush1.msra.mxu0 0.0
    %4156 = vmatprep.mubr.f32.mxu0 0.0
    %4157 = vmatmul.mubr.f32.gmra.mrb[0].mxu0 %v4090
    %v4158 = vpop.f32.mrb[0].mxu0
    %v4159 = vadd.f32 0.0, %v4158
    %v4160 = vpop.f32.mrb[0].mxu0
    %4161 = vdwg.mxu0
    %v4162 = vadd.f32 %v4007, %v4159
    %4163 = vrot.lane.b32.xlu0 %v2330, 72
    %v4164 = vpop.permute.xlu0 %4163
    %4165 = vrot.lane.b32.xlu0 %v2335, 72
    %v4166 = vpop.permute.xlu0 %4165
    %v4170 = vsel %vm2670, %v3705, 0
    %4172 = vmatprep.subr.mxu0 0.0
    %4173 = vmatpush1.msra.mxu0 %v4164
    %4174 = vmatprep.subr.mxu0 0.0
    %4175 = vmatpush1.msra.mxu0 %v4166
    %4176 = vmatprep.subr.mxu0 0.0
    %4177 = vmatpush1.msra.mxu0 0.0
    %4178 = vmatprep.subr.mxu0 0.0
    %4179 = vmatpush1.msra.mxu0 0.0
    %4180 = vmatprep.subr.mxu0 0.0
    %4181 = vmatpush1.msra.mxu0 0.0
    %4182 = vmatprep.subr.mxu0 0.0
    %4183 = vmatpush1.msra.mxu0 0.0
    %4184 = vmatprep.subr.mxu0 0.0
    %4185 = vmatpush1.msra.mxu0 0.0
    %4186 = vmatprep.subr.mxu0 0.0
    %4187 = vmatpush1.msra.mxu0 0.0
    %4188 = vmatprep.subr.mxu0 0.0
    %4189 = vmatpush1.msra.mxu0 0.0
    %4190 = vmatprep.subr.mxu0 0.0
    %4191 = vmatpush1.msra.mxu0 0.0
    %4192 = vmatprep.subr.mxu0 0.0
    %4193 = vmatpush1.msra.mxu0 0.0
    %4194 = vmatprep.subr.mxu0 0.0
    %4195 = vmatpush1.msra.mxu0 0.0
    %4196 = vmatprep.subr.mxu0 0.0
    %4197 = vmatpush1.msra.mxu0 0.0
    %4198 = vmatprep.subr.mxu0 0.0
    %4199 = vmatpush1.msra.mxu0 0.0
    %4200 = vmatprep.subr.mxu0 0.0
    %4201 = vmatpush1.msra.mxu0 0.0
    %4202 = vmatprep.subr.mxu0 0.0
    %4203 = vmatpush1.msra.mxu0 0.0
    %4204 = vmatprep.subr.mxu0 0.0
    %4205 = vmatpush1.msra.mxu0 0.0
    %4206 = vmatprep.subr.mxu0 0.0
    %4207 = vmatpush1.msra.mxu0 0.0
    %4208 = vmatprep.subr.mxu0 0.0
    %4209 = vmatpush1.msra.mxu0 0.0
    %4210 = vmatprep.subr.mxu0 0.0
    %4211 = vmatpush1.msra.mxu0 0.0
    %4212 = vmatprep.subr.mxu0 0.0
    %4213 = vmatpush1.msra.mxu0 0.0
    %4214 = vmatprep.subr.mxu0 0.0
    %4215 = vmatpush1.msra.mxu0 0.0
    %4216 = vmatprep.subr.mxu0 0.0
    %4217 = vmatpush1.msra.mxu0 0.0
    %4218 = vmatprep.subr.mxu0 0.0
    %4219 = vmatpush1.msra.mxu0 0.0
    %4220 = vmatprep.subr.mxu0 0.0
    %4221 = vmatpush1.msra.mxu0 0.0
    %4222 = vmatprep.subr.mxu0 0.0
    %4223 = vmatpush1.msra.mxu0 0.0
    %4224 = vmatprep.subr.mxu0 0.0
    %4225 = vmatpush1.msra.mxu0 0.0
    %4226 = vmatprep.subr.mxu0 0.0
    %4227 = vmatpush1.msra.mxu0 0.0
    %4228 = vmatprep.subr.mxu0 0.0
    %4229 = vmatpush1.msra.mxu0 0.0
    %4230 = vmatprep.subr.mxu0 0.0
    %4231 = vmatpush1.msra.mxu0 0.0
    %4232 = vmatprep.subr.mxu0 0.0
    %4233 = vmatpush1.msra.mxu0 0.0
    %4234 = vmatprep.subr.mxu0 0.0
    %4235 = vmatpush1.msra.mxu0 0.0
    %4236 = vmatprep.mubr.f32.mxu0 0.0
    %4237 = vmatmul.mubr.f32.gmra.mrb[0].mxu0 %v4170
    %v4238 = vpop.f32.mrb[0].mxu0
    %v4239 = vadd.f32 0.0, %v4238
    %v4240 = vpop.f32.mrb[0].mxu0
    %4241 = vdwg.mxu0
    %v4243 = vsel %vm179, %v4239, 0
    %4245 = vmatprep.subr.mxu0 0.0
    %4246 = vmatpush1.msra.mxu0 %v3254
    %4247 = vmatprep.subr.mxu0 0.0
    %4248 = vmatpush1.msra.mxu0 0.0
    %4249 = vmatprep.subr.mxu0 0.0
    %4250 = vmatpush1.msra.mxu0 0.0
    %4251 = vmatprep.subr.mxu0 0.0
    %4252 = vmatpush1.msra.mxu0 0.0
    %4253 = vmatprep.subr.mxu0 0.0
    %4254 = vmatpush1.msra.mxu0 0.0
    %4255 = vmatprep.subr.mxu0 0.0
    %4256 = vmatpush1.msra.mxu0 0.0
    %4257 = vmatprep.subr.mxu0 0.0
    %4258 = vmatpush1.msra.mxu0 0.0
    %4259 = vmatprep.subr.mxu0 0.0
    %4260 = vmatpush1.msra.mxu0 0.0
    %4261 = vmatprep.subr.mxu0 0.0
    %4262 = vmatpush1.msra.mxu0 0.0
    %4263 = vmatprep.subr.mxu0 0.0
    %4264 = vmatpush1.msra.mxu0 0.0
    %4265 = vmatprep.subr.mxu0 0.0
    %4266 = vmatpush1.msra.mxu0 0.0
    %4267 = vmatprep.subr.mxu0 0.0
    %4268 = vmatpush1.msra.mxu0 0.0
    %4269 = vmatprep.subr.mxu0 0.0
    %4270 = vmatpush1.msra.mxu0 0.0
    %4271 = vmatprep.subr.mxu0 0.0
    %4272 = vmatpush1.msra.mxu0 0.0
    %4273 = vmatprep.subr.mxu0 0.0
    %4274 = vmatpush1.msra.mxu0 0.0
    %4275 = vmatprep.subr.mxu0 0.0
    %4276 = vmatpush1.msra.mxu0 0.0
    %4277 = vmatprep.subr.mxu0 0.0
    %4278 = vmatpush1.msra.mxu0 0.0
    %4279 = vmatprep.subr.mxu0 0.0
    %4280 = vmatpush1.msra.mxu0 0.0
    %4281 = vmatprep.subr.mxu0 0.0
    %4282 = vmatpush1.msra.mxu0 0.0
    %4283 = vmatprep.subr.mxu0 0.0
    %4284 = vmatpush1.msra.mxu0 0.0
    %4285 = vmatprep.subr.mxu0 0.0
    %4286 = vmatpush1.msra.mxu0 0.0
    %4287 = vmatprep.subr.mxu0 0.0
    %4288 = vmatpush1.msra.mxu0 0.0
    %4289 = vmatprep.subr.mxu0 0.0
    %4290 = vmatpush1.msra.mxu0 0.0
    %4291 = vmatprep.subr.mxu0 0.0
    %4292 = vmatpush1.msra.mxu0 0.0
    %4293 = vmatprep.subr.mxu0 0.0
    %4294 = vmatpush1.msra.mxu0 0.0
    %4295 = vmatprep.subr.mxu0 0.0
    %4296 = vmatpush1.msra.mxu0 0.0
    %4297 = vmatprep.subr.mxu0 0.0
    %4298 = vmatpush1.msra.mxu0 0.0
    %4299 = vmatprep.subr.mxu0 0.0
    %4300 = vmatpush1.msra.mxu0 0.0
    %4301 = vmatprep.subr.mxu0 0.0
    %4302 = vmatpush1.msra.mxu0 0.0
    %4303 = vmatprep.subr.mxu0 0.0
    %4304 = vmatpush1.msra.mxu0 0.0
    %4305 = vmatprep.subr.mxu0 0.0
    %4306 = vmatpush1.msra.mxu0 0.0
    %4307 = vmatprep.subr.mxu0 0.0
    %4308 = vmatpush1.msra.mxu0 0.0
    %4309 = vmatprep.mubr.f32.mxu0 0.0
    %4310 = vmatmul.mubr.f32.gmra.mrb[0].mxu0 %v4243
    %v4311 = vpop.f32.mrb[0].mxu0
    %v4312 = vadd.f32 0.0, %v4311
    %v4313 = vpop.f32.mrb[0].mxu0
    %4314 = vdwg.mxu0
    %v4315 = vadd.f32 %v4162, %v4312
    %v4316 = vld [vmem:[%s7 + $0xc] sm:$0x1]
    %v4317 = vlaneseq
    %v4318 = vshrl.u32 %v4317, 7
    %v4319 = vsub.s32 0, %v4318
    %v4320 = vrot.slane %v4316, %v4319
    %v4321 = vadd.f32 %v3328, %v4320
    %v4322 = vadd.f32 %v4315, %v4320
    %v4323 = vadd.f32 %v2096, %v4321
    %v4324 = vadd.f32 %v2097, %v4322
    %v4325 = vmul.f32 %v4323, %v4323
    %v4326 = vmul.f32 %v4324, %v4324
    %v4327 = vsel %vm42, %v4323, 0.0
    %4328 = vadd.xlane.f32.xlu0 %v4327
    %v4329 = vpop.xlane.xlu0 %4328
    %v4330 = vsel %vm42, %v4324, 0.0
    %4331 = vadd.xlane.f32.xlu0 %v4330
    %v4332 = vpop.xlane.xlu0 %4331
    %v4333 = vsel %vm42, %v4325, 0.0
    %4334 = vadd.xlane.f32.xlu0 %v4333
    %v4335 = vpop.xlane.xlu0 %4334
    %v4336 = vsel %vm42, %v4326, 0.0
    %4337 = vadd.xlane.f32.xlu0 %v4336
    %v4338 = vpop.xlane.xlu0 %4337
    %v4339 = vmul.f32 %v4329, 0.03125
    %v4340 = vmul.f32 %v4332, 0.03125
    %v4341 = vmul.f32 %v4335, 0.03125
    %v4342 = vmul.f32 %v4338, 0.03125
    %v4343 = vmul.f32 %v4339, %v4339
    %v4344 = vmul.f32 %v4340, %v4340
    %v4345 = vsub.f32 %v4341, %v4343
    %v4346 = vsub.f32 %v4342, %v4344
    %v4347 = vadd.f32 %v4345, 1e-06
    %v4348 = vadd.f32 %v4346, 1e-06
    %v4349 = vrsqrt.pop %v4347
    %v4350 = vrsqrt.pop %v4348
    %v4351 = vsub.f32 %v4323, %v4339
    %v4352 = vsub.f32 %v4324, %v4340
    %v4353 = vmul.f32 %v4351, %v4349
    %v4354 = vmul.f32 %v4352, %v4350
    %v4355 = vld [vmem:[%s7 + $0x4] sm:$0x1]
    %v4356 = vlaneseq
    %v4357 = vshrl.u32 %v4356, 7
    %v4358 = vsub.s32 0, %v4357
    %v4359 = vrot.slane %v4355, %v4358
    %v4360 = vmul.f32 %v4353, %v4359
    %v4361 = vmul.f32 %v4354, %v4359
    %v4362 = vld [vmem:[%s7 + $0x5] sm:$0x1]
    %v4363 = vlaneseq
    %v4364 = vshrl.u32 %v4363, 7
    %v4365 = vsub.s32 0, %v4364
    %v4366 = vrot.slane %v4362, %v4365
    %v4367 = vadd.f32 %v4360, %v4366
    %v4368 = vadd.f32 %v4361, %v4366
    %v4369 = vld [vmem:[%s6 + $0xa0] sm:$0xff]
    %v4370 = vld [vmem:[%s6 + $0xa8] sm:$0xff]
    %v4371 = vld [vmem:[%s6 + $0xb0] sm:$0xff]
    %v4372 = vld [vmem:[%s6 + $0xb8] sm:$0xff]
    %v4373 = vld [vmem:[%s7 + $0xd] sm:$0x1]
    %v4374 = vlaneseq
    %v4375 = vshrl.u32 %v4374, 7
    %v4376 = vsub.s32 0, %v4375
    %v4377 = vrot.slane %v4373, %v4376
    %v4379 = vsel %vm42, %v4367, 0
    %v4382 = vsel %vm42, %v4368, 0
    %4384 = vmatprep.subr.mxu0 0.0
    %4385 = vmatpush1.msra.mxu0 %v4369
    %4386 = vmatprep.subr.mxu0 0.0
    %4387 = vmatpush1.msra.mxu0 %v4370
    %4388 = vmatprep.subr.mxu0 0.0
    %4389 = vmatpush1.msra.mxu0 %v4371
    %4390 = vmatprep.subr.mxu0 0.0
    %4391 = vmatpush1.msra.mxu0 %v4372
    %4392 = vmatprep.subr.mxu0 0.0
    %4393 = vmatpush1.msra.mxu0 0.0
    %4394 = vmatprep.subr.mxu0 0.0
    %4395 = vmatpush1.msra.mxu0 0.0
    %4396 = vmatprep.subr.mxu0 0.0
    %4397 = vmatpush1.msra.mxu0 0.0
    %4398 = vmatprep.subr.mxu0 0.0
    %4399 = vmatpush1.msra.mxu0 0.0
    %4400 = vmatprep.subr.mxu0 0.0
    %4401 = vmatpush1.msra.mxu0 0.0
    %4402 = vmatprep.subr.mxu0 0.0
    %4403 = vmatpush1.msra.mxu0 0.0
    %4404 = vmatprep.subr.mxu0 0.0
    %4405 = vmatpush1.msra.mxu0 0.0
    %4406 = vmatprep.subr.mxu0 0.0
    %4407 = vmatpush1.msra.mxu0 0.0
    %4408 = vmatprep.subr.mxu0 0.0
    %4409 = vmatpush1.msra.mxu0 0.0
    %4410 = vmatprep.subr.mxu0 0.0
    %4411 = vmatpush1.msra.mxu0 0.0
    %4412 = vmatprep.subr.mxu0 0.0
    %4413 = vmatpush1.msra.mxu0 0.0
    %4414 = vmatprep.subr.mxu0 0.0
    %4415 = vmatpush1.msra.mxu0 0.0
    %4416 = vmatprep.subr.mxu0 0.0
    %4417 = vmatpush1.msra.mxu0 0.0
    %4418 = vmatprep.subr.mxu0 0.0
    %4419 = vmatpush1.msra.mxu0 0.0
    %4420 = vmatprep.subr.mxu0 0.0
    %4421 = vmatpush1.msra.mxu0 0.0
    %4422 = vmatprep.subr.mxu0 0.0
    %4423 = vmatpush1.msra.mxu0 0.0
    %4424 = vmatprep.subr.mxu0 0.0
    %4425 = vmatpush1.msra.mxu0 0.0
    %4426 = vmatprep.subr.mxu0 0.0
    %4427 = vmatpush1.msra.mxu0 0.0
    %4428 = vmatprep.subr.mxu0 0.0
    %4429 = vmatpush1.msra.mxu0 0.0
    %4430 = vmatprep.subr.mxu0 0.0
    %4431 = vmatpush1.msra.mxu0 0.0
    %4432 = vmatprep.subr.mxu0 0.0
    %4433 = vmatpush1.msra.mxu0 0.0
    %4434 = vmatprep.subr.mxu0 0.0
    %4435 = vmatpush1.msra.mxu0 0.0
    %4436 = vmatprep.subr.mxu0 0.0
    %4437 = vmatpush1.msra.mxu0 0.0
    %4438 = vmatprep.subr.mxu0 0.0
    %4439 = vmatpush1.msra.mxu0 0.0
    %4440 = vmatprep.subr.mxu0 0.0
    %4441 = vmatpush1.msra.mxu0 0.0
    %4442 = vmatprep.subr.mxu0 0.0
    %4443 = vmatpush1.msra.mxu0 0.0
    %4444 = vmatprep.subr.mxu0 0.0
    %4445 = vmatpush1.msra.mxu0 0.0
    %4446 = vmatprep.subr.mxu0 0.0
    %4447 = vmatpush1.msra.mxu0 0.0
    %4448 = vmatprep.mubr.f32.mxu0 0.0
    %4449 = vmatmul.mubr.f32.gmra.mrb[0].mxu0 %v4379
    %v4450 = vpop.f32.mrb[0].mxu0
    %v4451 = vadd.f32 %v4377, %v4450
    %v4452 = vpop.f32.mrb[0].mxu0
    %4453 = vmatprep.mubr.f32.mxu0 0.0
    %4454 = vmatmul.mubr.f32.gmra.mrb[0].mxu0 %v4382
    %v4455 = vpop.f32.mrb[0].mxu0
    %v4456 = vadd.f32 %v4377, %v4455
    %v4457 = vpop.f32.mrb[0].mxu0
    %4458 = vdwg.mxu0
    %v4459 = vld [vmem:[%s6 + $0xc0] sm:$0xff]
    %v4460 = vld [vmem:[%s6 + $0xc8] sm:$0xff]
    %v4461 = vld [vmem:[%s6 + $0xd0] sm:$0xff]
    %v4462 = vld [vmem:[%s6 + $0xd8] sm:$0xff]
    %v4463 = vld [vmem:[%s7 + $0xe] sm:$0x1]
    %v4464 = vlaneseq
    %v4465 = vshrl.u32 %v4464, 7
    %v4466 = vsub.s32 0, %v4465
    %v4467 = vrot.slane %v4463, %v4466
    %v4469 = vsel %vm42, %v36, 0
    %v4472 = vsel %vm42, %v37, 0
    %v4475 = vsel %vm42, %v38, 0
    %v4478 = vsel %vm42, %v39, 0
    %4480 = vmatprep.subr.mxu0 0.0
    %4481 = vmatpush1.msra.mxu0 %v4459
    %4482 = vmatprep.subr.mxu0 0.0
    %4483 = vmatpush1.msra.mxu0 %v4460
    %4484 = vmatprep.subr.mxu0 0.0
    %4485 = vmatpush1.msra.mxu0 %v4461
    %4486 = vmatprep.subr.mxu0 0.0
    %4487 = vmatpush1.msra.mxu0 %v4462
    %4488 = vmatprep.subr.mxu0 0.0
    %4489 = vmatpush1.msra.mxu0 0.0
    %4490 = vmatprep.subr.mxu0 0.0
    %4491 = vmatpush1.msra.mxu0 0.0
    %4492 = vmatprep.subr.mxu0 0.0
    %4493 = vmatpush1.msra.mxu0 0.0
    %4494 = vmatprep.subr.mxu0 0.0
    %4495 = vmatpush1.msra.mxu0 0.0
    %4496 = vmatprep.subr.mxu0 0.0
    %4497 = vmatpush1.msra.mxu0 0.0
    %4498 = vmatprep.subr.mxu0 0.0
    %4499 = vmatpush1.msra.mxu0 0.0
    %4500 = vmatprep.subr.mxu0 0.0
    %4501 = vmatpush1.msra.mxu0 0.0
    %4502 = vmatprep.subr.mxu0 0.0
    %4503 = vmatpush1.msra.mxu0 0.0
    %4504 = vmatprep.subr.mxu0 0.0
    %4505 = vmatpush1.msra.mxu0 0.0
    %4506 = vmatprep.subr.mxu0 0.0
    %4507 = vmatpush1.msra.mxu0 0.0
    %4508 = vmatprep.subr.mxu0 0.0
    %4509 = vmatpush1.msra.mxu0 0.0
    %4510 = vmatprep.subr.mxu0 0.0
    %4511 = vmatpush1.msra.mxu0 0.0
    %4512 = vmatprep.subr.mxu0 0.0
    %4513 = vmatpush1.msra.mxu0 0.0
    %4514 = vmatprep.subr.mxu0 0.0
    %4515 = vmatpush1.msra.mxu0 0.0
    %4516 = vmatprep.subr.mxu0 0.0
    %4517 = vmatpush1.msra.mxu0 0.0
    %4518 = vmatprep.subr.mxu0 0.0
    %4519 = vmatpush1.msra.mxu0 0.0
    %4520 = vmatprep.subr.mxu0 0.0
    %4521 = vmatpush1.msra.mxu0 0.0
    %4522 = vmatprep.subr.mxu0 0.0
    %4523 = vmatpush1.msra.mxu0 0.0
    %4524 = vmatprep.subr.mxu0 0.0
    %4525 = vmatpush1.msra.mxu0 0.0
    %4526 = vmatprep.subr.mxu0 0.0
    %4527 = vmatpush1.msra.mxu0 0.0
    %4528 = vmatprep.subr.mxu0 0.0
    %4529 = vmatpush1.msra.mxu0 0.0
    %4530 = vmatprep.subr.mxu0 0.0
    %4531 = vmatpush1.msra.mxu0 0.0
    %4532 = vmatprep.subr.mxu0 0.0
    %4533 = vmatpush1.msra.mxu0 0.0
    %4534 = vmatprep.subr.mxu0 0.0
    %4535 = vmatpush1.msra.mxu0 0.0
    %4536 = vmatprep.subr.mxu0 0.0
    %4537 = vmatpush1.msra.mxu0 0.0
    %4538 = vmatprep.subr.mxu0 0.0
    %4539 = vmatpush1.msra.mxu0 0.0
    %4540 = vmatprep.subr.mxu0 0.0
    %4541 = vmatpush1.msra.mxu0 0.0
    %4542 = vmatprep.subr.mxu0 0.0
    %4543 = vmatpush1.msra.mxu0 0.0
    %4544 = vmatprep.mubr.f32.mxu0 0.0
    %4545 = vmatmul.mubr.f32.gmra.mrb[0].mxu0 %v4469
    %v4546 = vpop.f32.mrb[0].mxu0
    %v4547 = vadd.f32 %v4467, %v4546
    %v4548 = vpop.f32.mrb[0].mxu0
    %4549 = vmatprep.mubr.f32.mxu0 0.0
    %4550 = vmatmul.mubr.f32.gmra.mrb[0].mxu0 %v4472
    %v4551 = vpop.f32.mrb[0].mxu0
    %v4552 = vadd.f32 %v4467, %v4551
    %v4553 = vpop.f32.mrb[0].mxu0
    %4554 = vmatprep.mubr.f32.mxu0 0.0
    %4555 = vmatmul.mubr.f32.gmra.mrb[0].mxu0 %v4475
    %v4556 = vpop.f32.mrb[0].mxu0
    %v4557 = vadd.f32 %v4467, %v4556
    %v4558 = vpop.f32.mrb[0].mxu0
    %4559 = vmatprep.mubr.f32.mxu0 0.0
    %4560 = vmatmul.mubr.f32.gmra.mrb[0].mxu0 %v4478
    %v4561 = vpop.f32.mrb[0].mxu0
    %v4562 = vadd.f32 %v4467, %v4561
    %v4563 = vpop.f32.mrb[0].mxu0
    %4564 = vdwg.mxu0
    %v4565 = vld [vmem:[%s5] sm:$0x1]
    %v4567 = vlaneseq
    %v4568 = vshrl.u32 %v4567, 7
    %v4569 = vsub.s32 0, %v4568
    %v4570 = vrot.slane %v4565, %v4569
    %v4573 = vsel %vm179, %v4451, 0
    %v4576 = vsel %vm179, %v4547, 0
    %v4579 = vsel %vm179, %v4552, 0
    %4581 = vmatprep.subr.mxu0 0.0
    %4582 = vmatpush1.xpose.msra.mxu0 %v4576
    %4583 = vmatprep.subr.mxu0 0.0
    %4584 = vmatpush1.xpose.msra.mxu0 %v4579
    %4585 = vmatprep.subr.mxu0 0.0
    %4586 = vmatpush1.xpose.msra.mxu0 0.0
    %4587 = vmatprep.subr.mxu0 0.0
    %4588 = vmatpush1.xpose.msra.mxu0 0.0
    %4589 = vmatprep.subr.mxu0 0.0
    %4590 = vmatpush1.xpose.msra.mxu0 0.0
    %4591 = vmatprep.subr.mxu0 0.0
    %4592 = vmatpush1.xpose.msra.mxu0 0.0
    %4593 = vmatprep.subr.mxu0 0.0
    %4594 = vmatpush1.xpose.msra.mxu0 0.0
    %4595 = vmatprep.subr.mxu0 0.0
    %4596 = vmatpush1.xpose.msra.mxu0 0.0
    %4597 = vmatprep.subr.mxu0 0.0
    %4598 = vmatpush1.xpose.msra.mxu0 0.0
    %4599 = vmatprep.subr.mxu0 0.0
    %4600 = vmatpush1.xpose.msra.mxu0 0.0
    %4601 = vmatprep.subr.mxu0 0.0
    %4602 = vmatpush1.xpose.msra.mxu0 0.0
    %4603 = vmatprep.subr.mxu0 0.0
    %4604 = vmatpush1.xpose.msra.mxu0 0.0
    %4605 = vmatprep.subr.mxu0 0.0
    %4606 = vmatpush1.xpose.msra.mxu0 0.0
    %4607 = vmatprep.subr.mxu0 0.0
    %4608 = vmatpush1.xpose.msra.mxu0 0.0
    %4609 = vmatprep.subr.mxu0 0.0
    %4610 = vmatpush1.xpose.msra.mxu0 0.0
    %4611 = vmatprep.subr.mxu0 0.0
    %4612 = vmatpush1.xpose.msra.mxu0 0.0
    %4613 = vmatprep.subr.mxu0 0.0
    %4614 = vmatpush1.xpose.msra.mxu0 0.0
    %4615 = vmatprep.subr.mxu0 0.0
    %4616 = vmatpush1.xpose.msra.mxu0 0.0
    %4617 = vmatprep.subr.mxu0 0.0
    %4618 = vmatpush1.xpose.msra.mxu0 0.0
    %4619 = vmatprep.subr.mxu0 0.0
    %4620 = vmatpush1.xpose.msra.mxu0 0.0
    %4621 = vmatprep.subr.mxu0 0.0
    %4622 = vmatpush1.xpose.msra.mxu0 0.0
    %4623 = vmatprep.subr.mxu0 0.0
    %4624 = vmatpush1.xpose.msra.mxu0 0.0
    %4625 = vmatprep.subr.mxu0 0.0
    %4626 = vmatpush1.xpose.msra.mxu0 0.0
    %4627 = vmatprep.subr.mxu0 0.0
    %4628 = vmatpush1.xpose.msra.mxu0 0.0
    %4629 = vmatprep.subr.mxu0 0.0
    %4630 = vmatpush1.xpose.msra.mxu0 0.0
    %4631 = vmatprep.subr.mxu0 0.0
    %4632 = vmatpush1.xpose.msra.mxu0 0.0
    %4633 = vmatprep.subr.mxu0 0.0
    %4634 = vmatpush1.xpose.msra.mxu0 0.0
    %4635 = vmatprep.subr.mxu0 0.0
    %4636 = vmatpush1.xpose.msra.mxu0 0.0
    %4637 = vmatprep.subr.mxu0 0.0
    %4638 = vmatpush1.xpose.msra.mxu0 0.0
    %4639 = vmatprep.subr.mxu0 0.0
    %4640 = vmatpush1.xpose.msra.mxu0 0.0
    %4641 = vmatprep.subr.mxu0 0.0
    %4642 = vmatpush1.xpose.msra.mxu0 0.0
    %4643 = vmatprep.subr.mxu0 0.0
    %4644 = vmatpush1.xpose.msra.mxu0 0.0
    %4645 = vmatprep.mubr.f32.mxu0 0.0
    %4646 = vmatmul.mubr.f32.gmra.mrb[0].mxu0 %v4573
    %v4647 = vpop.f32.mrb[0].mxu0
    %v4648 = vadd.f32 %v4570, %v4647
    %v4649 = vpop.f32.mrb[0].mxu0
    %4650 = vdwg.mxu0
    %4651 = vrot.lane.b32.xlu0 %v4451, 120
    %v4652 = vpop.permute.xlu0 %4651
    %4653 = vrot.lane.b32.xlu0 %v4547, 120
    %v4654 = vpop.permute.xlu0 %4653
    %4655 = vrot.lane.b32.xlu0 %v4552, 120
    %v4656 = vpop.permute.xlu0 %4655
    %v4657 = vsel %vm179, %v4652, 0
    %v4659 = vsel %vm179, %v4654, 0
    %v4661 = vsel %vm179, %v4656, 0
    %4663 = vmatprep.subr.mxu0 0.0
    %4664 = vmatpush1.xpose.msra.mxu0 %v4659
    %4665 = vmatprep.subr.mxu0 0.0
    %4666 = vmatpush1.xpose.msra.mxu0 %v4661
    %4667 = vmatprep.subr.mxu0 0.0
    %4668 = vmatpush1.xpose.msra.mxu0 0.0
    %4669 = vmatprep.subr.mxu0 0.0
    %4670 = vmatpush1.xpose.msra.mxu0 0.0
    %4671 = vmatprep.subr.mxu0 0.0
    %4672 = vmatpush1.xpose.msra.mxu0 0.0
    %4673 = vmatprep.subr.mxu0 0.0
    %4674 = vmatpush1.xpose.msra.mxu0 0.0
    %4675 = vmatprep.subr.mxu0 0.0
    %4676 = vmatpush1.xpose.msra.mxu0 0.0
    %4677 = vmatprep.subr.mxu0 0.0
    %4678 = vmatpush1.xpose.msra.mxu0 0.0
    %4679 = vmatprep.subr.mxu0 0.0
    %4680 = vmatpush1.xpose.msra.mxu0 0.0
    %4681 = vmatprep.subr.mxu0 0.0
    %4682 = vmatpush1.xpose.msra.mxu0 0.0
    %4683 = vmatprep.subr.mxu0 0.0
    %4684 = vmatpush1.xpose.msra.mxu0 0.0
    %4685 = vmatprep.subr.mxu0 0.0
    %4686 = vmatpush1.xpose.msra.mxu0 0.0
    %4687 = vmatprep.subr.mxu0 0.0
    %4688 = vmatpush1.xpose.msra.mxu0 0.0
    %4689 = vmatprep.subr.mxu0 0.0
    %4690 = vmatpush1.xpose.msra.mxu0 0.0
    %4691 = vmatprep.subr.mxu0 0.0
    %4692 = vmatpush1.xpose.msra.mxu0 0.0
    %4693 = vmatprep.subr.mxu0 0.0
    %4694 = vmatpush1.xpose.msra.mxu0 0.0
    %4695 = vmatprep.subr.mxu0 0.0
    %4696 = vmatpush1.xpose.msra.mxu0 0.0
    %4697 = vmatprep.subr.mxu0 0.0
    %4698 = vmatpush1.xpose.msra.mxu0 0.0
    %4699 = vmatprep.subr.mxu0 0.0
    %4700 = vmatpush1.xpose.msra.mxu0 0.0
    %4701 = vmatprep.subr.mxu0 0.0
    %4702 = vmatpush1.xpose.msra.mxu0 0.0
    %4703 = vmatprep.subr.mxu0 0.0
    %4704 = vmatpush1.xpose.msra.mxu0 0.0
    %4705 = vmatprep.subr.mxu0 0.0
    %4706 = vmatpush1.xpose.msra.mxu0 0.0
    %4707 = vmatprep.subr.mxu0 0.0
    %4708 = vmatpush1.xpose.msra.mxu0 0.0
    %4709 = vmatprep.subr.mxu0 0.0
    %4710 = vmatpush1.xpose.msra.mxu0 0.0
    %4711 = vmatprep.subr.mxu0 0.0
    %4712 = vmatpush1.xpose.msra.mxu0 0.0
    %4713 = vmatprep.subr.mxu0 0.0
    %4714 = vmatpush1.xpose.msra.mxu0 0.0
    %4715 = vmatprep.subr.mxu0 0.0
    %4716 = vmatpush1.xpose.msra.mxu0 0.0
    %4717 = vmatprep.subr.mxu0 0.0
    %4718 = vmatpush1.xpose.msra.mxu0 0.0
    %4719 = vmatprep.subr.mxu0 0.0
    %4720 = vmatpush1.xpose.msra.mxu0 0.0
    %4721 = vmatprep.subr.mxu0 0.0
    %4722 = vmatpush1.xpose.msra.mxu0 0.0
    %4723 = vmatprep.subr.mxu0 0.0
    %4724 = vmatpush1.xpose.msra.mxu0 0.0
    %4725 = vmatprep.subr.mxu0 0.0
    %4726 = vmatpush1.xpose.msra.mxu0 0.0
    %4727 = vmatprep.mubr.f32.mxu0 0.0
    %4728 = vmatmul.mubr.f32.gmra.mrb[0].mxu0 %v4657
    %v4729 = vpop.f32.mrb[0].mxu0
    %v4730 = vadd.f32 %v4570, %v4729
    %v4731 = vpop.f32.mrb[0].mxu0
    %4732 = vdwg.mxu0
    %4733 = vrot.lane.b32.xlu0 %v4451, 112
    %v4734 = vpop.permute.xlu0 %4733
    %4735 = vrot.lane.b32.xlu0 %v4547, 112
    %v4736 = vpop.permute.xlu0 %4735
    %4737 = vrot.lane.b32.xlu0 %v4552, 112
    %v4738 = vpop.permute.xlu0 %4737
    %v4739 = vsel %vm179, %v4734, 0
    %v4741 = vsel %vm179, %v4736, 0
    %v4743 = vsel %vm179, %v4738, 0
    %4745 = vmatprep.subr.mxu0 0.0
    %4746 = vmatpush1.xpose.msra.mxu0 %v4741
    %4747 = vmatprep.subr.mxu0 0.0
    %4748 = vmatpush1.xpose.msra.mxu0 %v4743
    %4749 = vmatprep.subr.mxu0 0.0
    %4750 = vmatpush1.xpose.msra.mxu0 0.0
    %4751 = vmatprep.subr.mxu0 0.0
    %4752 = vmatpush1.xpose.msra.mxu0 0.0
    %4753 = vmatprep.subr.mxu0 0.0
    %4754 = vmatpush1.xpose.msra.mxu0 0.0
    %4755 = vmatprep.subr.mxu0 0.0
    %4756 = vmatpush1.xpose.msra.mxu0 0.0
    %4757 = vmatprep.subr.mxu0 0.0
    %4758 = vmatpush1.xpose.msra.mxu0 0.0
    %4759 = vmatprep.subr.mxu0 0.0
    %4760 = vmatpush1.xpose.msra.mxu0 0.0
    %4761 = vmatprep.subr.mxu0 0.0
    %4762 = vmatpush1.xpose.msra.mxu0 0.0
    %4763 = vmatprep.subr.mxu0 0.0
    %4764 = vmatpush1.xpose.msra.mxu0 0.0
    %4765 = vmatprep.subr.mxu0 0.0
    %4766 = vmatpush1.xpose.msra.mxu0 0.0
    %4767 = vmatprep.subr.mxu0 0.0
    %4768 = vmatpush1.xpose.msra.mxu0 0.0
    %4769 = vmatprep.subr.mxu0 0.0
    %4770 = vmatpush1.xpose.msra.mxu0 0.0
    %4771 = vmatprep.subr.mxu0 0.0
    %4772 = vmatpush1.xpose.msra.mxu0 0.0
    %4773 = vmatprep.subr.mxu0 0.0
    %4774 = vmatpush1.xpose.msra.mxu0 0.0
    %4775 = vmatprep.subr.mxu0 0.0
    %4776 = vmatpush1.xpose.msra.mxu0 0.0
    %4777 = vmatprep.subr.mxu0 0.0
    %4778 = vmatpush1.xpose.msra.mxu0 0.0
    %4779 = vmatprep.subr.mxu0 0.0
    %4780 = vmatpush1.xpose.msra.mxu0 0.0
    %4781 = vmatprep.subr.mxu0 0.0
    %4782 = vmatpush1.xpose.msra.mxu0 0.0
    %4783 = vmatprep.subr.mxu0 0.0
    %4784 = vmatpush1.xpose.msra.mxu0 0.0
    %4785 = vmatprep.subr.mxu0 0.0
    %4786 = vmatpush1.xpose.msra.mxu0 0.0
    %4787 = vmatprep.subr.mxu0 0.0
    %4788 = vmatpush1.xpose.msra.mxu0 0.0
    %4789 = vmatprep.subr.mxu0 0.0
    %4790 = vmatpush1.xpose.msra.mxu0 0.0
    %4791 = vmatprep.subr.mxu0 0.0
    %4792 = vmatpush1.xpose.msra.mxu0 0.0
    %4793 = vmatprep.subr.mxu0 0.0
    %4794 = vmatpush1.xpose.msra.mxu0 0.0
    %4795 = vmatprep.subr.mxu0 0.0
    %4796 = vmatpush1.xpose.msra.mxu0 0.0
    %4797 = vmatprep.subr.mxu0 0.0
    %4798 = vmatpush1.xpose.msra.mxu0 0.0
    %4799 = vmatprep.subr.mxu0 0.0
    %4800 = vmatpush1.xpose.msra.mxu0 0.0
    %4801 = vmatprep.subr.mxu0 0.0
    %4802 = vmatpush1.xpose.msra.mxu0 0.0
    %4803 = vmatprep.subr.mxu0 0.0
    %4804 = vmatpush1.xpose.msra.mxu0 0.0
    %4805 = vmatprep.subr.mxu0 0.0
    %4806 = vmatpush1.xpose.msra.mxu0 0.0
    %4807 = vmatprep.subr.mxu0 0.0
    %4808 = vmatpush1.xpose.msra.mxu0 0.0
    %4809 = vmatprep.mubr.f32.mxu0 0.0
    %4810 = vmatmul.mubr.f32.gmra.mrb[0].mxu0 %v4739
    %v4811 = vpop.f32.mrb[0].mxu0
    %v4812 = vadd.f32 %v4570, %v4811
    %v4813 = vpop.f32.mrb[0].mxu0
    %4814 = vdwg.mxu0
    %4815 = vrot.lane.b32.xlu0 %v4451, 104
    %v4816 = vpop.permute.xlu0 %4815
    %4817 = vrot.lane.b32.xlu0 %v4547, 104
    %v4818 = vpop.permute.xlu0 %4817
    %4819 = vrot.lane.b32.xlu0 %v4552, 104
    %v4820 = vpop.permute.xlu0 %4819
    %v4821 = vsel %vm179, %v4816, 0
    %v4823 = vsel %vm179, %v4818, 0
    %v4825 = vsel %vm179, %v4820, 0
    %4827 = vmatprep.subr.mxu0 0.0
    %4828 = vmatpush1.xpose.msra.mxu0 %v4823
    %4829 = vmatprep.subr.mxu0 0.0
    %4830 = vmatpush1.xpose.msra.mxu0 %v4825
    %4831 = vmatprep.subr.mxu0 0.0
    %4832 = vmatpush1.xpose.msra.mxu0 0.0
    %4833 = vmatprep.subr.mxu0 0.0
    %4834 = vmatpush1.xpose.msra.mxu0 0.0
    %4835 = vmatprep.subr.mxu0 0.0
    %4836 = vmatpush1.xpose.msra.mxu0 0.0
    %4837 = vmatprep.subr.mxu0 0.0
    %4838 = vmatpush1.xpose.msra.mxu0 0.0
    %4839 = vmatprep.subr.mxu0 0.0
    %4840 = vmatpush1.xpose.msra.mxu0 0.0
    %4841 = vmatprep.subr.mxu0 0.0
    %4842 = vmatpush1.xpose.msra.mxu0 0.0
    %4843 = vmatprep.subr.mxu0 0.0
    %4844 = vmatpush1.xpose.msra.mxu0 0.0
    %4845 = vmatprep.subr.mxu0 0.0
    %4846 = vmatpush1.xpose.msra.mxu0 0.0
    %4847 = vmatprep.subr.mxu0 0.0
    %4848 = vmatpush1.xpose.msra.mxu0 0.0
    %4849 = vmatprep.subr.mxu0 0.0
    %4850 = vmatpush1.xpose.msra.mxu0 0.0
    %4851 = vmatprep.subr.mxu0 0.0
    %4852 = vmatpush1.xpose.msra.mxu0 0.0
    %4853 = vmatprep.subr.mxu0 0.0
    %4854 = vmatpush1.xpose.msra.mxu0 0.0
    %4855 = vmatprep.subr.mxu0 0.0
    %4856 = vmatpush1.xpose.msra.mxu0 0.0
    %4857 = vmatprep.subr.mxu0 0.0
    %4858 = vmatpush1.xpose.msra.mxu0 0.0
    %4859 = vmatprep.subr.mxu0 0.0
    %4860 = vmatpush1.xpose.msra.mxu0 0.0
    %4861 = vmatprep.subr.mxu0 0.0
    %4862 = vmatpush1.xpose.msra.mxu0 0.0
    %4863 = vmatprep.subr.mxu0 0.0
    %4864 = vmatpush1.xpose.msra.mxu0 0.0
    %4865 = vmatprep.subr.mxu0 0.0
    %4866 = vmatpush1.xpose.msra.mxu0 0.0
    %4867 = vmatprep.subr.mxu0 0.0
    %4868 = vmatpush1.xpose.msra.mxu0 0.0
    %4869 = vmatprep.subr.mxu0 0.0
    %4870 = vmatpush1.xpose.msra.mxu0 0.0
    %4871 = vmatprep.subr.mxu0 0.0
    %4872 = vmatpush1.xpose.msra.mxu0 0.0
    %4873 = vmatprep.subr.mxu0 0.0
    %4874 = vmatpush1.xpose.msra.mxu0 0.0
    %4875 = vmatprep.subr.mxu0 0.0
    %4876 = vmatpush1.xpose.msra.mxu0 0.0
    %4877 = vmatprep.subr.mxu0 0.0
    %4878 = vmatpush1.xpose.msra.mxu0 0.0
    %4879 = vmatprep.subr.mxu0 0.0
    %4880 = vmatpush1.xpose.msra.mxu0 0.0
    %4881 = vmatprep.subr.mxu0 0.0
    %4882 = vmatpush1.xpose.msra.mxu0 0.0
    %4883 = vmatprep.subr.mxu0 0.0
    %4884 = vmatpush1.xpose.msra.mxu0 0.0
    %4885 = vmatprep.subr.mxu0 0.0
    %4886 = vmatpush1.xpose.msra.mxu0 0.0
    %4887 = vmatprep.subr.mxu0 0.0
    %4888 = vmatpush1.xpose.msra.mxu0 0.0
    %4889 = vmatprep.subr.mxu0 0.0
    %4890 = vmatpush1.xpose.msra.mxu0 0.0
    %4891 = vmatprep.mubr.f32.mxu0 0.0
    %4892 = vmatmul.mubr.f32.gmra.mrb[0].mxu0 %v4821
    %v4893 = vpop.f32.mrb[0].mxu0
    %v4894 = vadd.f32 %v4570, %v4893
    %v4895 = vpop.f32.mrb[0].mxu0
    %4896 = vdwg.mxu0
    %v4897 = vsel %vm2670, %v4648, -inf
    %4898 = vmax.xlane.f32.xlu0 %v4897
    %v4899 = vpop.xlane.xlu0 %4898
    %v4900 = vsel %vm2670, %v4730, -inf
    %4901 = vmax.xlane.f32.xlu0 %v4900
    %v4902 = vpop.xlane.xlu0 %4901
    %v4903 = vsel %vm2670, %v4812, -inf
    %4904 = vmax.xlane.f32.xlu0 %v4903
    %v4905 = vpop.xlane.xlu0 %4904
    %v4906 = vsel %vm2670, %v4894, -inf
    %4907 = vmax.xlane.f32.xlu0 %v4906
    %v4908 = vpop.xlane.xlu0 %4907
    %v4909 = vsub.f32 %v4648, %v4899
    %v4910 = vsub.f32 %v4730, %v4902
    %v4911 = vsub.f32 %v4812, %v4905
    %v4912 = vsub.f32 %v4894, %v4908
    %v4913 = vmul.f32 %v4909, 1.442695
    %v4914 = vpow.pop %v4913
    %v4915 = vmul.f32 %v4910, 1.442695
    %v4916 = vpow.pop %v4915
    %v4917 = vmul.f32 %v4911, 1.442695
    %v4918 = vpow.pop %v4917
    %v4919 = vmul.f32 %v4912, 1.442695
    %v4920 = vpow.pop %v4919
    %v4921 = vsel %vm2670, %v4914, 0.0
    %4922 = vadd.xlane.f32.xlu0 %v4921
    %v4923 = vpop.xlane.xlu0 %4922
    %v4924 = vsel %vm2670, %v4916, 0.0
    %4925 = vadd.xlane.f32.xlu0 %v4924
    %v4926 = vpop.xlane.xlu0 %4925
    %v4927 = vsel %vm2670, %v4918, 0.0
    %4928 = vadd.xlane.f32.xlu0 %v4927
    %v4929 = vpop.xlane.xlu0 %4928
    %v4930 = vsel %vm2670, %v4920, 0.0
    %4931 = vadd.xlane.f32.xlu0 %v4930
    %v4932 = vpop.xlane.xlu0 %4931
    %v4933 = vrcp.pop %v4923
    %v4934 = vrcp.pop %v4926
    %v4935 = vrcp.pop %v4929
    %v4936 = vrcp.pop %v4932
    %v4937 = vmul.f32 %v4914, %v4933
    %v4938 = vmul.f32 %v4916, %v4934
    %v4939 = vmul.f32 %v4918, %v4935
    %v4940 = vmul.f32 %v4920, %v4936
    %4941 = vrot.lane.b32.xlu0 %v4547, 96
    %v4942 = vpop.permute.xlu0 %4941
    %4943 = vrot.lane.b32.xlu0 %v4552, 96
    %v4944 = vpop.permute.xlu0 %4943
    %v4948 = vsel %vm2670, %v4937, 0
    %4950 = vmatprep.subr.mxu0 0.0
    %4951 = vmatpush1.msra.mxu0 %v4942
    %4952 = vmatprep.subr.mxu0 0.0
    %4953 = vmatpush1.msra.mxu0 %v4944
    %4954 = vmatprep.subr.mxu0 0.0
    %4955 = vmatpush1.msra.mxu0 0.0
    %4956 = vmatprep.subr.mxu0 0.0
    %4957 = vmatpush1.msra.mxu0 0.0
    %4958 = vmatprep.subr.mxu0 0.0
    %4959 = vmatpush1.msra.mxu0 0.0
    %4960 = vmatprep.subr.mxu0 0.0
    %4961 = vmatpush1.msra.mxu0 0.0
    %4962 = vmatprep.subr.mxu0 0.0
    %4963 = vmatpush1.msra.mxu0 0.0
    %4964 = vmatprep.subr.mxu0 0.0
    %4965 = vmatpush1.msra.mxu0 0.0
    %4966 = vmatprep.subr.mxu0 0.0
    %4967 = vmatpush1.msra.mxu0 0.0
    %4968 = vmatprep.subr.mxu0 0.0
    %4969 = vmatpush1.msra.mxu0 0.0
    %4970 = vmatprep.subr.mxu0 0.0
    %4971 = vmatpush1.msra.mxu0 0.0
    %4972 = vmatprep.subr.mxu0 0.0
    %4973 = vmatpush1.msra.mxu0 0.0
    %4974 = vmatprep.subr.mxu0 0.0
    %4975 = vmatpush1.msra.mxu0 0.0
    %4976 = vmatprep.subr.mxu0 0.0
    %4977 = vmatpush1.msra.mxu0 0.0
    %4978 = vmatprep.subr.mxu0 0.0
    %4979 = vmatpush1.msra.mxu0 0.0
    %4980 = vmatprep.subr.mxu0 0.0
    %4981 = vmatpush1.msra.mxu0 0.0
    %4982 = vmatprep.subr.mxu0 0.0
    %4983 = vmatpush1.msra.mxu0 0.0
    %4984 = vmatprep.subr.mxu0 0.0
    %4985 = vmatpush1.msra.mxu0 0.0
    %4986 = vmatprep.subr.mxu0 0.0
    %4987 = vmatpush1.msra.mxu0 0.0
    %4988 = vmatprep.subr.mxu0 0.0
    %4989 = vmatpush1.msra.mxu0 0.0
    %4990 = vmatprep.subr.mxu0 0.0
    %4991 = vmatpush1.msra.mxu0 0.0
    %4992 = vmatprep.subr.mxu0 0.0
    %4993 = vmatpush1.msra.mxu0 0.0
    %4994 = vmatprep.subr.mxu0 0.0
    %4995 = vmatpush1.msra.mxu0 0.0
    %4996 = vmatprep.subr.mxu0 0.0
    %4997 = vmatpush1.msra.mxu0 0.0
    %4998 = vmatprep.subr.mxu0 0.0
    %4999 = vmatpush1.msra.mxu0 0.0
    %5000 = vmatprep.subr.mxu0 0.0
    %5001 = vmatpush1.msra.mxu0 0.0
    %5002 = vmatprep.subr.mxu0 0.0
    %5003 = vmatpush1.msra.mxu0 0.0
    %5004 = vmatprep.subr.mxu0 0.0
    %5005 = vmatpush1.msra.mxu0 0.0
    %5006 = vmatprep.subr.mxu0 0.0
    %5007 = vmatpush1.msra.mxu0 0.0
    %5008 = vmatprep.subr.mxu0 0.0
    %5009 = vmatpush1.msra.mxu0 0.0
    %5010 = vmatprep.subr.mxu0 0.0
    %5011 = vmatpush1.msra.mxu0 0.0
    %5012 = vmatprep.subr.mxu0 0.0
    %5013 = vmatpush1.msra.mxu0 0.0
    %5014 = vmatprep.mubr.f32.mxu0 0.0
    %5015 = vmatmul.mubr.f32.gmra.mrb[0].mxu0 %v4948
    %v5016 = vpop.f32.mrb[0].mxu0
    %v5017 = vadd.f32 0.0, %v5016
    %v5018 = vpop.f32.mrb[0].mxu0
    %5019 = vdwg.mxu0
    %v5020 = vld [vmem:[%s6 + $0xe0] sm:$0xff]
    %5021 = vrot.lane.b32.xlu0 %v4547, 88
    %v5022 = vpop.permute.xlu0 %5021
    %5023 = vrot.lane.b32.xlu0 %v4552, 88
    %v5024 = vpop.permute.xlu0 %5023
    %v5028 = vsel %vm2670, %v4938, 0
    %5030 = vmatprep.subr.mxu0 0.0
    %5031 = vmatpush1.msra.mxu0 %v5022
    %5032 = vmatprep.subr.mxu0 0.0
    %5033 = vmatpush1.msra.mxu0 %v5024
    %5034 = vmatprep.subr.mxu0 0.0
    %5035 = vmatpush1.msra.mxu0 0.0
    %5036 = vmatprep.subr.mxu0 0.0
    %5037 = vmatpush1.msra.mxu0 0.0
    %5038 = vmatprep.subr.mxu0 0.0
    %5039 = vmatpush1.msra.mxu0 0.0
    %5040 = vmatprep.subr.mxu0 0.0
    %5041 = vmatpush1.msra.mxu0 0.0
    %5042 = vmatprep.subr.mxu0 0.0
    %5043 = vmatpush1.msra.mxu0 0.0
    %5044 = vmatprep.subr.mxu0 0.0
    %5045 = vmatpush1.msra.mxu0 0.0
    %5046 = vmatprep.subr.mxu0 0.0
    %5047 = vmatpush1.msra.mxu0 0.0
    %5048 = vmatprep.subr.mxu0 0.0
    %5049 = vmatpush1.msra.mxu0 0.0
    %5050 = vmatprep.subr.mxu0 0.0
    %5051 = vmatpush1.msra.mxu0 0.0
    %5052 = vmatprep.subr.mxu0 0.0
    %5053 = vmatpush1.msra.mxu0 0.0
    %5054 = vmatprep.subr.mxu0 0.0
    %5055 = vmatpush1.msra.mxu0 0.0
    %5056 = vmatprep.subr.mxu0 0.0
    %5057 = vmatpush1.msra.mxu0 0.0
    %5058 = vmatprep.subr.mxu0 0.0
    %5059 = vmatpush1.msra.mxu0 0.0
    %5060 = vmatprep.subr.mxu0 0.0
    %5061 = vmatpush1.msra.mxu0 0.0
    %5062 = vmatprep.subr.mxu0 0.0
    %5063 = vmatpush1.msra.mxu0 0.0
    %5064 = vmatprep.subr.mxu0 0.0
    %5065 = vmatpush1.msra.mxu0 0.0
    %5066 = vmatprep.subr.mxu0 0.0
    %5067 = vmatpush1.msra.mxu0 0.0
    %5068 = vmatprep.subr.mxu0 0.0
    %5069 = vmatpush1.msra.mxu0 0.0
    %5070 = vmatprep.subr.mxu0 0.0
    %5071 = vmatpush1.msra.mxu0 0.0
    %5072 = vmatprep.subr.mxu0 0.0
    %5073 = vmatpush1.msra.mxu0 0.0
    %5074 = vmatprep.subr.mxu0 0.0
    %5075 = vmatpush1.msra.mxu0 0.0
    %5076 = vmatprep.subr.mxu0 0.0
    %5077 = vmatpush1.msra.mxu0 0.0
    %5078 = vmatprep.subr.mxu0 0.0
    %5079 = vmatpush1.msra.mxu0 0.0
    %5080 = vmatprep.subr.mxu0 0.0
    %5081 = vmatpush1.msra.mxu0 0.0
    %5082 = vmatprep.subr.mxu0 0.0
    %5083 = vmatpush1.msra.mxu0 0.0
    %5084 = vmatprep.subr.mxu0 0.0
    %5085 = vmatpush1.msra.mxu0 0.0
    %5086 = vmatprep.subr.mxu0 0.0
    %5087 = vmatpush1.msra.mxu0 0.0
    %5088 = vmatprep.subr.mxu0 0.0
    %5089 = vmatpush1.msra.mxu0 0.0
    %5090 = vmatprep.subr.mxu0 0.0
    %5091 = vmatpush1.msra.mxu0 0.0
    %5092 = vmatprep.subr.mxu0 0.0
    %5093 = vmatpush1.msra.mxu0 0.0
    %5094 = vmatprep.mubr.f32.mxu0 0.0
    %5095 = vmatmul.mubr.f32.gmra.mrb[0].mxu0 %v5028
    %v5096 = vpop.f32.mrb[0].mxu0
    %v5097 = vadd.f32 0.0, %v5096
    %v5098 = vpop.f32.mrb[0].mxu0
    %5099 = vdwg.mxu0
    %v5100 = vld [vmem:[%s6 + $0xe8] sm:$0xff]
    %v5102 = vsel %vm179, %v5097, 0
    %5104 = vmatprep.subr.mxu0 0.0
    %5105 = vmatpush1.msra.mxu0 %v5100
    %5106 = vmatprep.subr.mxu0 0.0
    %5107 = vmatpush1.msra.mxu0 0.0
    %5108 = vmatprep.subr.mxu0 0.0
    %5109 = vmatpush1.msra.mxu0 0.0
    %5110 = vmatprep.subr.mxu0 0.0
    %5111 = vmatpush1.msra.mxu0 0.0
    %5112 = vmatprep.subr.mxu0 0.0
    %5113 = vmatpush1.msra.mxu0 0.0
    %5114 = vmatprep.subr.mxu0 0.0
    %5115 = vmatpush1.msra.mxu0 0.0
    %5116 = vmatprep.subr.mxu0 0.0
    %5117 = vmatpush1.msra.mxu0 0.0
    %5118 = vmatprep.subr.mxu0 0.0
    %5119 = vmatpush1.msra.mxu0 0.0
    %5120 = vmatprep.subr.mxu0 0.0
    %5121 = vmatpush1.msra.mxu0 0.0
    %5122 = vmatprep.subr.mxu0 0.0
    %5123 = vmatpush1.msra.mxu0 0.0
    %5124 = vmatprep.subr.mxu0 0.0
    %5125 = vmatpush1.msra.mxu0 0.0
    %5126 = vmatprep.subr.mxu0 0.0
    %5127 = vmatpush1.msra.mxu0 0.0
    %5128 = vmatprep.subr.mxu0 0.0
    %5129 = vmatpush1.msra.mxu0 0.0
    %5130 = vmatprep.subr.mxu0 0.0
    %5131 = vmatpush1.msra.mxu0 0.0
    %5132 = vmatprep.subr.mxu0 0.0
    %5133 = vmatpush1.msra.mxu0 0.0
    %5134 = vmatprep.subr.mxu0 0.0
    %5135 = vmatpush1.msra.mxu0 0.0
    %5136 = vmatprep.subr.mxu0 0.0
    %5137 = vmatpush1.msra.mxu0 0.0
    %5138 = vmatprep.subr.mxu0 0.0
    %5139 = vmatpush1.msra.mxu0 0.0
    %5140 = vmatprep.subr.mxu0 0.0
    %5141 = vmatpush1.msra.mxu0 0.0
    %5142 = vmatprep.subr.mxu0 0.0
    %5143 = vmatpush1.msra.mxu0 0.0
    %5144 = vmatprep.subr.mxu0 0.0
    %5145 = vmatpush1.msra.mxu0 0.0
    %5146 = vmatprep.subr.mxu0 0.0
    %5147 = vmatpush1.msra.mxu0 0.0
    %5148 = vmatprep.subr.mxu0 0.0
    %5149 = vmatpush1.msra.mxu0 0.0
    %5150 = vmatprep.subr.mxu0 0.0
    %5151 = vmatpush1.msra.mxu0 0.0
    %5152 = vmatprep.subr.mxu0 0.0
    %5153 = vmatpush1.msra.mxu0 0.0
    %5154 = vmatprep.subr.mxu0 0.0
    %5155 = vmatpush1.msra.mxu0 0.0
    %5156 = vmatprep.subr.mxu0 0.0
    %5157 = vmatpush1.msra.mxu0 0.0
    %5158 = vmatprep.subr.mxu0 0.0
    %5159 = vmatpush1.msra.mxu0 0.0
    %5160 = vmatprep.subr.mxu0 0.0
    %5161 = vmatpush1.msra.mxu0 0.0
    %5162 = vmatprep.subr.mxu0 0.0
    %5163 = vmatpush1.msra.mxu0 0.0
    %5164 = vmatprep.subr.mxu0 0.0
    %5165 = vmatpush1.msra.mxu0 0.0
    %5166 = vmatprep.subr.mxu0 0.0
    %5167 = vmatpush1.msra.mxu0 0.0
    %5168 = vmatprep.mubr.f32.mxu0 0.0
    %5169 = vmatmul.mubr.f32.gmra.mrb[0].mxu0 %v5102
    %v5170 = vpop.f32.mrb[0].mxu0
    %v5171 = vadd.f32 0.0, %v5170
    %v5172 = vpop.f32.mrb[0].mxu0
    %5173 = vdwg.mxu0
    %v5175 = vsel %vm179, %v5017, 0
    %5177 = vmatprep.subr.mxu0 0.0
    %5178 = vmatpush1.msra.mxu0 %v5020
    %5179 = vmatprep.subr.mxu0 0.0
    %5180 = vmatpush1.msra.mxu0 0.0
    %5181 = vmatprep.subr.mxu0 0.0
    %5182 = vmatpush1.msra.mxu0 0.0
    %5183 = vmatprep.subr.mxu0 0.0
    %5184 = vmatpush1.msra.mxu0 0.0
    %5185 = vmatprep.subr.mxu0 0.0
    %5186 = vmatpush1.msra.mxu0 0.0
    %5187 = vmatprep.subr.mxu0 0.0
    %5188 = vmatpush1.msra.mxu0 0.0
    %5189 = vmatprep.subr.mxu0 0.0
    %5190 = vmatpush1.msra.mxu0 0.0
    %5191 = vmatprep.subr.mxu0 0.0
    %5192 = vmatpush1.msra.mxu0 0.0
    %5193 = vmatprep.subr.mxu0 0.0
    %5194 = vmatpush1.msra.mxu0 0.0
    %5195 = vmatprep.subr.mxu0 0.0
    %5196 = vmatpush1.msra.mxu0 0.0
    %5197 = vmatprep.subr.mxu0 0.0
    %5198 = vmatpush1.msra.mxu0 0.0
    %5199 = vmatprep.subr.mxu0 0.0
    %5200 = vmatpush1.msra.mxu0 0.0
    %5201 = vmatprep.subr.mxu0 0.0
    %5202 = vmatpush1.msra.mxu0 0.0
    %5203 = vmatprep.subr.mxu0 0.0
    %5204 = vmatpush1.msra.mxu0 0.0
    %5205 = vmatprep.subr.mxu0 0.0
    %5206 = vmatpush1.msra.mxu0 0.0
    %5207 = vmatprep.subr.mxu0 0.0
    %5208 = vmatpush1.msra.mxu0 0.0
    %5209 = vmatprep.subr.mxu0 0.0
    %5210 = vmatpush1.msra.mxu0 0.0
    %5211 = vmatprep.subr.mxu0 0.0
    %5212 = vmatpush1.msra.mxu0 0.0
    %5213 = vmatprep.subr.mxu0 0.0
    %5214 = vmatpush1.msra.mxu0 0.0
    %5215 = vmatprep.subr.mxu0 0.0
    %5216 = vmatpush1.msra.mxu0 0.0
    %5217 = vmatprep.subr.mxu0 0.0
    %5218 = vmatpush1.msra.mxu0 0.0
    %5219 = vmatprep.subr.mxu0 0.0
    %5220 = vmatpush1.msra.mxu0 0.0
    %5221 = vmatprep.subr.mxu0 0.0
    %5222 = vmatpush1.msra.mxu0 0.0
    %5223 = vmatprep.subr.mxu0 0.0
    %5224 = vmatpush1.msra.mxu0 0.0
    %5225 = vmatprep.subr.mxu0 0.0
    %5226 = vmatpush1.msra.mxu0 0.0
    %5227 = vmatprep.subr.mxu0 0.0
    %5228 = vmatpush1.msra.mxu0 0.0
    %5229 = vmatprep.subr.mxu0 0.0
    %5230 = vmatpush1.msra.mxu0 0.0
    %5231 = vmatprep.subr.mxu0 0.0
    %5232 = vmatpush1.msra.mxu0 0.0
    %5233 = vmatprep.subr.mxu0 0.0
    %5234 = vmatpush1.msra.mxu0 0.0
    %5235 = vmatprep.subr.mxu0 0.0
    %5236 = vmatpush1.msra.mxu0 0.0
    %5237 = vmatprep.subr.mxu0 0.0
    %5238 = vmatpush1.msra.mxu0 0.0
    %5239 = vmatprep.subr.mxu0 0.0
    %5240 = vmatpush1.msra.mxu0 0.0
    %5241 = vmatprep.mubr.f32.mxu0 0.0
    %5242 = vmatmul.mubr.f32.gmra.mrb[0].mxu0 %v5175
    %v5243 = vpop.f32.mrb[0].mxu0
    %v5244 = vadd.f32 %v5171, %v5243
    %v5245 = vpop.f32.mrb[0].mxu0
    %5246 = vdwg.mxu0
    %5247 = vrot.lane.b32.xlu0 %v4547, 80
    %v5248 = vpop.permute.xlu0 %5247
    %5249 = vrot.lane.b32.xlu0 %v4552, 80
    %v5250 = vpop.permute.xlu0 %5249
    %v5254 = vsel %vm2670, %v4939, 0
    %5256 = vmatprep.subr.mxu0 0.0
    %5257 = vmatpush1.msra.mxu0 %v5248
    %5258 = vmatprep.subr.mxu0 0.0
    %5259 = vmatpush1.msra.mxu0 %v5250
    %5260 = vmatprep.subr.mxu0 0.0
    %5261 = vmatpush1.msra.mxu0 0.0
    %5262 = vmatprep.subr.mxu0 0.0
    %5263 = vmatpush1.msra.mxu0 0.0
    %5264 = vmatprep.subr.mxu0 0.0
    %5265 = vmatpush1.msra.mxu0 0.0
    %5266 = vmatprep.subr.mxu0 0.0
    %5267 = vmatpush1.msra.mxu0 0.0
    %5268 = vmatprep.subr.mxu0 0.0
    %5269 = vmatpush1.msra.mxu0 0.0
    %5270 = vmatprep.subr.mxu0 0.0
    %5271 = vmatpush1.msra.mxu0 0.0
    %5272 = vmatprep.subr.mxu0 0.0
    %5273 = vmatpush1.msra.mxu0 0.0
    %5274 = vmatprep.subr.mxu0 0.0
    %5275 = vmatpush1.msra.mxu0 0.0
    %5276 = vmatprep.subr.mxu0 0.0
    %5277 = vmatpush1.msra.mxu0 0.0
    %5278 = vmatprep.subr.mxu0 0.0
    %5279 = vmatpush1.msra.mxu0 0.0
    %5280 = vmatprep.subr.mxu0 0.0
    %5281 = vmatpush1.msra.mxu0 0.0
    %5282 = vmatprep.subr.mxu0 0.0
    %5283 = vmatpush1.msra.mxu0 0.0
    %5284 = vmatprep.subr.mxu0 0.0
    %5285 = vmatpush1.msra.mxu0 0.0
    %5286 = vmatprep.subr.mxu0 0.0
    %5287 = vmatpush1.msra.mxu0 0.0
    %5288 = vmatprep.subr.mxu0 0.0
    %5289 = vmatpush1.msra.mxu0 0.0
    %5290 = vmatprep.subr.mxu0 0.0
    %5291 = vmatpush1.msra.mxu0 0.0
    %5292 = vmatprep.subr.mxu0 0.0
    %5293 = vmatpush1.msra.mxu0 0.0
    %5294 = vmatprep.subr.mxu0 0.0
    %5295 = vmatpush1.msra.mxu0 0.0
    %5296 = vmatprep.subr.mxu0 0.0
    %5297 = vmatpush1.msra.mxu0 0.0
    %5298 = vmatprep.subr.mxu0 0.0
    %5299 = vmatpush1.msra.mxu0 0.0
    %5300 = vmatprep.subr.mxu0 0.0
    %5301 = vmatpush1.msra.mxu0 0.0
    %5302 = vmatprep.subr.mxu0 0.0
    %5303 = vmatpush1.msra.mxu0 0.0
    %5304 = vmatprep.subr.mxu0 0.0
    %5305 = vmatpush1.msra.mxu0 0.0
    %5306 = vmatprep.subr.mxu0 0.0
    %5307 = vmatpush1.msra.mxu0 0.0
    %5308 = vmatprep.subr.mxu0 0.0
    %5309 = vmatpush1.msra.mxu0 0.0
    %5310 = vmatprep.subr.mxu0 0.0
    %5311 = vmatpush1.msra.mxu0 0.0
    %5312 = vmatprep.subr.mxu0 0.0
    %5313 = vmatpush1.msra.mxu0 0.0
    %5314 = vmatprep.subr.mxu0 0.0
    %5315 = vmatpush1.msra.mxu0 0.0
    %5316 = vmatprep.subr.mxu0 0.0
    %5317 = vmatpush1.msra.mxu0 0.0
    %5318 = vmatprep.subr.mxu0 0.0
    %5319 = vmatpush1.msra.mxu0 0.0
    %5320 = vmatprep.mubr.f32.mxu0 0.0
    %5321 = vmatmul.mubr.f32.gmra.mrb[0].mxu0 %v5254
    %v5322 = vpop.f32.mrb[0].mxu0
    %v5323 = vadd.f32 0.0, %v5322
    %v5324 = vpop.f32.mrb[0].mxu0
    %5325 = vdwg.mxu0
    %v5326 = vld [vmem:[%s6 + $0xf0] sm:$0xff]
    %v5328 = vsel %vm179, %v5323, 0
    %5330 = vmatprep.subr.mxu0 0.0
    %5331 = vmatpush1.msra.mxu0 %v5326
    %5332 = vmatprep.subr.mxu0 0.0
    %5333 = vmatpush1.msra.mxu0 0.0
    %5334 = vmatprep.subr.mxu0 0.0
    %5335 = vmatpush1.msra.mxu0 0.0
    %5336 = vmatprep.subr.mxu0 0.0
    %5337 = vmatpush1.msra.mxu0 0.0
    %5338 = vmatprep.subr.mxu0 0.0
    %5339 = vmatpush1.msra.mxu0 0.0
    %5340 = vmatprep.subr.mxu0 0.0
    %5341 = vmatpush1.msra.mxu0 0.0
    %5342 = vmatprep.subr.mxu0 0.0
    %5343 = vmatpush1.msra.mxu0 0.0
    %5344 = vmatprep.subr.mxu0 0.0
    %5345 = vmatpush1.msra.mxu0 0.0
    %5346 = vmatprep.subr.mxu0 0.0
    %5347 = vmatpush1.msra.mxu0 0.0
    %5348 = vmatprep.subr.mxu0 0.0
    %5349 = vmatpush1.msra.mxu0 0.0
    %5350 = vmatprep.subr.mxu0 0.0
    %5351 = vmatpush1.msra.mxu0 0.0
    %5352 = vmatprep.subr.mxu0 0.0
    %5353 = vmatpush1.msra.mxu0 0.0
    %5354 = vmatprep.subr.mxu0 0.0
    %5355 = vmatpush1.msra.mxu0 0.0
    %5356 = vmatprep.subr.mxu0 0.0
    %5357 = vmatpush1.msra.mxu0 0.0
    %5358 = vmatprep.subr.mxu0 0.0
    %5359 = vmatpush1.msra.mxu0 0.0
    %5360 = vmatprep.subr.mxu0 0.0
    %5361 = vmatpush1.msra.mxu0 0.0
    %5362 = vmatprep.subr.mxu0 0.0
    %5363 = vmatpush1.msra.mxu0 0.0
    %5364 = vmatprep.subr.mxu0 0.0
    %5365 = vmatpush1.msra.mxu0 0.0
    %5366 = vmatprep.subr.mxu0 0.0
    %5367 = vmatpush1.msra.mxu0 0.0
    %5368 = vmatprep.subr.mxu0 0.0
    %5369 = vmatpush1.msra.mxu0 0.0
    %5370 = vmatprep.subr.mxu0 0.0
    %5371 = vmatpush1.msra.mxu0 0.0
    %5372 = vmatprep.subr.mxu0 0.0
    %5373 = vmatpush1.msra.mxu0 0.0
    %5374 = vmatprep.subr.mxu0 0.0
    %5375 = vmatpush1.msra.mxu0 0.0
    %5376 = vmatprep.subr.mxu0 0.0
    %5377 = vmatpush1.msra.mxu0 0.0
    %5378 = vmatprep.subr.mxu0 0.0
    %5379 = vmatpush1.msra.mxu0 0.0
    %5380 = vmatprep.subr.mxu0 0.0
    %5381 = vmatpush1.msra.mxu0 0.0
    %5382 = vmatprep.subr.mxu0 0.0
    %5383 = vmatpush1.msra.mxu0 0.0
    %5384 = vmatprep.subr.mxu0 0.0
    %5385 = vmatpush1.msra.mxu0 0.0
    %5386 = vmatprep.subr.mxu0 0.0
    %5387 = vmatpush1.msra.mxu0 0.0
    %5388 = vmatprep.subr.mxu0 0.0
    %5389 = vmatpush1.msra.mxu0 0.0
    %5390 = vmatprep.subr.mxu0 0.0
    %5391 = vmatpush1.msra.mxu0 0.0
    %5392 = vmatprep.subr.mxu0 0.0
    %5393 = vmatpush1.msra.mxu0 0.0
    %5394 = vmatprep.mubr.f32.mxu0 0.0
    %5395 = vmatmul.mubr.f32.gmra.mrb[0].mxu0 %v5328
    %v5396 = vpop.f32.mrb[0].mxu0
    %v5397 = vadd.f32 0.0, %v5396
    %v5398 = vpop.f32.mrb[0].mxu0
    %5399 = vdwg.mxu0
    %v5400 = vadd.f32 %v5244, %v5397
    %5401 = vrot.lane.b32.xlu0 %v4547, 72
    %v5402 = vpop.permute.xlu0 %5401
    %5403 = vrot.lane.b32.xlu0 %v4552, 72
    %v5404 = vpop.permute.xlu0 %5403
    %v5408 = vsel %vm2670, %v4940, 0
    %5410 = vmatprep.subr.mxu0 0.0
    %5411 = vmatpush1.msra.mxu0 %v5402
    %5412 = vmatprep.subr.mxu0 0.0
    %5413 = vmatpush1.msra.mxu0 %v5404
    %5414 = vmatprep.subr.mxu0 0.0
    %5415 = vmatpush1.msra.mxu0 0.0
    %5416 = vmatprep.subr.mxu0 0.0
    %5417 = vmatpush1.msra.mxu0 0.0
    %5418 = vmatprep.subr.mxu0 0.0
    %5419 = vmatpush1.msra.mxu0 0.0
    %5420 = vmatprep.subr.mxu0 0.0
    %5421 = vmatpush1.msra.mxu0 0.0
    %5422 = vmatprep.subr.mxu0 0.0
    %5423 = vmatpush1.msra.mxu0 0.0
    %5424 = vmatprep.subr.mxu0 0.0
    %5425 = vmatpush1.msra.mxu0 0.0
    %5426 = vmatprep.subr.mxu0 0.0
    %5427 = vmatpush1.msra.mxu0 0.0
    %5428 = vmatprep.subr.mxu0 0.0
    %5429 = vmatpush1.msra.mxu0 0.0
    %5430 = vmatprep.subr.mxu0 0.0
    %5431 = vmatpush1.msra.mxu0 0.0
    %5432 = vmatprep.subr.mxu0 0.0
    %5433 = vmatpush1.msra.mxu0 0.0
    %5434 = vmatprep.subr.mxu0 0.0
    %5435 = vmatpush1.msra.mxu0 0.0
    %5436 = vmatprep.subr.mxu0 0.0
    %5437 = vmatpush1.msra.mxu0 0.0
    %5438 = vmatprep.subr.mxu0 0.0
    %5439 = vmatpush1.msra.mxu0 0.0
    %5440 = vmatprep.subr.mxu0 0.0
    %5441 = vmatpush1.msra.mxu0 0.0
    %5442 = vmatprep.subr.mxu0 0.0
    %5443 = vmatpush1.msra.mxu0 0.0
    %5444 = vmatprep.subr.mxu0 0.0
    %5445 = vmatpush1.msra.mxu0 0.0
    %5446 = vmatprep.subr.mxu0 0.0
    %5447 = vmatpush1.msra.mxu0 0.0
    %5448 = vmatprep.subr.mxu0 0.0
    %5449 = vmatpush1.msra.mxu0 0.0
    %5450 = vmatprep.subr.mxu0 0.0
    %5451 = vmatpush1.msra.mxu0 0.0
    %5452 = vmatprep.subr.mxu0 0.0
    %5453 = vmatpush1.msra.mxu0 0.0
    %5454 = vmatprep.subr.mxu0 0.0
    %5455 = vmatpush1.msra.mxu0 0.0
    %5456 = vmatprep.subr.mxu0 0.0
    %5457 = vmatpush1.msra.mxu0 0.0
    %5458 = vmatprep.subr.mxu0 0.0
    %5459 = vmatpush1.msra.mxu0 0.0
    %5460 = vmatprep.subr.mxu0 0.0
    %5461 = vmatpush1.msra.mxu0 0.0
    %5462 = vmatprep.subr.mxu0 0.0
    %5463 = vmatpush1.msra.mxu0 0.0
    %5464 = vmatprep.subr.mxu0 0.0
    %5465 = vmatpush1.msra.mxu0 0.0
    %5466 = vmatprep.subr.mxu0 0.0
    %5467 = vmatpush1.msra.mxu0 0.0
    %5468 = vmatprep.subr.mxu0 0.0
    %5469 = vmatpush1.msra.mxu0 0.0
    %5470 = vmatprep.subr.mxu0 0.0
    %5471 = vmatpush1.msra.mxu0 0.0
    %5472 = vmatprep.subr.mxu0 0.0
    %5473 = vmatpush1.msra.mxu0 0.0
    %5474 = vmatprep.mubr.f32.mxu0 0.0
    %5475 = vmatmul.mubr.f32.gmra.mrb[0].mxu0 %v5408
    %v5476 = vpop.f32.mrb[0].mxu0
    %v5477 = vadd.f32 0.0, %v5476
    %v5478 = vpop.f32.mrb[0].mxu0
    %5479 = vdwg.mxu0
    %v5480 = vld [vmem:[%s6 + $0xf8] sm:$0xff]
    %v5482 = vsel %vm179, %v5477, 0
    %5484 = vmatprep.subr.mxu0 0.0
    %5485 = vmatpush1.msra.mxu0 %v5480
    %5486 = vmatprep.subr.mxu0 0.0
    %5487 = vmatpush1.msra.mxu0 0.0
    %5488 = vmatprep.subr.mxu0 0.0
    %5489 = vmatpush1.msra.mxu0 0.0
    %5490 = vmatprep.subr.mxu0 0.0
    %5491 = vmatpush1.msra.mxu0 0.0
    %5492 = vmatprep.subr.mxu0 0.0
    %5493 = vmatpush1.msra.mxu0 0.0
    %5494 = vmatprep.subr.mxu0 0.0
    %5495 = vmatpush1.msra.mxu0 0.0
    %5496 = vmatprep.subr.mxu0 0.0
    %5497 = vmatpush1.msra.mxu0 0.0
    %5498 = vmatprep.subr.mxu0 0.0
    %5499 = vmatpush1.msra.mxu0 0.0
    %5500 = vmatprep.subr.mxu0 0.0
    %5501 = vmatpush1.msra.mxu0 0.0
    %5502 = vmatprep.subr.mxu0 0.0
    %5503 = vmatpush1.msra.mxu0 0.0
    %5504 = vmatprep.subr.mxu0 0.0
    %5505 = vmatpush1.msra.mxu0 0.0
    %5506 = vmatprep.subr.mxu0 0.0
    %5507 = vmatpush1.msra.mxu0 0.0
    %5508 = vmatprep.subr.mxu0 0.0
    %5509 = vmatpush1.msra.mxu0 0.0
    %5510 = vmatprep.subr.mxu0 0.0
    %5511 = vmatpush1.msra.mxu0 0.0
    %5512 = vmatprep.subr.mxu0 0.0
    %5513 = vmatpush1.msra.mxu0 0.0
    %5514 = vmatprep.subr.mxu0 0.0
    %5515 = vmatpush1.msra.mxu0 0.0
    %5516 = vmatprep.subr.mxu0 0.0
    %5517 = vmatpush1.msra.mxu0 0.0
    %5518 = vmatprep.subr.mxu0 0.0
    %5519 = vmatpush1.msra.mxu0 0.0
    %5520 = vmatprep.subr.mxu0 0.0
    %5521 = vmatpush1.msra.mxu0 0.0
    %5522 = vmatprep.subr.mxu0 0.0
    %5523 = vmatpush1.msra.mxu0 0.0
    %5524 = vmatprep.subr.mxu0 0.0
    %5525 = vmatpush1.msra.mxu0 0.0
    %5526 = vmatprep.subr.mxu0 0.0
    %5527 = vmatpush1.msra.mxu0 0.0
    %5528 = vmatprep.subr.mxu0 0.0
    %5529 = vmatpush1.msra.mxu0 0.0
    %5530 = vmatprep.subr.mxu0 0.0
    %5531 = vmatpush1.msra.mxu0 0.0
    %5532 = vmatprep.subr.mxu0 0.0
    %5533 = vmatpush1.msra.mxu0 0.0
    %5534 = vmatprep.subr.mxu0 0.0
    %5535 = vmatpush1.msra.mxu0 0.0
    %5536 = vmatprep.subr.mxu0 0.0
    %5537 = vmatpush1.msra.mxu0 0.0
    %5538 = vmatprep.subr.mxu0 0.0
    %5539 = vmatpush1.msra.mxu0 0.0
    %5540 = vmatprep.subr.mxu0 0.0
    %5541 = vmatpush1.msra.mxu0 0.0
    %5542 = vmatprep.subr.mxu0 0.0
    %5543 = vmatpush1.msra.mxu0 0.0
    %5544 = vmatprep.subr.mxu0 0.0
    %5545 = vmatpush1.msra.mxu0 0.0
    %5546 = vmatprep.subr.mxu0 0.0
    %5547 = vmatpush1.msra.mxu0 0.0
    %5548 = vmatprep.mubr.f32.mxu0 0.0
    %5549 = vmatmul.mubr.f32.gmra.mrb[0].mxu0 %v5482
    %v5550 = vpop.f32.mrb[0].mxu0
    %v5551 = vadd.f32 0.0, %v5550
    %v5552 = vpop.f32.mrb[0].mxu0
    %5553 = vdwg.mxu0
    %v5554 = vadd.f32 %v5400, %v5551
    %s5555 = scalar_lea.vmem %s5, 1
    %v5556 = vld [vmem:[%s5555] sm:$0x1]
    %v5558 = vlaneseq
    %v5559 = vshrl.u32 %v5558, 7
    %v5560 = vsub.s32 0, %v5559
    %v5561 = vrot.slane %v5556, %v5560
    %v5564 = vsel %vm179, %v4456, 0
    %v5567 = vsel %vm179, %v4557, 0
    %v5570 = vsel %vm179, %v4562, 0
    %5572 = vmatprep.subr.mxu0 0.0
    %5573 = vmatpush1.xpose.msra.mxu0 %v5567
    %5574 = vmatprep.subr.mxu0 0.0
    %5575 = vmatpush1.xpose.msra.mxu0 %v5570
    %5576 = vmatprep.subr.mxu0 0.0
    %5577 = vmatpush1.xpose.msra.mxu0 0.0
    %5578 = vmatprep.subr.mxu0 0.0
    %5579 = vmatpush1.xpose.msra.mxu0 0.0
    %5580 = vmatprep.subr.mxu0 0.0
    %5581 = vmatpush1.xpose.msra.mxu0 0.0
    %5582 = vmatprep.subr.mxu0 0.0
    %5583 = vmatpush1.xpose.msra.mxu0 0.0
    %5584 = vmatprep.subr.mxu0 0.0
    %5585 = vmatpush1.xpose.msra.mxu0 0.0
    %5586 = vmatprep.subr.mxu0 0.0
    %5587 = vmatpush1.xpose.msra.mxu0 0.0
    %5588 = vmatprep.subr.mxu0 0.0
    %5589 = vmatpush1.xpose.msra.mxu0 0.0
    %5590 = vmatprep.subr.mxu0 0.0
    %5591 = vmatpush1.xpose.msra.mxu0 0.0
    %5592 = vmatprep.subr.mxu0 0.0
    %5593 = vmatpush1.xpose.msra.mxu0 0.0
    %5594 = vmatprep.subr.mxu0 0.0
    %5595 = vmatpush1.xpose.msra.mxu0 0.0
    %5596 = vmatprep.subr.mxu0 0.0
    %5597 = vmatpush1.xpose.msra.mxu0 0.0
    %5598 = vmatprep.subr.mxu0 0.0
    %5599 = vmatpush1.xpose.msra.mxu0 0.0
    %5600 = vmatprep.subr.mxu0 0.0
    %5601 = vmatpush1.xpose.msra.mxu0 0.0
    %5602 = vmatprep.subr.mxu0 0.0
    %5603 = vmatpush1.xpose.msra.mxu0 0.0
    %5604 = vmatprep.subr.mxu0 0.0
    %5605 = vmatpush1.xpose.msra.mxu0 0.0
    %5606 = vmatprep.subr.mxu0 0.0
    %5607 = vmatpush1.xpose.msra.mxu0 0.0
    %5608 = vmatprep.subr.mxu0 0.0
    %5609 = vmatpush1.xpose.msra.mxu0 0.0
    %5610 = vmatprep.subr.mxu0 0.0
    %5611 = vmatpush1.xpose.msra.mxu0 0.0
    %5612 = vmatprep.subr.mxu0 0.0
    %5613 = vmatpush1.xpose.msra.mxu0 0.0
    %5614 = vmatprep.subr.mxu0 0.0
    %5615 = vmatpush1.xpose.msra.mxu0 0.0
    %5616 = vmatprep.subr.mxu0 0.0
    %5617 = vmatpush1.xpose.msra.mxu0 0.0
    %5618 = vmatprep.subr.mxu0 0.0
    %5619 = vmatpush1.xpose.msra.mxu0 0.0
    %5620 = vmatprep.subr.mxu0 0.0
    %5621 = vmatpush1.xpose.msra.mxu0 0.0
    %5622 = vmatprep.subr.mxu0 0.0
    %5623 = vmatpush1.xpose.msra.mxu0 0.0
    %5624 = vmatprep.subr.mxu0 0.0
    %5625 = vmatpush1.xpose.msra.mxu0 0.0
    %5626 = vmatprep.subr.mxu0 0.0
    %5627 = vmatpush1.xpose.msra.mxu0 0.0
    %5628 = vmatprep.subr.mxu0 0.0
    %5629 = vmatpush1.xpose.msra.mxu0 0.0
    %5630 = vmatprep.subr.mxu0 0.0
    %5631 = vmatpush1.xpose.msra.mxu0 0.0
    %5632 = vmatprep.subr.mxu0 0.0
    %5633 = vmatpush1.xpose.msra.mxu0 0.0
    %5634 = vmatprep.subr.mxu0 0.0
    %5635 = vmatpush1.xpose.msra.mxu0 0.0
    %5636 = vmatprep.mubr.f32.mxu0 0.0
    %5637 = vmatmul.mubr.f32.gmra.mrb[0].mxu0 %v5564
    %v5638 = vpop.f32.mrb[0].mxu0
    %v5639 = vadd.f32 %v5561, %v5638
    %v5640 = vpop.f32.mrb[0].mxu0
    %5641 = vdwg.mxu0
    %5642 = vrot.lane.b32.xlu0 %v4456, 120
    %v5643 = vpop.permute.xlu0 %5642
    %5644 = vrot.lane.b32.xlu0 %v4557, 120
    %v5645 = vpop.permute.xlu0 %5644
    %5646 = vrot.lane.b32.xlu0 %v4562, 120
    %v5647 = vpop.permute.xlu0 %5646
    %v5648 = vsel %vm179, %v5643, 0
    %v5650 = vsel %vm179, %v5645, 0
    %v5652 = vsel %vm179, %v5647, 0
    %5654 = vmatprep.subr.mxu0 0.0
    %5655 = vmatpush1.xpose.msra.mxu0 %v5650
    %5656 = vmatprep.subr.mxu0 0.0
    %5657 = vmatpush1.xpose.msra.mxu0 %v5652
    %5658 = vmatprep.subr.mxu0 0.0
    %5659 = vmatpush1.xpose.msra.mxu0 0.0
    %5660 = vmatprep.subr.mxu0 0.0
    %5661 = vmatpush1.xpose.msra.mxu0 0.0
    %5662 = vmatprep.subr.mxu0 0.0
    %5663 = vmatpush1.xpose.msra.mxu0 0.0
    %5664 = vmatprep.subr.mxu0 0.0
    %5665 = vmatpush1.xpose.msra.mxu0 0.0
    %5666 = vmatprep.subr.mxu0 0.0
    %5667 = vmatpush1.xpose.msra.mxu0 0.0
    %5668 = vmatprep.subr.mxu0 0.0
    %5669 = vmatpush1.xpose.msra.mxu0 0.0
    %5670 = vmatprep.subr.mxu0 0.0
    %5671 = vmatpush1.xpose.msra.mxu0 0.0
    %5672 = vmatprep.subr.mxu0 0.0
    %5673 = vmatpush1.xpose.msra.mxu0 0.0
    %5674 = vmatprep.subr.mxu0 0.0
    %5675 = vmatpush1.xpose.msra.mxu0 0.0
    %5676 = vmatprep.subr.mxu0 0.0
    %5677 = vmatpush1.xpose.msra.mxu0 0.0
    %5678 = vmatprep.subr.mxu0 0.0
    %5679 = vmatpush1.xpose.msra.mxu0 0.0
    %5680 = vmatprep.subr.mxu0 0.0
    %5681 = vmatpush1.xpose.msra.mxu0 0.0
    %5682 = vmatprep.subr.mxu0 0.0
    %5683 = vmatpush1.xpose.msra.mxu0 0.0
    %5684 = vmatprep.subr.mxu0 0.0
    %5685 = vmatpush1.xpose.msra.mxu0 0.0
    %5686 = vmatprep.subr.mxu0 0.0
    %5687 = vmatpush1.xpose.msra.mxu0 0.0
    %5688 = vmatprep.subr.mxu0 0.0
    %5689 = vmatpush1.xpose.msra.mxu0 0.0
    %5690 = vmatprep.subr.mxu0 0.0
    %5691 = vmatpush1.xpose.msra.mxu0 0.0
    %5692 = vmatprep.subr.mxu0 0.0
    %5693 = vmatpush1.xpose.msra.mxu0 0.0
    %5694 = vmatprep.subr.mxu0 0.0
    %5695 = vmatpush1.xpose.msra.mxu0 0.0
    %5696 = vmatprep.subr.mxu0 0.0
    %5697 = vmatpush1.xpose.msra.mxu0 0.0
    %5698 = vmatprep.subr.mxu0 0.0
    %5699 = vmatpush1.xpose.msra.mxu0 0.0
    %5700 = vmatprep.subr.mxu0 0.0
    %5701 = vmatpush1.xpose.msra.mxu0 0.0
    %5702 = vmatprep.subr.mxu0 0.0
    %5703 = vmatpush1.xpose.msra.mxu0 0.0
    %5704 = vmatprep.subr.mxu0 0.0
    %5705 = vmatpush1.xpose.msra.mxu0 0.0
    %5706 = vmatprep.subr.mxu0 0.0
    %5707 = vmatpush1.xpose.msra.mxu0 0.0
    %5708 = vmatprep.subr.mxu0 0.0
    %5709 = vmatpush1.xpose.msra.mxu0 0.0
    %5710 = vmatprep.subr.mxu0 0.0
    %5711 = vmatpush1.xpose.msra.mxu0 0.0
    %5712 = vmatprep.subr.mxu0 0.0
    %5713 = vmatpush1.xpose.msra.mxu0 0.0
    %5714 = vmatprep.subr.mxu0 0.0
    %5715 = vmatpush1.xpose.msra.mxu0 0.0
    %5716 = vmatprep.subr.mxu0 0.0
    %5717 = vmatpush1.xpose.msra.mxu0 0.0
    %5718 = vmatprep.mubr.f32.mxu0 0.0
    %5719 = vmatmul.mubr.f32.gmra.mrb[0].mxu0 %v5648
    %v5720 = vpop.f32.mrb[0].mxu0
    %v5721 = vadd.f32 %v5561, %v5720
    %v5722 = vpop.f32.mrb[0].mxu0
    %5723 = vdwg.mxu0
    %5724 = vrot.lane.b32.xlu0 %v4456, 112
    %v5725 = vpop.permute.xlu0 %5724
    %5726 = vrot.lane.b32.xlu0 %v4557, 112
    %v5727 = vpop.permute.xlu0 %5726
    %5728 = vrot.lane.b32.xlu0 %v4562, 112
    %v5729 = vpop.permute.xlu0 %5728
    %v5730 = vsel %vm179, %v5725, 0
    %v5732 = vsel %vm179, %v5727, 0
    %v5734 = vsel %vm179, %v5729, 0
    %5736 = vmatprep.subr.mxu0 0.0
    %5737 = vmatpush1.xpose.msra.mxu0 %v5732
    %5738 = vmatprep.subr.mxu0 0.0
    %5739 = vmatpush1.xpose.msra.mxu0 %v5734
    %5740 = vmatprep.subr.mxu0 0.0
    %5741 = vmatpush1.xpose.msra.mxu0 0.0
    %5742 = vmatprep.subr.mxu0 0.0
    %5743 = vmatpush1.xpose.msra.mxu0 0.0
    %5744 = vmatprep.subr.mxu0 0.0
    %5745 = vmatpush1.xpose.msra.mxu0 0.0
    %5746 = vmatprep.subr.mxu0 0.0
    %5747 = vmatpush1.xpose.msra.mxu0 0.0
    %5748 = vmatprep.subr.mxu0 0.0
    %5749 = vmatpush1.xpose.msra.mxu0 0.0
    %5750 = vmatprep.subr.mxu0 0.0
    %5751 = vmatpush1.xpose.msra.mxu0 0.0
    %5752 = vmatprep.subr.mxu0 0.0
    %5753 = vmatpush1.xpose.msra.mxu0 0.0
    %5754 = vmatprep.subr.mxu0 0.0
    %5755 = vmatpush1.xpose.msra.mxu0 0.0
    %5756 = vmatprep.subr.mxu0 0.0
    %5757 = vmatpush1.xpose.msra.mxu0 0.0
    %5758 = vmatprep.subr.mxu0 0.0
    %5759 = vmatpush1.xpose.msra.mxu0 0.0
    %5760 = vmatprep.subr.mxu0 0.0
    %5761 = vmatpush1.xpose.msra.mxu0 0.0
    %5762 = vmatprep.subr.mxu0 0.0
    %5763 = vmatpush1.xpose.msra.mxu0 0.0
    %5764 = vmatprep.subr.mxu0 0.0
    %5765 = vmatpush1.xpose.msra.mxu0 0.0
    %5766 = vmatprep.subr.mxu0 0.0
    %5767 = vmatpush1.xpose.msra.mxu0 0.0
    %5768 = vmatprep.subr.mxu0 0.0
    %5769 = vmatpush1.xpose.msra.mxu0 0.0
    %5770 = vmatprep.subr.mxu0 0.0
    %5771 = vmatpush1.xpose.msra.mxu0 0.0
    %5772 = vmatprep.subr.mxu0 0.0
    %5773 = vmatpush1.xpose.msra.mxu0 0.0
    %5774 = vmatprep.subr.mxu0 0.0
    %5775 = vmatpush1.xpose.msra.mxu0 0.0
    %5776 = vmatprep.subr.mxu0 0.0
    %5777 = vmatpush1.xpose.msra.mxu0 0.0
    %5778 = vmatprep.subr.mxu0 0.0
    %5779 = vmatpush1.xpose.msra.mxu0 0.0
    %5780 = vmatprep.subr.mxu0 0.0
    %5781 = vmatpush1.xpose.msra.mxu0 0.0
    %5782 = vmatprep.subr.mxu0 0.0
    %5783 = vmatpush1.xpose.msra.mxu0 0.0
    %5784 = vmatprep.subr.mxu0 0.0
    %5785 = vmatpush1.xpose.msra.mxu0 0.0
    %5786 = vmatprep.subr.mxu0 0.0
    %5787 = vmatpush1.xpose.msra.mxu0 0.0
    %5788 = vmatprep.subr.mxu0 0.0
    %5789 = vmatpush1.xpose.msra.mxu0 0.0
    %5790 = vmatprep.subr.mxu0 0.0
    %5791 = vmatpush1.xpose.msra.mxu0 0.0
    %5792 = vmatprep.subr.mxu0 0.0
    %5793 = vmatpush1.xpose.msra.mxu0 0.0
    %5794 = vmatprep.subr.mxu0 0.0
    %5795 = vmatpush1.xpose.msra.mxu0 0.0
    %5796 = vmatprep.subr.mxu0 0.0
    %5797 = vmatpush1.xpose.msra.mxu0 0.0
    %5798 = vmatprep.subr.mxu0 0.0
    %5799 = vmatpush1.xpose.msra.mxu0 0.0
    %5800 = vmatprep.mubr.f32.mxu0 0.0
    %5801 = vmatmul.mubr.f32.gmra.mrb[0].mxu0 %v5730
    %v5802 = vpop.f32.mrb[0].mxu0
    %v5803 = vadd.f32 %v5561, %v5802
    %v5804 = vpop.f32.mrb[0].mxu0
    %5805 = vdwg.mxu0
    %5806 = vrot.lane.b32.xlu0 %v4456, 104
    %v5807 = vpop.permute.xlu0 %5806
    %5808 = vrot.lane.b32.xlu0 %v4557, 104
    %v5809 = vpop.permute.xlu0 %5808
    %5810 = vrot.lane.b32.xlu0 %v4562, 104
    %v5811 = vpop.permute.xlu0 %5810
    %v5812 = vsel %vm179, %v5807, 0
    %v5814 = vsel %vm179, %v5809, 0
    %v5816 = vsel %vm179, %v5811, 0
    %5818 = vmatprep.subr.mxu0 0.0
    %5819 = vmatpush1.xpose.msra.mxu0 %v5814
    %5820 = vmatprep.subr.mxu0 0.0
    %5821 = vmatpush1.xpose.msra.mxu0 %v5816
    %5822 = vmatprep.subr.mxu0 0.0
    %5823 = vmatpush1.xpose.msra.mxu0 0.0
    %5824 = vmatprep.subr.mxu0 0.0
    %5825 = vmatpush1.xpose.msra.mxu0 0.0
    %5826 = vmatprep.subr.mxu0 0.0
    %5827 = vmatpush1.xpose.msra.mxu0 0.0
    %5828 = vmatprep.subr.mxu0 0.0
    %5829 = vmatpush1.xpose.msra.mxu0 0.0
    %5830 = vmatprep.subr.mxu0 0.0
    %5831 = vmatpush1.xpose.msra.mxu0 0.0
    %5832 = vmatprep.subr.mxu0 0.0
    %5833 = vmatpush1.xpose.msra.mxu0 0.0
    %5834 = vmatprep.subr.mxu0 0.0
    %5835 = vmatpush1.xpose.msra.mxu0 0.0
    %5836 = vmatprep.subr.mxu0 0.0
    %5837 = vmatpush1.xpose.msra.mxu0 0.0
    %5838 = vmatprep.subr.mxu0 0.0
    %5839 = vmatpush1.xpose.msra.mxu0 0.0
    %5840 = vmatprep.subr.mxu0 0.0
    %5841 = vmatpush1.xpose.msra.mxu0 0.0
    %5842 = vmatprep.subr.mxu0 0.0
    %5843 = vmatpush1.xpose.msra.mxu0 0.0
    %5844 = vmatprep.subr.mxu0 0.0
    %5845 = vmatpush1.xpose.msra.mxu0 0.0
    %5846 = vmatprep.subr.mxu0 0.0
    %5847 = vmatpush1.xpose.msra.mxu0 0.0
    %5848 = vmatprep.subr.mxu0 0.0
    %5849 = vmatpush1.xpose.msra.mxu0 0.0
    %5850 = vmatprep.subr.mxu0 0.0
    %5851 = vmatpush1.xpose.msra.mxu0 0.0
    %5852 = vmatprep.subr.mxu0 0.0
    %5853 = vmatpush1.xpose.msra.mxu0 0.0
    %5854 = vmatprep.subr.mxu0 0.0
    %5855 = vmatpush1.xpose.msra.mxu0 0.0
    %5856 = vmatprep.subr.mxu0 0.0
    %5857 = vmatpush1.xpose.msra.mxu0 0.0
    %5858 = vmatprep.subr.mxu0 0.0
    %5859 = vmatpush1.xpose.msra.mxu0 0.0
    %5860 = vmatprep.subr.mxu0 0.0
    %5861 = vmatpush1.xpose.msra.mxu0 0.0
    %5862 = vmatprep.subr.mxu0 0.0
    %5863 = vmatpush1.xpose.msra.mxu0 0.0
    %5864 = vmatprep.subr.mxu0 0.0
    %5865 = vmatpush1.xpose.msra.mxu0 0.0
    %5866 = vmatprep.subr.mxu0 0.0
    %5867 = vmatpush1.xpose.msra.mxu0 0.0
    %5868 = vmatprep.subr.mxu0 0.0
    %5869 = vmatpush1.xpose.msra.mxu0 0.0
    %5870 = vmatprep.subr.mxu0 0.0
    %5871 = vmatpush1.xpose.msra.mxu0 0.0
    %5872 = vmatprep.subr.mxu0 0.0
    %5873 = vmatpush1.xpose.msra.mxu0 0.0
    %5874 = vmatprep.subr.mxu0 0.0
    %5875 = vmatpush1.xpose.msra.mxu0 0.0
    %5876 = vmatprep.subr.mxu0 0.0
    %5877 = vmatpush1.xpose.msra.mxu0 0.0
    %5878 = vmatprep.subr.mxu0 0.0
    %5879 = vmatpush1.xpose.msra.mxu0 0.0
    %5880 = vmatprep.subr.mxu0 0.0
    %5881 = vmatpush1.xpose.msra.mxu0 0.0
    %5882 = vmatprep.mubr.f32.mxu0 0.0
    %5883 = vmatmul.mubr.f32.gmra.mrb[0].mxu0 %v5812
    %v5884 = vpop.f32.mrb[0].mxu0
    %v5885 = vadd.f32 %v5561, %v5884
    %v5886 = vpop.f32.mrb[0].mxu0
    %5887 = vdwg.mxu0
    %v5888 = vsel %vm2670, %v5639, -inf
    %5889 = vmax.xlane.f32.xlu0 %v5888
    %v5890 = vpop.xlane.xlu0 %5889
    %v5891 = vsel %vm2670, %v5721, -inf
    %5892 = vmax.xlane.f32.xlu0 %v5891
    %v5893 = vpop.xlane.xlu0 %5892
    %v5894 = vsel %vm2670, %v5803, -inf
    %5895 = vmax.xlane.f32.xlu0 %v5894
    %v5896 = vpop.xlane.xlu0 %5895
    %v5897 = vsel %vm2670, %v5885, -inf
    %5898 = vmax.xlane.f32.xlu0 %v5897
    %v5899 = vpop.xlane.xlu0 %5898
    %v5900 = vsub.f32 %v5639, %v5890
    %v5901 = vsub.f32 %v5721, %v5893
    %v5902 = vsub.f32 %v5803, %v5896
    %v5903 = vsub.f32 %v5885, %v5899
    %v5904 = vmul.f32 %v5900, 1.442695
    %v5905 = vpow.pop %v5904
    %v5906 = vmul.f32 %v5901, 1.442695
    %v5907 = vpow.pop %v5906
    %v5908 = vmul.f32 %v5902, 1.442695
    %v5909 = vpow.pop %v5908
    %v5910 = vmul.f32 %v5903, 1.442695
    %v5911 = vpow.pop %v5910
    %v5912 = vsel %vm2670, %v5905, 0.0
    %5913 = vadd.xlane.f32.xlu0 %v5912
    %v5914 = vpop.xlane.xlu0 %5913
    %v5915 = vsel %vm2670, %v5907, 0.0
    %5916 = vadd.xlane.f32.xlu0 %v5915
    %v5917 = vpop.xlane.xlu0 %5916
    %v5918 = vsel %vm2670, %v5909, 0.0
    %5919 = vadd.xlane.f32.xlu0 %v5918
    %v5920 = vpop.xlane.xlu0 %5919
    %v5921 = vsel %vm2670, %v5911, 0.0
    %5922 = vadd.xlane.f32.xlu0 %v5921
    %v5923 = vpop.xlane.xlu0 %5922
    %v5924 = vrcp.pop %v5914
    %v5925 = vrcp.pop %v5917
    %v5926 = vrcp.pop %v5920
    %v5927 = vrcp.pop %v5923
    %v5928 = vmul.f32 %v5905, %v5924
    %v5929 = vmul.f32 %v5907, %v5925
    %v5930 = vmul.f32 %v5909, %v5926
    %v5931 = vmul.f32 %v5911, %v5927
    %5932 = vrot.lane.b32.xlu0 %v4557, 96
    %v5933 = vpop.permute.xlu0 %5932
    %5934 = vrot.lane.b32.xlu0 %v4562, 96
    %v5935 = vpop.permute.xlu0 %5934
    %v5939 = vsel %vm2670, %v5928, 0
    %5941 = vmatprep.subr.mxu0 0.0
    %5942 = vmatpush1.msra.mxu0 %v5933
    %5943 = vmatprep.subr.mxu0 0.0
    %5944 = vmatpush1.msra.mxu0 %v5935
    %5945 = vmatprep.subr.mxu0 0.0
    %5946 = vmatpush1.msra.mxu0 0.0
    %5947 = vmatprep.subr.mxu0 0.0
    %5948 = vmatpush1.msra.mxu0 0.0
    %5949 = vmatprep.subr.mxu0 0.0
    %5950 = vmatpush1.msra.mxu0 0.0
    %5951 = vmatprep.subr.mxu0 0.0
    %5952 = vmatpush1.msra.mxu0 0.0
    %5953 = vmatprep.subr.mxu0 0.0
    %5954 = vmatpush1.msra.mxu0 0.0
    %5955 = vmatprep.subr.mxu0 0.0
    %5956 = vmatpush1.msra.mxu0 0.0
    %5957 = vmatprep.subr.mxu0 0.0
    %5958 = vmatpush1.msra.mxu0 0.0
    %5959 = vmatprep.subr.mxu0 0.0
    %5960 = vmatpush1.msra.mxu0 0.0
    %5961 = vmatprep.subr.mxu0 0.0
    %5962 = vmatpush1.msra.mxu0 0.0
    %5963 = vmatprep.subr.mxu0 0.0
    %5964 = vmatpush1.msra.mxu0 0.0
    %5965 = vmatprep.subr.mxu0 0.0
    %5966 = vmatpush1.msra.mxu0 0.0
    %5967 = vmatprep.subr.mxu0 0.0
    %5968 = vmatpush1.msra.mxu0 0.0
    %5969 = vmatprep.subr.mxu0 0.0
    %5970 = vmatpush1.msra.mxu0 0.0
    %5971 = vmatprep.subr.mxu0 0.0
    %5972 = vmatpush1.msra.mxu0 0.0
    %5973 = vmatprep.subr.mxu0 0.0
    %5974 = vmatpush1.msra.mxu0 0.0
    %5975 = vmatprep.subr.mxu0 0.0
    %5976 = vmatpush1.msra.mxu0 0.0
    %5977 = vmatprep.subr.mxu0 0.0
    %5978 = vmatpush1.msra.mxu0 0.0
    %5979 = vmatprep.subr.mxu0 0.0
    %5980 = vmatpush1.msra.mxu0 0.0
    %5981 = vmatprep.subr.mxu0 0.0
    %5982 = vmatpush1.msra.mxu0 0.0
    %5983 = vmatprep.subr.mxu0 0.0
    %5984 = vmatpush1.msra.mxu0 0.0
    %5985 = vmatprep.subr.mxu0 0.0
    %5986 = vmatpush1.msra.mxu0 0.0
    %5987 = vmatprep.subr.mxu0 0.0
    %5988 = vmatpush1.msra.mxu0 0.0
    %5989 = vmatprep.subr.mxu0 0.0
    %5990 = vmatpush1.msra.mxu0 0.0
    %5991 = vmatprep.subr.mxu0 0.0
    %5992 = vmatpush1.msra.mxu0 0.0
    %5993 = vmatprep.subr.mxu0 0.0
    %5994 = vmatpush1.msra.mxu0 0.0
    %5995 = vmatprep.subr.mxu0 0.0
    %5996 = vmatpush1.msra.mxu0 0.0
    %5997 = vmatprep.subr.mxu0 0.0
    %5998 = vmatpush1.msra.mxu0 0.0
    %5999 = vmatprep.subr.mxu0 0.0
    %6000 = vmatpush1.msra.mxu0 0.0
    %6001 = vmatprep.subr.mxu0 0.0
    %6002 = vmatpush1.msra.mxu0 0.0
    %6003 = vmatprep.subr.mxu0 0.0
    %6004 = vmatpush1.msra.mxu0 0.0
    %6005 = vmatprep.mubr.f32.mxu0 0.0
    %6006 = vmatmul.mubr.f32.gmra.mrb[0].mxu0 %v5939
    %v6007 = vpop.f32.mrb[0].mxu0
    %v6008 = vadd.f32 0.0, %v6007
    %v6009 = vpop.f32.mrb[0].mxu0
    %6010 = vdwg.mxu0
    %6011 = vrot.lane.b32.xlu0 %v4557, 88
    %v6012 = vpop.permute.xlu0 %6011
    %6013 = vrot.lane.b32.xlu0 %v4562, 88
    %v6014 = vpop.permute.xlu0 %6013
    %v6018 = vsel %vm2670, %v5929, 0
    %6020 = vmatprep.subr.mxu0 0.0
    %6021 = vmatpush1.msra.mxu0 %v6012
    %6022 = vmatprep.subr.mxu0 0.0
    %6023 = vmatpush1.msra.mxu0 %v6014
    %6024 = vmatprep.subr.mxu0 0.0
    %6025 = vmatpush1.msra.mxu0 0.0
    %6026 = vmatprep.subr.mxu0 0.0
    %6027 = vmatpush1.msra.mxu0 0.0
    %6028 = vmatprep.subr.mxu0 0.0
    %6029 = vmatpush1.msra.mxu0 0.0
    %6030 = vmatprep.subr.mxu0 0.0
    %6031 = vmatpush1.msra.mxu0 0.0
    %6032 = vmatprep.subr.mxu0 0.0
    %6033 = vmatpush1.msra.mxu0 0.0
    %6034 = vmatprep.subr.mxu0 0.0
    %6035 = vmatpush1.msra.mxu0 0.0
    %6036 = vmatprep.subr.mxu0 0.0
    %6037 = vmatpush1.msra.mxu0 0.0
    %6038 = vmatprep.subr.mxu0 0.0
    %6039 = vmatpush1.msra.mxu0 0.0
    %6040 = vmatprep.subr.mxu0 0.0
    %6041 = vmatpush1.msra.mxu0 0.0
    %6042 = vmatprep.subr.mxu0 0.0
    %6043 = vmatpush1.msra.mxu0 0.0
    %6044 = vmatprep.subr.mxu0 0.0
    %6045 = vmatpush1.msra.mxu0 0.0
    %6046 = vmatprep.subr.mxu0 0.0
    %6047 = vmatpush1.msra.mxu0 0.0
    %6048 = vmatprep.subr.mxu0 0.0
    %6049 = vmatpush1.msra.mxu0 0.0
    %6050 = vmatprep.subr.mxu0 0.0
    %6051 = vmatpush1.msra.mxu0 0.0
    %6052 = vmatprep.subr.mxu0 0.0
    %6053 = vmatpush1.msra.mxu0 0.0
    %6054 = vmatprep.subr.mxu0 0.0
    %6055 = vmatpush1.msra.mxu0 0.0
    %6056 = vmatprep.subr.mxu0 0.0
    %6057 = vmatpush1.msra.mxu0 0.0
    %6058 = vmatprep.subr.mxu0 0.0
    %6059 = vmatpush1.msra.mxu0 0.0
    %6060 = vmatprep.subr.mxu0 0.0
    %6061 = vmatpush1.msra.mxu0 0.0
    %6062 = vmatprep.subr.mxu0 0.0
    %6063 = vmatpush1.msra.mxu0 0.0
    %6064 = vmatprep.subr.mxu0 0.0
    %6065 = vmatpush1.msra.mxu0 0.0
    %6066 = vmatprep.subr.mxu0 0.0
    %6067 = vmatpush1.msra.mxu0 0.0
    %6068 = vmatprep.subr.mxu0 0.0
    %6069 = vmatpush1.msra.mxu0 0.0
    %6070 = vmatprep.subr.mxu0 0.0
    %6071 = vmatpush1.msra.mxu0 0.0
    %6072 = vmatprep.subr.mxu0 0.0
    %6073 = vmatpush1.msra.mxu0 0.0
    %6074 = vmatprep.subr.mxu0 0.0
    %6075 = vmatpush1.msra.mxu0 0.0
    %6076 = vmatprep.subr.mxu0 0.0
    %6077 = vmatpush1.msra.mxu0 0.0
    %6078 = vmatprep.subr.mxu0 0.0
    %6079 = vmatpush1.msra.mxu0 0.0
    %6080 = vmatprep.subr.mxu0 0.0
    %6081 = vmatpush1.msra.mxu0 0.0
    %6082 = vmatprep.subr.mxu0 0.0
    %6083 = vmatpush1.msra.mxu0 0.0
    %6084 = vmatprep.mubr.f32.mxu0 0.0
    %6085 = vmatmul.mubr.f32.gmra.mrb[0].mxu0 %v6018
    %v6086 = vpop.f32.mrb[0].mxu0
    %v6087 = vadd.f32 0.0, %v6086
    %v6088 = vpop.f32.mrb[0].mxu0
    %6089 = vdwg.mxu0
    %v6091 = vsel %vm179, %v6087, 0
    %6093 = vmatprep.subr.mxu0 0.0
    %6094 = vmatpush1.msra.mxu0 %v5100
    %6095 = vmatprep.subr.mxu0 0.0
    %6096 = vmatpush1.msra.mxu0 0.0
    %6097 = vmatprep.subr.mxu0 0.0
    %6098 = vmatpush1.msra.mxu0 0.0
    %6099 = vmatprep.subr.mxu0 0.0
    %6100 = vmatpush1.msra.mxu0 0.0
    %6101 = vmatprep.subr.mxu0 0.0
    %6102 = vmatpush1.msra.mxu0 0.0
    %6103 = vmatprep.subr.mxu0 0.0
    %6104 = vmatpush1.msra.mxu0 0.0
    %6105 = vmatprep.subr.mxu0 0.0
    %6106 = vmatpush1.msra.mxu0 0.0
    %6107 = vmatprep.subr.mxu0 0.0
    %6108 = vmatpush1.msra.mxu0 0.0
    %6109 = vmatprep.subr.mxu0 0.0
    %6110 = vmatpush1.msra.mxu0 0.0
    %6111 = vmatprep.subr.mxu0 0.0
    %6112 = vmatpush1.msra.mxu0 0.0
    %6113 = vmatprep.subr.mxu0 0.0
    %6114 = vmatpush1.msra.mxu0 0.0
    %6115 = vmatprep.subr.mxu0 0.0
    %6116 = vmatpush1.msra.mxu0 0.0
    %6117 = vmatprep.subr.mxu0 0.0
    %6118 = vmatpush1.msra.mxu0 0.0
    %6119 = vmatprep.subr.mxu0 0.0
    %6120 = vmatpush1.msra.mxu0 0.0
    %6121 = vmatprep.subr.mxu0 0.0
    %6122 = vmatpush1.msra.mxu0 0.0
    %6123 = vmatprep.subr.mxu0 0.0
    %6124 = vmatpush1.msra.mxu0 0.0
    %6125 = vmatprep.subr.mxu0 0.0
    %6126 = vmatpush1.msra.mxu0 0.0
    %6127 = vmatprep.subr.mxu0 0.0
    %6128 = vmatpush1.msra.mxu0 0.0
    %6129 = vmatprep.subr.mxu0 0.0
    %6130 = vmatpush1.msra.mxu0 0.0
    %6131 = vmatprep.subr.mxu0 0.0
    %6132 = vmatpush1.msra.mxu0 0.0
    %6133 = vmatprep.subr.mxu0 0.0
    %6134 = vmatpush1.msra.mxu0 0.0
    %6135 = vmatprep.subr.mxu0 0.0
    %6136 = vmatpush1.msra.mxu0 0.0
    %6137 = vmatprep.subr.mxu0 0.0
    %6138 = vmatpush1.msra.mxu0 0.0
    %6139 = vmatprep.subr.mxu0 0.0
    %6140 = vmatpush1.msra.mxu0 0.0
    %6141 = vmatprep.subr.mxu0 0.0
    %6142 = vmatpush1.msra.mxu0 0.0
    %6143 = vmatprep.subr.mxu0 0.0
    %6144 = vmatpush1.msra.mxu0 0.0
    %6145 = vmatprep.subr.mxu0 0.0
    %6146 = vmatpush1.msra.mxu0 0.0
    %6147 = vmatprep.subr.mxu0 0.0
    %6148 = vmatpush1.msra.mxu0 0.0
    %6149 = vmatprep.subr.mxu0 0.0
    %6150 = vmatpush1.msra.mxu0 0.0
    %6151 = vmatprep.subr.mxu0 0.0
    %6152 = vmatpush1.msra.mxu0 0.0
    %6153 = vmatprep.subr.mxu0 0.0
    %6154 = vmatpush1.msra.mxu0 0.0
    %6155 = vmatprep.subr.mxu0 0.0
    %6156 = vmatpush1.msra.mxu0 0.0
    %6157 = vmatprep.mubr.f32.mxu0 0.0
    %6158 = vmatmul.mubr.f32.gmra.mrb[0].mxu0 %v6091
    %v6159 = vpop.f32.mrb[0].mxu0
    %v6160 = vadd.f32 0.0, %v6159
    %v6161 = vpop.f32.mrb[0].mxu0
    %6162 = vdwg.mxu0
    %v6164 = vsel %vm179, %v6008, 0
    %6166 = vmatprep.subr.mxu0 0.0
    %6167 = vmatpush1.msra.mxu0 %v5020
    %6168 = vmatprep.subr.mxu0 0.0
    %6169 = vmatpush1.msra.mxu0 0.0
    %6170 = vmatprep.subr.mxu0 0.0
    %6171 = vmatpush1.msra.mxu0 0.0
    %6172 = vmatprep.subr.mxu0 0.0
    %6173 = vmatpush1.msra.mxu0 0.0
    %6174 = vmatprep.subr.mxu0 0.0
    %6175 = vmatpush1.msra.mxu0 0.0
    %6176 = vmatprep.subr.mxu0 0.0
    %6177 = vmatpush1.msra.mxu0 0.0
    %6178 = vmatprep.subr.mxu0 0.0
    %6179 = vmatpush1.msra.mxu0 0.0
    %6180 = vmatprep.subr.mxu0 0.0
    %6181 = vmatpush1.msra.mxu0 0.0
    %6182 = vmatprep.subr.mxu0 0.0
    %6183 = vmatpush1.msra.mxu0 0.0
    %6184 = vmatprep.subr.mxu0 0.0
    %6185 = vmatpush1.msra.mxu0 0.0
    %6186 = vmatprep.subr.mxu0 0.0
    %6187 = vmatpush1.msra.mxu0 0.0
    %6188 = vmatprep.subr.mxu0 0.0
    %6189 = vmatpush1.msra.mxu0 0.0
    %6190 = vmatprep.subr.mxu0 0.0
    %6191 = vmatpush1.msra.mxu0 0.0
    %6192 = vmatprep.subr.mxu0 0.0
    %6193 = vmatpush1.msra.mxu0 0.0
    %6194 = vmatprep.subr.mxu0 0.0
    %6195 = vmatpush1.msra.mxu0 0.0
    %6196 = vmatprep.subr.mxu0 0.0
    %6197 = vmatpush1.msra.mxu0 0.0
    %6198 = vmatprep.subr.mxu0 0.0
    %6199 = vmatpush1.msra.mxu0 0.0
    %6200 = vmatprep.subr.mxu0 0.0
    %6201 = vmatpush1.msra.mxu0 0.0
    %6202 = vmatprep.subr.mxu0 0.0
    %6203 = vmatpush1.msra.mxu0 0.0
    %6204 = vmatprep.subr.mxu0 0.0
    %6205 = vmatpush1.msra.mxu0 0.0
    %6206 = vmatprep.subr.mxu0 0.0
    %6207 = vmatpush1.msra.mxu0 0.0
    %6208 = vmatprep.subr.mxu0 0.0
    %6209 = vmatpush1.msra.mxu0 0.0
    %6210 = vmatprep.subr.mxu0 0.0
    %6211 = vmatpush1.msra.mxu0 0.0
    %6212 = vmatprep.subr.mxu0 0.0
    %6213 = vmatpush1.msra.mxu0 0.0
    %6214 = vmatprep.subr.mxu0 0.0
    %6215 = vmatpush1.msra.mxu0 0.0
    %6216 = vmatprep.subr.mxu0 0.0
    %6217 = vmatpush1.msra.mxu0 0.0
    %6218 = vmatprep.subr.mxu0 0.0
    %6219 = vmatpush1.msra.mxu0 0.0
    %6220 = vmatprep.subr.mxu0 0.0
    %6221 = vmatpush1.msra.mxu0 0.0
    %6222 = vmatprep.subr.mxu0 0.0
    %6223 = vmatpush1.msra.mxu0 0.0
    %6224 = vmatprep.subr.mxu0 0.0
    %6225 = vmatpush1.msra.mxu0 0.0
    %6226 = vmatprep.subr.mxu0 0.0
    %6227 = vmatpush1.msra.mxu0 0.0
    %6228 = vmatprep.subr.mxu0 0.0
    %6229 = vmatpush1.msra.mxu0 0.0
    %6230 = vmatprep.mubr.f32.mxu0 0.0
    %6231 = vmatmul.mubr.f32.gmra.mrb[0].mxu0 %v6164
    %v6232 = vpop.f32.mrb[0].mxu0
    %v6233 = vadd.f32 %v6160, %v6232
    %v6234 = vpop.f32.mrb[0].mxu0
    %6235 = vdwg.mxu0
    %6236 = vrot.lane.b32.xlu0 %v4557, 80
    %v6237 = vpop.permute.xlu0 %6236
    %6238 = vrot.lane.b32.xlu0 %v4562, 80
    %v6239 = vpop.permute.xlu0 %6238
    %v6243 = vsel %vm2670, %v5930, 0
    %6245 = vmatprep.subr.mxu0 0.0
    %6246 = vmatpush1.msra.mxu0 %v6237
    %6247 = vmatprep.subr.mxu0 0.0
    %6248 = vmatpush1.msra.mxu0 %v6239
    %6249 = vmatprep.subr.mxu0 0.0
    %6250 = vmatpush1.msra.mxu0 0.0
    %6251 = vmatprep.subr.mxu0 0.0
    %6252 = vmatpush1.msra.mxu0 0.0
    %6253 = vmatprep.subr.mxu0 0.0
    %6254 = vmatpush1.msra.mxu0 0.0
    %6255 = vmatprep.subr.mxu0 0.0
    %6256 = vmatpush1.msra.mxu0 0.0
    %6257 = vmatprep.subr.mxu0 0.0
    %6258 = vmatpush1.msra.mxu0 0.0
    %6259 = vmatprep.subr.mxu0 0.0
    %6260 = vmatpush1.msra.mxu0 0.0
    %6261 = vmatprep.subr.mxu0 0.0
    %6262 = vmatpush1.msra.mxu0 0.0
    %6263 = vmatprep.subr.mxu0 0.0
    %6264 = vmatpush1.msra.mxu0 0.0
    %6265 = vmatprep.subr.mxu0 0.0
    %6266 = vmatpush1.msra.mxu0 0.0
    %6267 = vmatprep.subr.mxu0 0.0
    %6268 = vmatpush1.msra.mxu0 0.0
    %6269 = vmatprep.subr.mxu0 0.0
    %6270 = vmatpush1.msra.mxu0 0.0
    %6271 = vmatprep.subr.mxu0 0.0
    %6272 = vmatpush1.msra.mxu0 0.0
    %6273 = vmatprep.subr.mxu0 0.0
    %6274 = vmatpush1.msra.mxu0 0.0
    %6275 = vmatprep.subr.mxu0 0.0
    %6276 = vmatpush1.msra.mxu0 0.0
    %6277 = vmatprep.subr.mxu0 0.0
    %6278 = vmatpush1.msra.mxu0 0.0
    %6279 = vmatprep.subr.mxu0 0.0
    %6280 = vmatpush1.msra.mxu0 0.0
    %6281 = vmatprep.subr.mxu0 0.0
    %6282 = vmatpush1.msra.mxu0 0.0
    %6283 = vmatprep.subr.mxu0 0.0
    %6284 = vmatpush1.msra.mxu0 0.0
    %6285 = vmatprep.subr.mxu0 0.0
    %6286 = vmatpush1.msra.mxu0 0.0
    %6287 = vmatprep.subr.mxu0 0.0
    %6288 = vmatpush1.msra.mxu0 0.0
    %6289 = vmatprep.subr.mxu0 0.0
    %6290 = vmatpush1.msra.mxu0 0.0
    %6291 = vmatprep.subr.mxu0 0.0
    %6292 = vmatpush1.msra.mxu0 0.0
    %6293 = vmatprep.subr.mxu0 0.0
    %6294 = vmatpush1.msra.mxu0 0.0
    %6295 = vmatprep.subr.mxu0 0.0
    %6296 = vmatpush1.msra.mxu0 0.0
    %6297 = vmatprep.subr.mxu0 0.0
    %6298 = vmatpush1.msra.mxu0 0.0
    %6299 = vmatprep.subr.mxu0 0.0
    %6300 = vmatpush1.msra.mxu0 0.0
    %6301 = vmatprep.subr.mxu0 0.0
    %6302 = vmatpush1.msra.mxu0 0.0
    %6303 = vmatprep.subr.mxu0 0.0
    %6304 = vmatpush1.msra.mxu0 0.0
    %6305 = vmatprep.subr.mxu0 0.0
    %6306 = vmatpush1.msra.mxu0 0.0
    %6307 = vmatprep.subr.mxu0 0.0
    %6308 = vmatpush1.msra.mxu0 0.0
    %6309 = vmatprep.mubr.f32.mxu0 0.0
    %6310 = vmatmul.mubr.f32.gmra.mrb[0].mxu0 %v6243
    %v6311 = vpop.f32.mrb[0].mxu0
    %v6312 = vadd.f32 0.0, %v6311
    %v6313 = vpop.f32.mrb[0].mxu0
    %6314 = vdwg.mxu0
    %v6316 = vsel %vm179, %v6312, 0
    %6318 = vmatprep.subr.mxu0 0.0
    %6319 = vmatpush1.msra.mxu0 %v5326
    %6320 = vmatprep.subr.mxu0 0.0
    %6321 = vmatpush1.msra.mxu0 0.0
    %6322 = vmatprep.subr.mxu0 0.0
    %6323 = vmatpush1.msra.mxu0 0.0
    %6324 = vmatprep.subr.mxu0 0.0
    %6325 = vmatpush1.msra.mxu0 0.0
    %6326 = vmatprep.subr.mxu0 0.0
    %6327 = vmatpush1.msra.mxu0 0.0
    %6328 = vmatprep.subr.mxu0 0.0
    %6329 = vmatpush1.msra.mxu0 0.0
    %6330 = vmatprep.subr.mxu0 0.0
    %6331 = vmatpush1.msra.mxu0 0.0
    %6332 = vmatprep.subr.mxu0 0.0
    %6333 = vmatpush1.msra.mxu0 0.0
    %6334 = vmatprep.subr.mxu0 0.0
    %6335 = vmatpush1.msra.mxu0 0.0
    %6336 = vmatprep.subr.mxu0 0.0
    %6337 = vmatpush1.msra.mxu0 0.0
    %6338 = vmatprep.subr.mxu0 0.0
    %6339 = vmatpush1.msra.mxu0 0.0
    %6340 = vmatprep.subr.mxu0 0.0
    %6341 = vmatpush1.msra.mxu0 0.0
    %6342 = vmatprep.subr.mxu0 0.0
    %6343 = vmatpush1.msra.mxu0 0.0
    %6344 = vmatprep.subr.mxu0 0.0
    %6345 = vmatpush1.msra.mxu0 0.0
    %6346 = vmatprep.subr.mxu0 0.0
    %6347 = vmatpush1.msra.mxu0 0.0
    %6348 = vmatprep.subr.mxu0 0.0
    %6349 = vmatpush1.msra.mxu0 0.0
    %6350 = vmatprep.subr.mxu0 0.0
    %6351 = vmatpush1.msra.mxu0 0.0
    %6352 = vmatprep.subr.mxu0 0.0
    %6353 = vmatpush1.msra.mxu0 0.0
    %6354 = vmatprep.subr.mxu0 0.0
    %6355 = vmatpush1.msra.mxu0 0.0
    %6356 = vmatprep.subr.mxu0 0.0
    %6357 = vmatpush1.msra.mxu0 0.0
    %6358 = vmatprep.subr.mxu0 0.0
    %6359 = vmatpush1.msra.mxu0 0.0
    %6360 = vmatprep.subr.mxu0 0.0
    %6361 = vmatpush1.msra.mxu0 0.0
    %6362 = vmatprep.subr.mxu0 0.0
    %6363 = vmatpush1.msra.mxu0 0.0
    %6364 = vmatprep.subr.mxu0 0.0
    %6365 = vmatpush1.msra.mxu0 0.0
    %6366 = vmatprep.subr.mxu0 0.0
    %6367 = vmatpush1.msra.mxu0 0.0
    %6368 = vmatprep.subr.mxu0 0.0
    %6369 = vmatpush1.msra.mxu0 0.0
    %6370 = vmatprep.subr.mxu0 0.0
    %6371 = vmatpush1.msra.mxu0 0.0
    %6372 = vmatprep.subr.mxu0 0.0
    %6373 = vmatpush1.msra.mxu0 0.0
    %6374 = vmatprep.subr.mxu0 0.0
    %6375 = vmatpush1.msra.mxu0 0.0
    %6376 = vmatprep.subr.mxu0 0.0
    %6377 = vmatpush1.msra.mxu0 0.0
    %6378 = vmatprep.subr.mxu0 0.0
    %6379 = vmatpush1.msra.mxu0 0.0
    %6380 = vmatprep.subr.mxu0 0.0
    %6381 = vmatpush1.msra.mxu0 0.0
    %6382 = vmatprep.mubr.f32.mxu0 0.0
    %6383 = vmatmul.mubr.f32.gmra.mrb[0].mxu0 %v6316
    %v6384 = vpop.f32.mrb[0].mxu0
    %v6385 = vadd.f32 0.0, %v6384
    %v6386 = vpop.f32.mrb[0].mxu0
    %6387 = vdwg.mxu0
    %v6388 = vadd.f32 %v6233, %v6385
    %6389 = vrot.lane.b32.xlu0 %v4557, 72
    %v6390 = vpop.permute.xlu0 %6389
    %6391 = vrot.lane.b32.xlu0 %v4562, 72
    %v6392 = vpop.permute.xlu0 %6391
    %v6396 = vsel %vm2670, %v5931, 0
    %6398 = vmatprep.subr.mxu0 0.0
    %6399 = vmatpush1.msra.mxu0 %v6390
    %6400 = vmatprep.subr.mxu0 0.0
    %6401 = vmatpush1.msra.mxu0 %v6392
    %6402 = vmatprep.subr.mxu0 0.0
    %6403 = vmatpush1.msra.mxu0 0.0
    %6404 = vmatprep.subr.mxu0 0.0
    %6405 = vmatpush1.msra.mxu0 0.0
    %6406 = vmatprep.subr.mxu0 0.0
    %6407 = vmatpush1.msra.mxu0 0.0
    %6408 = vmatprep.subr.mxu0 0.0
    %6409 = vmatpush1.msra.mxu0 0.0
    %6410 = vmatprep.subr.mxu0 0.0
    %6411 = vmatpush1.msra.mxu0 0.0
    %6412 = vmatprep.subr.mxu0 0.0
    %6413 = vmatpush1.msra.mxu0 0.0
    %6414 = vmatprep.subr.mxu0 0.0
    %6415 = vmatpush1.msra.mxu0 0.0
    %6416 = vmatprep.subr.mxu0 0.0
    %6417 = vmatpush1.msra.mxu0 0.0
    %6418 = vmatprep.subr.mxu0 0.0
    %6419 = vmatpush1.msra.mxu0 0.0
    %6420 = vmatprep.subr.mxu0 0.0
    %6421 = vmatpush1.msra.mxu0 0.0
    %6422 = vmatprep.subr.mxu0 0.0
    %6423 = vmatpush1.msra.mxu0 0.0
    %6424 = vmatprep.subr.mxu0 0.0
    %6425 = vmatpush1.msra.mxu0 0.0
    %6426 = vmatprep.subr.mxu0 0.0
    %6427 = vmatpush1.msra.mxu0 0.0
    %6428 = vmatprep.subr.mxu0 0.0
    %6429 = vmatpush1.msra.mxu0 0.0
    %6430 = vmatprep.subr.mxu0 0.0
    %6431 = vmatpush1.msra.mxu0 0.0
    %6432 = vmatprep.subr.mxu0 0.0
    %6433 = vmatpush1.msra.mxu0 0.0
    %6434 = vmatprep.subr.mxu0 0.0
    %6435 = vmatpush1.msra.mxu0 0.0
    %6436 = vmatprep.subr.mxu0 0.0
    %6437 = vmatpush1.msra.mxu0 0.0
    %6438 = vmatprep.subr.mxu0 0.0
    %6439 = vmatpush1.msra.mxu0 0.0
    %6440 = vmatprep.subr.mxu0 0.0
    %6441 = vmatpush1.msra.mxu0 0.0
    %6442 = vmatprep.subr.mxu0 0.0
    %6443 = vmatpush1.msra.mxu0 0.0
    %6444 = vmatprep.subr.mxu0 0.0
    %6445 = vmatpush1.msra.mxu0 0.0
    %6446 = vmatprep.subr.mxu0 0.0
    %6447 = vmatpush1.msra.mxu0 0.0
    %6448 = vmatprep.subr.mxu0 0.0
    %6449 = vmatpush1.msra.mxu0 0.0
    %6450 = vmatprep.subr.mxu0 0.0
    %6451 = vmatpush1.msra.mxu0 0.0
    %6452 = vmatprep.subr.mxu0 0.0
    %6453 = vmatpush1.msra.mxu0 0.0
    %6454 = vmatprep.subr.mxu0 0.0
    %6455 = vmatpush1.msra.mxu0 0.0
    %6456 = vmatprep.subr.mxu0 0.0
    %6457 = vmatpush1.msra.mxu0 0.0
    %6458 = vmatprep.subr.mxu0 0.0
    %6459 = vmatpush1.msra.mxu0 0.0
    %6460 = vmatprep.subr.mxu0 0.0
    %6461 = vmatpush1.msra.mxu0 0.0
    %6462 = vmatprep.mubr.f32.mxu0 0.0
    %6463 = vmatmul.mubr.f32.gmra.mrb[0].mxu0 %v6396
    %v6464 = vpop.f32.mrb[0].mxu0
    %v6465 = vadd.f32 0.0, %v6464
    %v6466 = vpop.f32.mrb[0].mxu0
    %6467 = vdwg.mxu0
    %v6469 = vsel %vm179, %v6465, 0
    %6471 = vmatprep.subr.mxu0 0.0
    %6472 = vmatpush1.msra.mxu0 %v5480
    %6473 = vmatprep.subr.mxu0 0.0
    %6474 = vmatpush1.msra.mxu0 0.0
    %6475 = vmatprep.subr.mxu0 0.0
    %6476 = vmatpush1.msra.mxu0 0.0
    %6477 = vmatprep.subr.mxu0 0.0
    %6478 = vmatpush1.msra.mxu0 0.0
    %6479 = vmatprep.subr.mxu0 0.0
    %6480 = vmatpush1.msra.mxu0 0.0
    %6481 = vmatprep.subr.mxu0 0.0
    %6482 = vmatpush1.msra.mxu0 0.0
    %6483 = vmatprep.subr.mxu0 0.0
    %6484 = vmatpush1.msra.mxu0 0.0
    %6485 = vmatprep.subr.mxu0 0.0
    %6486 = vmatpush1.msra.mxu0 0.0
    %6487 = vmatprep.subr.mxu0 0.0
    %6488 = vmatpush1.msra.mxu0 0.0
    %6489 = vmatprep.subr.mxu0 0.0
    %6490 = vmatpush1.msra.mxu0 0.0
    %6491 = vmatprep.subr.mxu0 0.0
    %6492 = vmatpush1.msra.mxu0 0.0
    %6493 = vmatprep.subr.mxu0 0.0
    %6494 = vmatpush1.msra.mxu0 0.0
    %6495 = vmatprep.subr.mxu0 0.0
    %6496 = vmatpush1.msra.mxu0 0.0
    %6497 = vmatprep.subr.mxu0 0.0
    %6498 = vmatpush1.msra.mxu0 0.0
    %6499 = vmatprep.subr.mxu0 0.0
    %6500 = vmatpush1.msra.mxu0 0.0
    %6501 = vmatprep.subr.mxu0 0.0
    %6502 = vmatpush1.msra.mxu0 0.0
    %6503 = vmatprep.subr.mxu0 0.0
    %6504 = vmatpush1.msra.mxu0 0.0
    %6505 = vmatprep.subr.mxu0 0.0
    %6506 = vmatpush1.msra.mxu0 0.0
    %6507 = vmatprep.subr.mxu0 0.0
    %6508 = vmatpush1.msra.mxu0 0.0
    %6509 = vmatprep.subr.mxu0 0.0
    %6510 = vmatpush1.msra.mxu0 0.0
    %6511 = vmatprep.subr.mxu0 0.0
    %6512 = vmatpush1.msra.mxu0 0.0
    %6513 = vmatprep.subr.mxu0 0.0
    %6514 = vmatpush1.msra.mxu0 0.0
    %6515 = vmatprep.subr.mxu0 0.0
    %6516 = vmatpush1.msra.mxu0 0.0
    %6517 = vmatprep.subr.mxu0 0.0
    %6518 = vmatpush1.msra.mxu0 0.0
    %6519 = vmatprep.subr.mxu0 0.0
    %6520 = vmatpush1.msra.mxu0 0.0
    %6521 = vmatprep.subr.mxu0 0.0
    %6522 = vmatpush1.msra.mxu0 0.0
    %6523 = vmatprep.subr.mxu0 0.0
    %6524 = vmatpush1.msra.mxu0 0.0
    %6525 = vmatprep.subr.mxu0 0.0
    %6526 = vmatpush1.msra.mxu0 0.0
    %6527 = vmatprep.subr.mxu0 0.0
    %6528 = vmatpush1.msra.mxu0 0.0
    %6529 = vmatprep.subr.mxu0 0.0
    %6530 = vmatpush1.msra.mxu0 0.0
    %6531 = vmatprep.subr.mxu0 0.0
    %6532 = vmatpush1.msra.mxu0 0.0
    %6533 = vmatprep.subr.mxu0 0.0
    %6534 = vmatpush1.msra.mxu0 0.0
    %6535 = vmatprep.mubr.f32.mxu0 0.0
    %6536 = vmatmul.mubr.f32.gmra.mrb[0].mxu0 %v6469
    %v6537 = vpop.f32.mrb[0].mxu0
    %v6538 = vadd.f32 0.0, %v6537
    %v6539 = vpop.f32.mrb[0].mxu0
    %6540 = vdwg.mxu0
    %v6541 = vadd.f32 %v6388, %v6538
    %v6542 = vld [vmem:[%s7 + $0xf] sm:$0x1]
    %v6543 = vlaneseq
    %v6544 = vshrl.u32 %v6543, 7
    %v6545 = vsub.s32 0, %v6544
    %v6546 = vrot.slane %v6542, %v6545
    %v6547 = vadd.f32 %v5554, %v6546
    %v6548 = vadd.f32 %v6541, %v6546
    %v6549 = vadd.f32 %v4323, %v6547
    %v6550 = vadd.f32 %v4324, %v6548
    %v6551 = vmul.f32 %v6549, %v6549
    %v6552 = vmul.f32 %v6550, %v6550
    %v6553 = vsel %vm42, %v6549, 0.0
    %6554 = vadd.xlane.f32.xlu0 %v6553
    %v6555 = vpop.xlane.xlu0 %6554
    %v6556 = vsel %vm42, %v6550, 0.0
    %6557 = vadd.xlane.f32.xlu0 %v6556
    %v6558 = vpop.xlane.xlu0 %6557
    %v6559 = vsel %vm42, %v6551, 0.0
    %6560 = vadd.xlane.f32.xlu0 %v6559
    %v6561 = vpop.xlane.xlu0 %6560
    %v6562 = vsel %vm42, %v6552, 0.0
    %6563 = vadd.xlane.f32.xlu0 %v6562
    %v6564 = vpop.xlane.xlu0 %6563
    %v6565 = vmul.f32 %v6555, 0.03125
    %v6566 = vmul.f32 %v6558, 0.03125
    %v6567 = vmul.f32 %v6561, 0.03125
    %v6568 = vmul.f32 %v6564, 0.03125
    %v6569 = vmul.f32 %v6565, %v6565
    %v6570 = vmul.f32 %v6566, %v6566
    %v6571 = vsub.f32 %v6567, %v6569
    %v6572 = vsub.f32 %v6568, %v6570
    %v6573 = vadd.f32 %v6571, 1e-06
    %v6574 = vadd.f32 %v6572, 1e-06
    %v6575 = vrsqrt.pop %v6573
    %v6576 = vrsqrt.pop %v6574
    %v6577 = vsub.f32 %v6549, %v6565
    %v6578 = vsub.f32 %v6550, %v6566
    %v6579 = vmul.f32 %v6577, %v6575
    %v6580 = vmul.f32 %v6578, %v6576
    %v6581 = vld [vmem:[%s7 + $0x6] sm:$0x1]
    %v6582 = vlaneseq
    %v6583 = vshrl.u32 %v6582, 7
    %v6584 = vsub.s32 0, %v6583
    %v6585 = vrot.slane %v6581, %v6584
    %v6586 = vmul.f32 %v6579, %v6585
    %v6587 = vmul.f32 %v6580, %v6585
    %v6588 = vld [vmem:[%s7 + $0x7] sm:$0x1]
    %v6589 = vlaneseq
    %v6590 = vshrl.u32 %v6589, 7
    %v6591 = vsub.s32 0, %v6590
    %v6592 = vrot.slane %v6588, %v6591
    %v6593 = vadd.f32 %v6586, %v6592
    %v6594 = vadd.f32 %v6587, %v6592
    %v6595 = vld [vmem:[%s6 + $0x100] sm:$0xff]
    %v6596 = vld [vmem:[%s6 + $0x108] sm:$0xff]
    %v6597 = vld [vmem:[%s6 + $0x110] sm:$0xff]
    %v6598 = vld [vmem:[%s6 + $0x118] sm:$0xff]
    %v6599 = vld [vmem:[%s7 + $0x10] sm:$0x1]
    %v6600 = vlaneseq
    %v6601 = vshrl.u32 %v6600, 7
    %v6602 = vsub.s32 0, %v6601
    %v6603 = vrot.slane %v6599, %v6602
    %v6605 = vsel %vm42, %v6593, 0
    %v6608 = vsel %vm42, %v6594, 0
    %6610 = vmatprep.subr.mxu0 0.0
    %6611 = vmatpush1.msra.mxu0 %v6595
    %6612 = vmatprep.subr.mxu0 0.0
    %6613 = vmatpush1.msra.mxu0 %v6596
    %6614 = vmatprep.subr.mxu0 0.0
    %6615 = vmatpush1.msra.mxu0 %v6597
    %6616 = vmatprep.subr.mxu0 0.0
    %6617 = vmatpush1.msra.mxu0 %v6598
    %6618 = vmatprep.subr.mxu0 0.0
    %6619 = vmatpush1.msra.mxu0 0.0
    %6620 = vmatprep.subr.mxu0 0.0
    %6621 = vmatpush1.msra.mxu0 0.0
    %6622 = vmatprep.subr.mxu0 0.0
    %6623 = vmatpush1.msra.mxu0 0.0
    %6624 = vmatprep.subr.mxu0 0.0
    %6625 = vmatpush1.msra.mxu0 0.0
    %6626 = vmatprep.subr.mxu0 0.0
    %6627 = vmatpush1.msra.mxu0 0.0
    %6628 = vmatprep.subr.mxu0 0.0
    %6629 = vmatpush1.msra.mxu0 0.0
    %6630 = vmatprep.subr.mxu0 0.0
    %6631 = vmatpush1.msra.mxu0 0.0
    %6632 = vmatprep.subr.mxu0 0.0
    %6633 = vmatpush1.msra.mxu0 0.0
    %6634 = vmatprep.subr.mxu0 0.0
    %6635 = vmatpush1.msra.mxu0 0.0
    %6636 = vmatprep.subr.mxu0 0.0
    %6637 = vmatpush1.msra.mxu0 0.0
    %6638 = vmatprep.subr.mxu0 0.0
    %6639 = vmatpush1.msra.mxu0 0.0
    %6640 = vmatprep.subr.mxu0 0.0
    %6641 = vmatpush1.msra.mxu0 0.0
    %6642 = vmatprep.subr.mxu0 0.0
    %6643 = vmatpush1.msra.mxu0 0.0
    %6644 = vmatprep.subr.mxu0 0.0
    %6645 = vmatpush1.msra.mxu0 0.0
    %6646 = vmatprep.subr.mxu0 0.0
    %6647 = vmatpush1.msra.mxu0 0.0
    %6648 = vmatprep.subr.mxu0 0.0
    %6649 = vmatpush1.msra.mxu0 0.0
    %6650 = vmatprep.subr.mxu0 0.0
    %6651 = vmatpush1.msra.mxu0 0.0
    %6652 = vmatprep.subr.mxu0 0.0
    %6653 = vmatpush1.msra.mxu0 0.0
    %6654 = vmatprep.subr.mxu0 0.0
    %6655 = vmatpush1.msra.mxu0 0.0
    %6656 = vmatprep.subr.mxu0 0.0
    %6657 = vmatpush1.msra.mxu0 0.0
    %6658 = vmatprep.subr.mxu0 0.0
    %6659 = vmatpush1.msra.mxu0 0.0
    %6660 = vmatprep.subr.mxu0 0.0
    %6661 = vmatpush1.msra.mxu0 0.0
    %6662 = vmatprep.subr.mxu0 0.0
    %6663 = vmatpush1.msra.mxu0 0.0
    %6664 = vmatprep.subr.mxu0 0.0
    %6665 = vmatpush1.msra.mxu0 0.0
    %6666 = vmatprep.subr.mxu0 0.0
    %6667 = vmatpush1.msra.mxu0 0.0
    %6668 = vmatprep.subr.mxu0 0.0
    %6669 = vmatpush1.msra.mxu0 0.0
    %6670 = vmatprep.subr.mxu0 0.0
    %6671 = vmatpush1.msra.mxu0 0.0
    %6672 = vmatprep.subr.mxu0 0.0
    %6673 = vmatpush1.msra.mxu0 0.0
    %6674 = vmatprep.mubr.f32.mxu0 0.0
    %6675 = vmatmul.mubr.f32.gmra.mrb[0].mxu0 %v6605
    %v6676 = vpop.f32.mrb[0].mxu0
    %v6677 = vadd.f32 %v6603, %v6676
    %v6678 = vpop.f32.mrb[0].mxu0
    %6679 = vmatprep.mubr.f32.mxu0 0.0
    %6680 = vmatmul.mubr.f32.gmra.mrb[0].mxu0 %v6608
    %v6681 = vpop.f32.mrb[0].mxu0
    %v6682 = vadd.f32 %v6603, %v6681
    %v6683 = vpop.f32.mrb[0].mxu0
    %6684 = vdwg.mxu0
    %v6685 = vmax.f32 %v6677, 0.0
    %v6686 = vmax.f32 %v6682, 0.0
    %v6687 = vld [vmem:[%s6 + $0x120] sm:$0xff]
    %v6688 = vld [vmem:[%s6 + $0x128] sm:$0xff]
    %v6689 = vld [vmem:[%s6 + $0x130] sm:$0xff]
    %v6690 = vld [vmem:[%s6 + $0x138] sm:$0xff]
    %v6691 = vld [vmem:[%s6 + $0x140] sm:$0xff]
    %v6692 = vld [vmem:[%s6 + $0x148] sm:$0xff]
    %v6693 = vld [vmem:[%s6 + $0x150] sm:$0xff]
    %v6694 = vld [vmem:[%s6 + $0x158] sm:$0xff]
    %vm6695 = vcmask 523264
    %v6697 = vsel %vm6695, %v6685, 0
    %v6700 = vsel %vm6695, %v6686, 0
    %6702 = vmatprep.subr.mxu0 0.0
    %6703 = vmatpush1.msra.mxu0 %v6687
    %6704 = vmatprep.subr.mxu0 0.0
    %6705 = vmatpush1.msra.mxu0 %v6688
    %6706 = vmatprep.subr.mxu0 0.0
    %6707 = vmatpush1.msra.mxu0 %v6689
    %6708 = vmatprep.subr.mxu0 0.0
    %6709 = vmatpush1.msra.mxu0 %v6690
    %6710 = vmatprep.subr.mxu0 0.0
    %6711 = vmatpush1.msra.mxu0 %v6691
    %6712 = vmatprep.subr.mxu0 0.0
    %6713 = vmatpush1.msra.mxu0 %v6692
    %6714 = vmatprep.subr.mxu0 0.0
    %6715 = vmatpush1.msra.mxu0 %v6693
    %6716 = vmatprep.subr.mxu0 0.0
    %6717 = vmatpush1.msra.mxu0 %v6694
    %6718 = vmatprep.subr.mxu0 0.0
    %6719 = vmatpush1.msra.mxu0 0.0
    %6720 = vmatprep.subr.mxu0 0.0
    %6721 = vmatpush1.msra.mxu0 0.0
    %6722 = vmatprep.subr.mxu0 0.0
    %6723 = vmatpush1.msra.mxu0 0.0
    %6724 = vmatprep.subr.mxu0 0.0
    %6725 = vmatpush1.msra.mxu0 0.0
    %6726 = vmatprep.subr.mxu0 0.0
    %6727 = vmatpush1.msra.mxu0 0.0
    %6728 = vmatprep.subr.mxu0 0.0
    %6729 = vmatpush1.msra.mxu0 0.0
    %6730 = vmatprep.subr.mxu0 0.0
    %6731 = vmatpush1.msra.mxu0 0.0
    %6732 = vmatprep.subr.mxu0 0.0
    %6733 = vmatpush1.msra.mxu0 0.0
    %6734 = vmatprep.subr.mxu0 0.0
    %6735 = vmatpush1.msra.mxu0 0.0
    %6736 = vmatprep.subr.mxu0 0.0
    %6737 = vmatpush1.msra.mxu0 0.0
    %6738 = vmatprep.subr.mxu0 0.0
    %6739 = vmatpush1.msra.mxu0 0.0
    %6740 = vmatprep.subr.mxu0 0.0
    %6741 = vmatpush1.msra.mxu0 0.0
    %6742 = vmatprep.subr.mxu0 0.0
    %6743 = vmatpush1.msra.mxu0 0.0
    %6744 = vmatprep.subr.mxu0 0.0
    %6745 = vmatpush1.msra.mxu0 0.0
    %6746 = vmatprep.subr.mxu0 0.0
    %6747 = vmatpush1.msra.mxu0 0.0
    %6748 = vmatprep.subr.mxu0 0.0
    %6749 = vmatpush1.msra.mxu0 0.0
    %6750 = vmatprep.subr.mxu0 0.0
    %6751 = vmatpush1.msra.mxu0 0.0
    %6752 = vmatprep.subr.mxu0 0.0
    %6753 = vmatpush1.msra.mxu0 0.0
    %6754 = vmatprep.subr.mxu0 0.0
    %6755 = vmatpush1.msra.mxu0 0.0
    %6756 = vmatprep.subr.mxu0 0.0
    %6757 = vmatpush1.msra.mxu0 0.0
    %6758 = vmatprep.subr.mxu0 0.0
    %6759 = vmatpush1.msra.mxu0 0.0
    %6760 = vmatprep.subr.mxu0 0.0
    %6761 = vmatpush1.msra.mxu0 0.0
    %6762 = vmatprep.subr.mxu0 0.0
    %6763 = vmatpush1.msra.mxu0 0.0
    %6764 = vmatprep.subr.mxu0 0.0
    %6765 = vmatpush1.msra.mxu0 0.0
    %6766 = vmatprep.mubr.f32.mxu0 0.0
    %6767 = vmatmul.mubr.f32.gmra.mrb[0].mxu0 %v6697
    %v6768 = vpop.f32.mrb[0].mxu0
    %v6769 = vadd.f32 0.0, %v6768
    %v6770 = vpop.f32.mrb[0].mxu0
    %6771 = vmatprep.mubr.f32.mxu0 0.0
    %6772 = vmatmul.mubr.f32.gmra.mrb[0].mxu0 %v6700
    %v6773 = vpop.f32.mrb[0].mxu0
    %v6774 = vadd.f32 0.0, %v6773
    %v6775 = vpop.f32.mrb[0].mxu0
    %6776 = vdwg.mxu0
    %v6777 = vadd.f32 %v6549, %v6769
    %v6778 = vadd.f32 %v6550, %v6774
    %v6779 = vld [vmem:[%s7 + $0x11] sm:$0x1]
    %v6780 = vlaneseq
    %v6781 = vshrl.u32 %v6780, 7
    %v6782 = vsub.s32 0, %v6781
    %v6783 = vrot.slane %v6779, %v6782
    %v6784 = vadd.f32 %v6777, %v6783
    %v6785 = vadd.f32 %v6778, %v6783
    %6786 = vst.msk [vmem:[#allocation2] sm:$0xff] %vm42, %v6784
    %6787 = vst.msk [vmem:[#allocation2 + $0x8] sm:$0xff] %vm42, %v6785
    // Predicated region
    $region34: #{tpu_custom_call.1} parent=1 // pred_check
      _
    $region35: #{tpu_custom_call.1} parent=1 // pred_check_branch
      %6789 = sbr.rel (0) target = $region37
    $region36: #{tpu_custom_call.1} parent=1 // pred_region
      %s6791 = ssub.s32 256, 256
      %6792 = vsyncadd [#allocation3], %s6791
      %s6793 = sshll.u32 [#allocation2], 4
      %s6794 = int_to_ptr.vmem [resolvable:$true] %s6793
      %6799 = dma.vmem_to_hbm [thread:$0]  %s6794, 256, %s8, [#allocation3], 128, 128, 8
    $region37: #{tpu_custom_call.1} parent=1 // pred_fallthru
      _
    // Predicated region
    $region38: #{tpu_custom_call.1} parent=1 // pred_check
      _
    $region39: #{tpu_custom_call.1} parent=1 // pred_check_branch
      %6801 = sbr.rel (0) target = $region41
    $region40: #{tpu_custom_call.1} parent=1 // pred_region
      %6802 = dma.done [#allocation3], 256
    $region41: #{tpu_custom_call.1} parent=1 // pred_fallthru
      _
    %6803 = vsyncpa [#allocation3], 1

</llo_original>
